<compile_context>
chip_gen: v6e
topology: v6e:2x2x1
jax: 0.10.0
libtpu: 0.0.40
codegen_flags: <defaults>
</compile_context>

<pallas_src>
import functools
import numpy as np

import jax
import jax.numpy as jnp
from jax import lax
from jax.experimental import pallas as pl
from jax.experimental.pallas import tpu as pltpu

LN_EPS = 1e-5          # torch.nn.LayerNorm default
NEG_INF = -1e9         # out-of-window logit bias; exp() underflows to exactly 0 in f32


# ----------------------------- in-kernel math helpers -----------------------------

def _layernorm(x, gamma, beta):
    mu = jnp.mean(x, axis=-1, keepdims=True)
    var = jnp.mean((x - mu) ** 2, axis=-1, keepdims=True)
    return (x - mu) * lax.rsqrt(var + LN_EPS) * gamma + beta


def _gelu_exact(x):
    # torch.nn.GELU default (erf-based), computed in f32
    return 0.5 * x * (1.0 + lax.erf(x * (1.0 / np.sqrt(2.0))))


# ----------------------------- fused BasicLayer kernel -----------------------------

def _basic_layer_kernel(depth, num_heads, head_dim,
                        x_ref, bias_ref, g1_ref, be1_ref, wqkv_ref, bqkv_ref,
                        battn_ref, g2_ref, be2_ref, w1_ref, b1_ref, w2_ref, b2_ref,
                        o_ref):
    G, L, C = x_ref.shape
    R = G * L
    x = x_ref[...].reshape(R, C)                      # residual stream, f32, stays resident

    for d in range(depth):                            # static unroll over the layer's blocks
        # ---------- attention branch: x += proj(W-MSA(LN1(x))) ----------
        xn = _layernorm(x, g1_ref[d], be1_ref[d]).astype(jnp.bfloat16)
        # one fused MXU matmul: columns = [q*scale (C) | k (C) | per-head v@Wproj (H*C)]
        qkv = jnp.dot(xn, wqkv_ref[d],
                      preferred_element_type=jnp.float32) + bqkv_ref[d]   # (R, 2C + H*C)
        x = x + battn_ref[d]                          # folded (b_v @ W_proj + b_proj)

        for h in range(num_heads):
            q = qkv[:, h * head_dim:(h + 1) * head_dim].reshape(G, L, head_dim)
            k = qkv[:, C + h * head_dim:C + (h + 1) * head_dim].reshape(G, L, head_dim)
            vp = qkv[:, 2 * C + h * C:2 * C + (h + 1) * C]                # already projected
            vp = vp.astype(jnp.bfloat16).reshape(G, L, C)

            # per-window structure lives entirely in bias_ref; attention is batched over images
            s = lax.dot_general(q.astype(jnp.bfloat16), k.astype(jnp.bfloat16),
                                (((2,), (2,)), ((0,), (0,))),
                                preferred_element_type=jnp.float32)       # (G, L, L)
            s = s + bias_ref[d, h]                    # rel-pos bias + shift mask + window mask
            s = s - jnp.max(s, axis=-1, keepdims=True)
            p = jnp.exp(s)                            # f32 softmax statistics
            p = p * pl.reciprocal(jnp.sum(p, axis=-1, keepdims=True), approx=True)

            x = x + lax.dot_general(p.astype(jnp.bfloat16), vp,
                                    (((2,), (1,)), ((0,), (0,))),
                                    preferred_element_type=jnp.float32).reshape(R, C)

        # ---------- MLP branch: x += fc2(gelu(fc1(LN2(x)))) ----------
        zn = _layernorm(x, g2_ref[d], be2_ref[d]).astype(jnp.bfloat16)
        hid = jnp.dot(zn, w1_ref[d], preferred_element_type=jnp.float32) + b1_ref[d]
        hid = _gelu_exact(hid)
        x = x + jnp.dot(hid.astype(jnp.bfloat16), w2_ref[d],
                        preferred_element_type=jnp.float32) + b2_ref[d]

    o_ref[...] = x.reshape(G, L, C)


# ----------------------------- pallas_call wrapper -----------------------------

def basic_layer_pallas(x, p, num_heads, images_per_step=None):
    """x: (B, L, C) f32 token slab; p: packed per-layer params (leading depth dim)."""
    B, L, C = x.shape
    depth = p["bias"].shape[0]
    head_dim = C // num_heads

    if images_per_step is None:
        # Fold the batch so one grid step feeds >=128 rows to the MXU (single-TC v5e/v6e).
        # On v7x (2 TCs) pass images_per_step=1 to keep the "parallel" grid axis busy on
        # both cores when B is small.
        g = max(1, min(B, max(1, 128 // L)))
        while B % g:
            g -= 1
        images_per_step = g
    G = images_per_step
    assert B % G == 0

    def fixed(shape):
        nd = len(shape)
        return pl.BlockSpec(shape, lambda i, _nd=nd: (0,) * _nd)

    in_specs = [
        pl.BlockSpec((G, L, C), lambda i: (i, 0, 0)),     # token slab for this group of images
        fixed(p["bias"].shape),                           # (depth, heads, L, L) logit bias
        fixed(p["g1"].shape), fixed(p["be1"].shape),      # LN1
        fixed(p["wqkv"].shape), fixed(p["bqkv"].shape),   # fused qkv' weight / bias (bf16 / f32)
        fixed(p["battn"].shape),                          # folded attention output bias
        fixed(p["g2"].shape), fixed(p["be2"].shape),      # LN2
        fixed(p["w1"].shape), fixed(p["b1"].shape),       # MLP fc1
        fixed(p["w2"].shape), fixed(p["b2"].shape),       # MLP fc2
    ]

    kernel = functools.partial(_basic_layer_kernel, depth, num_heads, head_dim)
    return pl.pallas_call(
        kernel,
        out_shape=jax.ShapeDtypeStruct((B, L, C), jnp.float32),
        grid=(B // G,),
        in_specs=in_specs,
        out_specs=pl.BlockSpec((G, L, C), lambda i: (i, 0, 0)),
        compiler_params=pltpu.CompilerParams(dimension_semantics=("parallel",)),
    )(x, p["bias"], p["g1"], p["be1"], p["wqkv"], p["bqkv"], p["battn"],
      p["g2"], p["be2"], p["w1"], p["b1"], p["w2"], p["b2"])


# ----------------------------- host-side structure helpers -----------------------------

def _relative_position_index(ws):
    coords = np.stack(np.meshgrid(np.arange(ws), np.arange(ws), indexing="ij"))
    cf = coords.reshape(2, -1)
    rel = cf[:, :, None] - cf[:, None, :]
    rel = rel.transpose(1, 2, 0).copy()
    rel[:, :, 0] += ws - 1
    rel[:, :, 1] += ws - 1
    rel[:, :, 0] *= 2 * ws - 1
    return rel.sum(-1)  # (N, N) int


def _shift_attn_mask_np(H, W, ws, shift):
    img_mask = np.zeros((H, W), np.float32)
    cnt = 0
    for hs in (slice(0, -ws), slice(-ws, -shift), slice(-shift, None)):
        for wsl in (slice(0, -ws), slice(-ws, -shift), slice(-shift, None)):
            img_mask[hs, wsl] = cnt
            cnt += 1
    mw = img_mask.reshape(H // ws, ws, W // ws, ws).transpose(0, 2, 1, 3).reshape(-1, ws * ws)
    am = mw[:, None, :] - mw[:, :, None]
    return np.where(am != 0, -100.0, 0.0).astype(np.float32)     # (nW, N, N)


def _token_window_maps(H, W, ws, shift):
    """For each raster token: its (shifted-)window index and within-window position."""
    p = np.arange(H * W)
    r, c = p // W, p % W
    rs, cs = (r - shift) % H, (c - shift) % W
    w_of = (rs // ws) * (W // ws) + (cs // ws)
    n_of = (rs % ws) * ws + (cs % ws)
    return w_of, n_of


# ----------------------------- parameter init / kernel-ready packing -----------------------------

def init_block_params(key, dim, num_heads, ws, mlp_ratio):
    hidden = int(dim * mlp_ratio)
    ks = jax.random.split(key, 5)
    return {
        "g1": jnp.ones((dim,), jnp.float32), "be1": jnp.zeros((dim,), jnp.float32),
        "wqkv": 0.02 * jax.random.normal(ks[0], (dim, 3 * dim), jnp.float32),
        "bqkv": jnp.zeros((3 * dim,), jnp.float32),
        "wproj": 0.02 * jax.random.normal(ks[1], (dim, dim), jnp.float32),
        "bproj": jnp.zeros((dim,), jnp.float32),
        "rpb_table": 0.02 * jax.random.normal(
            ks[2], ((2 * ws - 1) * (2 * ws - 1), num_heads), jnp.float32),
        "g2": jnp.ones((dim,), jnp.float32), "be2": jnp.zeros((dim,), jnp.float32),
        "w1": 0.02 * jax.random.normal(ks[3], (dim, hidden), jnp.float32),
        "b1": jnp.zeros((hidden,), jnp.float32),
        "w2": 0.02 * jax.random.normal(ks[4], (hidden, dim), jnp.float32),
        "b2": jnp.zeros((dim,), jnp.float32),
    }


def prepare_layer_params(raw_list, shifts, num_heads, ws, H, W):
    """Pack the whole layer: fold scale into q, W_proj into W_v, windows/shift-mask/rel-pos
    bias into one (heads, L, L) logit-bias tensor per block; cast MXU weights to bf16."""
    C = raw_list[0]["wqkv"].shape[0]
    hd = C // num_heads
    N = ws * ws
    L = H * W
    scale = hd ** (-0.5)
    rel_idx = _relative_position_index(ws).reshape(-1)

    keys = ["bias", "g1", "be1", "wqkv", "bqkv", "battn", "g2", "be2", "w1", "b1", "w2", "b2"]
    stk = {k: [] for k in keys}
    for raw, shift in zip(raw_list, shifts):
        wq = raw["wqkv"][:, :C] * scale
        wk = raw["wqkv"][:, C:2 * C]
        wv = raw["wqkv"][:, 2 * C:]
        bq = raw["bqkv"][:C] * scale
        bk = raw["bqkv"][C:2 * C]
        bv = raw["bqkv"][2 * C:]
        wproj = raw["wproj"]

        # fold per-head output projection into the V weights -> (C, heads*C)
        wvp = jnp.concatenate(
            [wv[:, h * hd:(h + 1) * hd] @ wproj[h * hd:(h + 1) * hd, :]
             for h in range(num_heads)], axis=1)
        wfused = jnp.concatenate([wq, wk, wvp], axis=1)                  # (C, 2C + heads*C)
        bfused = jnp.concatenate([bq, bk, jnp.zeros((num_heads * C,), jnp.float32)])[None]
        battn = (bv @ wproj + raw["bproj"])[None]                        # (1, C)

        # full-image additive attention bias = window structure + shift mask + rel-pos bias
        rpb = raw["rpb_table"][rel_idx].reshape(N, N, num_heads).transpose(2, 0, 1)  # (H, N, N)
        w_of, n_of = _token_window_maps(H, W, ws, shift)
        same = (w_of[:, None] == w_of[None, :])                          # (L, L) bool
        if shift > 0:
            am = _shift_attn_mask_np(H, W, ws, shift)
            maskpair = am[w_of[:, None], n_of[:, None], n_of[None, :]]   # (L, L)
        else:
            maskpair = np.zeros((L, L), np.float32)
        rpb_pair = rpb[:, n_of[:, None], n_of[None, :]]                  # (heads, L, L)
        bias = jnp.where(jnp.asarray(same)[None],
                         rpb_pair + jnp.asarray(maskpair)[None],
                         NEG_INF).astype(jnp.float32)

        stk["bias"].append(bias)
        stk["g1"].append(raw["g1"][None]); stk["be1"].append(raw["be1"][None])
        stk["wqkv"].append(wfused.astype(jnp.bfloat16))
        stk["bqkv"].append(bfused.astype(jnp.float32))
        stk["battn"].append(battn.astype(jnp.float32))
        stk["g2"].append(raw["g2"][None]); stk["be2"].append(raw["be2"][None])
        stk["w1"].append(raw["w1"].astype(jnp.bfloat16)); stk["b1"].append(raw["b1"][None])
        stk["w2"].append(raw["w2"].astype(jnp.bfloat16)); stk["b2"].append(raw["b2"][None])
    return {k: jnp.stack(v, axis=0) for k, v in stk.items()}


# ----------------------------- pure-JAX reference (for self-check) -----------------------------

def _window_partition_jnp(x, ws):
    B, H, W, C = x.shape
    x = x.reshape(B, H // ws, ws, W // ws, ws, C)
    return x.transpose(0, 1, 3, 2, 4, 5).reshape(-1, ws, ws, C)


def _window_reverse_jnp(windows, ws, H, W):
    B = windows.shape[0] // ((H * W) // ws // ws)
    x = windows.reshape(B, H // ws, W // ws, ws, ws, -1)
    return x.transpose(0, 1, 3, 2, 4, 5).reshape(B, H, W, -1)


def _reference_layer(x, raw_list, shifts, ws, H, W, num_heads):
    B, L, C = x.shape
    N = ws * ws
    hd = C // num_heads
    scale = hd ** (-0.5)
    nW = (H // ws) * (W // ws)
    rel_idx = _relative_position_index(ws).reshape(-1)
    for raw, shift in zip(raw_list, shifts):
        rpb = raw["rpb_table"][rel_idx].reshape(N, N, num_heads).transpose(2, 0, 1)
        shortcut = x
        xn = _layernorm(x, raw["g1"], raw["be1"])
        xi = xn.reshape(B, H, W, C)
        if shift > 0:
            xi = jnp.roll(xi, (-shift, -shift), (1, 2))
        xw = _window_partition_jnp(xi, ws).reshape(-1, N, C)
        qkv = xw @ raw["wqkv"] + raw["bqkv"]
        qkv = qkv.reshape(-1, N, 3, num_heads, hd).transpose(2, 0, 3, 1, 4)
        q, k, v = qkv[0] * scale, qkv[1], qkv[2]
        attn = jnp.einsum("whnd,whmd->whnm", q, k) + rpb[None]
        if shift > 0:
            mask = jnp.asarray(_shift_attn_mask_np(H, W, ws, shift))
            attn = attn.reshape(B, nW, num_heads, N, N) + mask[None, :, None]
            attn = attn.reshape(-1, num_heads, N, N)
        attn = jax.nn.softmax(attn, axis=-1)
        ctx = jnp.einsum("whnm,whmd->whnd", attn, v)
        ctx = ctx.transpose(0, 2, 1, 3).reshape(-1, N, C)
        ctx = ctx @ raw["wproj"] + raw["bproj"]
        out = _window_reverse_jnp(ctx.reshape(-1, ws, ws, C), ws, H, W)
        if shift > 0:
            out = jnp.roll(out, (shift, shift), (1, 2))
        x = shortcut + out.reshape(B, L, C)
        zn = _layernorm(x, raw["g2"], raw["be2"])
        hid = jax.nn.gelu(zn @ raw["w1"] + raw["b1"], approximate=False)
        x = x + hid @ raw["w2"] + raw["b2"]
    return x


# ----------------------------- main -----------------------------

if __name__ == "__main__":
    # BasicLayer(dim=32, input_resolution=(8, 8), depth=2, num_heads=4, window_size=4)
    B = 2
    H = W = 8
    dim = 32
    num_heads = 4
    ws = 4
    depth = 2
    mlp_ratio = 4.0
    L = H * W

    key = jax.random.PRNGKey(0)
    key, xkey = jax.random.split(key)
    x = jax.random.normal(xkey, (B, L, dim), jnp.float32)

    block_keys = jax.random.split(key, depth)
    raw_params = [init_block_params(block_keys[i], dim, num_heads, ws, mlp_ratio)
                  for i in range(depth)]
    shifts = [0 if i % 2 == 0 else ws // 2 for i in range(depth)]
    packed = prepare_layer_params(raw_params, shifts, num_heads, ws, H, W)

    fwd = jax.jit(functools.partial(basic_layer_pallas, num_heads=num_heads))
    out = jax.block_until_ready(fwd(x, packed))
    assert out.shape == (B, L, dim) and out.dtype == jnp.float32

    # self-check against the straightforward (roll / window-partition / per-window softmax)
    # implementation; tolerance covers the accepted bf16-weight / approx-reciprocal noise.
    ref = jax.block_until_ready(_reference_layer(x, raw_params, shifts, ws, H, W, num_heads))
    max_err = float(jnp.max(jnp.abs(out - ref)))
    assert max_err < 3e-2, f"kernel deviates from reference: max |err| = {max_err}"

    print("KERNEL_OK")
</pallas_src>

<mosaic_0001>
module attributes {stable_mosaic.version = 11 : i64} {
  func.func @_basic_layer_kernel(%arg0: i32, %arg1: memref<2x64x32xf32, #tpu.memory_space<vmem>>, %arg2: memref<2x4x64x64xf32, #tpu.memory_space<vmem>>, %arg3: memref<2x1x32xf32, #tpu.memory_space<vmem>>, %arg4: memref<2x1x32xf32, #tpu.memory_space<vmem>>, %arg5: memref<2x32x192xbf16, #tpu.memory_space<vmem>>, %arg6: memref<2x1x192xf32, #tpu.memory_space<vmem>>, %arg7: memref<2x1x32xf32, #tpu.memory_space<vmem>>, %arg8: memref<2x1x32xf32, #tpu.memory_space<vmem>>, %arg9: memref<2x1x32xf32, #tpu.memory_space<vmem>>, %arg10: memref<2x32x128xbf16, #tpu.memory_space<vmem>>, %arg11: memref<2x1x128xf32, #tpu.memory_space<vmem>>, %arg12: memref<2x128x32xbf16, #tpu.memory_space<vmem>>, %arg13: memref<2x1x32xf32, #tpu.memory_space<vmem>>, %arg14: memref<2x64x32xf32, #tpu.memory_space<vmem>>) attributes {dimension_semantics = [#tpu.dimension_semantics<parallel>], iteration_bounds = array<i64: 1>, scalar_prefetch = 0 : i64, scratch_operands = 0 : i64, tpu.core_type = #tpu.core_type<tc>, window_params = [{transform_indices = @transform_0, window_bounds = array<i64: 2, 64, 32>}, {pipeline_mode = #tpu.pipeline_mode<synchronous>, transform_indices = @transform_1, window_bounds = array<i64: 2, 4, 64, 64>}, {pipeline_mode = #tpu.pipeline_mode<synchronous>, transform_indices = @transform_2, window_bounds = array<i64: 2, 1, 32>}, {pipeline_mode = #tpu.pipeline_mode<synchronous>, transform_indices = @transform_3, window_bounds = array<i64: 2, 1, 32>}, {pipeline_mode = #tpu.pipeline_mode<synchronous>, transform_indices = @transform_4, window_bounds = array<i64: 2, 32, 192>}, {pipeline_mode = #tpu.pipeline_mode<synchronous>, transform_indices = @transform_5, window_bounds = array<i64: 2, 1, 192>}, {pipeline_mode = #tpu.pipeline_mode<synchronous>, transform_indices = @transform_6, window_bounds = array<i64: 2, 1, 32>}, {pipeline_mode = #tpu.pipeline_mode<synchronous>, transform_indices = @transform_7, window_bounds = array<i64: 2, 1, 32>}, {pipeline_mode = #tpu.pipeline_mode<synchronous>, transform_indices = @transform_8, window_bounds = array<i64: 2, 1, 32>}, {pipeline_mode = #tpu.pipeline_mode<synchronous>, transform_indices = @transform_9, window_bounds = array<i64: 2, 32, 128>}, {pipeline_mode = #tpu.pipeline_mode<synchronous>, transform_indices = @transform_10, window_bounds = array<i64: 2, 1, 128>}, {pipeline_mode = #tpu.pipeline_mode<synchronous>, transform_indices = @transform_11, window_bounds = array<i64: 2, 128, 32>}, {pipeline_mode = #tpu.pipeline_mode<synchronous>, transform_indices = @transform_12, window_bounds = array<i64: 2, 1, 32>}, {transform_indices = @transform_13, window_bounds = array<i64: 2, 64, 32>}]} {
    %c0 = arith.constant 0 : index
    %c0_0 = arith.constant 0 : index
    %c0_1 = arith.constant 0 : index
    %0 = vector.load %arg1[%c0, %c0_0, %c0_1] : memref<2x64x32xf32, #tpu.memory_space<vmem>>, vector<2x64x32xf32>
    %1 = vector.shape_cast %0 : vector<2x64x32xf32> to vector<128x32xf32>
    %c0_2 = arith.constant 0 : index
    %c0_3 = arith.constant 0 : index
    %c0_4 = arith.constant 0 : index
    %2 = vector.load %arg3[%c0_2, %c0_3, %c0_4] : memref<2x1x32xf32, #tpu.memory_space<vmem>>, vector<1x1x32xf32>
    %3 = vector.shape_cast %2 : vector<1x1x32xf32> to vector<1x32xf32>
    %c0_5 = arith.constant 0 : index
    %c0_6 = arith.constant 0 : index
    %c0_7 = arith.constant 0 : index
    %4 = vector.load %arg4[%c0_5, %c0_6, %c0_7] : memref<2x1x32xf32, #tpu.memory_space<vmem>>, vector<1x1x32xf32>
    %5 = vector.shape_cast %4 : vector<1x1x32xf32> to vector<1x32xf32>
    %cst = arith.constant dense<0.000000e+00> : vector<128xf32>
    %6 = vector.multi_reduction <add>, %1, %cst [1] : vector<128x32xf32> to vector<128xf32>
    %7 = vector.shape_cast %6 : vector<128xf32> to vector<128x1xf32>
    %cst_8 = arith.constant 3.200000e+01 : f32
    %8 = vector.broadcast %cst_8 : f32 to vector<128x1xf32>
    %9 = arith.divf %7, %8 : vector<128x1xf32>
    %10 = vector.broadcast %9 : vector<128x1xf32> to vector<128x32xf32>
    %11 = arith.subf %1, %10 : vector<128x32xf32>
    %12 = arith.mulf %11, %11 : vector<128x32xf32>
    %cst_9 = arith.constant dense<0.000000e+00> : vector<128xf32>
    %13 = vector.multi_reduction <add>, %12, %cst_9 [1] : vector<128x32xf32> to vector<128xf32>
    %14 = vector.shape_cast %13 : vector<128xf32> to vector<128x1xf32>
    %cst_10 = arith.constant 3.200000e+01 : f32
    %15 = vector.broadcast %cst_10 : f32 to vector<128x1xf32>
    %16 = arith.divf %14, %15 : vector<128x1xf32>
    %17 = vector.broadcast %9 : vector<128x1xf32> to vector<128x32xf32>
    %18 = arith.subf %1, %17 : vector<128x32xf32>
    %cst_11 = arith.constant 9.99999974E-6 : f32
    %19 = vector.broadcast %cst_11 : f32 to vector<128x1xf32>
    %20 = arith.addf %16, %19 : vector<128x1xf32>
    %21 = math.rsqrt %20 : vector<128x1xf32>
    %22 = vector.broadcast %21 : vector<128x1xf32> to vector<128x32xf32>
    %23 = arith.mulf %18, %22 : vector<128x32xf32>
    %24 = vector.broadcast %3 : vector<1x32xf32> to vector<128x32xf32>
    %25 = arith.mulf %23, %24 : vector<128x32xf32>
    %26 = vector.broadcast %5 : vector<1x32xf32> to vector<128x32xf32>
    %27 = arith.addf %25, %26 : vector<128x32xf32>
    %28 = arith.truncf %27 : vector<128x32xf32> to vector<128x32xbf16>
    %c0_12 = arith.constant 0 : index
    %c0_13 = arith.constant 0 : index
    %c0_14 = arith.constant 0 : index
    %29 = vector.load %arg5[%c0_12, %c0_13, %c0_14] : memref<2x32x192xbf16, #tpu.memory_space<vmem>>, vector<1x32x192xbf16>
    %30 = vector.shape_cast %29 : vector<1x32x192xbf16> to vector<32x192xbf16>
    %cst_15 = arith.constant dense<0.000000e+00> : vector<128x192xf32>
    %31 = tpu.matmul %28, %30, %cst_15 {dimension_numbers = #tpu.dot_dimension_numbers<[1], [0], [0], [1], [0, 0, 1, 1], [], []>} : vector<128x32xbf16>, vector<32x192xbf16>, vector<128x192xf32> -> vector<128x192xf32>
    %c0_16 = arith.constant 0 : index
    %c0_17 = arith.constant 0 : index
    %c0_18 = arith.constant 0 : index
    %32 = vector.load %arg6[%c0_16, %c0_17, %c0_18] : memref<2x1x192xf32, #tpu.memory_space<vmem>>, vector<1x1x192xf32>
    %33 = vector.shape_cast %32 : vector<1x1x192xf32> to vector<1x192xf32>
    %34 = vector.broadcast %33 : vector<1x192xf32> to vector<128x192xf32>
    %35 = arith.addf %31, %34 : vector<128x192xf32>
    %c0_19 = arith.constant 0 : index
    %c0_20 = arith.constant 0 : index
    %c0_21 = arith.constant 0 : index
    %36 = vector.load %arg7[%c0_19, %c0_20, %c0_21] : memref<2x1x32xf32, #tpu.memory_space<vmem>>, vector<1x1x32xf32>
    %37 = vector.shape_cast %36 : vector<1x1x32xf32> to vector<1x32xf32>
    %38 = vector.broadcast %37 : vector<1x32xf32> to vector<128x32xf32>
    %39 = arith.addf %1, %38 : vector<128x32xf32>
    %40 = vector.extract_strided_slice %35 {offsets = [0, 0], sizes = [128, 8], strides = [1, 1]} : vector<128x192xf32> to vector<128x8xf32>
    %41 = vector.shape_cast %40 : vector<128x8xf32> to vector<2x64x8xf32>
    %42 = vector.extract_strided_slice %35 {offsets = [0, 32], sizes = [128, 8], strides = [1, 1]} : vector<128x192xf32> to vector<128x8xf32>
    %43 = vector.shape_cast %42 : vector<128x8xf32> to vector<2x64x8xf32>
    %44 = vector.extract_strided_slice %35 {offsets = [0, 64], sizes = [128, 32], strides = [1, 1]} : vector<128x192xf32> to vector<128x32xf32>
    %45 = arith.truncf %44 : vector<128x32xf32> to vector<128x32xbf16>
    %46 = vector.shape_cast %45 : vector<128x32xbf16> to vector<2x64x32xbf16>
    %47 = arith.truncf %41 : vector<2x64x8xf32> to vector<2x64x8xbf16>
    %48 = arith.truncf %43 : vector<2x64x8xf32> to vector<2x64x8xbf16>
    %cst_22 = arith.constant dense<0.000000e+00> : vector<2x64x64xf32>
    %49 = tpu.matmul %47, %48, %cst_22 {dimension_numbers = #tpu.dot_dimension_numbers<[2], [2], [1], [1], [0, 0, 0, 1, 1, 1], [0], [0]>} : vector<2x64x8xbf16>, vector<2x64x8xbf16>, vector<2x64x64xf32> -> vector<2x64x64xf32>
    %c0_23 = arith.constant 0 : index
    %c0_24 = arith.constant 0 : index
    %c0_25 = arith.constant 0 : index
    %c0_26 = arith.constant 0 : index
    %50 = vector.load %arg2[%c0_23, %c0_24, %c0_25, %c0_26] : memref<2x4x64x64xf32, #tpu.memory_space<vmem>>, vector<1x1x64x64xf32>
    %51 = vector.shape_cast %50 : vector<1x1x64x64xf32> to vector<64x64xf32>
    %52 = vector.shape_cast %51 : vector<64x64xf32> to vector<1x64x64xf32>
    %53 = vector.broadcast %52 : vector<1x64x64xf32> to vector<2x64x64xf32>
    %54 = arith.addf %49, %53 : vector<2x64x64xf32>
    %cst_27 = arith.constant dense<0xFF800000> : vector<2x64xf32>
    %55 = vector.multi_reduction <maximumf>, %54, %cst_27 [2] : vector<2x64x64xf32> to vector<2x64xf32>
    %56 = vector.shape_cast %55 : vector<2x64xf32> to vector<2x64x1xf32>
    %57 = vector.broadcast %56 : vector<2x64x1xf32> to vector<2x64x64xf32>
    %58 = arith.subf %54, %57 : vector<2x64x64xf32>
    %59 = math.exp %58 : vector<2x64x64xf32>
    %cst_28 = arith.constant dense<0.000000e+00> : vector<2x64xf32>
    %60 = vector.multi_reduction <add>, %59, %cst_28 [2] : vector<2x64x64xf32> to vector<2x64xf32>
    %61 = vector.shape_cast %60 : vector<2x64xf32> to vector<2x64x1xf32>
    %62 = tpu.reciprocal %61 {approx = true} : vector<2x64x1xf32> -> vector<2x64x1xf32>
    %63 = vector.broadcast %62 : vector<2x64x1xf32> to vector<2x64x64xf32>
    %64 = arith.mulf %59, %63 : vector<2x64x64xf32>
    %65 = arith.truncf %64 : vector<2x64x64xf32> to vector<2x64x64xbf16>
    %cst_29 = arith.constant dense<0.000000e+00> : vector<2x64x32xf32>
    %66 = tpu.matmul %65, %46, %cst_29 {dimension_numbers = #tpu.dot_dimension_numbers<[2], [1], [1], [2], [0, 0, 0, 1, 1, 2], [0], [0]>} : vector<2x64x64xbf16>, vector<2x64x32xbf16>, vector<2x64x32xf32> -> vector<2x64x32xf32>
    %67 = vector.shape_cast %66 : vector<2x64x32xf32> to vector<128x32xf32>
    %68 = arith.addf %39, %67 : vector<128x32xf32>
    %69 = vector.extract_strided_slice %35 {offsets = [0, 8], sizes = [128, 8], strides = [1, 1]} : vector<128x192xf32> to vector<128x8xf32>
    %70 = vector.shape_cast %69 : vector<128x8xf32> to vector<2x64x8xf32>
    %71 = vector.extract_strided_slice %35 {offsets = [0, 40], sizes = [128, 8], strides = [1, 1]} : vector<128x192xf32> to vector<128x8xf32>
    %72 = vector.shape_cast %71 : vector<128x8xf32> to vector<2x64x8xf32>
    %73 = vector.extract_strided_slice %35 {offsets = [0, 96], sizes = [128, 32], strides = [1, 1]} : vector<128x192xf32> to vector<128x32xf32>
    %74 = arith.truncf %73 : vector<128x32xf32> to vector<128x32xbf16>
    %75 = vector.shape_cast %74 : vector<128x32xbf16> to vector<2x64x32xbf16>
    %76 = arith.truncf %70 : vector<2x64x8xf32> to vector<2x64x8xbf16>
    %77 = arith.truncf %72 : vector<2x64x8xf32> to vector<2x64x8xbf16>
    %cst_30 = arith.constant dense<0.000000e+00> : vector<2x64x64xf32>
    %78 = tpu.matmul %76, %77, %cst_30 {dimension_numbers = #tpu.dot_dimension_numbers<[2], [2], [1], [1], [0, 0, 0, 1, 1, 1], [0], [0]>} : vector<2x64x8xbf16>, vector<2x64x8xbf16>, vector<2x64x64xf32> -> vector<2x64x64xf32>
    %c0_31 = arith.constant 0 : index
    %c1 = arith.constant 1 : index
    %c0_32 = arith.constant 0 : index
    %c0_33 = arith.constant 0 : index
    %79 = vector.load %arg2[%c0_31, %c1, %c0_32, %c0_33] : memref<2x4x64x64xf32, #tpu.memory_space<vmem>>, vector<1x1x64x64xf32>
    %80 = vector.shape_cast %79 : vector<1x1x64x64xf32> to vector<64x64xf32>
    %81 = vector.shape_cast %80 : vector<64x64xf32> to vector<1x64x64xf32>
    %82 = vector.broadcast %81 : vector<1x64x64xf32> to vector<2x64x64xf32>
    %83 = arith.addf %78, %82 : vector<2x64x64xf32>
    %cst_34 = arith.constant dense<0xFF800000> : vector<2x64xf32>
    %84 = vector.multi_reduction <maximumf>, %83, %cst_34 [2] : vector<2x64x64xf32> to vector<2x64xf32>
    %85 = vector.shape_cast %84 : vector<2x64xf32> to vector<2x64x1xf32>
    %86 = vector.broadcast %85 : vector<2x64x1xf32> to vector<2x64x64xf32>
    %87 = arith.subf %83, %86 : vector<2x64x64xf32>
    %88 = math.exp %87 : vector<2x64x64xf32>
    %cst_35 = arith.constant dense<0.000000e+00> : vector<2x64xf32>
    %89 = vector.multi_reduction <add>, %88, %cst_35 [2] : vector<2x64x64xf32> to vector<2x64xf32>
    %90 = vector.shape_cast %89 : vector<2x64xf32> to vector<2x64x1xf32>
    %91 = tpu.reciprocal %90 {approx = true} : vector<2x64x1xf32> -> vector<2x64x1xf32>
    %92 = vector.broadcast %91 : vector<2x64x1xf32> to vector<2x64x64xf32>
    %93 = arith.mulf %88, %92 : vector<2x64x64xf32>
    %94 = arith.truncf %93 : vector<2x64x64xf32> to vector<2x64x64xbf16>
    %cst_36 = arith.constant dense<0.000000e+00> : vector<2x64x32xf32>
    %95 = tpu.matmul %94, %75, %cst_36 {dimension_numbers = #tpu.dot_dimension_numbers<[2], [1], [1], [2], [0, 0, 0, 1, 1, 2], [0], [0]>} : vector<2x64x64xbf16>, vector<2x64x32xbf16>, vector<2x64x32xf32> -> vector<2x64x32xf32>
    %96 = vector.shape_cast %95 : vector<2x64x32xf32> to vector<128x32xf32>
    %97 = arith.addf %68, %96 : vector<128x32xf32>
    %98 = vector.extract_strided_slice %35 {offsets = [0, 16], sizes = [128, 8], strides = [1, 1]} : vector<128x192xf32> to vector<128x8xf32>
    %99 = vector.shape_cast %98 : vector<128x8xf32> to vector<2x64x8xf32>
    %100 = vector.extract_strided_slice %35 {offsets = [0, 48], sizes = [128, 8], strides = [1, 1]} : vector<128x192xf32> to vector<128x8xf32>
    %101 = vector.shape_cast %100 : vector<128x8xf32> to vector<2x64x8xf32>
    %102 = vector.extract_strided_slice %35 {offsets = [0, 128], sizes = [128, 32], strides = [1, 1]} : vector<128x192xf32> to vector<128x32xf32>
    %103 = arith.truncf %102 : vector<128x32xf32> to vector<128x32xbf16>
    %104 = vector.shape_cast %103 : vector<128x32xbf16> to vector<2x64x32xbf16>
    %105 = arith.truncf %99 : vector<2x64x8xf32> to vector<2x64x8xbf16>
    %106 = arith.truncf %101 : vector<2x64x8xf32> to vector<2x64x8xbf16>
    %cst_37 = arith.constant dense<0.000000e+00> : vector<2x64x64xf32>
    %107 = tpu.matmul %105, %106, %cst_37 {dimension_numbers = #tpu.dot_dimension_numbers<[2], [2], [1], [1], [0, 0, 0, 1, 1, 1], [0], [0]>} : vector<2x64x8xbf16>, vector<2x64x8xbf16>, vector<2x64x64xf32> -> vector<2x64x64xf32>
    %c0_38 = arith.constant 0 : index
    %c2 = arith.constant 2 : index
    %c0_39 = arith.constant 0 : index
    %c0_40 = arith.constant 0 : index
    %108 = vector.load %arg2[%c0_38, %c2, %c0_39, %c0_40] : memref<2x4x64x64xf32, #tpu.memory_space<vmem>>, vector<1x1x64x64xf32>
    %109 = vector.shape_cast %108 : vector<1x1x64x64xf32> to vector<64x64xf32>
    %110 = vector.shape_cast %109 : vector<64x64xf32> to vector<1x64x64xf32>
    %111 = vector.broadcast %110 : vector<1x64x64xf32> to vector<2x64x64xf32>
    %112 = arith.addf %107, %111 : vector<2x64x64xf32>
    %cst_41 = arith.constant dense<0xFF800000> : vector<2x64xf32>
    %113 = vector.multi_reduction <maximumf>, %112, %cst_41 [2] : vector<2x64x64xf32> to vector<2x64xf32>
    %114 = vector.shape_cast %113 : vector<2x64xf32> to vector<2x64x1xf32>
    %115 = vector.broadcast %114 : vector<2x64x1xf32> to vector<2x64x64xf32>
    %116 = arith.subf %112, %115 : vector<2x64x64xf32>
    %117 = math.exp %116 : vector<2x64x64xf32>
    %cst_42 = arith.constant dense<0.000000e+00> : vector<2x64xf32>
    %118 = vector.multi_reduction <add>, %117, %cst_42 [2] : vector<2x64x64xf32> to vector<2x64xf32>
    %119 = vector.shape_cast %118 : vector<2x64xf32> to vector<2x64x1xf32>
    %120 = tpu.reciprocal %119 {approx = true} : vector<2x64x1xf32> -> vector<2x64x1xf32>
    %121 = vector.broadcast %120 : vector<2x64x1xf32> to vector<2x64x64xf32>
    %122 = arith.mulf %117, %121 : vector<2x64x64xf32>
    %123 = arith.truncf %122 : vector<2x64x64xf32> to vector<2x64x64xbf16>
    %cst_43 = arith.constant dense<0.000000e+00> : vector<2x64x32xf32>
    %124 = tpu.matmul %123, %104, %cst_43 {dimension_numbers = #tpu.dot_dimension_numbers<[2], [1], [1], [2], [0, 0, 0, 1, 1, 2], [0], [0]>} : vector<2x64x64xbf16>, vector<2x64x32xbf16>, vector<2x64x32xf32> -> vector<2x64x32xf32>
    %125 = vector.shape_cast %124 : vector<2x64x32xf32> to vector<128x32xf32>
    %126 = arith.addf %97, %125 : vector<128x32xf32>
    %127 = vector.extract_strided_slice %35 {offsets = [0, 24], sizes = [128, 8], strides = [1, 1]} : vector<128x192xf32> to vector<128x8xf32>
    %128 = vector.shape_cast %127 : vector<128x8xf32> to vector<2x64x8xf32>
    %129 = vector.extract_strided_slice %35 {offsets = [0, 56], sizes = [128, 8], strides = [1, 1]} : vector<128x192xf32> to vector<128x8xf32>
    %130 = vector.shape_cast %129 : vector<128x8xf32> to vector<2x64x8xf32>
    %131 = vector.extract_strided_slice %35 {offsets = [0, 160], sizes = [128, 32], strides = [1, 1]} : vector<128x192xf32> to vector<128x32xf32>
    %132 = arith.truncf %131 : vector<128x32xf32> to vector<128x32xbf16>
    %133 = vector.shape_cast %132 : vector<128x32xbf16> to vector<2x64x32xbf16>
    %134 = arith.truncf %128 : vector<2x64x8xf32> to vector<2x64x8xbf16>
    %135 = arith.truncf %130 : vector<2x64x8xf32> to vector<2x64x8xbf16>
    %cst_44 = arith.constant dense<0.000000e+00> : vector<2x64x64xf32>
    %136 = tpu.matmul %134, %135, %cst_44 {dimension_numbers = #tpu.dot_dimension_numbers<[2], [2], [1], [1], [0, 0, 0, 1, 1, 1], [0], [0]>} : vector<2x64x8xbf16>, vector<2x64x8xbf16>, vector<2x64x64xf32> -> vector<2x64x64xf32>
    %c0_45 = arith.constant 0 : index
    %c3 = arith.constant 3 : index
    %c0_46 = arith.constant 0 : index
    %c0_47 = arith.constant 0 : index
    %137 = vector.load %arg2[%c0_45, %c3, %c0_46, %c0_47] : memref<2x4x64x64xf32, #tpu.memory_space<vmem>>, vector<1x1x64x64xf32>
    %138 = vector.shape_cast %137 : vector<1x1x64x64xf32> to vector<64x64xf32>
    %139 = vector.shape_cast %138 : vector<64x64xf32> to vector<1x64x64xf32>
    %140 = vector.broadcast %139 : vector<1x64x64xf32> to vector<2x64x64xf32>
    %141 = arith.addf %136, %140 : vector<2x64x64xf32>
    %cst_48 = arith.constant dense<0xFF800000> : vector<2x64xf32>
    %142 = vector.multi_reduction <maximumf>, %141, %cst_48 [2] : vector<2x64x64xf32> to vector<2x64xf32>
    %143 = vector.shape_cast %142 : vector<2x64xf32> to vector<2x64x1xf32>
    %144 = vector.broadcast %143 : vector<2x64x1xf32> to vector<2x64x64xf32>
    %145 = arith.subf %141, %144 : vector<2x64x64xf32>
    %146 = math.exp %145 : vector<2x64x64xf32>
    %cst_49 = arith.constant dense<0.000000e+00> : vector<2x64xf32>
    %147 = vector.multi_reduction <add>, %146, %cst_49 [2] : vector<2x64x64xf32> to vector<2x64xf32>
    %148 = vector.shape_cast %147 : vector<2x64xf32> to vector<2x64x1xf32>
    %149 = tpu.reciprocal %148 {approx = true} : vector<2x64x1xf32> -> vector<2x64x1xf32>
    %150 = vector.broadcast %149 : vector<2x64x1xf32> to vector<2x64x64xf32>
    %151 = arith.mulf %146, %150 : vector<2x64x64xf32>
    %152 = arith.truncf %151 : vector<2x64x64xf32> to vector<2x64x64xbf16>
    %cst_50 = arith.constant dense<0.000000e+00> : vector<2x64x32xf32>
    %153 = tpu.matmul %152, %133, %cst_50 {dimension_numbers = #tpu.dot_dimension_numbers<[2], [1], [1], [2], [0, 0, 0, 1, 1, 2], [0], [0]>} : vector<2x64x64xbf16>, vector<2x64x32xbf16>, vector<2x64x32xf32> -> vector<2x64x32xf32>
    %154 = vector.shape_cast %153 : vector<2x64x32xf32> to vector<128x32xf32>
    %155 = arith.addf %126, %154 : vector<128x32xf32>
    %c0_51 = arith.constant 0 : index
    %c0_52 = arith.constant 0 : index
    %c0_53 = arith.constant 0 : index
    %156 = vector.load %arg8[%c0_51, %c0_52, %c0_53] : memref<2x1x32xf32, #tpu.memory_space<vmem>>, vector<1x1x32xf32>
    %157 = vector.shape_cast %156 : vector<1x1x32xf32> to vector<1x32xf32>
    %c0_54 = arith.constant 0 : index
    %c0_55 = arith.constant 0 : index
    %c0_56 = arith.constant 0 : index
    %158 = vector.load %arg9[%c0_54, %c0_55, %c0_56] : memref<2x1x32xf32, #tpu.memory_space<vmem>>, vector<1x1x32xf32>
    %159 = vector.shape_cast %158 : vector<1x1x32xf32> to vector<1x32xf32>
    %cst_57 = arith.constant dense<0.000000e+00> : vector<128xf32>
    %160 = vector.multi_reduction <add>, %155, %cst_57 [1] : vector<128x32xf32> to vector<128xf32>
    %161 = vector.shape_cast %160 : vector<128xf32> to vector<128x1xf32>
    %cst_58 = arith.constant 3.200000e+01 : f32
    %162 = vector.broadcast %cst_58 : f32 to vector<128x1xf32>
    %163 = arith.divf %161, %162 : vector<128x1xf32>
    %164 = vector.broadcast %163 : vector<128x1xf32> to vector<128x32xf32>
    %165 = arith.subf %155, %164 : vector<128x32xf32>
    %166 = arith.mulf %165, %165 : vector<128x32xf32>
    %cst_59 = arith.constant dense<0.000000e+00> : vector<128xf32>
    %167 = vector.multi_reduction <add>, %166, %cst_59 [1] : vector<128x32xf32> to vector<128xf32>
    %168 = vector.shape_cast %167 : vector<128xf32> to vector<128x1xf32>
    %cst_60 = arith.constant 3.200000e+01 : f32
    %169 = vector.broadcast %cst_60 : f32 to vector<128x1xf32>
    %170 = arith.divf %168, %169 : vector<128x1xf32>
    %171 = vector.broadcast %163 : vector<128x1xf32> to vector<128x32xf32>
    %172 = arith.subf %155, %171 : vector<128x32xf32>
    %cst_61 = arith.constant 9.99999974E-6 : f32
    %173 = vector.broadcast %cst_61 : f32 to vector<128x1xf32>
    %174 = arith.addf %170, %173 : vector<128x1xf32>
    %175 = math.rsqrt %174 : vector<128x1xf32>
    %176 = vector.broadcast %175 : vector<128x1xf32> to vector<128x32xf32>
    %177 = arith.mulf %172, %176 : vector<128x32xf32>
    %178 = vector.broadcast %157 : vector<1x32xf32> to vector<128x32xf32>
    %179 = arith.mulf %177, %178 : vector<128x32xf32>
    %180 = vector.broadcast %159 : vector<1x32xf32> to vector<128x32xf32>
    %181 = arith.addf %179, %180 : vector<128x32xf32>
    %182 = arith.truncf %181 : vector<128x32xf32> to vector<128x32xbf16>
    %c0_62 = arith.constant 0 : index
    %c0_63 = arith.constant 0 : index
    %c0_64 = arith.constant 0 : index
    %183 = vector.load %arg10[%c0_62, %c0_63, %c0_64] : memref<2x32x128xbf16, #tpu.memory_space<vmem>>, vector<1x32x128xbf16>
    %184 = vector.shape_cast %183 : vector<1x32x128xbf16> to vector<32x128xbf16>
    %cst_65 = arith.constant dense<0.000000e+00> : vector<128x128xf32>
    %185 = tpu.matmul %182, %184, %cst_65 {dimension_numbers = #tpu.dot_dimension_numbers<[1], [0], [0], [1], [0, 0, 1, 1], [], []>} : vector<128x32xbf16>, vector<32x128xbf16>, vector<128x128xf32> -> vector<128x128xf32>
    %c0_66 = arith.constant 0 : index
    %c0_67 = arith.constant 0 : index
    %c0_68 = arith.constant 0 : index
    %186 = vector.load %arg11[%c0_66, %c0_67, %c0_68] : memref<2x1x128xf32, #tpu.memory_space<vmem>>, vector<1x1x128xf32>
    %187 = vector.shape_cast %186 : vector<1x1x128xf32> to vector<1x128xf32>
    %188 = vector.broadcast %187 : vector<1x128xf32> to vector<128x128xf32>
    %189 = arith.addf %185, %188 : vector<128x128xf32>
    %cst_69 = arith.constant 5.000000e-01 : f32
    %190 = vector.broadcast %cst_69 : f32 to vector<128x128xf32>
    %191 = arith.mulf %190, %189 : vector<128x128xf32>
    %cst_70 = arith.constant 0.707106769 : f32
    %192 = vector.broadcast %cst_70 : f32 to vector<128x128xf32>
    %193 = arith.mulf %189, %192 : vector<128x128xf32>
    %194 = math.erf %193 : vector<128x128xf32>
    %cst_71 = arith.constant 1.000000e+00 : f32
    %195 = vector.broadcast %cst_71 : f32 to vector<128x128xf32>
    %196 = arith.addf %195, %194 : vector<128x128xf32>
    %197 = arith.mulf %191, %196 : vector<128x128xf32>
    %198 = arith.truncf %197 : vector<128x128xf32> to vector<128x128xbf16>
    %c0_72 = arith.constant 0 : index
    %c0_73 = arith.constant 0 : index
    %c0_74 = arith.constant 0 : index
    %199 = vector.load %arg12[%c0_72, %c0_73, %c0_74] : memref<2x128x32xbf16, #tpu.memory_space<vmem>>, vector<1x128x32xbf16>
    %200 = vector.shape_cast %199 : vector<1x128x32xbf16> to vector<128x32xbf16>
    %cst_75 = arith.constant dense<0.000000e+00> : vector<128x32xf32>
    %201 = tpu.matmul %198, %200, %cst_75 {dimension_numbers = #tpu.dot_dimension_numbers<[1], [0], [0], [1], [0, 0, 1, 1], [], []>} : vector<128x128xbf16>, vector<128x32xbf16>, vector<128x32xf32> -> vector<128x32xf32>
    %202 = arith.addf %155, %201 : vector<128x32xf32>
    %c0_76 = arith.constant 0 : index
    %c0_77 = arith.constant 0 : index
    %c0_78 = arith.constant 0 : index
    %203 = vector.load %arg13[%c0_76, %c0_77, %c0_78] : memref<2x1x32xf32, #tpu.memory_space<vmem>>, vector<1x1x32xf32>
    %204 = vector.shape_cast %203 : vector<1x1x32xf32> to vector<1x32xf32>
    %205 = vector.broadcast %204 : vector<1x32xf32> to vector<128x32xf32>
    %206 = arith.addf %202, %205 : vector<128x32xf32>
    %c1_79 = arith.constant 1 : index
    %c0_80 = arith.constant 0 : index
    %c0_81 = arith.constant 0 : index
    %207 = vector.load %arg3[%c1_79, %c0_80, %c0_81] : memref<2x1x32xf32, #tpu.memory_space<vmem>>, vector<1x1x32xf32>
    %208 = vector.shape_cast %207 : vector<1x1x32xf32> to vector<1x32xf32>
    %c1_82 = arith.constant 1 : index
    %c0_83 = arith.constant 0 : index
    %c0_84 = arith.constant 0 : index
    %209 = vector.load %arg4[%c1_82, %c0_83, %c0_84] : memref<2x1x32xf32, #tpu.memory_space<vmem>>, vector<1x1x32xf32>
    %210 = vector.shape_cast %209 : vector<1x1x32xf32> to vector<1x32xf32>
    %cst_85 = arith.constant dense<0.000000e+00> : vector<128xf32>
    %211 = vector.multi_reduction <add>, %206, %cst_85 [1] : vector<128x32xf32> to vector<128xf32>
    %212 = vector.shape_cast %211 : vector<128xf32> to vector<128x1xf32>
    %cst_86 = arith.constant 3.200000e+01 : f32
    %213 = vector.broadcast %cst_86 : f32 to vector<128x1xf32>
    %214 = arith.divf %212, %213 : vector<128x1xf32>
    %215 = vector.broadcast %214 : vector<128x1xf32> to vector<128x32xf32>
    %216 = arith.subf %206, %215 : vector<128x32xf32>
    %217 = arith.mulf %216, %216 : vector<128x32xf32>
    %cst_87 = arith.constant dense<0.000000e+00> : vector<128xf32>
    %218 = vector.multi_reduction <add>, %217, %cst_87 [1] : vector<128x32xf32> to vector<128xf32>
    %219 = vector.shape_cast %218 : vector<128xf32> to vector<128x1xf32>
    %cst_88 = arith.constant 3.200000e+01 : f32
    %220 = vector.broadcast %cst_88 : f32 to vector<128x1xf32>
    %221 = arith.divf %219, %220 : vector<128x1xf32>
    %222 = vector.broadcast %214 : vector<128x1xf32> to vector<128x32xf32>
    %223 = arith.subf %206, %222 : vector<128x32xf32>
    %cst_89 = arith.constant 9.99999974E-6 : f32
    %224 = vector.broadcast %cst_89 : f32 to vector<128x1xf32>
    %225 = arith.addf %221, %224 : vector<128x1xf32>
    %226 = math.rsqrt %225 : vector<128x1xf32>
    %227 = vector.broadcast %226 : vector<128x1xf32> to vector<128x32xf32>
    %228 = arith.mulf %223, %227 : vector<128x32xf32>
    %229 = vector.broadcast %208 : vector<1x32xf32> to vector<128x32xf32>
    %230 = arith.mulf %228, %229 : vector<128x32xf32>
    %231 = vector.broadcast %210 : vector<1x32xf32> to vector<128x32xf32>
    %232 = arith.addf %230, %231 : vector<128x32xf32>
    %233 = arith.truncf %232 : vector<128x32xf32> to vector<128x32xbf16>
    %c1_90 = arith.constant 1 : index
    %c0_91 = arith.constant 0 : index
    %c0_92 = arith.constant 0 : index
    %234 = vector.load %arg5[%c1_90, %c0_91, %c0_92] : memref<2x32x192xbf16, #tpu.memory_space<vmem>>, vector<1x32x192xbf16>
    %235 = vector.shape_cast %234 : vector<1x32x192xbf16> to vector<32x192xbf16>
    %cst_93 = arith.constant dense<0.000000e+00> : vector<128x192xf32>
    %236 = tpu.matmul %233, %235, %cst_93 {dimension_numbers = #tpu.dot_dimension_numbers<[1], [0], [0], [1], [0, 0, 1, 1], [], []>} : vector<128x32xbf16>, vector<32x192xbf16>, vector<128x192xf32> -> vector<128x192xf32>
    %c1_94 = arith.constant 1 : index
    %c0_95 = arith.constant 0 : index
    %c0_96 = arith.constant 0 : index
    %237 = vector.load %arg6[%c1_94, %c0_95, %c0_96] : memref<2x1x192xf32, #tpu.memory_space<vmem>>, vector<1x1x192xf32>
    %238 = vector.shape_cast %237 : vector<1x1x192xf32> to vector<1x192xf32>
    %239 = vector.broadcast %238 : vector<1x192xf32> to vector<128x192xf32>
    %240 = arith.addf %236, %239 : vector<128x192xf32>
    %c1_97 = arith.constant 1 : index
    %c0_98 = arith.constant 0 : index
    %c0_99 = arith.constant 0 : index
    %241 = vector.load %arg7[%c1_97, %c0_98, %c0_99] : memref<2x1x32xf32, #tpu.memory_space<vmem>>, vector<1x1x32xf32>
    %242 = vector.shape_cast %241 : vector<1x1x32xf32> to vector<1x32xf32>
    %243 = vector.broadcast %242 : vector<1x32xf32> to vector<128x32xf32>
    %244 = arith.addf %206, %243 : vector<128x32xf32>
    %245 = vector.extract_strided_slice %240 {offsets = [0, 0], sizes = [128, 8], strides = [1, 1]} : vector<128x192xf32> to vector<128x8xf32>
    %246 = vector.shape_cast %245 : vector<128x8xf32> to vector<2x64x8xf32>
    %247 = vector.extract_strided_slice %240 {offsets = [0, 32], sizes = [128, 8], strides = [1, 1]} : vector<128x192xf32> to vector<128x8xf32>
    %248 = vector.shape_cast %247 : vector<128x8xf32> to vector<2x64x8xf32>
    %249 = vector.extract_strided_slice %240 {offsets = [0, 64], sizes = [128, 32], strides = [1, 1]} : vector<128x192xf32> to vector<128x32xf32>
    %250 = arith.truncf %249 : vector<128x32xf32> to vector<128x32xbf16>
    %251 = vector.shape_cast %250 : vector<128x32xbf16> to vector<2x64x32xbf16>
    %252 = arith.truncf %246 : vector<2x64x8xf32> to vector<2x64x8xbf16>
    %253 = arith.truncf %248 : vector<2x64x8xf32> to vector<2x64x8xbf16>
    %cst_100 = arith.constant dense<0.000000e+00> : vector<2x64x64xf32>
    %254 = tpu.matmul %252, %253, %cst_100 {dimension_numbers = #tpu.dot_dimension_numbers<[2], [2], [1], [1], [0, 0, 0, 1, 1, 1], [0], [0]>} : vector<2x64x8xbf16>, vector<2x64x8xbf16>, vector<2x64x64xf32> -> vector<2x64x64xf32>
    %c1_101 = arith.constant 1 : index
    %c0_102 = arith.constant 0 : index
    %c0_103 = arith.constant 0 : index
    %c0_104 = arith.constant 0 : index
    %255 = vector.load %arg2[%c1_101, %c0_102, %c0_103, %c0_104] : memref<2x4x64x64xf32, #tpu.memory_space<vmem>>, vector<1x1x64x64xf32>
    %256 = vector.shape_cast %255 : vector<1x1x64x64xf32> to vector<64x64xf32>
    %257 = vector.shape_cast %256 : vector<64x64xf32> to vector<1x64x64xf32>
    %258 = vector.broadcast %257 : vector<1x64x64xf32> to vector<2x64x64xf32>
    %259 = arith.addf %254, %258 : vector<2x64x64xf32>
    %cst_105 = arith.constant dense<0xFF800000> : vector<2x64xf32>
    %260 = vector.multi_reduction <maximumf>, %259, %cst_105 [2] : vector<2x64x64xf32> to vector<2x64xf32>
    %261 = vector.shape_cast %260 : vector<2x64xf32> to vector<2x64x1xf32>
    %262 = vector.broadcast %261 : vector<2x64x1xf32> to vector<2x64x64xf32>
    %263 = arith.subf %259, %262 : vector<2x64x64xf32>
    %264 = math.exp %263 : vector<2x64x64xf32>
    %cst_106 = arith.constant dense<0.000000e+00> : vector<2x64xf32>
    %265 = vector.multi_reduction <add>, %264, %cst_106 [2] : vector<2x64x64xf32> to vector<2x64xf32>
    %266 = vector.shape_cast %265 : vector<2x64xf32> to vector<2x64x1xf32>
    %267 = tpu.reciprocal %266 {approx = true} : vector<2x64x1xf32> -> vector<2x64x1xf32>
    %268 = vector.broadcast %267 : vector<2x64x1xf32> to vector<2x64x64xf32>
    %269 = arith.mulf %264, %268 : vector<2x64x64xf32>
    %270 = arith.truncf %269 : vector<2x64x64xf32> to vector<2x64x64xbf16>
    %cst_107 = arith.constant dense<0.000000e+00> : vector<2x64x32xf32>
    %271 = tpu.matmul %270, %251, %cst_107 {dimension_numbers = #tpu.dot_dimension_numbers<[2], [1], [1], [2], [0, 0, 0, 1, 1, 2], [0], [0]>} : vector<2x64x64xbf16>, vector<2x64x32xbf16>, vector<2x64x32xf32> -> vector<2x64x32xf32>
    %272 = vector.shape_cast %271 : vector<2x64x32xf32> to vector<128x32xf32>
    %273 = arith.addf %244, %272 : vector<128x32xf32>
    %274 = vector.extract_strided_slice %240 {offsets = [0, 8], sizes = [128, 8], strides = [1, 1]} : vector<128x192xf32> to vector<128x8xf32>
    %275 = vector.shape_cast %274 : vector<128x8xf32> to vector<2x64x8xf32>
    %276 = vector.extract_strided_slice %240 {offsets = [0, 40], sizes = [128, 8], strides = [1, 1]} : vector<128x192xf32> to vector<128x8xf32>
    %277 = vector.shape_cast %276 : vector<128x8xf32> to vector<2x64x8xf32>
    %278 = vector.extract_strided_slice %240 {offsets = [0, 96], sizes = [128, 32], strides = [1, 1]} : vector<128x192xf32> to vector<128x32xf32>
    %279 = arith.truncf %278 : vector<128x32xf32> to vector<128x32xbf16>
    %280 = vector.shape_cast %279 : vector<128x32xbf16> to vector<2x64x32xbf16>
    %281 = arith.truncf %275 : vector<2x64x8xf32> to vector<2x64x8xbf16>
    %282 = arith.truncf %277 : vector<2x64x8xf32> to vector<2x64x8xbf16>
    %cst_108 = arith.constant dense<0.000000e+00> : vector<2x64x64xf32>
    %283 = tpu.matmul %281, %282, %cst_108 {dimension_numbers = #tpu.dot_dimension_numbers<[2], [2], [1], [1], [0, 0, 0, 1, 1, 1], [0], [0]>} : vector<2x64x8xbf16>, vector<2x64x8xbf16>, vector<2x64x64xf32> -> vector<2x64x64xf32>
    %c1_109 = arith.constant 1 : index
    %c1_110 = arith.constant 1 : index
    %c0_111 = arith.constant 0 : index
    %c0_112 = arith.constant 0 : index
    %284 = vector.load %arg2[%c1_109, %c1_110, %c0_111, %c0_112] : memref<2x4x64x64xf32, #tpu.memory_space<vmem>>, vector<1x1x64x64xf32>
    %285 = vector.shape_cast %284 : vector<1x1x64x64xf32> to vector<64x64xf32>
    %286 = vector.shape_cast %285 : vector<64x64xf32> to vector<1x64x64xf32>
    %287 = vector.broadcast %286 : vector<1x64x64xf32> to vector<2x64x64xf32>
    %288 = arith.addf %283, %287 : vector<2x64x64xf32>
    %cst_113 = arith.constant dense<0xFF800000> : vector<2x64xf32>
    %289 = vector.multi_reduction <maximumf>, %288, %cst_113 [2] : vector<2x64x64xf32> to vector<2x64xf32>
    %290 = vector.shape_cast %289 : vector<2x64xf32> to vector<2x64x1xf32>
    %291 = vector.broadcast %290 : vector<2x64x1xf32> to vector<2x64x64xf32>
    %292 = arith.subf %288, %291 : vector<2x64x64xf32>
    %293 = math.exp %292 : vector<2x64x64xf32>
    %cst_114 = arith.constant dense<0.000000e+00> : vector<2x64xf32>
    %294 = vector.multi_reduction <add>, %293, %cst_114 [2] : vector<2x64x64xf32> to vector<2x64xf32>
    %295 = vector.shape_cast %294 : vector<2x64xf32> to vector<2x64x1xf32>
    %296 = tpu.reciprocal %295 {approx = true} : vector<2x64x1xf32> -> vector<2x64x1xf32>
    %297 = vector.broadcast %296 : vector<2x64x1xf32> to vector<2x64x64xf32>
    %298 = arith.mulf %293, %297 : vector<2x64x64xf32>
    %299 = arith.truncf %298 : vector<2x64x64xf32> to vector<2x64x64xbf16>
    %cst_115 = arith.constant dense<0.000000e+00> : vector<2x64x32xf32>
    %300 = tpu.matmul %299, %280, %cst_115 {dimension_numbers = #tpu.dot_dimension_numbers<[2], [1], [1], [2], [0, 0, 0, 1, 1, 2], [0], [0]>} : vector<2x64x64xbf16>, vector<2x64x32xbf16>, vector<2x64x32xf32> -> vector<2x64x32xf32>
    %301 = vector.shape_cast %300 : vector<2x64x32xf32> to vector<128x32xf32>
    %302 = arith.addf %273, %301 : vector<128x32xf32>
    %303 = vector.extract_strided_slice %240 {offsets = [0, 16], sizes = [128, 8], strides = [1, 1]} : vector<128x192xf32> to vector<128x8xf32>
    %304 = vector.shape_cast %303 : vector<128x8xf32> to vector<2x64x8xf32>
    %305 = vector.extract_strided_slice %240 {offsets = [0, 48], sizes = [128, 8], strides = [1, 1]} : vector<128x192xf32> to vector<128x8xf32>
    %306 = vector.shape_cast %305 : vector<128x8xf32> to vector<2x64x8xf32>
    %307 = vector.extract_strided_slice %240 {offsets = [0, 128], sizes = [128, 32], strides = [1, 1]} : vector<128x192xf32> to vector<128x32xf32>
    %308 = arith.truncf %307 : vector<128x32xf32> to vector<128x32xbf16>
    %309 = vector.shape_cast %308 : vector<128x32xbf16> to vector<2x64x32xbf16>
    %310 = arith.truncf %304 : vector<2x64x8xf32> to vector<2x64x8xbf16>
    %311 = arith.truncf %306 : vector<2x64x8xf32> to vector<2x64x8xbf16>
    %cst_116 = arith.constant dense<0.000000e+00> : vector<2x64x64xf32>
    %312 = tpu.matmul %310, %311, %cst_116 {dimension_numbers = #tpu.dot_dimension_numbers<[2], [2], [1], [1], [0, 0, 0, 1, 1, 1], [0], [0]>} : vector<2x64x8xbf16>, vector<2x64x8xbf16>, vector<2x64x64xf32> -> vector<2x64x64xf32>
    %c1_117 = arith.constant 1 : index
    %c2_118 = arith.constant 2 : index
    %c0_119 = arith.constant 0 : index
    %c0_120 = arith.constant 0 : index
    %313 = vector.load %arg2[%c1_117, %c2_118, %c0_119, %c0_120] : memref<2x4x64x64xf32, #tpu.memory_space<vmem>>, vector<1x1x64x64xf32>
    %314 = vector.shape_cast %313 : vector<1x1x64x64xf32> to vector<64x64xf32>
    %315 = vector.shape_cast %314 : vector<64x64xf32> to vector<1x64x64xf32>
    %316 = vector.broadcast %315 : vector<1x64x64xf32> to vector<2x64x64xf32>
    %317 = arith.addf %312, %316 : vector<2x64x64xf32>
    %cst_121 = arith.constant dense<0xFF800000> : vector<2x64xf32>
    %318 = vector.multi_reduction <maximumf>, %317, %cst_121 [2] : vector<2x64x64xf32> to vector<2x64xf32>
    %319 = vector.shape_cast %318 : vector<2x64xf32> to vector<2x64x1xf32>
    %320 = vector.broadcast %319 : vector<2x64x1xf32> to vector<2x64x64xf32>
    %321 = arith.subf %317, %320 : vector<2x64x64xf32>
    %322 = math.exp %321 : vector<2x64x64xf32>
    %cst_122 = arith.constant dense<0.000000e+00> : vector<2x64xf32>
    %323 = vector.multi_reduction <add>, %322, %cst_122 [2] : vector<2x64x64xf32> to vector<2x64xf32>
    %324 = vector.shape_cast %323 : vector<2x64xf32> to vector<2x64x1xf32>
    %325 = tpu.reciprocal %324 {approx = true} : vector<2x64x1xf32> -> vector<2x64x1xf32>
    %326 = vector.broadcast %325 : vector<2x64x1xf32> to vector<2x64x64xf32>
    %327 = arith.mulf %322, %326 : vector<2x64x64xf32>
    %328 = arith.truncf %327 : vector<2x64x64xf32> to vector<2x64x64xbf16>
    %cst_123 = arith.constant dense<0.000000e+00> : vector<2x64x32xf32>
    %329 = tpu.matmul %328, %309, %cst_123 {dimension_numbers = #tpu.dot_dimension_numbers<[2], [1], [1], [2], [0, 0, 0, 1, 1, 2], [0], [0]>} : vector<2x64x64xbf16>, vector<2x64x32xbf16>, vector<2x64x32xf32> -> vector<2x64x32xf32>
    %330 = vector.shape_cast %329 : vector<2x64x32xf32> to vector<128x32xf32>
    %331 = arith.addf %302, %330 : vector<128x32xf32>
    %332 = vector.extract_strided_slice %240 {offsets = [0, 24], sizes = [128, 8], strides = [1, 1]} : vector<128x192xf32> to vector<128x8xf32>
    %333 = vector.shape_cast %332 : vector<128x8xf32> to vector<2x64x8xf32>
    %334 = vector.extract_strided_slice %240 {offsets = [0, 56], sizes = [128, 8], strides = [1, 1]} : vector<128x192xf32> to vector<128x8xf32>
    %335 = vector.shape_cast %334 : vector<128x8xf32> to vector<2x64x8xf32>
    %336 = vector.extract_strided_slice %240 {offsets = [0, 160], sizes = [128, 32], strides = [1, 1]} : vector<128x192xf32> to vector<128x32xf32>
    %337 = arith.truncf %336 : vector<128x32xf32> to vector<128x32xbf16>
    %338 = vector.shape_cast %337 : vector<128x32xbf16> to vector<2x64x32xbf16>
    %339 = arith.truncf %333 : vector<2x64x8xf32> to vector<2x64x8xbf16>
    %340 = arith.truncf %335 : vector<2x64x8xf32> to vector<2x64x8xbf16>
    %cst_124 = arith.constant dense<0.000000e+00> : vector<2x64x64xf32>
    %341 = tpu.matmul %339, %340, %cst_124 {dimension_numbers = #tpu.dot_dimension_numbers<[2], [2], [1], [1], [0, 0, 0, 1, 1, 1], [0], [0]>} : vector<2x64x8xbf16>, vector<2x64x8xbf16>, vector<2x64x64xf32> -> vector<2x64x64xf32>
    %c1_125 = arith.constant 1 : index
    %c3_126 = arith.constant 3 : index
    %c0_127 = arith.constant 0 : index
    %c0_128 = arith.constant 0 : index
    %342 = vector.load %arg2[%c1_125, %c3_126, %c0_127, %c0_128] : memref<2x4x64x64xf32, #tpu.memory_space<vmem>>, vector<1x1x64x64xf32>
    %343 = vector.shape_cast %342 : vector<1x1x64x64xf32> to vector<64x64xf32>
    %344 = vector.shape_cast %343 : vector<64x64xf32> to vector<1x64x64xf32>
    %345 = vector.broadcast %344 : vector<1x64x64xf32> to vector<2x64x64xf32>
    %346 = arith.addf %341, %345 : vector<2x64x64xf32>
    %cst_129 = arith.constant dense<0xFF800000> : vector<2x64xf32>
    %347 = vector.multi_reduction <maximumf>, %346, %cst_129 [2] : vector<2x64x64xf32> to vector<2x64xf32>
    %348 = vector.shape_cast %347 : vector<2x64xf32> to vector<2x64x1xf32>
    %349 = vector.broadcast %348 : vector<2x64x1xf32> to vector<2x64x64xf32>
    %350 = arith.subf %346, %349 : vector<2x64x64xf32>
    %351 = math.exp %350 : vector<2x64x64xf32>
    %cst_130 = arith.constant dense<0.000000e+00> : vector<2x64xf32>
    %352 = vector.multi_reduction <add>, %351, %cst_130 [2] : vector<2x64x64xf32> to vector<2x64xf32>
    %353 = vector.shape_cast %352 : vector<2x64xf32> to vector<2x64x1xf32>
    %354 = tpu.reciprocal %353 {approx = true} : vector<2x64x1xf32> -> vector<2x64x1xf32>
    %355 = vector.broadcast %354 : vector<2x64x1xf32> to vector<2x64x64xf32>
    %356 = arith.mulf %351, %355 : vector<2x64x64xf32>
    %357 = arith.truncf %356 : vector<2x64x64xf32> to vector<2x64x64xbf16>
    %cst_131 = arith.constant dense<0.000000e+00> : vector<2x64x32xf32>
    %358 = tpu.matmul %357, %338, %cst_131 {dimension_numbers = #tpu.dot_dimension_numbers<[2], [1], [1], [2], [0, 0, 0, 1, 1, 2], [0], [0]>} : vector<2x64x64xbf16>, vector<2x64x32xbf16>, vector<2x64x32xf32> -> vector<2x64x32xf32>
    %359 = vector.shape_cast %358 : vector<2x64x32xf32> to vector<128x32xf32>
    %360 = arith.addf %331, %359 : vector<128x32xf32>
    %c1_132 = arith.constant 1 : index
    %c0_133 = arith.constant 0 : index
    %c0_134 = arith.constant 0 : index
    %361 = vector.load %arg8[%c1_132, %c0_133, %c0_134] : memref<2x1x32xf32, #tpu.memory_space<vmem>>, vector<1x1x32xf32>
    %362 = vector.shape_cast %361 : vector<1x1x32xf32> to vector<1x32xf32>
    %c1_135 = arith.constant 1 : index
    %c0_136 = arith.constant 0 : index
    %c0_137 = arith.constant 0 : index
    %363 = vector.load %arg9[%c1_135, %c0_136, %c0_137] : memref<2x1x32xf32, #tpu.memory_space<vmem>>, vector<1x1x32xf32>
    %364 = vector.shape_cast %363 : vector<1x1x32xf32> to vector<1x32xf32>
    %cst_138 = arith.constant dense<0.000000e+00> : vector<128xf32>
    %365 = vector.multi_reduction <add>, %360, %cst_138 [1] : vector<128x32xf32> to vector<128xf32>
    %366 = vector.shape_cast %365 : vector<128xf32> to vector<128x1xf32>
    %cst_139 = arith.constant 3.200000e+01 : f32
    %367 = vector.broadcast %cst_139 : f32 to vector<128x1xf32>
    %368 = arith.divf %366, %367 : vector<128x1xf32>
    %369 = vector.broadcast %368 : vector<128x1xf32> to vector<128x32xf32>
    %370 = arith.subf %360, %369 : vector<128x32xf32>
    %371 = arith.mulf %370, %370 : vector<128x32xf32>
    %cst_140 = arith.constant dense<0.000000e+00> : vector<128xf32>
    %372 = vector.multi_reduction <add>, %371, %cst_140 [1] : vector<128x32xf32> to vector<128xf32>
    %373 = vector.shape_cast %372 : vector<128xf32> to vector<128x1xf32>
    %cst_141 = arith.constant 3.200000e+01 : f32
    %374 = vector.broadcast %cst_141 : f32 to vector<128x1xf32>
    %375 = arith.divf %373, %374 : vector<128x1xf32>
    %376 = vector.broadcast %368 : vector<128x1xf32> to vector<128x32xf32>
    %377 = arith.subf %360, %376 : vector<128x32xf32>
    %cst_142 = arith.constant 9.99999974E-6 : f32
    %378 = vector.broadcast %cst_142 : f32 to vector<128x1xf32>
    %379 = arith.addf %375, %378 : vector<128x1xf32>
    %380 = math.rsqrt %379 : vector<128x1xf32>
    %381 = vector.broadcast %380 : vector<128x1xf32> to vector<128x32xf32>
    %382 = arith.mulf %377, %381 : vector<128x32xf32>
    %383 = vector.broadcast %362 : vector<1x32xf32> to vector<128x32xf32>
    %384 = arith.mulf %382, %383 : vector<128x32xf32>
    %385 = vector.broadcast %364 : vector<1x32xf32> to vector<128x32xf32>
    %386 = arith.addf %384, %385 : vector<128x32xf32>
    %387 = arith.truncf %386 : vector<128x32xf32> to vector<128x32xbf16>
    %c1_143 = arith.constant 1 : index
    %c0_144 = arith.constant 0 : index
    %c0_145 = arith.constant 0 : index
    %388 = vector.load %arg10[%c1_143, %c0_144, %c0_145] : memref<2x32x128xbf16, #tpu.memory_space<vmem>>, vector<1x32x128xbf16>
    %389 = vector.shape_cast %388 : vector<1x32x128xbf16> to vector<32x128xbf16>
    %cst_146 = arith.constant dense<0.000000e+00> : vector<128x128xf32>
    %390 = tpu.matmul %387, %389, %cst_146 {dimension_numbers = #tpu.dot_dimension_numbers<[1], [0], [0], [1], [0, 0, 1, 1], [], []>} : vector<128x32xbf16>, vector<32x128xbf16>, vector<128x128xf32> -> vector<128x128xf32>
    %c1_147 = arith.constant 1 : index
    %c0_148 = arith.constant 0 : index
    %c0_149 = arith.constant 0 : index
    %391 = vector.load %arg11[%c1_147, %c0_148, %c0_149] : memref<2x1x128xf32, #tpu.memory_space<vmem>>, vector<1x1x128xf32>
    %392 = vector.shape_cast %391 : vector<1x1x128xf32> to vector<1x128xf32>
    %393 = vector.broadcast %392 : vector<1x128xf32> to vector<128x128xf32>
    %394 = arith.addf %390, %393 : vector<128x128xf32>
    %cst_150 = arith.constant 5.000000e-01 : f32
    %395 = vector.broadcast %cst_150 : f32 to vector<128x128xf32>
    %396 = arith.mulf %395, %394 : vector<128x128xf32>
    %cst_151 = arith.constant 0.707106769 : f32
    %397 = vector.broadcast %cst_151 : f32 to vector<128x128xf32>
    %398 = arith.mulf %394, %397 : vector<128x128xf32>
    %399 = math.erf %398 : vector<128x128xf32>
    %cst_152 = arith.constant 1.000000e+00 : f32
    %400 = vector.broadcast %cst_152 : f32 to vector<128x128xf32>
    %401 = arith.addf %400, %399 : vector<128x128xf32>
    %402 = arith.mulf %396, %401 : vector<128x128xf32>
    %403 = arith.truncf %402 : vector<128x128xf32> to vector<128x128xbf16>
    %c1_153 = arith.constant 1 : index
    %c0_154 = arith.constant 0 : index
    %c0_155 = arith.constant 0 : index
    %404 = vector.load %arg12[%c1_153, %c0_154, %c0_155] : memref<2x128x32xbf16, #tpu.memory_space<vmem>>, vector<1x128x32xbf16>
    %405 = vector.shape_cast %404 : vector<1x128x32xbf16> to vector<128x32xbf16>
    %cst_156 = arith.constant dense<0.000000e+00> : vector<128x32xf32>
    %406 = tpu.matmul %403, %405, %cst_156 {dimension_numbers = #tpu.dot_dimension_numbers<[1], [0], [0], [1], [0, 0, 1, 1], [], []>} : vector<128x128xbf16>, vector<128x32xbf16>, vector<128x32xf32> -> vector<128x32xf32>
    %407 = arith.addf %360, %406 : vector<128x32xf32>
    %c1_157 = arith.constant 1 : index
    %c0_158 = arith.constant 0 : index
    %c0_159 = arith.constant 0 : index
    %408 = vector.load %arg13[%c1_157, %c0_158, %c0_159] : memref<2x1x32xf32, #tpu.memory_space<vmem>>, vector<1x1x32xf32>
    %409 = vector.shape_cast %408 : vector<1x1x32xf32> to vector<1x32xf32>
    %410 = vector.broadcast %409 : vector<1x32xf32> to vector<128x32xf32>
    %411 = arith.addf %407, %410 : vector<128x32xf32>
    %412 = vector.shape_cast %411 : vector<128x32xf32> to vector<2x64x32xf32>
    %c0_160 = arith.constant 0 : index
    %c0_161 = arith.constant 0 : index
    %c0_162 = arith.constant 0 : index
    %413 = vector.load %arg14[%c0_160, %c0_161, %c0_162] : memref<2x64x32xf32, #tpu.memory_space<vmem>>, vector<2x64x32xf32>
    tpu.vector_store %arg14[%c0_160, %c0_161, %c0_162], %412 {strides = array<i32>} : memref<2x64x32xf32, #tpu.memory_space<vmem>>, vector<2x64x32xf32>,
    return
  }
  func.func @transform_0(%arg0: i32) -> (i32, i32, i32) {
    %c0_i32 = arith.constant 0 : i32
    %c0_i32_0 = arith.constant 0 : i32
    %c0_i32_1 = arith.constant 0 : i32
    return %arg0, %c0_i32, %c0_i32_0 : i32, i32, i32
  }
  func.func @transform_1(%arg0: i32) -> (i32, i32, i32, i32) {
    %c0_i32 = arith.constant 0 : i32
    %c0_i32_0 = arith.constant 0 : i32
    %c0_i32_1 = arith.constant 0 : i32
    %c0_i32_2 = arith.constant 0 : i32
    %c0_i32_3 = arith.constant 0 : i32
    return %c0_i32, %c0_i32_0, %c0_i32_1, %c0_i32_2 : i32, i32, i32, i32
  }
  func.func @transform_2(%arg0: i32) -> (i32, i32, i32) {
    %c0_i32 = arith.constant 0 : i32
    %c0_i32_0 = arith.constant 0 : i32
    %c0_i32_1 = arith.constant 0 : i32
    %c0_i32_2 = arith.constant 0 : i32
    return %c0_i32, %c0_i32_0, %c0_i32_1 : i32, i32, i32
  }
  func.func @transform_3(%arg0: i32) -> (i32, i32, i32) {
    %c0_i32 = arith.constant 0 : i32
    %c0_i32_0 = arith.constant 0 : i32
    %c0_i32_1 = arith.constant 0 : i32
    %c0_i32_2 = arith.constant 0 : i32
    return %c0_i32, %c0_i32_0, %c0_i32_1 : i32, i32, i32
  }
  func.func @transform_4(%arg0: i32) -> (i32, i32, i32) {
    %c0_i32 = arith.constant 0 : i32
    %c0_i32_0 = arith.constant 0 : i32
    %c0_i32_1 = arith.constant 0 : i32
    %c0_i32_2 = arith.constant 0 : i32
    return %c0_i32, %c0_i32_0, %c0_i32_1 : i32, i32, i32
  }
  func.func @transform_5(%arg0: i32) -> (i32, i32, i32) {
    %c0_i32 = arith.constant 0 : i32
    %c0_i32_0 = arith.constant 0 : i32
    %c0_i32_1 = arith.constant 0 : i32
    %c0_i32_2 = arith.constant 0 : i32
    return %c0_i32, %c0_i32_0, %c0_i32_1 : i32, i32, i32
  }
  func.func @transform_6(%arg0: i32) -> (i32, i32, i32) {
    %c0_i32 = arith.constant 0 : i32
    %c0_i32_0 = arith.constant 0 : i32
    %c0_i32_1 = arith.constant 0 : i32
    %c0_i32_2 = arith.constant 0 : i32
    return %c0_i32, %c0_i32_0, %c0_i32_1 : i32, i32, i32
  }
  func.func @transform_7(%arg0: i32) -> (i32, i32, i32) {
    %c0_i32 = arith.constant 0 : i32
    %c0_i32_0 = arith.constant 0 : i32
    %c0_i32_1 = arith.constant 0 : i32
    %c0_i32_2 = arith.constant 0 : i32
    return %c0_i32, %c0_i32_0, %c0_i32_1 : i32, i32, i32
  }
  func.func @transform_8(%arg0: i32) -> (i32, i32, i32) {
    %c0_i32 = arith.constant 0 : i32
    %c0_i32_0 = arith.constant 0 : i32
    %c0_i32_1 = arith.constant 0 : i32
    %c0_i32_2 = arith.constant 0 : i32
    return %c0_i32, %c0_i32_0, %c0_i32_1 : i32, i32, i32
  }
  func.func @transform_9(%arg0: i32) -> (i32, i32, i32) {
    %c0_i32 = arith.constant 0 : i32
    %c0_i32_0 = arith.constant 0 : i32
    %c0_i32_1 = arith.constant 0 : i32
    %c0_i32_2 = arith.constant 0 : i32
    return %c0_i32, %c0_i32_0, %c0_i32_1 : i32, i32, i32
  }
  func.func @transform_10(%arg0: i32) -> (i32, i32, i32) {
    %c0_i32 = arith.constant 0 : i32
    %c0_i32_0 = arith.constant 0 : i32
    %c0_i32_1 = arith.constant 0 : i32
    %c0_i32_2 = arith.constant 0 : i32
    return %c0_i32, %c0_i32_0, %c0_i32_1 : i32, i32, i32
  }
  func.func @transform_11(%arg0: i32) -> (i32, i32, i32) {
    %c0_i32 = arith.constant 0 : i32
    %c0_i32_0 = arith.constant 0 : i32
    %c0_i32_1 = arith.constant 0 : i32
    %c0_i32_2 = arith.constant 0 : i32
    return %c0_i32, %c0_i32_0, %c0_i32_1 : i32, i32, i32
  }
  func.func @transform_12(%arg0: i32) -> (i32, i32, i32) {
    %c0_i32 = arith.constant 0 : i32
    %c0_i32_0 = arith.constant 0 : i32
    %c0_i32_1 = arith.constant 0 : i32
    %c0_i32_2 = arith.constant 0 : i32
    return %c0_i32, %c0_i32_0, %c0_i32_1 : i32, i32, i32
  }
  func.func @transform_13(%arg0: i32) -> (i32, i32, i32) {
    %c0_i32 = arith.constant 0 : i32
    %c0_i32_0 = arith.constant 0 : i32
    %c0_i32_1 = arith.constant 0 : i32
    return %arg0, %c0_i32, %c0_i32_0 : i32, i32, i32
  }
}

</mosaic_0001>

<llo_original>
// kernel: basic_layer_pallas.1
$region0: #{basic_layer_pallas.1}
  #allocation0 [shape = 'u32[]', space=smem, size = 0x4, offset = 0x4, fixed_abs, tag = 'smem constant byte address 0x4 - core index']
  #allocation1 [shape = 'u32[144,128]{1,0:T(1,128)}', space=vmem, size = 0x12000, scoped, tag = 'internal scratch']
  %s0 = inlined_call_operand.vmem [shape: f32[2,64,32], index: 0, kind: input, shape index: {}]
  %s1 = inlined_call_operand.hbm [shape: f32[2,4,64,64], index: 1, kind: input, shape index: {}]
  %s2 = inlined_call_operand.vmem [shape: f32[2,1,32], index: 2, kind: input, shape index: {}]
  %s3 = inlined_call_operand.vmem [shape: f32[2,1,32], index: 3, kind: input, shape index: {}]
  %s4 = inlined_call_operand.vmem [shape: bf16[2,32,192], index: 4, kind: input, shape index: {}]
  %s5 = inlined_call_operand.vmem [shape: f32[2,1,192], index: 5, kind: input, shape index: {}]
  %s6 = inlined_call_operand.vmem [shape: f32[2,1,32], index: 6, kind: input, shape index: {}]
  %s7 = inlined_call_operand.vmem [shape: f32[2,1,32], index: 7, kind: input, shape index: {}]
  %s8 = inlined_call_operand.vmem [shape: f32[2,1,32], index: 8, kind: input, shape index: {}]
  %s9 = inlined_call_operand.vmem [shape: bf16[2,32,128], index: 9, kind: input, shape index: {}]
  %s10 = inlined_call_operand.vmem [shape: f32[2,1,128], index: 10, kind: input, shape index: {}]
  %s11 = inlined_call_operand.vmem [shape: bf16[2,128,32], index: 11, kind: input, shape index: {}]
  %s12 = inlined_call_operand.vmem [shape: f32[2,1,32], index: 12, kind: input, shape index: {}]
  %s13 = inlined_call_operand.vmem [shape: f32[2,64,32], index: 13, kind: output, shape index: {}]
  %s14 = sld [smem:[#allocation0]]
  $region66: #{basic_layer_pallas.1} parent=0
    _
  %s16 = ssub.s32 1, %s14
  %s17 = scalar_select 0, %s16, %s14
  $region1: #{basic_layer_pallas.1} parent=0
    #allocation2 [shape = 'u8[262144]{0}', space=vmem, size = 0x40000, scoped, tag = 'input window, operand 1, single buffered']
    #allocation3 [shape = 's32[1]{0}', space=sflag, size = 0x4, scoped, tag = 'scoped memory for basic_layer_pallas.1']
    %18 = vsyncpa [#allocation3], 0
    // Predicated region
    $region2: #{basic_layer_pallas.1} parent=1 // pred_check
      _
    $region3: #{basic_layer_pallas.1} parent=1 // pred_check_branch
      %20 = sbr.rel (0) target = $region5
    $region4: #{basic_layer_pallas.1} parent=1 // pred_region
      _
    $region5: #{basic_layer_pallas.1} parent=1 // pred_fallthru
      _
    // Predicated region
    $region6: #{basic_layer_pallas.1} parent=1 // pred_check
      _
    $region7: #{basic_layer_pallas.1} parent=1 // pred_check_branch
      %22 = sbr.rel (0) target = $region9
    $region8: #{basic_layer_pallas.1} parent=1 // pred_region
      %s24 = ssub.s32 8192, 8192
      %25 = vsyncadd [#allocation3], %s24
      %s26 = sshll.u32 [#allocation2], 4
      %s27 = int_to_ptr.vmem [resolvable:$true] %s26
      %32 = dma.hbm_to_vmem [thread:$0]  %s1, 8192, %s27, [#allocation3], 128, 128, 8
    $region9: #{basic_layer_pallas.1} parent=1 // pred_fallthru
      _
    // Predicated region
    $region10: #{basic_layer_pallas.1} parent=1 // pred_check
      _
    $region11: #{basic_layer_pallas.1} parent=1 // pred_check_branch
      %34 = sbr.rel (0) target = $region13
    $region12: #{basic_layer_pallas.1} parent=1 // pred_region
      _
    $region13: #{basic_layer_pallas.1} parent=1 // pred_fallthru
      _
    // Predicated region
    $region14: #{basic_layer_pallas.1} parent=1 // pred_check
      _
    $region15: #{basic_layer_pallas.1} parent=1 // pred_check_branch
      %36 = sbr.rel (0) target = $region17
    $region16: #{basic_layer_pallas.1} parent=1 // pred_region
      _
    $region17: #{basic_layer_pallas.1} parent=1 // pred_fallthru
      _
    // Predicated region
    $region18: #{basic_layer_pallas.1} parent=1 // pred_check
      _
    $region19: #{basic_layer_pallas.1} parent=1 // pred_check_branch
      %38 = sbr.rel (0) target = $region21
    $region20: #{basic_layer_pallas.1} parent=1 // pred_region
      _
    $region21: #{basic_layer_pallas.1} parent=1 // pred_fallthru
      _
    // Predicated region
    $region22: #{basic_layer_pallas.1} parent=1 // pred_check
      _
    $region23: #{basic_layer_pallas.1} parent=1 // pred_check_branch
      %40 = sbr.rel (0) target = $region25
    $region24: #{basic_layer_pallas.1} parent=1 // pred_region
      _
    $region25: #{basic_layer_pallas.1} parent=1 // pred_fallthru
      _
    // Predicated region
    $region26: #{basic_layer_pallas.1} parent=1 // pred_check
      _
    $region27: #{basic_layer_pallas.1} parent=1 // pred_check_branch
      %42 = sbr.rel (0) target = $region29
    $region28: #{basic_layer_pallas.1} parent=1 // pred_region
      _
    $region29: #{basic_layer_pallas.1} parent=1 // pred_fallthru
      _
    // Predicated region
    $region30: #{basic_layer_pallas.1} parent=1 // pred_check
      _
    $region31: #{basic_layer_pallas.1} parent=1 // pred_check_branch
      %44 = sbr.rel (0) target = $region33
    $region32: #{basic_layer_pallas.1} parent=1 // pred_region
      _
    $region33: #{basic_layer_pallas.1} parent=1 // pred_fallthru
      _
    // Predicated region
    $region34: #{basic_layer_pallas.1} parent=1 // pred_check
      _
    $region35: #{basic_layer_pallas.1} parent=1 // pred_check_branch
      %46 = sbr.rel (0) target = $region37
    $region36: #{basic_layer_pallas.1} parent=1 // pred_region
      _
    $region37: #{basic_layer_pallas.1} parent=1 // pred_fallthru
      _
    // Predicated region
    $region38: #{basic_layer_pallas.1} parent=1 // pred_check
      _
    $region39: #{basic_layer_pallas.1} parent=1 // pred_check_branch
      %48 = sbr.rel (0) target = $region41
    $region40: #{basic_layer_pallas.1} parent=1 // pred_region
      _
    $region41: #{basic_layer_pallas.1} parent=1 // pred_fallthru
      _
    // Predicated region
    $region42: #{basic_layer_pallas.1} parent=1 // pred_check
      _
    $region43: #{basic_layer_pallas.1} parent=1 // pred_check_branch
      %50 = sbr.rel (0) target = $region45
    $region44: #{basic_layer_pallas.1} parent=1 // pred_region
      _
    $region45: #{basic_layer_pallas.1} parent=1 // pred_fallthru
      _
    // Predicated region
    $region46: #{basic_layer_pallas.1} parent=1 // pred_check
      _
    $region47: #{basic_layer_pallas.1} parent=1 // pred_check_branch
      %52 = sbr.rel (0) target = $region49
    $region48: #{basic_layer_pallas.1} parent=1 // pred_region
      _
    $region49: #{basic_layer_pallas.1} parent=1 // pred_fallthru
      _
    // Predicated region
    $region50: #{basic_layer_pallas.1} parent=1 // pred_check
      _
    $region51: #{basic_layer_pallas.1} parent=1 // pred_check_branch
      %54 = sbr.rel (0) target = $region53
    $region52: #{basic_layer_pallas.1} parent=1 // pred_region
      _
    $region53: #{basic_layer_pallas.1} parent=1 // pred_fallthru
      _
    // Predicated region
    $region54: #{basic_layer_pallas.1} parent=1 // pred_check
      _
    $region55: #{basic_layer_pallas.1} parent=1 // pred_check_branch
      %56 = sbr.rel (0) target = $region57
    $region56: #{basic_layer_pallas.1} parent=1 // pred_region
      %57 = dma.done [#allocation3], 8192
    $region57: #{basic_layer_pallas.1} parent=1 // pred_fallthru
      _
    %v59 = vld [vmem:[%s0] sm:$0xff]
    %v60 = vld [vmem:[%s0 + $0x8] sm:$0xff]
    %v61 = vld [vmem:[%s0 + $0x10] sm:$0xff]
    %v62 = vld [vmem:[%s0 + $0x18] sm:$0xff]
    %v63 = vld [vmem:[%s0 + $0x20] sm:$0xff]
    %v64 = vld [vmem:[%s0 + $0x28] sm:$0xff]
    %v65 = vld [vmem:[%s0 + $0x30] sm:$0xff]
    %v66 = vld [vmem:[%s0 + $0x38] sm:$0xff]
    %v67 = vld [vmem:[%s0 + $0x40] sm:$0xff]
    %v68 = vld [vmem:[%s0 + $0x48] sm:$0xff]
    %v69 = vld [vmem:[%s0 + $0x50] sm:$0xff]
    %v70 = vld [vmem:[%s0 + $0x58] sm:$0xff]
    %v71 = vld [vmem:[%s0 + $0x60] sm:$0xff]
    %v72 = vld [vmem:[%s0 + $0x68] sm:$0xff]
    %v73 = vld [vmem:[%s0 + $0x70] sm:$0xff]
    %v74 = vld [vmem:[%s0 + $0x78] sm:$0xff]
    %v75 = vld [vmem:[%s2] sm:$0x1]
    %v76 = vld [vmem:[%s3] sm:$0x1]
    %vm77 = vcmask 261120
    %v78 = vsel %vm77, %v59, 0.0
    %79 = vadd.xlane.f32.xlu0 %v78
    %v80 = vpop.xlane.xlu0 %79
    %v81 = vsel %vm77, %v60, 0.0
    %82 = vadd.xlane.f32.xlu0 %v81
    %v83 = vpop.xlane.xlu0 %82
    %v84 = vsel %vm77, %v61, 0.0
    %85 = vadd.xlane.f32.xlu0 %v84
    %v86 = vpop.xlane.xlu0 %85
    %v87 = vsel %vm77, %v62, 0.0
    %88 = vadd.xlane.f32.xlu0 %v87
    %v89 = vpop.xlane.xlu0 %88
    %v90 = vsel %vm77, %v63, 0.0
    %91 = vadd.xlane.f32.xlu0 %v90
    %v92 = vpop.xlane.xlu0 %91
    %v93 = vsel %vm77, %v64, 0.0
    %94 = vadd.xlane.f32.xlu0 %v93
    %v95 = vpop.xlane.xlu0 %94
    %v96 = vsel %vm77, %v65, 0.0
    %97 = vadd.xlane.f32.xlu0 %v96
    %v98 = vpop.xlane.xlu0 %97
    %v99 = vsel %vm77, %v66, 0.0
    %100 = vadd.xlane.f32.xlu0 %v99
    %v101 = vpop.xlane.xlu0 %100
    %v102 = vsel %vm77, %v67, 0.0
    %103 = vadd.xlane.f32.xlu0 %v102
    %v104 = vpop.xlane.xlu0 %103
    %v105 = vsel %vm77, %v68, 0.0
    %106 = vadd.xlane.f32.xlu0 %v105
    %v107 = vpop.xlane.xlu0 %106
    %v108 = vsel %vm77, %v69, 0.0
    %109 = vadd.xlane.f32.xlu0 %v108
    %v110 = vpop.xlane.xlu0 %109
    %v111 = vsel %vm77, %v70, 0.0
    %112 = vadd.xlane.f32.xlu0 %v111
    %v113 = vpop.xlane.xlu0 %112
    %v114 = vsel %vm77, %v71, 0.0
    %115 = vadd.xlane.f32.xlu0 %v114
    %v116 = vpop.xlane.xlu0 %115
    %v117 = vsel %vm77, %v72, 0.0
    %118 = vadd.xlane.f32.xlu0 %v117
    %v119 = vpop.xlane.xlu0 %118
    %v120 = vsel %vm77, %v73, 0.0
    %121 = vadd.xlane.f32.xlu0 %v120
    %v122 = vpop.xlane.xlu0 %121
    %v123 = vsel %vm77, %v74, 0.0
    %124 = vadd.xlane.f32.xlu0 %v123
    %v125 = vpop.xlane.xlu0 %124
    %v126 = vrcp.pop 32.0
    %v127 = vmul.f32 %v80, %v126
    %v128 = vmul.f32 %v83, %v126
    %v129 = vmul.f32 %v86, %v126
    %v130 = vmul.f32 %v89, %v126
    %v131 = vmul.f32 %v92, %v126
    %v132 = vmul.f32 %v95, %v126
    %v133 = vmul.f32 %v98, %v126
    %v134 = vmul.f32 %v101, %v126
    %v135 = vmul.f32 %v104, %v126
    %v136 = vmul.f32 %v107, %v126
    %v137 = vmul.f32 %v110, %v126
    %v138 = vmul.f32 %v113, %v126
    %v139 = vmul.f32 %v116, %v126
    %v140 = vmul.f32 %v119, %v126
    %v141 = vmul.f32 %v122, %v126
    %v142 = vmul.f32 %v125, %v126
    %v143 = vsub.f32 %v59, %v127
    %v144 = vsub.f32 %v60, %v128
    %v145 = vsub.f32 %v61, %v129
    %v146 = vsub.f32 %v62, %v130
    %v147 = vsub.f32 %v63, %v131
    %v148 = vsub.f32 %v64, %v132
    %v149 = vsub.f32 %v65, %v133
    %v150 = vsub.f32 %v66, %v134
    %v151 = vsub.f32 %v67, %v135
    %v152 = vsub.f32 %v68, %v136
    %v153 = vsub.f32 %v69, %v137
    %v154 = vsub.f32 %v70, %v138
    %v155 = vsub.f32 %v71, %v139
    %v156 = vsub.f32 %v72, %v140
    %v157 = vsub.f32 %v73, %v141
    %v158 = vsub.f32 %v74, %v142
    %v159 = vmul.f32 %v143, %v143
    %v160 = vmul.f32 %v144, %v144
    %v161 = vmul.f32 %v145, %v145
    %v162 = vmul.f32 %v146, %v146
    %v163 = vmul.f32 %v147, %v147
    %v164 = vmul.f32 %v148, %v148
    %v165 = vmul.f32 %v149, %v149
    %v166 = vmul.f32 %v150, %v150
    %v167 = vmul.f32 %v151, %v151
    %v168 = vmul.f32 %v152, %v152
    %v169 = vmul.f32 %v153, %v153
    %v170 = vmul.f32 %v154, %v154
    %v171 = vmul.f32 %v155, %v155
    %v172 = vmul.f32 %v156, %v156
    %v173 = vmul.f32 %v157, %v157
    %v174 = vmul.f32 %v158, %v158
    %v175 = vsel %vm77, %v159, 0.0
    %176 = vadd.xlane.f32.xlu0 %v175
    %v177 = vpop.xlane.xlu0 %176
    %v178 = vsel %vm77, %v160, 0.0
    %179 = vadd.xlane.f32.xlu0 %v178
    %v180 = vpop.xlane.xlu0 %179
    %v181 = vsel %vm77, %v161, 0.0
    %182 = vadd.xlane.f32.xlu0 %v181
    %v183 = vpop.xlane.xlu0 %182
    %v184 = vsel %vm77, %v162, 0.0
    %185 = vadd.xlane.f32.xlu0 %v184
    %v186 = vpop.xlane.xlu0 %185
    %v187 = vsel %vm77, %v163, 0.0
    %188 = vadd.xlane.f32.xlu0 %v187
    %v189 = vpop.xlane.xlu0 %188
    %v190 = vsel %vm77, %v164, 0.0
    %191 = vadd.xlane.f32.xlu0 %v190
    %v192 = vpop.xlane.xlu0 %191
    %v193 = vsel %vm77, %v165, 0.0
    %194 = vadd.xlane.f32.xlu0 %v193
    %v195 = vpop.xlane.xlu0 %194
    %v196 = vsel %vm77, %v166, 0.0
    %197 = vadd.xlane.f32.xlu0 %v196
    %v198 = vpop.xlane.xlu0 %197
    %v199 = vsel %vm77, %v167, 0.0
    %200 = vadd.xlane.f32.xlu0 %v199
    %v201 = vpop.xlane.xlu0 %200
    %v202 = vsel %vm77, %v168, 0.0
    %203 = vadd.xlane.f32.xlu0 %v202
    %v204 = vpop.xlane.xlu0 %203
    %v205 = vsel %vm77, %v169, 0.0
    %206 = vadd.xlane.f32.xlu0 %v205
    %v207 = vpop.xlane.xlu0 %206
    %v208 = vsel %vm77, %v170, 0.0
    %209 = vadd.xlane.f32.xlu0 %v208
    %v210 = vpop.xlane.xlu0 %209
    %v211 = vsel %vm77, %v171, 0.0
    %212 = vadd.xlane.f32.xlu0 %v211
    %v213 = vpop.xlane.xlu0 %212
    %v214 = vsel %vm77, %v172, 0.0
    %215 = vadd.xlane.f32.xlu0 %v214
    %v216 = vpop.xlane.xlu0 %215
    %v217 = vsel %vm77, %v173, 0.0
    %218 = vadd.xlane.f32.xlu0 %v217
    %v219 = vpop.xlane.xlu0 %218
    %v220 = vsel %vm77, %v174, 0.0
    %221 = vadd.xlane.f32.xlu0 %v220
    %v222 = vpop.xlane.xlu0 %221
    %v223 = vmul.f32 %v177, %v126
    %v224 = vmul.f32 %v180, %v126
    %v225 = vmul.f32 %v183, %v126
    %v226 = vmul.f32 %v186, %v126
    %v227 = vmul.f32 %v189, %v126
    %v228 = vmul.f32 %v192, %v126
    %v229 = vmul.f32 %v195, %v126
    %v230 = vmul.f32 %v198, %v126
    %v231 = vmul.f32 %v201, %v126
    %v232 = vmul.f32 %v204, %v126
    %v233 = vmul.f32 %v207, %v126
    %v234 = vmul.f32 %v210, %v126
    %v235 = vmul.f32 %v213, %v126
    %v236 = vmul.f32 %v216, %v126
    %v237 = vmul.f32 %v219, %v126
    %v238 = vmul.f32 %v222, %v126
    %v239 = vadd.f32 %v223, 1e-05
    %v240 = vadd.f32 %v224, 1e-05
    %v241 = vadd.f32 %v225, 1e-05
    %v242 = vadd.f32 %v226, 1e-05
    %v243 = vadd.f32 %v227, 1e-05
    %v244 = vadd.f32 %v228, 1e-05
    %v245 = vadd.f32 %v229, 1e-05
    %v246 = vadd.f32 %v230, 1e-05
    %v247 = vadd.f32 %v231, 1e-05
    %v248 = vadd.f32 %v232, 1e-05
    %v249 = vadd.f32 %v233, 1e-05
    %v250 = vadd.f32 %v234, 1e-05
    %v251 = vadd.f32 %v235, 1e-05
    %v252 = vadd.f32 %v236, 1e-05
    %v253 = vadd.f32 %v237, 1e-05
    %v254 = vadd.f32 %v238, 1e-05
    %v255 = vrsqrt.pop %v239
    %v256 = vrsqrt.pop %v240
    %v257 = vrsqrt.pop %v241
    %v258 = vrsqrt.pop %v242
    %v259 = vrsqrt.pop %v243
    %v260 = vrsqrt.pop %v244
    %v261 = vrsqrt.pop %v245
    %v262 = vrsqrt.pop %v246
    %v263 = vrsqrt.pop %v247
    %v264 = vrsqrt.pop %v248
    %v265 = vrsqrt.pop %v249
    %v266 = vrsqrt.pop %v250
    %v267 = vrsqrt.pop %v251
    %v268 = vrsqrt.pop %v252
    %v269 = vrsqrt.pop %v253
    %v270 = vrsqrt.pop %v254
    %v271 = vmul.f32 %v143, %v255
    %v272 = vmul.f32 %v144, %v256
    %v273 = vmul.f32 %v145, %v257
    %v274 = vmul.f32 %v146, %v258
    %v275 = vmul.f32 %v147, %v259
    %v276 = vmul.f32 %v148, %v260
    %v277 = vmul.f32 %v149, %v261
    %v278 = vmul.f32 %v150, %v262
    %v279 = vmul.f32 %v151, %v263
    %v280 = vmul.f32 %v152, %v264
    %v281 = vmul.f32 %v153, %v265
    %v282 = vmul.f32 %v154, %v266
    %v283 = vmul.f32 %v155, %v267
    %v284 = vmul.f32 %v156, %v268
    %v285 = vmul.f32 %v157, %v269
    %v286 = vmul.f32 %v158, %v270
    %v288 = vlaneseq
    %v289 = vshrl.u32 %v288, 7
    %v290 = vsub.s32 0, %v289
    %v291 = vrot.slane %v75, %v290
    %v293 = vmul.f32 %v271, %v291
    %v294 = vmul.f32 %v272, %v291
    %v295 = vmul.f32 %v273, %v291
    %v296 = vmul.f32 %v274, %v291
    %v297 = vmul.f32 %v275, %v291
    %v298 = vmul.f32 %v276, %v291
    %v299 = vmul.f32 %v277, %v291
    %v300 = vmul.f32 %v278, %v291
    %v301 = vmul.f32 %v279, %v291
    %v302 = vmul.f32 %v280, %v291
    %v303 = vmul.f32 %v281, %v291
    %v304 = vmul.f32 %v282, %v291
    %v305 = vmul.f32 %v283, %v291
    %v306 = vmul.f32 %v284, %v291
    %v307 = vmul.f32 %v285, %v291
    %v308 = vmul.f32 %v286, %v291
    %v310 = vlaneseq
    %v311 = vshrl.u32 %v310, 7
    %v312 = vsub.s32 0, %v311
    %v313 = vrot.slane %v76, %v312
    %v315 = vadd.f32 %v293, %v313
    %v316 = vadd.f32 %v294, %v313
    %v317 = vadd.f32 %v295, %v313
    %v318 = vadd.f32 %v296, %v313
    %v319 = vadd.f32 %v297, %v313
    %v320 = vadd.f32 %v298, %v313
    %v321 = vadd.f32 %v299, %v313
    %v322 = vadd.f32 %v300, %v313
    %v323 = vadd.f32 %v301, %v313
    %v324 = vadd.f32 %v302, %v313
    %v325 = vadd.f32 %v303, %v313
    %v326 = vadd.f32 %v304, %v313
    %v327 = vadd.f32 %v305, %v313
    %v328 = vadd.f32 %v306, %v313
    %v329 = vadd.f32 %v307, %v313
    %v330 = vadd.f32 %v308, %v313
    %v331 = vpack.c.bf16 %v316, %v315
    %v332 = vpack.c.bf16 %v318, %v317
    %v333 = vpack.c.bf16 %v320, %v319
    %v334 = vpack.c.bf16 %v322, %v321
    %v335 = vpack.c.bf16 %v324, %v323
    %v336 = vpack.c.bf16 %v326, %v325
    %v337 = vpack.c.bf16 %v328, %v327
    %v338 = vpack.c.bf16 %v330, %v329
    %v339 = vld [vmem:[%s4] sm:$0xff]
    %v340 = vld [vmem:[%s4 + $0x8] sm:$0xff]
    %v341 = vld [vmem:[%s4 + $0x10] sm:$0xff]
    %v342 = vld [vmem:[%s4 + $0x18] sm:$0xff]
    %v343 = vld [vmem:[%s5] sm:$0x3]
    %v345 = vlaneseq
    %v346 = vshrl.u32 %v345, 7
    %v347 = vsub.s32 0, %v346
    %v348 = vrot.slane %v343, %v347
    %v349 = vlaneseq
    %v350 = vshrl.u32 %v349, 7
    %v351 = vsub.s32 1, %v350
    %v352 = vrot.slane %v343, %v351
    %v359 = vunpack.c.l.b16 %v339
    %v360 = vunpack.c.h.b16 %v339
    %v361 = vunpack.c.l.b16 %v340
    %v362 = vunpack.c.h.b16 %v340
    %v363 = vunpack.c.l.b16 %v341
    %v364 = vunpack.c.h.b16 %v341
    %v365 = vunpack.c.l.b16 %v342
    %v366 = vunpack.c.h.b16 %v342
    %v367 = vpack.c.b16 %v361, %v359
    %v368 = vpack.c.b16 %v362, %v360
    %v369 = vpack.c.b16 %v365, %v363
    %v370 = vpack.c.b16 %v366, %v364
    %v376 = vsel %vm77, %v331, 0
    %v379 = vsel %vm77, %v332, 0
    %v382 = vsel %vm77, %v333, 0
    %v385 = vsel %vm77, %v334, 0
    %v388 = vsel %vm77, %v335, 0
    %v391 = vsel %vm77, %v336, 0
    %v394 = vsel %vm77, %v337, 0
    %v397 = vsel %vm77, %v338, 0
    %399 = vmatprep.subr.bf16.mxu0 0
    %400 = vmatpush1.bf16.msra.mxu0 0
    %401 = vmatprep.subr.bf16.mxu0 0
    %402 = vmatpush1.bf16.msra.mxu0 0
    %403 = vmatprep.subr.bf16.mxu0 0
    %404 = vmatpush1.bf16.msra.mxu0 0
    %405 = vmatprep.subr.bf16.mxu0 0
    %406 = vmatpush1.bf16.msra.mxu0 0
    %407 = vmatprep.subr.bf16.mxu0 0
    %408 = vmatpush1.bf16.msra.mxu0 0
    %409 = vmatprep.subr.bf16.mxu0 0
    %410 = vmatpush1.bf16.msra.mxu0 0
    %411 = vmatprep.subr.bf16.mxu0 %v370
    %412 = vmatpush1.bf16.msra.mxu0 %v369
    %413 = vmatprep.subr.bf16.mxu0 %v368
    %414 = vmatpush1.bf16.msra.mxu0 %v367
    %415 = vmatprep.subr.bf16.mxu0 0
    %416 = vmatpush2.bf16.msra.mxu0 0
    %417 = vmatprep.subr.bf16.mxu0 0
    %418 = vmatpush2.bf16.msra.mxu0 0
    %419 = vmatprep.subr.bf16.mxu0 0
    %420 = vmatpush2.bf16.msra.mxu0 0
    %421 = vmatprep.subr.bf16.mxu0 0
    %422 = vmatpush2.bf16.msra.mxu0 0
    %423 = vmatprep.subr.bf16.mxu0 0
    %424 = vmatpush2.bf16.msra.mxu0 0
    %425 = vmatprep.subr.bf16.mxu0 0
    %426 = vmatpush2.bf16.msra.mxu0 0
    %427 = vmatprep.subr.bf16.mxu0 0
    %428 = vmatpush2.bf16.msra.mxu0 0
    %429 = vmatprep.subr.bf16.mxu0 0
    %430 = vmatpush2.bf16.msra.mxu0 0
    %431 = vmatprep.mubr.bf16.mxu0 0
    %432 = vmatmul.mubr.bf16.gmra.mxu0 %v376
    %v433 = vpop.f32.mrf.mxu0
    %v434 = vadd.f32 %v348, %v433
    %v435 = vpop.f32.mrf.mxu0
    %v436 = vadd.f32 %v352, %v435
    %v437 = vpop.f32.mrf.mxu0
    %v438 = vadd.f32 %v348, %v437
    %v439 = vpop.f32.mrf.mxu0
    %v440 = vadd.f32 %v352, %v439
    %441 = vmatprep.mubr.bf16.mxu0 0
    %442 = vmatmul.mubr.bf16.gmra.mxu0 %v379
    %v443 = vpop.f32.mrf.mxu0
    %v444 = vadd.f32 %v348, %v443
    %v445 = vpop.f32.mrf.mxu0
    %v446 = vadd.f32 %v352, %v445
    %v447 = vpop.f32.mrf.mxu0
    %v448 = vadd.f32 %v348, %v447
    %v449 = vpop.f32.mrf.mxu0
    %v450 = vadd.f32 %v352, %v449
    %451 = vmatprep.mubr.bf16.mxu0 0
    %452 = vmatmul.mubr.bf16.gmra.mxu0 %v382
    %v453 = vpop.f32.mrf.mxu0
    %v454 = vadd.f32 %v348, %v453
    %v455 = vpop.f32.mrf.mxu0
    %v456 = vadd.f32 %v352, %v455
    %v457 = vpop.f32.mrf.mxu0
    %v458 = vadd.f32 %v348, %v457
    %v459 = vpop.f32.mrf.mxu0
    %v460 = vadd.f32 %v352, %v459
    %461 = vmatprep.mubr.bf16.mxu0 0
    %462 = vmatmul.mubr.bf16.gmra.mxu0 %v385
    %v463 = vpop.f32.mrf.mxu0
    %v464 = vadd.f32 %v348, %v463
    %v465 = vpop.f32.mrf.mxu0
    %v466 = vadd.f32 %v352, %v465
    %v467 = vpop.f32.mrf.mxu0
    %v468 = vadd.f32 %v348, %v467
    %v469 = vpop.f32.mrf.mxu0
    %v470 = vadd.f32 %v352, %v469
    %471 = vmatprep.mubr.bf16.mxu0 0
    %472 = vmatmul.mubr.bf16.gmra.mxu0 %v388
    %v473 = vpop.f32.mrf.mxu0
    %v474 = vadd.f32 %v348, %v473
    %v475 = vpop.f32.mrf.mxu0
    %v476 = vadd.f32 %v352, %v475
    %v477 = vpop.f32.mrf.mxu0
    %v478 = vadd.f32 %v348, %v477
    %v479 = vpop.f32.mrf.mxu0
    %v480 = vadd.f32 %v352, %v479
    %481 = vmatprep.mubr.bf16.mxu0 0
    %482 = vmatmul.mubr.bf16.gmra.mxu0 %v391
    %v483 = vpop.f32.mrf.mxu0
    %v484 = vadd.f32 %v348, %v483
    %v485 = vpop.f32.mrf.mxu0
    %v486 = vadd.f32 %v352, %v485
    %v487 = vpop.f32.mrf.mxu0
    %v488 = vadd.f32 %v348, %v487
    %v489 = vpop.f32.mrf.mxu0
    %v490 = vadd.f32 %v352, %v489
    %491 = vmatprep.mubr.bf16.mxu0 0
    %492 = vmatmul.mubr.bf16.gmra.mxu0 %v394
    %v493 = vpop.f32.mrf.mxu0
    %v494 = vadd.f32 %v348, %v493
    %v495 = vpop.f32.mrf.mxu0
    %v496 = vadd.f32 %v352, %v495
    %v497 = vpop.f32.mrf.mxu0
    %v498 = vadd.f32 %v348, %v497
    %v499 = vpop.f32.mrf.mxu0
    %v500 = vadd.f32 %v352, %v499
    %501 = vmatprep.mubr.bf16.mxu0 0
    %502 = vmatmul.mubr.bf16.gmra.mxu0 %v397
    %v503 = vpop.f32.mrf.mxu0
    %v504 = vadd.f32 %v348, %v503
    %v505 = vpop.f32.mrf.mxu0
    %v506 = vadd.f32 %v352, %v505
    %v507 = vpop.f32.mrf.mxu0
    %v508 = vadd.f32 %v348, %v507
    %v509 = vpop.f32.mrf.mxu0
    %v510 = vadd.f32 %v352, %v509
    %511 = vdwg.mxu0
    %v512 = vld [vmem:[%s6] sm:$0x1]
    %v514 = vlaneseq
    %v515 = vshrl.u32 %v514, 7
    %v516 = vsub.s32 0, %v515
    %v517 = vrot.slane %v512, %v516
    %v519 = vadd.f32 %v59, %v517
    %v520 = vadd.f32 %v60, %v517
    %v521 = vadd.f32 %v61, %v517
    %v522 = vadd.f32 %v62, %v517
    %v523 = vadd.f32 %v63, %v517
    %v524 = vadd.f32 %v64, %v517
    %v525 = vadd.f32 %v65, %v517
    %v526 = vadd.f32 %v66, %v517
    %v527 = vadd.f32 %v67, %v517
    %v528 = vadd.f32 %v68, %v517
    %v529 = vadd.f32 %v69, %v517
    %v530 = vadd.f32 %v70, %v517
    %v531 = vadd.f32 %v71, %v517
    %v532 = vadd.f32 %v72, %v517
    %v533 = vadd.f32 %v73, %v517
    %v534 = vadd.f32 %v74, %v517
    %v535 = vpack.c.bf16 %v438, %v434
    %v536 = vpack.c.bf16 %v448, %v444
    %v537 = vpack.c.bf16 %v458, %v454
    %v538 = vpack.c.bf16 %v468, %v464
    %v539 = vpack.c.bf16 %v478, %v474
    %v540 = vpack.c.bf16 %v488, %v484
    %v541 = vpack.c.bf16 %v498, %v494
    %v542 = vpack.c.bf16 %v508, %v504
    %v543 = vld [vmem:[#allocation2] sm:$0xff]
    %v544 = vld [vmem:[#allocation2 + $0x8] sm:$0xff]
    %v545 = vld [vmem:[#allocation2 + $0x10] sm:$0xff]
    %v546 = vld [vmem:[#allocation2 + $0x18] sm:$0xff]
    %v547 = vld [vmem:[#allocation2 + $0x20] sm:$0xff]
    %v548 = vld [vmem:[#allocation2 + $0x28] sm:$0xff]
    %v549 = vld [vmem:[#allocation2 + $0x30] sm:$0xff]
    %v550 = vld [vmem:[#allocation2 + $0x38] sm:$0xff]
    %555 = vrot.lane.b32.xlu0 %v535, 96
    %v556 = vpop.permute.xlu0 %555
    %557 = vrot.lane.b32.xlu0 %v536, 96
    %v558 = vpop.permute.xlu0 %557
    %559 = vrot.lane.b32.xlu0 %v537, 96
    %v560 = vpop.permute.xlu0 %559
    %561 = vrot.lane.b32.xlu0 %v538, 96
    %v562 = vpop.permute.xlu0 %561
    %vm563 = vcmask 64512
    %v565 = vsel %vm563, %v535, 0
    %v568 = vsel %vm563, %v536, 0
    %v571 = vsel %vm563, %v537, 0
    %v574 = vsel %vm563, %v538, 0
    %v577 = vsel %vm563, %v556, 0
    %v580 = vsel %vm563, %v558, 0
    %v583 = vsel %vm563, %v560, 0
    %v586 = vsel %vm563, %v562, 0
    %588 = vmatprep.subr.bf16.mxu0 0
    %589 = vmatpush1.bf16.xpose.msra.mxu0 0
    %590 = vmatprep.subr.bf16.mxu0 0
    %591 = vmatpush1.bf16.xpose.msra.mxu0 0
    %592 = vmatprep.subr.bf16.mxu0 0
    %593 = vmatpush1.bf16.xpose.msra.mxu0 0
    %594 = vmatprep.subr.bf16.mxu0 0
    %595 = vmatpush1.bf16.xpose.msra.mxu0 0
    %596 = vmatprep.subr.bf16.mxu0 0
    %597 = vmatpush1.bf16.xpose.msra.mxu0 %v586
    %598 = vmatprep.subr.bf16.mxu0 0
    %599 = vmatpush1.bf16.xpose.msra.mxu0 %v583
    %600 = vmatprep.subr.bf16.mxu0 0
    %601 = vmatpush1.bf16.xpose.msra.mxu0 %v580
    %602 = vmatprep.subr.bf16.mxu0 0
    %603 = vmatpush1.bf16.xpose.msra.mxu0 %v577
    %604 = vmatprep.subr.bf16.mxu0 0
    %605 = vmatpush2.bf16.xpose.msra.mxu0 0
    %606 = vmatprep.subr.bf16.mxu0 0
    %607 = vmatpush2.bf16.xpose.msra.mxu0 0
    %608 = vmatprep.subr.bf16.mxu0 0
    %609 = vmatpush2.bf16.xpose.msra.mxu0 0
    %610 = vmatprep.subr.bf16.mxu0 0
    %611 = vmatpush2.bf16.xpose.msra.mxu0 0
    %612 = vmatprep.subr.bf16.mxu0 0
    %613 = vmatpush2.bf16.xpose.msra.mxu0 0
    %614 = vmatprep.subr.bf16.mxu0 0
    %615 = vmatpush2.bf16.xpose.msra.mxu0 0
    %616 = vmatprep.subr.bf16.mxu0 0
    %617 = vmatpush2.bf16.xpose.msra.mxu0 0
    %618 = vmatprep.subr.bf16.mxu0 0
    %619 = vmatpush2.bf16.xpose.msra.mxu0 0
    %620 = vmatprep.mubr.bf16.mxu0 0
    %621 = vmatmul.mubr.bf16.gmra.mxu0 %v565
    %v622 = vpop.f32.mrf.mxu0
    %v623 = vadd.f32 %v543, %v622
    %v624 = vpop.f32.mrf.mxu0
    %v625 = vpop.f32.mrf.mxu0
    %v626 = vadd.f32 %v544, %v625
    %v627 = vpop.f32.mrf.mxu0
    %628 = vmatprep.mubr.bf16.mxu0 0
    %629 = vmatmul.mubr.bf16.gmra.mxu0 %v568
    %v630 = vpop.f32.mrf.mxu0
    %v631 = vadd.f32 %v545, %v630
    %v632 = vpop.f32.mrf.mxu0
    %v633 = vpop.f32.mrf.mxu0
    %v634 = vadd.f32 %v546, %v633
    %v635 = vpop.f32.mrf.mxu0
    %636 = vmatprep.mubr.bf16.mxu0 0
    %637 = vmatmul.mubr.bf16.gmra.mxu0 %v571
    %v638 = vpop.f32.mrf.mxu0
    %v639 = vadd.f32 %v547, %v638
    %v640 = vpop.f32.mrf.mxu0
    %v641 = vpop.f32.mrf.mxu0
    %v642 = vadd.f32 %v548, %v641
    %v643 = vpop.f32.mrf.mxu0
    %644 = vmatprep.mubr.bf16.mxu0 0
    %645 = vmatmul.mubr.bf16.gmra.mxu0 %v574
    %v646 = vpop.f32.mrf.mxu0
    %v647 = vadd.f32 %v549, %v646
    %v648 = vpop.f32.mrf.mxu0
    %v649 = vpop.f32.mrf.mxu0
    %v650 = vadd.f32 %v550, %v649
    %v651 = vpop.f32.mrf.mxu0
    %652 = vdwg.mxu0
    %657 = vrot.lane.b32.xlu0 %v539, 96
    %v658 = vpop.permute.xlu0 %657
    %659 = vrot.lane.b32.xlu0 %v540, 96
    %v660 = vpop.permute.xlu0 %659
    %661 = vrot.lane.b32.xlu0 %v541, 96
    %v662 = vpop.permute.xlu0 %661
    %663 = vrot.lane.b32.xlu0 %v542, 96
    %v664 = vpop.permute.xlu0 %663
    %v666 = vsel %vm563, %v539, 0
    %v669 = vsel %vm563, %v540, 0
    %v672 = vsel %vm563, %v541, 0
    %v675 = vsel %vm563, %v542, 0
    %v678 = vsel %vm563, %v658, 0
    %v681 = vsel %vm563, %v660, 0
    %v684 = vsel %vm563, %v662, 0
    %v687 = vsel %vm563, %v664, 0
    %689 = vmatprep.subr.bf16.mxu0 0
    %690 = vmatpush1.bf16.xpose.msra.mxu0 0
    %691 = vmatprep.subr.bf16.mxu0 0
    %692 = vmatpush1.bf16.xpose.msra.mxu0 0
    %693 = vmatprep.subr.bf16.mxu0 0
    %694 = vmatpush1.bf16.xpose.msra.mxu0 0
    %695 = vmatprep.subr.bf16.mxu0 0
    %696 = vmatpush1.bf16.xpose.msra.mxu0 0
    %697 = vmatprep.subr.bf16.mxu0 0
    %698 = vmatpush1.bf16.xpose.msra.mxu0 %v687
    %699 = vmatprep.subr.bf16.mxu0 0
    %700 = vmatpush1.bf16.xpose.msra.mxu0 %v684
    %701 = vmatprep.subr.bf16.mxu0 0
    %702 = vmatpush1.bf16.xpose.msra.mxu0 %v681
    %703 = vmatprep.subr.bf16.mxu0 0
    %704 = vmatpush1.bf16.xpose.msra.mxu0 %v678
    %705 = vmatprep.subr.bf16.mxu0 0
    %706 = vmatpush2.bf16.xpose.msra.mxu0 0
    %707 = vmatprep.subr.bf16.mxu0 0
    %708 = vmatpush2.bf16.xpose.msra.mxu0 0
    %709 = vmatprep.subr.bf16.mxu0 0
    %710 = vmatpush2.bf16.xpose.msra.mxu0 0
    %711 = vmatprep.subr.bf16.mxu0 0
    %712 = vmatpush2.bf16.xpose.msra.mxu0 0
    %713 = vmatprep.subr.bf16.mxu0 0
    %714 = vmatpush2.bf16.xpose.msra.mxu0 0
    %715 = vmatprep.subr.bf16.mxu0 0
    %716 = vmatpush2.bf16.xpose.msra.mxu0 0
    %717 = vmatprep.subr.bf16.mxu0 0
    %718 = vmatpush2.bf16.xpose.msra.mxu0 0
    %719 = vmatprep.subr.bf16.mxu0 0
    %720 = vmatpush2.bf16.xpose.msra.mxu0 0
    %721 = vmatprep.mubr.bf16.mxu0 0
    %722 = vmatmul.mubr.bf16.gmra.mxu0 %v666
    %v723 = vpop.f32.mrf.mxu0
    %v724 = vadd.f32 %v543, %v723
    %v725 = vpop.f32.mrf.mxu0
    %v726 = vpop.f32.mrf.mxu0
    %v727 = vadd.f32 %v544, %v726
    %v728 = vpop.f32.mrf.mxu0
    %729 = vmatprep.mubr.bf16.mxu0 0
    %730 = vmatmul.mubr.bf16.gmra.mxu0 %v669
    %v731 = vpop.f32.mrf.mxu0
    %v732 = vadd.f32 %v545, %v731
    %v733 = vpop.f32.mrf.mxu0
    %v734 = vpop.f32.mrf.mxu0
    %v735 = vadd.f32 %v546, %v734
    %v736 = vpop.f32.mrf.mxu0
    %737 = vmatprep.mubr.bf16.mxu0 0
    %738 = vmatmul.mubr.bf16.gmra.mxu0 %v672
    %v739 = vpop.f32.mrf.mxu0
    %v740 = vadd.f32 %v547, %v739
    %v741 = vpop.f32.mrf.mxu0
    %v742 = vpop.f32.mrf.mxu0
    %v743 = vadd.f32 %v548, %v742
    %v744 = vpop.f32.mrf.mxu0
    %745 = vmatprep.mubr.bf16.mxu0 0
    %746 = vmatmul.mubr.bf16.gmra.mxu0 %v675
    %v747 = vpop.f32.mrf.mxu0
    %v748 = vadd.f32 %v549, %v747
    %v749 = vpop.f32.mrf.mxu0
    %v750 = vpop.f32.mrf.mxu0
    %v751 = vadd.f32 %v550, %v750
    %v752 = vpop.f32.mrf.mxu0
    %753 = vdwg.mxu0
    %vm754 = vcmask 523264
    %v755 = vsel %vm754, %v623, -inf
    %756 = vmax.xlane.f32.xlu0 %v755
    %v757 = vpop.xlane.xlu0 %756
    %v758 = vsel %vm754, %v626, -inf
    %759 = vmax.xlane.f32.xlu0 %v758
    %v760 = vpop.xlane.xlu0 %759
    %v761 = vsel %vm754, %v631, -inf
    %762 = vmax.xlane.f32.xlu0 %v761
    %v763 = vpop.xlane.xlu0 %762
    %v764 = vsel %vm754, %v634, -inf
    %765 = vmax.xlane.f32.xlu0 %v764
    %v766 = vpop.xlane.xlu0 %765
    %v767 = vsel %vm754, %v639, -inf
    %768 = vmax.xlane.f32.xlu0 %v767
    %v769 = vpop.xlane.xlu0 %768
    %v770 = vsel %vm754, %v642, -inf
    %771 = vmax.xlane.f32.xlu0 %v770
    %v772 = vpop.xlane.xlu0 %771
    %v773 = vsel %vm754, %v647, -inf
    %774 = vmax.xlane.f32.xlu0 %v773
    %v775 = vpop.xlane.xlu0 %774
    %v776 = vsel %vm754, %v650, -inf
    %777 = vmax.xlane.f32.xlu0 %v776
    %v778 = vpop.xlane.xlu0 %777
    %v779 = vsel %vm754, %v724, -inf
    %780 = vmax.xlane.f32.xlu0 %v779
    %v781 = vpop.xlane.xlu0 %780
    %v782 = vsel %vm754, %v727, -inf
    %783 = vmax.xlane.f32.xlu0 %v782
    %v784 = vpop.xlane.xlu0 %783
    %v785 = vsel %vm754, %v732, -inf
    %786 = vmax.xlane.f32.xlu0 %v785
    %v787 = vpop.xlane.xlu0 %786
    %v788 = vsel %vm754, %v735, -inf
    %789 = vmax.xlane.f32.xlu0 %v788
    %v790 = vpop.xlane.xlu0 %789
    %v791 = vsel %vm754, %v740, -inf
    %792 = vmax.xlane.f32.xlu0 %v791
    %v793 = vpop.xlane.xlu0 %792
    %v794 = vsel %vm754, %v743, -inf
    %795 = vmax.xlane.f32.xlu0 %v794
    %v796 = vpop.xlane.xlu0 %795
    %v797 = vsel %vm754, %v748, -inf
    %798 = vmax.xlane.f32.xlu0 %v797
    %v799 = vpop.xlane.xlu0 %798
    %v800 = vsel %vm754, %v751, -inf
    %801 = vmax.xlane.f32.xlu0 %v800
    %v802 = vpop.xlane.xlu0 %801
    %v803 = vsub.f32 %v623, %v757
    %v804 = vsub.f32 %v626, %v760
    %v805 = vsub.f32 %v631, %v763
    %v806 = vsub.f32 %v634, %v766
    %v807 = vsub.f32 %v639, %v769
    %v808 = vsub.f32 %v642, %v772
    %v809 = vsub.f32 %v647, %v775
    %v810 = vsub.f32 %v650, %v778
    %v811 = vsub.f32 %v724, %v781
    %v812 = vsub.f32 %v727, %v784
    %v813 = vsub.f32 %v732, %v787
    %v814 = vsub.f32 %v735, %v790
    %v815 = vsub.f32 %v740, %v793
    %v816 = vsub.f32 %v743, %v796
    %v817 = vsub.f32 %v748, %v799
    %v818 = vsub.f32 %v751, %v802
    %v819 = vmul.f32 %v803, 1.442695
    %v820 = vpow.pop %v819
    %v821 = vmul.f32 %v804, 1.442695
    %v822 = vpow.pop %v821
    %v823 = vmul.f32 %v805, 1.442695
    %v824 = vpow.pop %v823
    %v825 = vmul.f32 %v806, 1.442695
    %v826 = vpow.pop %v825
    %v827 = vmul.f32 %v807, 1.442695
    %v828 = vpow.pop %v827
    %v829 = vmul.f32 %v808, 1.442695
    %v830 = vpow.pop %v829
    %v831 = vmul.f32 %v809, 1.442695
    %v832 = vpow.pop %v831
    %v833 = vmul.f32 %v810, 1.442695
    %v834 = vpow.pop %v833
    %v835 = vmul.f32 %v811, 1.442695
    %v836 = vpow.pop %v835
    %v837 = vmul.f32 %v812, 1.442695
    %v838 = vpow.pop %v837
    %v839 = vmul.f32 %v813, 1.442695
    %v840 = vpow.pop %v839
    %v841 = vmul.f32 %v814, 1.442695
    %v842 = vpow.pop %v841
    %v843 = vmul.f32 %v815, 1.442695
    %v844 = vpow.pop %v843
    %v845 = vmul.f32 %v816, 1.442695
    %v846 = vpow.pop %v845
    %v847 = vmul.f32 %v817, 1.442695
    %v848 = vpow.pop %v847
    %v849 = vmul.f32 %v818, 1.442695
    %v850 = vpow.pop %v849
    %v851 = vsel %vm754, %v820, 0.0
    %852 = vadd.xlane.f32.xlu0 %v851
    %v853 = vpop.xlane.xlu0 %852
    %v854 = vsel %vm754, %v822, 0.0
    %855 = vadd.xlane.f32.xlu0 %v854
    %v856 = vpop.xlane.xlu0 %855
    %v857 = vsel %vm754, %v824, 0.0
    %858 = vadd.xlane.f32.xlu0 %v857
    %v859 = vpop.xlane.xlu0 %858
    %v860 = vsel %vm754, %v826, 0.0
    %861 = vadd.xlane.f32.xlu0 %v860
    %v862 = vpop.xlane.xlu0 %861
    %v863 = vsel %vm754, %v828, 0.0
    %864 = vadd.xlane.f32.xlu0 %v863
    %v865 = vpop.xlane.xlu0 %864
    %v866 = vsel %vm754, %v830, 0.0
    %867 = vadd.xlane.f32.xlu0 %v866
    %v868 = vpop.xlane.xlu0 %867
    %v869 = vsel %vm754, %v832, 0.0
    %870 = vadd.xlane.f32.xlu0 %v869
    %v871 = vpop.xlane.xlu0 %870
    %v872 = vsel %vm754, %v834, 0.0
    %873 = vadd.xlane.f32.xlu0 %v872
    %v874 = vpop.xlane.xlu0 %873
    %v875 = vsel %vm754, %v836, 0.0
    %876 = vadd.xlane.f32.xlu0 %v875
    %v877 = vpop.xlane.xlu0 %876
    %v878 = vsel %vm754, %v838, 0.0
    %879 = vadd.xlane.f32.xlu0 %v878
    %v880 = vpop.xlane.xlu0 %879
    %v881 = vsel %vm754, %v840, 0.0
    %882 = vadd.xlane.f32.xlu0 %v881
    %v883 = vpop.xlane.xlu0 %882
    %v884 = vsel %vm754, %v842, 0.0
    %885 = vadd.xlane.f32.xlu0 %v884
    %v886 = vpop.xlane.xlu0 %885
    %v887 = vsel %vm754, %v844, 0.0
    %888 = vadd.xlane.f32.xlu0 %v887
    %v889 = vpop.xlane.xlu0 %888
    %v890 = vsel %vm754, %v846, 0.0
    %891 = vadd.xlane.f32.xlu0 %v890
    %v892 = vpop.xlane.xlu0 %891
    %v893 = vsel %vm754, %v848, 0.0
    %894 = vadd.xlane.f32.xlu0 %v893
    %v895 = vpop.xlane.xlu0 %894
    %v896 = vsel %vm754, %v850, 0.0
    %897 = vadd.xlane.f32.xlu0 %v896
    %v898 = vpop.xlane.xlu0 %897
    %v899 = vrcp.pop %v853
    %v900 = vrcp.pop %v856
    %v901 = vrcp.pop %v859
    %v902 = vrcp.pop %v862
    %v903 = vrcp.pop %v865
    %v904 = vrcp.pop %v868
    %v905 = vrcp.pop %v871
    %v906 = vrcp.pop %v874
    %v907 = vrcp.pop %v877
    %v908 = vrcp.pop %v880
    %v909 = vrcp.pop %v883
    %v910 = vrcp.pop %v886
    %v911 = vrcp.pop %v889
    %v912 = vrcp.pop %v892
    %v913 = vrcp.pop %v895
    %v914 = vrcp.pop %v898
    %v915 = vmul.f32 %v820, %v899
    %v916 = vmul.f32 %v822, %v900
    %v917 = vmul.f32 %v824, %v901
    %v918 = vmul.f32 %v826, %v902
    %v919 = vmul.f32 %v828, %v903
    %v920 = vmul.f32 %v830, %v904
    %v921 = vmul.f32 %v832, %v905
    %v922 = vmul.f32 %v834, %v906
    %v923 = vmul.f32 %v836, %v907
    %v924 = vmul.f32 %v838, %v908
    %v925 = vmul.f32 %v840, %v909
    %v926 = vmul.f32 %v842, %v910
    %v927 = vmul.f32 %v844, %v911
    %v928 = vmul.f32 %v846, %v912
    %v929 = vmul.f32 %v848, %v913
    %v930 = vmul.f32 %v850, %v914
    %v931 = vpack.c.bf16 %v916, %v915
    %v932 = vpack.c.bf16 %v918, %v917
    %v933 = vpack.c.bf16 %v920, %v919
    %v934 = vpack.c.bf16 %v922, %v921
    %v935 = vpack.c.bf16 %v924, %v923
    %v936 = vpack.c.bf16 %v926, %v925
    %v937 = vpack.c.bf16 %v928, %v927
    %v938 = vpack.c.bf16 %v930, %v929
    %939 = vrot.lane.b32.xlu0 %v535, 64
    %v940 = vpop.permute.xlu0 %939
    %941 = vrot.lane.b32.xlu0 %v536, 64
    %v942 = vpop.permute.xlu0 %941
    %943 = vrot.lane.b32.xlu0 %v537, 64
    %v944 = vpop.permute.xlu0 %943
    %945 = vrot.lane.b32.xlu0 %v538, 64
    %v946 = vpop.permute.xlu0 %945
    %v952 = vsel %vm754, %v931, 0
    %v955 = vsel %vm754, %v932, 0
    %v958 = vsel %vm754, %v933, 0
    %v961 = vsel %vm754, %v934, 0
    %963 = vmatprep.subr.bf16.mxu0 0
    %964 = vmatpush1.bf16.msra.mxu0 0
    %965 = vmatprep.subr.bf16.mxu0 0
    %966 = vmatpush1.bf16.msra.mxu0 0
    %967 = vmatprep.subr.bf16.mxu0 0
    %968 = vmatpush1.bf16.msra.mxu0 0
    %969 = vmatprep.subr.bf16.mxu0 0
    %970 = vmatpush1.bf16.msra.mxu0 0
    %971 = vmatprep.subr.bf16.mxu0 0
    %972 = vmatpush1.bf16.msra.mxu0 %v946
    %973 = vmatprep.subr.bf16.mxu0 0
    %974 = vmatpush1.bf16.msra.mxu0 %v944
    %975 = vmatprep.subr.bf16.mxu0 0
    %976 = vmatpush1.bf16.msra.mxu0 %v942
    %977 = vmatprep.subr.bf16.mxu0 0
    %978 = vmatpush1.bf16.msra.mxu0 %v940
    %979 = vmatprep.subr.bf16.mxu0 0
    %980 = vmatpush2.bf16.msra.mxu0 0
    %981 = vmatprep.subr.bf16.mxu0 0
    %982 = vmatpush2.bf16.msra.mxu0 0
    %983 = vmatprep.subr.bf16.mxu0 0
    %984 = vmatpush2.bf16.msra.mxu0 0
    %985 = vmatprep.subr.bf16.mxu0 0
    %986 = vmatpush2.bf16.msra.mxu0 0
    %987 = vmatprep.subr.bf16.mxu0 0
    %988 = vmatpush2.bf16.msra.mxu0 0
    %989 = vmatprep.subr.bf16.mxu0 0
    %990 = vmatpush2.bf16.msra.mxu0 0
    %991 = vmatprep.subr.bf16.mxu0 0
    %992 = vmatpush2.bf16.msra.mxu0 0
    %993 = vmatprep.subr.bf16.mxu0 0
    %994 = vmatpush2.bf16.msra.mxu0 0
    %995 = vmatprep.mubr.bf16.mxu0 0
    %996 = vmatmul.mubr.bf16.gmra.mxu0 %v952
    %v997 = vpop.f32.mrf.mxu0
    %v998 = vadd.f32 0.0, %v997
    %v999 = vpop.f32.mrf.mxu0
    %v1000 = vpop.f32.mrf.mxu0
    %v1001 = vadd.f32 0.0, %v1000
    %v1002 = vpop.f32.mrf.mxu0
    %1003 = vmatprep.mubr.bf16.mxu0 0
    %1004 = vmatmul.mubr.bf16.gmra.mxu0 %v955
    %v1005 = vpop.f32.mrf.mxu0
    %v1006 = vadd.f32 0.0, %v1005
    %v1007 = vpop.f32.mrf.mxu0
    %v1008 = vpop.f32.mrf.mxu0
    %v1009 = vadd.f32 0.0, %v1008
    %v1010 = vpop.f32.mrf.mxu0
    %1011 = vmatprep.mubr.bf16.mxu0 0
    %1012 = vmatmul.mubr.bf16.gmra.mxu0 %v958
    %v1013 = vpop.f32.mrf.mxu0
    %v1014 = vadd.f32 0.0, %v1013
    %v1015 = vpop.f32.mrf.mxu0
    %v1016 = vpop.f32.mrf.mxu0
    %v1017 = vadd.f32 0.0, %v1016
    %v1018 = vpop.f32.mrf.mxu0
    %1019 = vmatprep.mubr.bf16.mxu0 0
    %1020 = vmatmul.mubr.bf16.gmra.mxu0 %v961
    %v1021 = vpop.f32.mrf.mxu0
    %v1022 = vadd.f32 0.0, %v1021
    %v1023 = vpop.f32.mrf.mxu0
    %v1024 = vpop.f32.mrf.mxu0
    %v1025 = vadd.f32 0.0, %v1024
    %v1026 = vpop.f32.mrf.mxu0
    %1027 = vdwg.mxu0
    %1028 = vrot.lane.b32.xlu0 %v539, 64
    %v1029 = vpop.permute.xlu0 %1028
    %1030 = vrot.lane.b32.xlu0 %v540, 64
    %v1031 = vpop.permute.xlu0 %1030
    %1032 = vrot.lane.b32.xlu0 %v541, 64
    %v1033 = vpop.permute.xlu0 %1032
    %1034 = vrot.lane.b32.xlu0 %v542, 64
    %v1035 = vpop.permute.xlu0 %1034
    %v1041 = vsel %vm754, %v935, 0
    %v1044 = vsel %vm754, %v936, 0
    %v1047 = vsel %vm754, %v937, 0
    %v1050 = vsel %vm754, %v938, 0
    %1052 = vmatprep.subr.bf16.mxu0 0
    %1053 = vmatpush1.bf16.msra.mxu0 0
    %1054 = vmatprep.subr.bf16.mxu0 0
    %1055 = vmatpush1.bf16.msra.mxu0 0
    %1056 = vmatprep.subr.bf16.mxu0 0
    %1057 = vmatpush1.bf16.msra.mxu0 0
    %1058 = vmatprep.subr.bf16.mxu0 0
    %1059 = vmatpush1.bf16.msra.mxu0 0
    %1060 = vmatprep.subr.bf16.mxu0 0
    %1061 = vmatpush1.bf16.msra.mxu0 %v1035
    %1062 = vmatprep.subr.bf16.mxu0 0
    %1063 = vmatpush1.bf16.msra.mxu0 %v1033
    %1064 = vmatprep.subr.bf16.mxu0 0
    %1065 = vmatpush1.bf16.msra.mxu0 %v1031
    %1066 = vmatprep.subr.bf16.mxu0 0
    %1067 = vmatpush1.bf16.msra.mxu0 %v1029
    %1068 = vmatprep.subr.bf16.mxu0 0
    %1069 = vmatpush2.bf16.msra.mxu0 0
    %1070 = vmatprep.subr.bf16.mxu0 0
    %1071 = vmatpush2.bf16.msra.mxu0 0
    %1072 = vmatprep.subr.bf16.mxu0 0
    %1073 = vmatpush2.bf16.msra.mxu0 0
    %1074 = vmatprep.subr.bf16.mxu0 0
    %1075 = vmatpush2.bf16.msra.mxu0 0
    %1076 = vmatprep.subr.bf16.mxu0 0
    %1077 = vmatpush2.bf16.msra.mxu0 0
    %1078 = vmatprep.subr.bf16.mxu0 0
    %1079 = vmatpush2.bf16.msra.mxu0 0
    %1080 = vmatprep.subr.bf16.mxu0 0
    %1081 = vmatpush2.bf16.msra.mxu0 0
    %1082 = vmatprep.subr.bf16.mxu0 0
    %1083 = vmatpush2.bf16.msra.mxu0 0
    %1084 = vmatprep.mubr.bf16.mxu0 0
    %1085 = vmatmul.mubr.bf16.gmra.mxu0 %v1041
    %v1086 = vpop.f32.mrf.mxu0
    %v1087 = vadd.f32 0.0, %v1086
    %v1088 = vpop.f32.mrf.mxu0
    %v1089 = vpop.f32.mrf.mxu0
    %v1090 = vadd.f32 0.0, %v1089
    %v1091 = vpop.f32.mrf.mxu0
    %1092 = vmatprep.mubr.bf16.mxu0 0
    %1093 = vmatmul.mubr.bf16.gmra.mxu0 %v1044
    %v1094 = vpop.f32.mrf.mxu0
    %v1095 = vadd.f32 0.0, %v1094
    %v1096 = vpop.f32.mrf.mxu0
    %v1097 = vpop.f32.mrf.mxu0
    %v1098 = vadd.f32 0.0, %v1097
    %v1099 = vpop.f32.mrf.mxu0
    %1100 = vmatprep.mubr.bf16.mxu0 0
    %1101 = vmatmul.mubr.bf16.gmra.mxu0 %v1047
    %v1102 = vpop.f32.mrf.mxu0
    %v1103 = vadd.f32 0.0, %v1102
    %v1104 = vpop.f32.mrf.mxu0
    %v1105 = vpop.f32.mrf.mxu0
    %v1106 = vadd.f32 0.0, %v1105
    %v1107 = vpop.f32.mrf.mxu0
    %1108 = vmatprep.mubr.bf16.mxu0 0
    %1109 = vmatmul.mubr.bf16.gmra.mxu0 %v1050
    %v1110 = vpop.f32.mrf.mxu0
    %v1111 = vadd.f32 0.0, %v1110
    %v1112 = vpop.f32.mrf.mxu0
    %v1113 = vpop.f32.mrf.mxu0
    %v1114 = vadd.f32 0.0, %v1113
    %v1115 = vpop.f32.mrf.mxu0
    %1116 = vdwg.mxu0
    %v1117 = vadd.f32 %v519, %v998
    %v1118 = vadd.f32 %v520, %v1001
    %v1119 = vadd.f32 %v521, %v1006
    %v1120 = vadd.f32 %v522, %v1009
    %v1121 = vadd.f32 %v523, %v1014
    %v1122 = vadd.f32 %v524, %v1017
    %v1123 = vadd.f32 %v525, %v1022
    %v1124 = vadd.f32 %v526, %v1025
    %v1125 = vadd.f32 %v527, %v1087
    %v1126 = vadd.f32 %v528, %v1090
    %v1127 = vadd.f32 %v529, %v1095
    %v1128 = vadd.f32 %v530, %v1098
    %v1129 = vadd.f32 %v531, %v1103
    %v1130 = vadd.f32 %v532, %v1106
    %v1131 = vadd.f32 %v533, %v1111
    %v1132 = vadd.f32 %v534, %v1114
    %s1133 = scalar_lea.vmem [#allocation2], 64
    %v1134 = vld [vmem:[%s1133] sm:$0xff]
    %v1135 = vld [vmem:[%s1133 + $0x8] sm:$0xff]
    %v1136 = vld [vmem:[%s1133 + $0x10] sm:$0xff]
    %v1137 = vld [vmem:[%s1133 + $0x18] sm:$0xff]
    %v1138 = vld [vmem:[%s1133 + $0x20] sm:$0xff]
    %v1139 = vld [vmem:[%s1133 + $0x28] sm:$0xff]
    %v1140 = vld [vmem:[%s1133 + $0x30] sm:$0xff]
    %v1141 = vld [vmem:[%s1133 + $0x38] sm:$0xff]
    %1142 = vrot.lane.b32.xlu0 %v535, 120
    %v1143 = vpop.permute.xlu0 %1142
    %1144 = vrot.lane.b32.xlu0 %v536, 120
    %v1145 = vpop.permute.xlu0 %1144
    %1146 = vrot.lane.b32.xlu0 %v537, 120
    %v1147 = vpop.permute.xlu0 %1146
    %1148 = vrot.lane.b32.xlu0 %v538, 120
    %v1149 = vpop.permute.xlu0 %1148
    %1150 = vrot.lane.b32.xlu0 %v535, 88
    %v1151 = vpop.permute.xlu0 %1150
    %1152 = vrot.lane.b32.xlu0 %v536, 88
    %v1153 = vpop.permute.xlu0 %1152
    %1154 = vrot.lane.b32.xlu0 %v537, 88
    %v1155 = vpop.permute.xlu0 %1154
    %1156 = vrot.lane.b32.xlu0 %v538, 88
    %v1157 = vpop.permute.xlu0 %1156
    %v1159 = vsel %vm563, %v1143, 0
    %v1162 = vsel %vm563, %v1145, 0
    %v1165 = vsel %vm563, %v1147, 0
    %v1168 = vsel %vm563, %v1149, 0
    %v1171 = vsel %vm563, %v1151, 0
    %v1174 = vsel %vm563, %v1153, 0
    %v1177 = vsel %vm563, %v1155, 0
    %v1180 = vsel %vm563, %v1157, 0
    %1182 = vmatprep.subr.bf16.mxu0 0
    %1183 = vmatpush1.bf16.xpose.msra.mxu0 0
    %1184 = vmatprep.subr.bf16.mxu0 0
    %1185 = vmatpush1.bf16.xpose.msra.mxu0 0
    %1186 = vmatprep.subr.bf16.mxu0 0
    %1187 = vmatpush1.bf16.xpose.msra.mxu0 0
    %1188 = vmatprep.subr.bf16.mxu0 0
    %1189 = vmatpush1.bf16.xpose.msra.mxu0 0
    %1190 = vmatprep.subr.bf16.mxu0 0
    %1191 = vmatpush1.bf16.xpose.msra.mxu0 %v1180
    %1192 = vmatprep.subr.bf16.mxu0 0
    %1193 = vmatpush1.bf16.xpose.msra.mxu0 %v1177
    %1194 = vmatprep.subr.bf16.mxu0 0
    %1195 = vmatpush1.bf16.xpose.msra.mxu0 %v1174
    %1196 = vmatprep.subr.bf16.mxu0 0
    %1197 = vmatpush1.bf16.xpose.msra.mxu0 %v1171
    %1198 = vmatprep.subr.bf16.mxu0 0
    %1199 = vmatpush2.bf16.xpose.msra.mxu0 0
    %1200 = vmatprep.subr.bf16.mxu0 0
    %1201 = vmatpush2.bf16.xpose.msra.mxu0 0
    %1202 = vmatprep.subr.bf16.mxu0 0
    %1203 = vmatpush2.bf16.xpose.msra.mxu0 0
    %1204 = vmatprep.subr.bf16.mxu0 0
    %1205 = vmatpush2.bf16.xpose.msra.mxu0 0
    %1206 = vmatprep.subr.bf16.mxu0 0
    %1207 = vmatpush2.bf16.xpose.msra.mxu0 0
    %1208 = vmatprep.subr.bf16.mxu0 0
    %1209 = vmatpush2.bf16.xpose.msra.mxu0 0
    %1210 = vmatprep.subr.bf16.mxu0 0
    %1211 = vmatpush2.bf16.xpose.msra.mxu0 0
    %1212 = vmatprep.subr.bf16.mxu0 0
    %1213 = vmatpush2.bf16.xpose.msra.mxu0 0
    %1214 = vmatprep.mubr.bf16.mxu0 0
    %1215 = vmatmul.mubr.bf16.gmra.mxu0 %v1159
    %v1216 = vpop.f32.mrf.mxu0
    %v1217 = vadd.f32 %v1134, %v1216
    %v1218 = vpop.f32.mrf.mxu0
    %v1219 = vpop.f32.mrf.mxu0
    %v1220 = vadd.f32 %v1135, %v1219
    %v1221 = vpop.f32.mrf.mxu0
    %1222 = vmatprep.mubr.bf16.mxu0 0
    %1223 = vmatmul.mubr.bf16.gmra.mxu0 %v1162
    %v1224 = vpop.f32.mrf.mxu0
    %v1225 = vadd.f32 %v1136, %v1224
    %v1226 = vpop.f32.mrf.mxu0
    %v1227 = vpop.f32.mrf.mxu0
    %v1228 = vadd.f32 %v1137, %v1227
    %v1229 = vpop.f32.mrf.mxu0
    %1230 = vmatprep.mubr.bf16.mxu0 0
    %1231 = vmatmul.mubr.bf16.gmra.mxu0 %v1165
    %v1232 = vpop.f32.mrf.mxu0
    %v1233 = vadd.f32 %v1138, %v1232
    %v1234 = vpop.f32.mrf.mxu0
    %v1235 = vpop.f32.mrf.mxu0
    %v1236 = vadd.f32 %v1139, %v1235
    %v1237 = vpop.f32.mrf.mxu0
    %1238 = vmatprep.mubr.bf16.mxu0 0
    %1239 = vmatmul.mubr.bf16.gmra.mxu0 %v1168
    %v1240 = vpop.f32.mrf.mxu0
    %v1241 = vadd.f32 %v1140, %v1240
    %v1242 = vpop.f32.mrf.mxu0
    %v1243 = vpop.f32.mrf.mxu0
    %v1244 = vadd.f32 %v1141, %v1243
    %v1245 = vpop.f32.mrf.mxu0
    %1246 = vdwg.mxu0
    %1247 = vrot.lane.b32.xlu0 %v539, 120
    %v1248 = vpop.permute.xlu0 %1247
    %1249 = vrot.lane.b32.xlu0 %v540, 120
    %v1250 = vpop.permute.xlu0 %1249
    %1251 = vrot.lane.b32.xlu0 %v541, 120
    %v1252 = vpop.permute.xlu0 %1251
    %1253 = vrot.lane.b32.xlu0 %v542, 120
    %v1254 = vpop.permute.xlu0 %1253
    %1255 = vrot.lane.b32.xlu0 %v539, 88
    %v1256 = vpop.permute.xlu0 %1255
    %1257 = vrot.lane.b32.xlu0 %v540, 88
    %v1258 = vpop.permute.xlu0 %1257
    %1259 = vrot.lane.b32.xlu0 %v541, 88
    %v1260 = vpop.permute.xlu0 %1259
    %1261 = vrot.lane.b32.xlu0 %v542, 88
    %v1262 = vpop.permute.xlu0 %1261
    %v1264 = vsel %vm563, %v1248, 0
    %v1267 = vsel %vm563, %v1250, 0
    %v1270 = vsel %vm563, %v1252, 0
    %v1273 = vsel %vm563, %v1254, 0
    %v1276 = vsel %vm563, %v1256, 0
    %v1279 = vsel %vm563, %v1258, 0
    %v1282 = vsel %vm563, %v1260, 0
    %v1285 = vsel %vm563, %v1262, 0
    %1287 = vmatprep.subr.bf16.mxu0 0
    %1288 = vmatpush1.bf16.xpose.msra.mxu0 0
    %1289 = vmatprep.subr.bf16.mxu0 0
    %1290 = vmatpush1.bf16.xpose.msra.mxu0 0
    %1291 = vmatprep.subr.bf16.mxu0 0
    %1292 = vmatpush1.bf16.xpose.msra.mxu0 0
    %1293 = vmatprep.subr.bf16.mxu0 0
    %1294 = vmatpush1.bf16.xpose.msra.mxu0 0
    %1295 = vmatprep.subr.bf16.mxu0 0
    %1296 = vmatpush1.bf16.xpose.msra.mxu0 %v1285
    %1297 = vmatprep.subr.bf16.mxu0 0
    %1298 = vmatpush1.bf16.xpose.msra.mxu0 %v1282
    %1299 = vmatprep.subr.bf16.mxu0 0
    %1300 = vmatpush1.bf16.xpose.msra.mxu0 %v1279
    %1301 = vmatprep.subr.bf16.mxu0 0
    %1302 = vmatpush1.bf16.xpose.msra.mxu0 %v1276
    %1303 = vmatprep.subr.bf16.mxu0 0
    %1304 = vmatpush2.bf16.xpose.msra.mxu0 0
    %1305 = vmatprep.subr.bf16.mxu0 0
    %1306 = vmatpush2.bf16.xpose.msra.mxu0 0
    %1307 = vmatprep.subr.bf16.mxu0 0
    %1308 = vmatpush2.bf16.xpose.msra.mxu0 0
    %1309 = vmatprep.subr.bf16.mxu0 0
    %1310 = vmatpush2.bf16.xpose.msra.mxu0 0
    %1311 = vmatprep.subr.bf16.mxu0 0
    %1312 = vmatpush2.bf16.xpose.msra.mxu0 0
    %1313 = vmatprep.subr.bf16.mxu0 0
    %1314 = vmatpush2.bf16.xpose.msra.mxu0 0
    %1315 = vmatprep.subr.bf16.mxu0 0
    %1316 = vmatpush2.bf16.xpose.msra.mxu0 0
    %1317 = vmatprep.subr.bf16.mxu0 0
    %1318 = vmatpush2.bf16.xpose.msra.mxu0 0
    %1319 = vmatprep.mubr.bf16.mxu0 0
    %1320 = vmatmul.mubr.bf16.gmra.mxu0 %v1264
    %v1321 = vpop.f32.mrf.mxu0
    %v1322 = vadd.f32 %v1134, %v1321
    %v1323 = vpop.f32.mrf.mxu0
    %v1324 = vpop.f32.mrf.mxu0
    %v1325 = vadd.f32 %v1135, %v1324
    %v1326 = vpop.f32.mrf.mxu0
    %1327 = vmatprep.mubr.bf16.mxu0 0
    %1328 = vmatmul.mubr.bf16.gmra.mxu0 %v1267
    %v1329 = vpop.f32.mrf.mxu0
    %v1330 = vadd.f32 %v1136, %v1329
    %v1331 = vpop.f32.mrf.mxu0
    %v1332 = vpop.f32.mrf.mxu0
    %v1333 = vadd.f32 %v1137, %v1332
    %v1334 = vpop.f32.mrf.mxu0
    %1335 = vmatprep.mubr.bf16.mxu0 0
    %1336 = vmatmul.mubr.bf16.gmra.mxu0 %v1270
    %v1337 = vpop.f32.mrf.mxu0
    %v1338 = vadd.f32 %v1138, %v1337
    %v1339 = vpop.f32.mrf.mxu0
    %v1340 = vpop.f32.mrf.mxu0
    %v1341 = vadd.f32 %v1139, %v1340
    %v1342 = vpop.f32.mrf.mxu0
    %1343 = vmatprep.mubr.bf16.mxu0 0
    %1344 = vmatmul.mubr.bf16.gmra.mxu0 %v1273
    %v1345 = vpop.f32.mrf.mxu0
    %v1346 = vadd.f32 %v1140, %v1345
    %v1347 = vpop.f32.mrf.mxu0
    %v1348 = vpop.f32.mrf.mxu0
    %v1349 = vadd.f32 %v1141, %v1348
    %v1350 = vpop.f32.mrf.mxu0
    %1351 = vdwg.mxu0
    %v1352 = vsel %vm754, %v1217, -inf
    %1353 = vmax.xlane.f32.xlu0 %v1352
    %v1354 = vpop.xlane.xlu0 %1353
    %v1355 = vsel %vm754, %v1220, -inf
    %1356 = vmax.xlane.f32.xlu0 %v1355
    %v1357 = vpop.xlane.xlu0 %1356
    %v1358 = vsel %vm754, %v1225, -inf
    %1359 = vmax.xlane.f32.xlu0 %v1358
    %v1360 = vpop.xlane.xlu0 %1359
    %v1361 = vsel %vm754, %v1228, -inf
    %1362 = vmax.xlane.f32.xlu0 %v1361
    %v1363 = vpop.xlane.xlu0 %1362
    %v1364 = vsel %vm754, %v1233, -inf
    %1365 = vmax.xlane.f32.xlu0 %v1364
    %v1366 = vpop.xlane.xlu0 %1365
    %v1367 = vsel %vm754, %v1236, -inf
    %1368 = vmax.xlane.f32.xlu0 %v1367
    %v1369 = vpop.xlane.xlu0 %1368
    %v1370 = vsel %vm754, %v1241, -inf
    %1371 = vmax.xlane.f32.xlu0 %v1370
    %v1372 = vpop.xlane.xlu0 %1371
    %v1373 = vsel %vm754, %v1244, -inf
    %1374 = vmax.xlane.f32.xlu0 %v1373
    %v1375 = vpop.xlane.xlu0 %1374
    %v1376 = vsel %vm754, %v1322, -inf
    %1377 = vmax.xlane.f32.xlu0 %v1376
    %v1378 = vpop.xlane.xlu0 %1377
    %v1379 = vsel %vm754, %v1325, -inf
    %1380 = vmax.xlane.f32.xlu0 %v1379
    %v1381 = vpop.xlane.xlu0 %1380
    %v1382 = vsel %vm754, %v1330, -inf
    %1383 = vmax.xlane.f32.xlu0 %v1382
    %v1384 = vpop.xlane.xlu0 %1383
    %v1385 = vsel %vm754, %v1333, -inf
    %1386 = vmax.xlane.f32.xlu0 %v1385
    %v1387 = vpop.xlane.xlu0 %1386
    %v1388 = vsel %vm754, %v1338, -inf
    %1389 = vmax.xlane.f32.xlu0 %v1388
    %v1390 = vpop.xlane.xlu0 %1389
    %v1391 = vsel %vm754, %v1341, -inf
    %1392 = vmax.xlane.f32.xlu0 %v1391
    %v1393 = vpop.xlane.xlu0 %1392
    %v1394 = vsel %vm754, %v1346, -inf
    %1395 = vmax.xlane.f32.xlu0 %v1394
    %v1396 = vpop.xlane.xlu0 %1395
    %v1397 = vsel %vm754, %v1349, -inf
    %1398 = vmax.xlane.f32.xlu0 %v1397
    %v1399 = vpop.xlane.xlu0 %1398
    %v1400 = vsub.f32 %v1217, %v1354
    %v1401 = vsub.f32 %v1220, %v1357
    %v1402 = vsub.f32 %v1225, %v1360
    %v1403 = vsub.f32 %v1228, %v1363
    %v1404 = vsub.f32 %v1233, %v1366
    %v1405 = vsub.f32 %v1236, %v1369
    %v1406 = vsub.f32 %v1241, %v1372
    %v1407 = vsub.f32 %v1244, %v1375
    %v1408 = vsub.f32 %v1322, %v1378
    %v1409 = vsub.f32 %v1325, %v1381
    %v1410 = vsub.f32 %v1330, %v1384
    %v1411 = vsub.f32 %v1333, %v1387
    %v1412 = vsub.f32 %v1338, %v1390
    %v1413 = vsub.f32 %v1341, %v1393
    %v1414 = vsub.f32 %v1346, %v1396
    %v1415 = vsub.f32 %v1349, %v1399
    %v1416 = vmul.f32 %v1400, 1.442695
    %v1417 = vpow.pop %v1416
    %v1418 = vmul.f32 %v1401, 1.442695
    %v1419 = vpow.pop %v1418
    %v1420 = vmul.f32 %v1402, 1.442695
    %v1421 = vpow.pop %v1420
    %v1422 = vmul.f32 %v1403, 1.442695
    %v1423 = vpow.pop %v1422
    %v1424 = vmul.f32 %v1404, 1.442695
    %v1425 = vpow.pop %v1424
    %v1426 = vmul.f32 %v1405, 1.442695
    %v1427 = vpow.pop %v1426
    %v1428 = vmul.f32 %v1406, 1.442695
    %v1429 = vpow.pop %v1428
    %v1430 = vmul.f32 %v1407, 1.442695
    %v1431 = vpow.pop %v1430
    %v1432 = vmul.f32 %v1408, 1.442695
    %v1433 = vpow.pop %v1432
    %v1434 = vmul.f32 %v1409, 1.442695
    %v1435 = vpow.pop %v1434
    %v1436 = vmul.f32 %v1410, 1.442695
    %v1437 = vpow.pop %v1436
    %v1438 = vmul.f32 %v1411, 1.442695
    %v1439 = vpow.pop %v1438
    %v1440 = vmul.f32 %v1412, 1.442695
    %v1441 = vpow.pop %v1440
    %v1442 = vmul.f32 %v1413, 1.442695
    %v1443 = vpow.pop %v1442
    %v1444 = vmul.f32 %v1414, 1.442695
    %v1445 = vpow.pop %v1444
    %v1446 = vmul.f32 %v1415, 1.442695
    %v1447 = vpow.pop %v1446
    %v1448 = vsel %vm754, %v1417, 0.0
    %1449 = vadd.xlane.f32.xlu0 %v1448
    %v1450 = vpop.xlane.xlu0 %1449
    %v1451 = vsel %vm754, %v1419, 0.0
    %1452 = vadd.xlane.f32.xlu0 %v1451
    %v1453 = vpop.xlane.xlu0 %1452
    %v1454 = vsel %vm754, %v1421, 0.0
    %1455 = vadd.xlane.f32.xlu0 %v1454
    %v1456 = vpop.xlane.xlu0 %1455
    %v1457 = vsel %vm754, %v1423, 0.0
    %1458 = vadd.xlane.f32.xlu0 %v1457
    %v1459 = vpop.xlane.xlu0 %1458
    %v1460 = vsel %vm754, %v1425, 0.0
    %1461 = vadd.xlane.f32.xlu0 %v1460
    %v1462 = vpop.xlane.xlu0 %1461
    %v1463 = vsel %vm754, %v1427, 0.0
    %1464 = vadd.xlane.f32.xlu0 %v1463
    %v1465 = vpop.xlane.xlu0 %1464
    %v1466 = vsel %vm754, %v1429, 0.0
    %1467 = vadd.xlane.f32.xlu0 %v1466
    %v1468 = vpop.xlane.xlu0 %1467
    %v1469 = vsel %vm754, %v1431, 0.0
    %1470 = vadd.xlane.f32.xlu0 %v1469
    %v1471 = vpop.xlane.xlu0 %1470
    %v1472 = vsel %vm754, %v1433, 0.0
    %1473 = vadd.xlane.f32.xlu0 %v1472
    %v1474 = vpop.xlane.xlu0 %1473
    %v1475 = vsel %vm754, %v1435, 0.0
    %1476 = vadd.xlane.f32.xlu0 %v1475
    %v1477 = vpop.xlane.xlu0 %1476
    %v1478 = vsel %vm754, %v1437, 0.0
    %1479 = vadd.xlane.f32.xlu0 %v1478
    %v1480 = vpop.xlane.xlu0 %1479
    %v1481 = vsel %vm754, %v1439, 0.0
    %1482 = vadd.xlane.f32.xlu0 %v1481
    %v1483 = vpop.xlane.xlu0 %1482
    %v1484 = vsel %vm754, %v1441, 0.0
    %1485 = vadd.xlane.f32.xlu0 %v1484
    %v1486 = vpop.xlane.xlu0 %1485
    %v1487 = vsel %vm754, %v1443, 0.0
    %1488 = vadd.xlane.f32.xlu0 %v1487
    %v1489 = vpop.xlane.xlu0 %1488
    %v1490 = vsel %vm754, %v1445, 0.0
    %1491 = vadd.xlane.f32.xlu0 %v1490
    %v1492 = vpop.xlane.xlu0 %1491
    %v1493 = vsel %vm754, %v1447, 0.0
    %1494 = vadd.xlane.f32.xlu0 %v1493
    %v1495 = vpop.xlane.xlu0 %1494
    %v1496 = vrcp.pop %v1450
    %v1497 = vrcp.pop %v1453
    %v1498 = vrcp.pop %v1456
    %v1499 = vrcp.pop %v1459
    %v1500 = vrcp.pop %v1462
    %v1501 = vrcp.pop %v1465
    %v1502 = vrcp.pop %v1468
    %v1503 = vrcp.pop %v1471
    %v1504 = vrcp.pop %v1474
    %v1505 = vrcp.pop %v1477
    %v1506 = vrcp.pop %v1480
    %v1507 = vrcp.pop %v1483
    %v1508 = vrcp.pop %v1486
    %v1509 = vrcp.pop %v1489
    %v1510 = vrcp.pop %v1492
    %v1511 = vrcp.pop %v1495
    %v1512 = vmul.f32 %v1417, %v1496
    %v1513 = vmul.f32 %v1419, %v1497
    %v1514 = vmul.f32 %v1421, %v1498
    %v1515 = vmul.f32 %v1423, %v1499
    %v1516 = vmul.f32 %v1425, %v1500
    %v1517 = vmul.f32 %v1427, %v1501
    %v1518 = vmul.f32 %v1429, %v1502
    %v1519 = vmul.f32 %v1431, %v1503
    %v1520 = vmul.f32 %v1433, %v1504
    %v1521 = vmul.f32 %v1435, %v1505
    %v1522 = vmul.f32 %v1437, %v1506
    %v1523 = vmul.f32 %v1439, %v1507
    %v1524 = vmul.f32 %v1441, %v1508
    %v1525 = vmul.f32 %v1443, %v1509
    %v1526 = vmul.f32 %v1445, %v1510
    %v1527 = vmul.f32 %v1447, %v1511
    %v1528 = vpack.c.bf16 %v1513, %v1512
    %v1529 = vpack.c.bf16 %v1515, %v1514
    %v1530 = vpack.c.bf16 %v1517, %v1516
    %v1531 = vpack.c.bf16 %v1519, %v1518
    %v1532 = vpack.c.bf16 %v1521, %v1520
    %v1533 = vpack.c.bf16 %v1523, %v1522
    %v1534 = vpack.c.bf16 %v1525, %v1524
    %v1535 = vpack.c.bf16 %v1527, %v1526
    %1536 = vrot.lane.b32.xlu0 %v535, 32
    %v1537 = vpop.permute.xlu0 %1536
    %1538 = vrot.lane.b32.xlu0 %v536, 32
    %v1539 = vpop.permute.xlu0 %1538
    %1540 = vrot.lane.b32.xlu0 %v537, 32
    %v1541 = vpop.permute.xlu0 %1540
    %1542 = vrot.lane.b32.xlu0 %v538, 32
    %v1543 = vpop.permute.xlu0 %1542
    %v1549 = vsel %vm754, %v1528, 0
    %v1552 = vsel %vm754, %v1529, 0
    %v1555 = vsel %vm754, %v1530, 0
    %v1558 = vsel %vm754, %v1531, 0
    %1560 = vmatprep.subr.bf16.mxu0 0
    %1561 = vmatpush1.bf16.msra.mxu0 0
    %1562 = vmatprep.subr.bf16.mxu0 0
    %1563 = vmatpush1.bf16.msra.mxu0 0
    %1564 = vmatprep.subr.bf16.mxu0 0
    %1565 = vmatpush1.bf16.msra.mxu0 0
    %1566 = vmatprep.subr.bf16.mxu0 0
    %1567 = vmatpush1.bf16.msra.mxu0 0
    %1568 = vmatprep.subr.bf16.mxu0 0
    %1569 = vmatpush1.bf16.msra.mxu0 %v1543
    %1570 = vmatprep.subr.bf16.mxu0 0
    %1571 = vmatpush1.bf16.msra.mxu0 %v1541
    %1572 = vmatprep.subr.bf16.mxu0 0
    %1573 = vmatpush1.bf16.msra.mxu0 %v1539
    %1574 = vmatprep.subr.bf16.mxu0 0
    %1575 = vmatpush1.bf16.msra.mxu0 %v1537
    %1576 = vmatprep.subr.bf16.mxu0 0
    %1577 = vmatpush2.bf16.msra.mxu0 0
    %1578 = vmatprep.subr.bf16.mxu0 0
    %1579 = vmatpush2.bf16.msra.mxu0 0
    %1580 = vmatprep.subr.bf16.mxu0 0
    %1581 = vmatpush2.bf16.msra.mxu0 0
    %1582 = vmatprep.subr.bf16.mxu0 0
    %1583 = vmatpush2.bf16.msra.mxu0 0
    %1584 = vmatprep.subr.bf16.mxu0 0
    %1585 = vmatpush2.bf16.msra.mxu0 0
    %1586 = vmatprep.subr.bf16.mxu0 0
    %1587 = vmatpush2.bf16.msra.mxu0 0
    %1588 = vmatprep.subr.bf16.mxu0 0
    %1589 = vmatpush2.bf16.msra.mxu0 0
    %1590 = vmatprep.subr.bf16.mxu0 0
    %1591 = vmatpush2.bf16.msra.mxu0 0
    %1592 = vmatprep.mubr.bf16.mxu0 0
    %1593 = vmatmul.mubr.bf16.gmra.mxu0 %v1549
    %v1594 = vpop.f32.mrf.mxu0
    %v1595 = vadd.f32 0.0, %v1594
    %v1596 = vpop.f32.mrf.mxu0
    %v1597 = vpop.f32.mrf.mxu0
    %v1598 = vadd.f32 0.0, %v1597
    %v1599 = vpop.f32.mrf.mxu0
    %1600 = vmatprep.mubr.bf16.mxu0 0
    %1601 = vmatmul.mubr.bf16.gmra.mxu0 %v1552
    %v1602 = vpop.f32.mrf.mxu0
    %v1603 = vadd.f32 0.0, %v1602
    %v1604 = vpop.f32.mrf.mxu0
    %v1605 = vpop.f32.mrf.mxu0
    %v1606 = vadd.f32 0.0, %v1605
    %v1607 = vpop.f32.mrf.mxu0
    %1608 = vmatprep.mubr.bf16.mxu0 0
    %1609 = vmatmul.mubr.bf16.gmra.mxu0 %v1555
    %v1610 = vpop.f32.mrf.mxu0
    %v1611 = vadd.f32 0.0, %v1610
    %v1612 = vpop.f32.mrf.mxu0
    %v1613 = vpop.f32.mrf.mxu0
    %v1614 = vadd.f32 0.0, %v1613
    %v1615 = vpop.f32.mrf.mxu0
    %1616 = vmatprep.mubr.bf16.mxu0 0
    %1617 = vmatmul.mubr.bf16.gmra.mxu0 %v1558
    %v1618 = vpop.f32.mrf.mxu0
    %v1619 = vadd.f32 0.0, %v1618
    %v1620 = vpop.f32.mrf.mxu0
    %v1621 = vpop.f32.mrf.mxu0
    %v1622 = vadd.f32 0.0, %v1621
    %v1623 = vpop.f32.mrf.mxu0
    %1624 = vdwg.mxu0
    %1625 = vrot.lane.b32.xlu0 %v539, 32
    %v1626 = vpop.permute.xlu0 %1625
    %1627 = vrot.lane.b32.xlu0 %v540, 32
    %v1628 = vpop.permute.xlu0 %1627
    %1629 = vrot.lane.b32.xlu0 %v541, 32
    %v1630 = vpop.permute.xlu0 %1629
    %1631 = vrot.lane.b32.xlu0 %v542, 32
    %v1632 = vpop.permute.xlu0 %1631
    %v1638 = vsel %vm754, %v1532, 0
    %v1641 = vsel %vm754, %v1533, 0
    %v1644 = vsel %vm754, %v1534, 0
    %v1647 = vsel %vm754, %v1535, 0
    %1649 = vmatprep.subr.bf16.mxu0 0
    %1650 = vmatpush1.bf16.msra.mxu0 0
    %1651 = vmatprep.subr.bf16.mxu0 0
    %1652 = vmatpush1.bf16.msra.mxu0 0
    %1653 = vmatprep.subr.bf16.mxu0 0
    %1654 = vmatpush1.bf16.msra.mxu0 0
    %1655 = vmatprep.subr.bf16.mxu0 0
    %1656 = vmatpush1.bf16.msra.mxu0 0
    %1657 = vmatprep.subr.bf16.mxu0 0
    %1658 = vmatpush1.bf16.msra.mxu0 %v1632
    %1659 = vmatprep.subr.bf16.mxu0 0
    %1660 = vmatpush1.bf16.msra.mxu0 %v1630
    %1661 = vmatprep.subr.bf16.mxu0 0
    %1662 = vmatpush1.bf16.msra.mxu0 %v1628
    %1663 = vmatprep.subr.bf16.mxu0 0
    %1664 = vmatpush1.bf16.msra.mxu0 %v1626
    %1665 = vmatprep.subr.bf16.mxu0 0
    %1666 = vmatpush2.bf16.msra.mxu0 0
    %1667 = vmatprep.subr.bf16.mxu0 0
    %1668 = vmatpush2.bf16.msra.mxu0 0
    %1669 = vmatprep.subr.bf16.mxu0 0
    %1670 = vmatpush2.bf16.msra.mxu0 0
    %1671 = vmatprep.subr.bf16.mxu0 0
    %1672 = vmatpush2.bf16.msra.mxu0 0
    %1673 = vmatprep.subr.bf16.mxu0 0
    %1674 = vmatpush2.bf16.msra.mxu0 0
    %1675 = vmatprep.subr.bf16.mxu0 0
    %1676 = vmatpush2.bf16.msra.mxu0 0
    %1677 = vmatprep.subr.bf16.mxu0 0
    %1678 = vmatpush2.bf16.msra.mxu0 0
    %1679 = vmatprep.subr.bf16.mxu0 0
    %1680 = vmatpush2.bf16.msra.mxu0 0
    %1681 = vmatprep.mubr.bf16.mxu0 0
    %1682 = vmatmul.mubr.bf16.gmra.mxu0 %v1638
    %v1683 = vpop.f32.mrf.mxu0
    %v1684 = vadd.f32 0.0, %v1683
    %v1685 = vpop.f32.mrf.mxu0
    %v1686 = vpop.f32.mrf.mxu0
    %v1687 = vadd.f32 0.0, %v1686
    %v1688 = vpop.f32.mrf.mxu0
    %1689 = vmatprep.mubr.bf16.mxu0 0
    %1690 = vmatmul.mubr.bf16.gmra.mxu0 %v1641
    %v1691 = vpop.f32.mrf.mxu0
    %v1692 = vadd.f32 0.0, %v1691
    %v1693 = vpop.f32.mrf.mxu0
    %v1694 = vpop.f32.mrf.mxu0
    %v1695 = vadd.f32 0.0, %v1694
    %v1696 = vpop.f32.mrf.mxu0
    %1697 = vmatprep.mubr.bf16.mxu0 0
    %1698 = vmatmul.mubr.bf16.gmra.mxu0 %v1644
    %v1699 = vpop.f32.mrf.mxu0
    %v1700 = vadd.f32 0.0, %v1699
    %v1701 = vpop.f32.mrf.mxu0
    %v1702 = vpop.f32.mrf.mxu0
    %v1703 = vadd.f32 0.0, %v1702
    %v1704 = vpop.f32.mrf.mxu0
    %1705 = vmatprep.mubr.bf16.mxu0 0
    %1706 = vmatmul.mubr.bf16.gmra.mxu0 %v1647
    %v1707 = vpop.f32.mrf.mxu0
    %v1708 = vadd.f32 0.0, %v1707
    %v1709 = vpop.f32.mrf.mxu0
    %v1710 = vpop.f32.mrf.mxu0
    %v1711 = vadd.f32 0.0, %v1710
    %v1712 = vpop.f32.mrf.mxu0
    %1713 = vdwg.mxu0
    %v1714 = vadd.f32 %v1117, %v1595
    %v1715 = vadd.f32 %v1118, %v1598
    %v1716 = vadd.f32 %v1119, %v1603
    %v1717 = vadd.f32 %v1120, %v1606
    %v1718 = vadd.f32 %v1121, %v1611
    %v1719 = vadd.f32 %v1122, %v1614
    %v1720 = vadd.f32 %v1123, %v1619
    %v1721 = vadd.f32 %v1124, %v1622
    %v1722 = vadd.f32 %v1125, %v1684
    %v1723 = vadd.f32 %v1126, %v1687
    %v1724 = vadd.f32 %v1127, %v1692
    %v1725 = vadd.f32 %v1128, %v1695
    %v1726 = vadd.f32 %v1129, %v1700
    %v1727 = vadd.f32 %v1130, %v1703
    %v1728 = vadd.f32 %v1131, %v1708
    %v1729 = vadd.f32 %v1132, %v1711
    %v1730 = vpack.c.bf16 %v440, %v436
    %v1731 = vpack.c.bf16 %v450, %v446
    %v1732 = vpack.c.bf16 %v460, %v456
    %v1733 = vpack.c.bf16 %v470, %v466
    %v1734 = vpack.c.bf16 %v480, %v476
    %v1735 = vpack.c.bf16 %v490, %v486
    %v1736 = vpack.c.bf16 %v500, %v496
    %v1737 = vpack.c.bf16 %v510, %v506
    %s1738 = scalar_lea.vmem [#allocation2], 128
    %v1739 = vld [vmem:[%s1738] sm:$0xff]
    %v1740 = vld [vmem:[%s1738 + $0x8] sm:$0xff]
    %v1741 = vld [vmem:[%s1738 + $0x10] sm:$0xff]
    %v1742 = vld [vmem:[%s1738 + $0x18] sm:$0xff]
    %v1743 = vld [vmem:[%s1738 + $0x20] sm:$0xff]
    %v1744 = vld [vmem:[%s1738 + $0x28] sm:$0xff]
    %v1745 = vld [vmem:[%s1738 + $0x30] sm:$0xff]
    %v1746 = vld [vmem:[%s1738 + $0x38] sm:$0xff]
    %1747 = vrot.lane.b32.xlu0 %v535, 112
    %v1748 = vpop.permute.xlu0 %1747
    %1749 = vrot.lane.b32.xlu0 %v536, 112
    %v1750 = vpop.permute.xlu0 %1749
    %1751 = vrot.lane.b32.xlu0 %v537, 112
    %v1752 = vpop.permute.xlu0 %1751
    %1753 = vrot.lane.b32.xlu0 %v538, 112
    %v1754 = vpop.permute.xlu0 %1753
    %1755 = vrot.lane.b32.xlu0 %v535, 80
    %v1756 = vpop.permute.xlu0 %1755
    %1757 = vrot.lane.b32.xlu0 %v536, 80
    %v1758 = vpop.permute.xlu0 %1757
    %1759 = vrot.lane.b32.xlu0 %v537, 80
    %v1760 = vpop.permute.xlu0 %1759
    %1761 = vrot.lane.b32.xlu0 %v538, 80
    %v1762 = vpop.permute.xlu0 %1761
    %v1764 = vsel %vm563, %v1748, 0
    %v1767 = vsel %vm563, %v1750, 0
    %v1770 = vsel %vm563, %v1752, 0
    %v1773 = vsel %vm563, %v1754, 0
    %v1776 = vsel %vm563, %v1756, 0
    %v1779 = vsel %vm563, %v1758, 0
    %v1782 = vsel %vm563, %v1760, 0
    %v1785 = vsel %vm563, %v1762, 0
    %1787 = vmatprep.subr.bf16.mxu0 0
    %1788 = vmatpush1.bf16.xpose.msra.mxu0 0
    %1789 = vmatprep.subr.bf16.mxu0 0
    %1790 = vmatpush1.bf16.xpose.msra.mxu0 0
    %1791 = vmatprep.subr.bf16.mxu0 0
    %1792 = vmatpush1.bf16.xpose.msra.mxu0 0
    %1793 = vmatprep.subr.bf16.mxu0 0
    %1794 = vmatpush1.bf16.xpose.msra.mxu0 0
    %1795 = vmatprep.subr.bf16.mxu0 0
    %1796 = vmatpush1.bf16.xpose.msra.mxu0 %v1785
    %1797 = vmatprep.subr.bf16.mxu0 0
    %1798 = vmatpush1.bf16.xpose.msra.mxu0 %v1782
    %1799 = vmatprep.subr.bf16.mxu0 0
    %1800 = vmatpush1.bf16.xpose.msra.mxu0 %v1779
    %1801 = vmatprep.subr.bf16.mxu0 0
    %1802 = vmatpush1.bf16.xpose.msra.mxu0 %v1776
    %1803 = vmatprep.subr.bf16.mxu0 0
    %1804 = vmatpush2.bf16.xpose.msra.mxu0 0
    %1805 = vmatprep.subr.bf16.mxu0 0
    %1806 = vmatpush2.bf16.xpose.msra.mxu0 0
    %1807 = vmatprep.subr.bf16.mxu0 0
    %1808 = vmatpush2.bf16.xpose.msra.mxu0 0
    %1809 = vmatprep.subr.bf16.mxu0 0
    %1810 = vmatpush2.bf16.xpose.msra.mxu0 0
    %1811 = vmatprep.subr.bf16.mxu0 0
    %1812 = vmatpush2.bf16.xpose.msra.mxu0 0
    %1813 = vmatprep.subr.bf16.mxu0 0
    %1814 = vmatpush2.bf16.xpose.msra.mxu0 0
    %1815 = vmatprep.subr.bf16.mxu0 0
    %1816 = vmatpush2.bf16.xpose.msra.mxu0 0
    %1817 = vmatprep.subr.bf16.mxu0 0
    %1818 = vmatpush2.bf16.xpose.msra.mxu0 0
    %1819 = vmatprep.mubr.bf16.mxu0 0
    %1820 = vmatmul.mubr.bf16.gmra.mxu0 %v1764
    %v1821 = vpop.f32.mrf.mxu0
    %v1822 = vadd.f32 %v1739, %v1821
    %v1823 = vpop.f32.mrf.mxu0
    %v1824 = vpop.f32.mrf.mxu0
    %v1825 = vadd.f32 %v1740, %v1824
    %v1826 = vpop.f32.mrf.mxu0
    %1827 = vmatprep.mubr.bf16.mxu0 0
    %1828 = vmatmul.mubr.bf16.gmra.mxu0 %v1767
    %v1829 = vpop.f32.mrf.mxu0
    %v1830 = vadd.f32 %v1741, %v1829
    %v1831 = vpop.f32.mrf.mxu0
    %v1832 = vpop.f32.mrf.mxu0
    %v1833 = vadd.f32 %v1742, %v1832
    %v1834 = vpop.f32.mrf.mxu0
    %1835 = vmatprep.mubr.bf16.mxu0 0
    %1836 = vmatmul.mubr.bf16.gmra.mxu0 %v1770
    %v1837 = vpop.f32.mrf.mxu0
    %v1838 = vadd.f32 %v1743, %v1837
    %v1839 = vpop.f32.mrf.mxu0
    %v1840 = vpop.f32.mrf.mxu0
    %v1841 = vadd.f32 %v1744, %v1840
    %v1842 = vpop.f32.mrf.mxu0
    %1843 = vmatprep.mubr.bf16.mxu0 0
    %1844 = vmatmul.mubr.bf16.gmra.mxu0 %v1773
    %v1845 = vpop.f32.mrf.mxu0
    %v1846 = vadd.f32 %v1745, %v1845
    %v1847 = vpop.f32.mrf.mxu0
    %v1848 = vpop.f32.mrf.mxu0
    %v1849 = vadd.f32 %v1746, %v1848
    %v1850 = vpop.f32.mrf.mxu0
    %1851 = vdwg.mxu0
    %1852 = vrot.lane.b32.xlu0 %v539, 112
    %v1853 = vpop.permute.xlu0 %1852
    %1854 = vrot.lane.b32.xlu0 %v540, 112
    %v1855 = vpop.permute.xlu0 %1854
    %1856 = vrot.lane.b32.xlu0 %v541, 112
    %v1857 = vpop.permute.xlu0 %1856
    %1858 = vrot.lane.b32.xlu0 %v542, 112
    %v1859 = vpop.permute.xlu0 %1858
    %1860 = vrot.lane.b32.xlu0 %v539, 80
    %v1861 = vpop.permute.xlu0 %1860
    %1862 = vrot.lane.b32.xlu0 %v540, 80
    %v1863 = vpop.permute.xlu0 %1862
    %1864 = vrot.lane.b32.xlu0 %v541, 80
    %v1865 = vpop.permute.xlu0 %1864
    %1866 = vrot.lane.b32.xlu0 %v542, 80
    %v1867 = vpop.permute.xlu0 %1866
    %v1869 = vsel %vm563, %v1853, 0
    %v1872 = vsel %vm563, %v1855, 0
    %v1875 = vsel %vm563, %v1857, 0
    %v1878 = vsel %vm563, %v1859, 0
    %v1881 = vsel %vm563, %v1861, 0
    %v1884 = vsel %vm563, %v1863, 0
    %v1887 = vsel %vm563, %v1865, 0
    %v1890 = vsel %vm563, %v1867, 0
    %1892 = vmatprep.subr.bf16.mxu0 0
    %1893 = vmatpush1.bf16.xpose.msra.mxu0 0
    %1894 = vmatprep.subr.bf16.mxu0 0
    %1895 = vmatpush1.bf16.xpose.msra.mxu0 0
    %1896 = vmatprep.subr.bf16.mxu0 0
    %1897 = vmatpush1.bf16.xpose.msra.mxu0 0
    %1898 = vmatprep.subr.bf16.mxu0 0
    %1899 = vmatpush1.bf16.xpose.msra.mxu0 0
    %1900 = vmatprep.subr.bf16.mxu0 0
    %1901 = vmatpush1.bf16.xpose.msra.mxu0 %v1890
    %1902 = vmatprep.subr.bf16.mxu0 0
    %1903 = vmatpush1.bf16.xpose.msra.mxu0 %v1887
    %1904 = vmatprep.subr.bf16.mxu0 0
    %1905 = vmatpush1.bf16.xpose.msra.mxu0 %v1884
    %1906 = vmatprep.subr.bf16.mxu0 0
    %1907 = vmatpush1.bf16.xpose.msra.mxu0 %v1881
    %1908 = vmatprep.subr.bf16.mxu0 0
    %1909 = vmatpush2.bf16.xpose.msra.mxu0 0
    %1910 = vmatprep.subr.bf16.mxu0 0
    %1911 = vmatpush2.bf16.xpose.msra.mxu0 0
    %1912 = vmatprep.subr.bf16.mxu0 0
    %1913 = vmatpush2.bf16.xpose.msra.mxu0 0
    %1914 = vmatprep.subr.bf16.mxu0 0
    %1915 = vmatpush2.bf16.xpose.msra.mxu0 0
    %1916 = vmatprep.subr.bf16.mxu0 0
    %1917 = vmatpush2.bf16.xpose.msra.mxu0 0
    %1918 = vmatprep.subr.bf16.mxu0 0
    %1919 = vmatpush2.bf16.xpose.msra.mxu0 0
    %1920 = vmatprep.subr.bf16.mxu0 0
    %1921 = vmatpush2.bf16.xpose.msra.mxu0 0
    %1922 = vmatprep.subr.bf16.mxu0 0
    %1923 = vmatpush2.bf16.xpose.msra.mxu0 0
    %1924 = vmatprep.mubr.bf16.mxu0 0
    %1925 = vmatmul.mubr.bf16.gmra.mxu0 %v1869
    %v1926 = vpop.f32.mrf.mxu0
    %v1927 = vadd.f32 %v1739, %v1926
    %v1928 = vpop.f32.mrf.mxu0
    %v1929 = vpop.f32.mrf.mxu0
    %v1930 = vadd.f32 %v1740, %v1929
    %v1931 = vpop.f32.mrf.mxu0
    %1932 = vmatprep.mubr.bf16.mxu0 0
    %1933 = vmatmul.mubr.bf16.gmra.mxu0 %v1872
    %v1934 = vpop.f32.mrf.mxu0
    %v1935 = vadd.f32 %v1741, %v1934
    %v1936 = vpop.f32.mrf.mxu0
    %v1937 = vpop.f32.mrf.mxu0
    %v1938 = vadd.f32 %v1742, %v1937
    %v1939 = vpop.f32.mrf.mxu0
    %1940 = vmatprep.mubr.bf16.mxu0 0
    %1941 = vmatmul.mubr.bf16.gmra.mxu0 %v1875
    %v1942 = vpop.f32.mrf.mxu0
    %v1943 = vadd.f32 %v1743, %v1942
    %v1944 = vpop.f32.mrf.mxu0
    %v1945 = vpop.f32.mrf.mxu0
    %v1946 = vadd.f32 %v1744, %v1945
    %v1947 = vpop.f32.mrf.mxu0
    %1948 = vmatprep.mubr.bf16.mxu0 0
    %1949 = vmatmul.mubr.bf16.gmra.mxu0 %v1878
    %v1950 = vpop.f32.mrf.mxu0
    %v1951 = vadd.f32 %v1745, %v1950
    %v1952 = vpop.f32.mrf.mxu0
    %v1953 = vpop.f32.mrf.mxu0
    %v1954 = vadd.f32 %v1746, %v1953
    %v1955 = vpop.f32.mrf.mxu0
    %1956 = vdwg.mxu0
    %v1957 = vsel %vm754, %v1822, -inf
    %1958 = vmax.xlane.f32.xlu0 %v1957
    %v1959 = vpop.xlane.xlu0 %1958
    %v1960 = vsel %vm754, %v1825, -inf
    %1961 = vmax.xlane.f32.xlu0 %v1960
    %v1962 = vpop.xlane.xlu0 %1961
    %v1963 = vsel %vm754, %v1830, -inf
    %1964 = vmax.xlane.f32.xlu0 %v1963
    %v1965 = vpop.xlane.xlu0 %1964
    %v1966 = vsel %vm754, %v1833, -inf
    %1967 = vmax.xlane.f32.xlu0 %v1966
    %v1968 = vpop.xlane.xlu0 %1967
    %v1969 = vsel %vm754, %v1838, -inf
    %1970 = vmax.xlane.f32.xlu0 %v1969
    %v1971 = vpop.xlane.xlu0 %1970
    %v1972 = vsel %vm754, %v1841, -inf
    %1973 = vmax.xlane.f32.xlu0 %v1972
    %v1974 = vpop.xlane.xlu0 %1973
    %v1975 = vsel %vm754, %v1846, -inf
    %1976 = vmax.xlane.f32.xlu0 %v1975
    %v1977 = vpop.xlane.xlu0 %1976
    %v1978 = vsel %vm754, %v1849, -inf
    %1979 = vmax.xlane.f32.xlu0 %v1978
    %v1980 = vpop.xlane.xlu0 %1979
    %v1981 = vsel %vm754, %v1927, -inf
    %1982 = vmax.xlane.f32.xlu0 %v1981
    %v1983 = vpop.xlane.xlu0 %1982
    %v1984 = vsel %vm754, %v1930, -inf
    %1985 = vmax.xlane.f32.xlu0 %v1984
    %v1986 = vpop.xlane.xlu0 %1985
    %v1987 = vsel %vm754, %v1935, -inf
    %1988 = vmax.xlane.f32.xlu0 %v1987
    %v1989 = vpop.xlane.xlu0 %1988
    %v1990 = vsel %vm754, %v1938, -inf
    %1991 = vmax.xlane.f32.xlu0 %v1990
    %v1992 = vpop.xlane.xlu0 %1991
    %v1993 = vsel %vm754, %v1943, -inf
    %1994 = vmax.xlane.f32.xlu0 %v1993
    %v1995 = vpop.xlane.xlu0 %1994
    %v1996 = vsel %vm754, %v1946, -inf
    %1997 = vmax.xlane.f32.xlu0 %v1996
    %v1998 = vpop.xlane.xlu0 %1997
    %v1999 = vsel %vm754, %v1951, -inf
    %2000 = vmax.xlane.f32.xlu0 %v1999
    %v2001 = vpop.xlane.xlu0 %2000
    %v2002 = vsel %vm754, %v1954, -inf
    %2003 = vmax.xlane.f32.xlu0 %v2002
    %v2004 = vpop.xlane.xlu0 %2003
    %v2005 = vsub.f32 %v1822, %v1959
    %v2006 = vsub.f32 %v1825, %v1962
    %v2007 = vsub.f32 %v1830, %v1965
    %v2008 = vsub.f32 %v1833, %v1968
    %v2009 = vsub.f32 %v1838, %v1971
    %v2010 = vsub.f32 %v1841, %v1974
    %v2011 = vsub.f32 %v1846, %v1977
    %v2012 = vsub.f32 %v1849, %v1980
    %v2013 = vsub.f32 %v1927, %v1983
    %v2014 = vsub.f32 %v1930, %v1986
    %v2015 = vsub.f32 %v1935, %v1989
    %v2016 = vsub.f32 %v1938, %v1992
    %v2017 = vsub.f32 %v1943, %v1995
    %v2018 = vsub.f32 %v1946, %v1998
    %v2019 = vsub.f32 %v1951, %v2001
    %v2020 = vsub.f32 %v1954, %v2004
    %v2021 = vmul.f32 %v2005, 1.442695
    %v2022 = vpow.pop %v2021
    %v2023 = vmul.f32 %v2006, 1.442695
    %v2024 = vpow.pop %v2023
    %v2025 = vmul.f32 %v2007, 1.442695
    %v2026 = vpow.pop %v2025
    %v2027 = vmul.f32 %v2008, 1.442695
    %v2028 = vpow.pop %v2027
    %v2029 = vmul.f32 %v2009, 1.442695
    %v2030 = vpow.pop %v2029
    %v2031 = vmul.f32 %v2010, 1.442695
    %v2032 = vpow.pop %v2031
    %v2033 = vmul.f32 %v2011, 1.442695
    %v2034 = vpow.pop %v2033
    %v2035 = vmul.f32 %v2012, 1.442695
    %v2036 = vpow.pop %v2035
    %v2037 = vmul.f32 %v2013, 1.442695
    %v2038 = vpow.pop %v2037
    %v2039 = vmul.f32 %v2014, 1.442695
    %v2040 = vpow.pop %v2039
    %v2041 = vmul.f32 %v2015, 1.442695
    %v2042 = vpow.pop %v2041
    %v2043 = vmul.f32 %v2016, 1.442695
    %v2044 = vpow.pop %v2043
    %v2045 = vmul.f32 %v2017, 1.442695
    %v2046 = vpow.pop %v2045
    %v2047 = vmul.f32 %v2018, 1.442695
    %v2048 = vpow.pop %v2047
    %v2049 = vmul.f32 %v2019, 1.442695
    %v2050 = vpow.pop %v2049
    %v2051 = vmul.f32 %v2020, 1.442695
    %v2052 = vpow.pop %v2051
    %v2053 = vsel %vm754, %v2022, 0.0
    %2054 = vadd.xlane.f32.xlu0 %v2053
    %v2055 = vpop.xlane.xlu0 %2054
    %v2056 = vsel %vm754, %v2024, 0.0
    %2057 = vadd.xlane.f32.xlu0 %v2056
    %v2058 = vpop.xlane.xlu0 %2057
    %v2059 = vsel %vm754, %v2026, 0.0
    %2060 = vadd.xlane.f32.xlu0 %v2059
    %v2061 = vpop.xlane.xlu0 %2060
    %v2062 = vsel %vm754, %v2028, 0.0
    %2063 = vadd.xlane.f32.xlu0 %v2062
    %v2064 = vpop.xlane.xlu0 %2063
    %v2065 = vsel %vm754, %v2030, 0.0
    %2066 = vadd.xlane.f32.xlu0 %v2065
    %v2067 = vpop.xlane.xlu0 %2066
    %v2068 = vsel %vm754, %v2032, 0.0
    %2069 = vadd.xlane.f32.xlu0 %v2068
    %v2070 = vpop.xlane.xlu0 %2069
    %v2071 = vsel %vm754, %v2034, 0.0
    %2072 = vadd.xlane.f32.xlu0 %v2071
    %v2073 = vpop.xlane.xlu0 %2072
    %v2074 = vsel %vm754, %v2036, 0.0
    %2075 = vadd.xlane.f32.xlu0 %v2074
    %v2076 = vpop.xlane.xlu0 %2075
    %v2077 = vsel %vm754, %v2038, 0.0
    %2078 = vadd.xlane.f32.xlu0 %v2077
    %v2079 = vpop.xlane.xlu0 %2078
    %v2080 = vsel %vm754, %v2040, 0.0
    %2081 = vadd.xlane.f32.xlu0 %v2080
    %v2082 = vpop.xlane.xlu0 %2081
    %v2083 = vsel %vm754, %v2042, 0.0
    %2084 = vadd.xlane.f32.xlu0 %v2083
    %v2085 = vpop.xlane.xlu0 %2084
    %v2086 = vsel %vm754, %v2044, 0.0
    %2087 = vadd.xlane.f32.xlu0 %v2086
    %v2088 = vpop.xlane.xlu0 %2087
    %v2089 = vsel %vm754, %v2046, 0.0
    %2090 = vadd.xlane.f32.xlu0 %v2089
    %v2091 = vpop.xlane.xlu0 %2090
    %v2092 = vsel %vm754, %v2048, 0.0
    %2093 = vadd.xlane.f32.xlu0 %v2092
    %v2094 = vpop.xlane.xlu0 %2093
    %v2095 = vsel %vm754, %v2050, 0.0
    %2096 = vadd.xlane.f32.xlu0 %v2095
    %v2097 = vpop.xlane.xlu0 %2096
    %v2098 = vsel %vm754, %v2052, 0.0
    %2099 = vadd.xlane.f32.xlu0 %v2098
    %v2100 = vpop.xlane.xlu0 %2099
    %v2101 = vrcp.pop %v2055
    %v2102 = vrcp.pop %v2058
    %v2103 = vrcp.pop %v2061
    %v2104 = vrcp.pop %v2064
    %v2105 = vrcp.pop %v2067
    %v2106 = vrcp.pop %v2070
    %v2107 = vrcp.pop %v2073
    %v2108 = vrcp.pop %v2076
    %v2109 = vrcp.pop %v2079
    %v2110 = vrcp.pop %v2082
    %v2111 = vrcp.pop %v2085
    %v2112 = vrcp.pop %v2088
    %v2113 = vrcp.pop %v2091
    %v2114 = vrcp.pop %v2094
    %v2115 = vrcp.pop %v2097
    %v2116 = vrcp.pop %v2100
    %v2117 = vmul.f32 %v2022, %v2101
    %v2118 = vmul.f32 %v2024, %v2102
    %v2119 = vmul.f32 %v2026, %v2103
    %v2120 = vmul.f32 %v2028, %v2104
    %v2121 = vmul.f32 %v2030, %v2105
    %v2122 = vmul.f32 %v2032, %v2106
    %v2123 = vmul.f32 %v2034, %v2107
    %v2124 = vmul.f32 %v2036, %v2108
    %v2125 = vmul.f32 %v2038, %v2109
    %v2126 = vmul.f32 %v2040, %v2110
    %v2127 = vmul.f32 %v2042, %v2111
    %v2128 = vmul.f32 %v2044, %v2112
    %v2129 = vmul.f32 %v2046, %v2113
    %v2130 = vmul.f32 %v2048, %v2114
    %v2131 = vmul.f32 %v2050, %v2115
    %v2132 = vmul.f32 %v2052, %v2116
    %v2133 = vpack.c.bf16 %v2118, %v2117
    %v2134 = vpack.c.bf16 %v2120, %v2119
    %v2135 = vpack.c.bf16 %v2122, %v2121
    %v2136 = vpack.c.bf16 %v2124, %v2123
    %v2137 = vpack.c.bf16 %v2126, %v2125
    %v2138 = vpack.c.bf16 %v2128, %v2127
    %v2139 = vpack.c.bf16 %v2130, %v2129
    %v2140 = vpack.c.bf16 %v2132, %v2131
    %v2142 = vsel %vm754, %v2133, 0
    %v2145 = vsel %vm754, %v2134, 0
    %v2148 = vsel %vm754, %v2135, 0
    %v2151 = vsel %vm754, %v2136, 0
    %2153 = vmatprep.subr.bf16.mxu0 0
    %2154 = vmatpush1.bf16.msra.mxu0 0
    %2155 = vmatprep.subr.bf16.mxu0 0
    %2156 = vmatpush1.bf16.msra.mxu0 0
    %2157 = vmatprep.subr.bf16.mxu0 0
    %2158 = vmatpush1.bf16.msra.mxu0 0
    %2159 = vmatprep.subr.bf16.mxu0 0
    %2160 = vmatpush1.bf16.msra.mxu0 0
    %2161 = vmatprep.subr.bf16.mxu0 0
    %2162 = vmatpush1.bf16.msra.mxu0 %v1733
    %2163 = vmatprep.subr.bf16.mxu0 0
    %2164 = vmatpush1.bf16.msra.mxu0 %v1732
    %2165 = vmatprep.subr.bf16.mxu0 0
    %2166 = vmatpush1.bf16.msra.mxu0 %v1731
    %2167 = vmatprep.subr.bf16.mxu0 0
    %2168 = vmatpush1.bf16.msra.mxu0 %v1730
    %2169 = vmatprep.subr.bf16.mxu0 0
    %2170 = vmatpush2.bf16.msra.mxu0 0
    %2171 = vmatprep.subr.bf16.mxu0 0
    %2172 = vmatpush2.bf16.msra.mxu0 0
    %2173 = vmatprep.subr.bf16.mxu0 0
    %2174 = vmatpush2.bf16.msra.mxu0 0
    %2175 = vmatprep.subr.bf16.mxu0 0
    %2176 = vmatpush2.bf16.msra.mxu0 0
    %2177 = vmatprep.subr.bf16.mxu0 0
    %2178 = vmatpush2.bf16.msra.mxu0 0
    %2179 = vmatprep.subr.bf16.mxu0 0
    %2180 = vmatpush2.bf16.msra.mxu0 0
    %2181 = vmatprep.subr.bf16.mxu0 0
    %2182 = vmatpush2.bf16.msra.mxu0 0
    %2183 = vmatprep.subr.bf16.mxu0 0
    %2184 = vmatpush2.bf16.msra.mxu0 0
    %2185 = vmatprep.mubr.bf16.mxu0 0
    %2186 = vmatmul.mubr.bf16.gmra.mxu0 %v2142
    %v2187 = vpop.f32.mrf.mxu0
    %v2188 = vadd.f32 0.0, %v2187
    %v2189 = vpop.f32.mrf.mxu0
    %v2190 = vpop.f32.mrf.mxu0
    %v2191 = vadd.f32 0.0, %v2190
    %v2192 = vpop.f32.mrf.mxu0
    %2193 = vmatprep.mubr.bf16.mxu0 0
    %2194 = vmatmul.mubr.bf16.gmra.mxu0 %v2145
    %v2195 = vpop.f32.mrf.mxu0
    %v2196 = vadd.f32 0.0, %v2195
    %v2197 = vpop.f32.mrf.mxu0
    %v2198 = vpop.f32.mrf.mxu0
    %v2199 = vadd.f32 0.0, %v2198
    %v2200 = vpop.f32.mrf.mxu0
    %2201 = vmatprep.mubr.bf16.mxu0 0
    %2202 = vmatmul.mubr.bf16.gmra.mxu0 %v2148
    %v2203 = vpop.f32.mrf.mxu0
    %v2204 = vadd.f32 0.0, %v2203
    %v2205 = vpop.f32.mrf.mxu0
    %v2206 = vpop.f32.mrf.mxu0
    %v2207 = vadd.f32 0.0, %v2206
    %v2208 = vpop.f32.mrf.mxu0
    %2209 = vmatprep.mubr.bf16.mxu0 0
    %2210 = vmatmul.mubr.bf16.gmra.mxu0 %v2151
    %v2211 = vpop.f32.mrf.mxu0
    %v2212 = vadd.f32 0.0, %v2211
    %v2213 = vpop.f32.mrf.mxu0
    %v2214 = vpop.f32.mrf.mxu0
    %v2215 = vadd.f32 0.0, %v2214
    %v2216 = vpop.f32.mrf.mxu0
    %2217 = vdwg.mxu0
    %v2219 = vsel %vm754, %v2137, 0
    %v2222 = vsel %vm754, %v2138, 0
    %v2225 = vsel %vm754, %v2139, 0
    %v2228 = vsel %vm754, %v2140, 0
    %2230 = vmatprep.subr.bf16.mxu0 0
    %2231 = vmatpush1.bf16.msra.mxu0 0
    %2232 = vmatprep.subr.bf16.mxu0 0
    %2233 = vmatpush1.bf16.msra.mxu0 0
    %2234 = vmatprep.subr.bf16.mxu0 0
    %2235 = vmatpush1.bf16.msra.mxu0 0
    %2236 = vmatprep.subr.bf16.mxu0 0
    %2237 = vmatpush1.bf16.msra.mxu0 0
    %2238 = vmatprep.subr.bf16.mxu0 0
    %2239 = vmatpush1.bf16.msra.mxu0 %v1737
    %2240 = vmatprep.subr.bf16.mxu0 0
    %2241 = vmatpush1.bf16.msra.mxu0 %v1736
    %2242 = vmatprep.subr.bf16.mxu0 0
    %2243 = vmatpush1.bf16.msra.mxu0 %v1735
    %2244 = vmatprep.subr.bf16.mxu0 0
    %2245 = vmatpush1.bf16.msra.mxu0 %v1734
    %2246 = vmatprep.subr.bf16.mxu0 0
    %2247 = vmatpush2.bf16.msra.mxu0 0
    %2248 = vmatprep.subr.bf16.mxu0 0
    %2249 = vmatpush2.bf16.msra.mxu0 0
    %2250 = vmatprep.subr.bf16.mxu0 0
    %2251 = vmatpush2.bf16.msra.mxu0 0
    %2252 = vmatprep.subr.bf16.mxu0 0
    %2253 = vmatpush2.bf16.msra.mxu0 0
    %2254 = vmatprep.subr.bf16.mxu0 0
    %2255 = vmatpush2.bf16.msra.mxu0 0
    %2256 = vmatprep.subr.bf16.mxu0 0
    %2257 = vmatpush2.bf16.msra.mxu0 0
    %2258 = vmatprep.subr.bf16.mxu0 0
    %2259 = vmatpush2.bf16.msra.mxu0 0
    %2260 = vmatprep.subr.bf16.mxu0 0
    %2261 = vmatpush2.bf16.msra.mxu0 0
    %2262 = vmatprep.mubr.bf16.mxu0 0
    %2263 = vmatmul.mubr.bf16.gmra.mxu0 %v2219
    %v2264 = vpop.f32.mrf.mxu0
    %v2265 = vadd.f32 0.0, %v2264
    %v2266 = vpop.f32.mrf.mxu0
    %v2267 = vpop.f32.mrf.mxu0
    %v2268 = vadd.f32 0.0, %v2267
    %v2269 = vpop.f32.mrf.mxu0
    %2270 = vmatprep.mubr.bf16.mxu0 0
    %2271 = vmatmul.mubr.bf16.gmra.mxu0 %v2222
    %v2272 = vpop.f32.mrf.mxu0
    %v2273 = vadd.f32 0.0, %v2272
    %v2274 = vpop.f32.mrf.mxu0
    %v2275 = vpop.f32.mrf.mxu0
    %v2276 = vadd.f32 0.0, %v2275
    %v2277 = vpop.f32.mrf.mxu0
    %2278 = vmatprep.mubr.bf16.mxu0 0
    %2279 = vmatmul.mubr.bf16.gmra.mxu0 %v2225
    %v2280 = vpop.f32.mrf.mxu0
    %v2281 = vadd.f32 0.0, %v2280
    %v2282 = vpop.f32.mrf.mxu0
    %v2283 = vpop.f32.mrf.mxu0
    %v2284 = vadd.f32 0.0, %v2283
    %v2285 = vpop.f32.mrf.mxu0
    %2286 = vmatprep.mubr.bf16.mxu0 0
    %2287 = vmatmul.mubr.bf16.gmra.mxu0 %v2228
    %v2288 = vpop.f32.mrf.mxu0
    %v2289 = vadd.f32 0.0, %v2288
    %v2290 = vpop.f32.mrf.mxu0
    %v2291 = vpop.f32.mrf.mxu0
    %v2292 = vadd.f32 0.0, %v2291
    %v2293 = vpop.f32.mrf.mxu0
    %2294 = vdwg.mxu0
    %v2295 = vadd.f32 %v1714, %v2188
    %v2296 = vadd.f32 %v1715, %v2191
    %v2297 = vadd.f32 %v1716, %v2196
    %v2298 = vadd.f32 %v1717, %v2199
    %v2299 = vadd.f32 %v1718, %v2204
    %v2300 = vadd.f32 %v1719, %v2207
    %v2301 = vadd.f32 %v1720, %v2212
    %v2302 = vadd.f32 %v1721, %v2215
    %v2303 = vadd.f32 %v1722, %v2265
    %v2304 = vadd.f32 %v1723, %v2268
    %v2305 = vadd.f32 %v1724, %v2273
    %v2306 = vadd.f32 %v1725, %v2276
    %v2307 = vadd.f32 %v1726, %v2281
    %v2308 = vadd.f32 %v1727, %v2284
    %v2309 = vadd.f32 %v1728, %v2289
    %v2310 = vadd.f32 %v1729, %v2292
    %s2311 = scalar_lea.vmem [#allocation2], 192
    %v2312 = vld [vmem:[%s2311] sm:$0xff]
    %v2313 = vld [vmem:[%s2311 + $0x8] sm:$0xff]
    %v2314 = vld [vmem:[%s2311 + $0x10] sm:$0xff]
    %v2315 = vld [vmem:[%s2311 + $0x18] sm:$0xff]
    %v2316 = vld [vmem:[%s2311 + $0x20] sm:$0xff]
    %v2317 = vld [vmem:[%s2311 + $0x28] sm:$0xff]
    %v2318 = vld [vmem:[%s2311 + $0x30] sm:$0xff]
    %v2319 = vld [vmem:[%s2311 + $0x38] sm:$0xff]
    %2320 = vrot.lane.b32.xlu0 %v535, 104
    %v2321 = vpop.permute.xlu0 %2320
    %2322 = vrot.lane.b32.xlu0 %v536, 104
    %v2323 = vpop.permute.xlu0 %2322
    %2324 = vrot.lane.b32.xlu0 %v537, 104
    %v2325 = vpop.permute.xlu0 %2324
    %2326 = vrot.lane.b32.xlu0 %v538, 104
    %v2327 = vpop.permute.xlu0 %2326
    %2328 = vrot.lane.b32.xlu0 %v535, 72
    %v2329 = vpop.permute.xlu0 %2328
    %2330 = vrot.lane.b32.xlu0 %v536, 72
    %v2331 = vpop.permute.xlu0 %2330
    %2332 = vrot.lane.b32.xlu0 %v537, 72
    %v2333 = vpop.permute.xlu0 %2332
    %2334 = vrot.lane.b32.xlu0 %v538, 72
    %v2335 = vpop.permute.xlu0 %2334
    %v2337 = vsel %vm563, %v2321, 0
    %v2340 = vsel %vm563, %v2323, 0
    %v2343 = vsel %vm563, %v2325, 0
    %v2346 = vsel %vm563, %v2327, 0
    %v2349 = vsel %vm563, %v2329, 0
    %v2352 = vsel %vm563, %v2331, 0
    %v2355 = vsel %vm563, %v2333, 0
    %v2358 = vsel %vm563, %v2335, 0
    %2360 = vmatprep.subr.bf16.mxu0 0
    %2361 = vmatpush1.bf16.xpose.msra.mxu0 0
    %2362 = vmatprep.subr.bf16.mxu0 0
    %2363 = vmatpush1.bf16.xpose.msra.mxu0 0
    %2364 = vmatprep.subr.bf16.mxu0 0
    %2365 = vmatpush1.bf16.xpose.msra.mxu0 0
    %2366 = vmatprep.subr.bf16.mxu0 0
    %2367 = vmatpush1.bf16.xpose.msra.mxu0 0
    %2368 = vmatprep.subr.bf16.mxu0 0
    %2369 = vmatpush1.bf16.xpose.msra.mxu0 %v2358
    %2370 = vmatprep.subr.bf16.mxu0 0
    %2371 = vmatpush1.bf16.xpose.msra.mxu0 %v2355
    %2372 = vmatprep.subr.bf16.mxu0 0
    %2373 = vmatpush1.bf16.xpose.msra.mxu0 %v2352
    %2374 = vmatprep.subr.bf16.mxu0 0
    %2375 = vmatpush1.bf16.xpose.msra.mxu0 %v2349
    %2376 = vmatprep.subr.bf16.mxu0 0
    %2377 = vmatpush2.bf16.xpose.msra.mxu0 0
    %2378 = vmatprep.subr.bf16.mxu0 0
    %2379 = vmatpush2.bf16.xpose.msra.mxu0 0
    %2380 = vmatprep.subr.bf16.mxu0 0
    %2381 = vmatpush2.bf16.xpose.msra.mxu0 0
    %2382 = vmatprep.subr.bf16.mxu0 0
    %2383 = vmatpush2.bf16.xpose.msra.mxu0 0
    %2384 = vmatprep.subr.bf16.mxu0 0
    %2385 = vmatpush2.bf16.xpose.msra.mxu0 0
    %2386 = vmatprep.subr.bf16.mxu0 0
    %2387 = vmatpush2.bf16.xpose.msra.mxu0 0
    %2388 = vmatprep.subr.bf16.mxu0 0
    %2389 = vmatpush2.bf16.xpose.msra.mxu0 0
    %2390 = vmatprep.subr.bf16.mxu0 0
    %2391 = vmatpush2.bf16.xpose.msra.mxu0 0
    %2392 = vmatprep.mubr.bf16.mxu0 0
    %2393 = vmatmul.mubr.bf16.gmra.mxu0 %v2337
    %v2394 = vpop.f32.mrf.mxu0
    %v2395 = vadd.f32 %v2312, %v2394
    %v2396 = vpop.f32.mrf.mxu0
    %v2397 = vpop.f32.mrf.mxu0
    %v2398 = vadd.f32 %v2313, %v2397
    %v2399 = vpop.f32.mrf.mxu0
    %2400 = vmatprep.mubr.bf16.mxu0 0
    %2401 = vmatmul.mubr.bf16.gmra.mxu0 %v2340
    %v2402 = vpop.f32.mrf.mxu0
    %v2403 = vadd.f32 %v2314, %v2402
    %v2404 = vpop.f32.mrf.mxu0
    %v2405 = vpop.f32.mrf.mxu0
    %v2406 = vadd.f32 %v2315, %v2405
    %v2407 = vpop.f32.mrf.mxu0
    %2408 = vmatprep.mubr.bf16.mxu0 0
    %2409 = vmatmul.mubr.bf16.gmra.mxu0 %v2343
    %v2410 = vpop.f32.mrf.mxu0
    %v2411 = vadd.f32 %v2316, %v2410
    %v2412 = vpop.f32.mrf.mxu0
    %v2413 = vpop.f32.mrf.mxu0
    %v2414 = vadd.f32 %v2317, %v2413
    %v2415 = vpop.f32.mrf.mxu0
    %2416 = vmatprep.mubr.bf16.mxu0 0
    %2417 = vmatmul.mubr.bf16.gmra.mxu0 %v2346
    %v2418 = vpop.f32.mrf.mxu0
    %v2419 = vadd.f32 %v2318, %v2418
    %v2420 = vpop.f32.mrf.mxu0
    %v2421 = vpop.f32.mrf.mxu0
    %v2422 = vadd.f32 %v2319, %v2421
    %v2423 = vpop.f32.mrf.mxu0
    %2424 = vdwg.mxu0
    %2425 = vrot.lane.b32.xlu0 %v539, 104
    %v2426 = vpop.permute.xlu0 %2425
    %2427 = vrot.lane.b32.xlu0 %v540, 104
    %v2428 = vpop.permute.xlu0 %2427
    %2429 = vrot.lane.b32.xlu0 %v541, 104
    %v2430 = vpop.permute.xlu0 %2429
    %2431 = vrot.lane.b32.xlu0 %v542, 104
    %v2432 = vpop.permute.xlu0 %2431
    %2433 = vrot.lane.b32.xlu0 %v539, 72
    %v2434 = vpop.permute.xlu0 %2433
    %2435 = vrot.lane.b32.xlu0 %v540, 72
    %v2436 = vpop.permute.xlu0 %2435
    %2437 = vrot.lane.b32.xlu0 %v541, 72
    %v2438 = vpop.permute.xlu0 %2437
    %2439 = vrot.lane.b32.xlu0 %v542, 72
    %v2440 = vpop.permute.xlu0 %2439
    %v2442 = vsel %vm563, %v2426, 0
    %v2445 = vsel %vm563, %v2428, 0
    %v2448 = vsel %vm563, %v2430, 0
    %v2451 = vsel %vm563, %v2432, 0
    %v2454 = vsel %vm563, %v2434, 0
    %v2457 = vsel %vm563, %v2436, 0
    %v2460 = vsel %vm563, %v2438, 0
    %v2463 = vsel %vm563, %v2440, 0
    %2465 = vmatprep.subr.bf16.mxu0 0
    %2466 = vmatpush1.bf16.xpose.msra.mxu0 0
    %2467 = vmatprep.subr.bf16.mxu0 0
    %2468 = vmatpush1.bf16.xpose.msra.mxu0 0
    %2469 = vmatprep.subr.bf16.mxu0 0
    %2470 = vmatpush1.bf16.xpose.msra.mxu0 0
    %2471 = vmatprep.subr.bf16.mxu0 0
    %2472 = vmatpush1.bf16.xpose.msra.mxu0 0
    %2473 = vmatprep.subr.bf16.mxu0 0
    %2474 = vmatpush1.bf16.xpose.msra.mxu0 %v2463
    %2475 = vmatprep.subr.bf16.mxu0 0
    %2476 = vmatpush1.bf16.xpose.msra.mxu0 %v2460
    %2477 = vmatprep.subr.bf16.mxu0 0
    %2478 = vmatpush1.bf16.xpose.msra.mxu0 %v2457
    %2479 = vmatprep.subr.bf16.mxu0 0
    %2480 = vmatpush1.bf16.xpose.msra.mxu0 %v2454
    %2481 = vmatprep.subr.bf16.mxu0 0
    %2482 = vmatpush2.bf16.xpose.msra.mxu0 0
    %2483 = vmatprep.subr.bf16.mxu0 0
    %2484 = vmatpush2.bf16.xpose.msra.mxu0 0
    %2485 = vmatprep.subr.bf16.mxu0 0
    %2486 = vmatpush2.bf16.xpose.msra.mxu0 0
    %2487 = vmatprep.subr.bf16.mxu0 0
    %2488 = vmatpush2.bf16.xpose.msra.mxu0 0
    %2489 = vmatprep.subr.bf16.mxu0 0
    %2490 = vmatpush2.bf16.xpose.msra.mxu0 0
    %2491 = vmatprep.subr.bf16.mxu0 0
    %2492 = vmatpush2.bf16.xpose.msra.mxu0 0
    %2493 = vmatprep.subr.bf16.mxu0 0
    %2494 = vmatpush2.bf16.xpose.msra.mxu0 0
    %2495 = vmatprep.subr.bf16.mxu0 0
    %2496 = vmatpush2.bf16.xpose.msra.mxu0 0
    %2497 = vmatprep.mubr.bf16.mxu0 0
    %2498 = vmatmul.mubr.bf16.gmra.mxu0 %v2442
    %v2499 = vpop.f32.mrf.mxu0
    %v2500 = vadd.f32 %v2312, %v2499
    %v2501 = vpop.f32.mrf.mxu0
    %v2502 = vpop.f32.mrf.mxu0
    %v2503 = vadd.f32 %v2313, %v2502
    %v2504 = vpop.f32.mrf.mxu0
    %2505 = vmatprep.mubr.bf16.mxu0 0
    %2506 = vmatmul.mubr.bf16.gmra.mxu0 %v2445
    %v2507 = vpop.f32.mrf.mxu0
    %v2508 = vadd.f32 %v2314, %v2507
    %v2509 = vpop.f32.mrf.mxu0
    %v2510 = vpop.f32.mrf.mxu0
    %v2511 = vadd.f32 %v2315, %v2510
    %v2512 = vpop.f32.mrf.mxu0
    %2513 = vmatprep.mubr.bf16.mxu0 0
    %2514 = vmatmul.mubr.bf16.gmra.mxu0 %v2448
    %v2515 = vpop.f32.mrf.mxu0
    %v2516 = vadd.f32 %v2316, %v2515
    %v2517 = vpop.f32.mrf.mxu0
    %v2518 = vpop.f32.mrf.mxu0
    %v2519 = vadd.f32 %v2317, %v2518
    %v2520 = vpop.f32.mrf.mxu0
    %2521 = vmatprep.mubr.bf16.mxu0 0
    %2522 = vmatmul.mubr.bf16.gmra.mxu0 %v2451
    %v2523 = vpop.f32.mrf.mxu0
    %v2524 = vadd.f32 %v2318, %v2523
    %v2525 = vpop.f32.mrf.mxu0
    %v2526 = vpop.f32.mrf.mxu0
    %v2527 = vadd.f32 %v2319, %v2526
    %v2528 = vpop.f32.mrf.mxu0
    %2529 = vdwg.mxu0
    %v2530 = vsel %vm754, %v2395, -inf
    %2531 = vmax.xlane.f32.xlu0 %v2530
    %v2532 = vpop.xlane.xlu0 %2531
    %v2533 = vsel %vm754, %v2398, -inf
    %2534 = vmax.xlane.f32.xlu0 %v2533
    %v2535 = vpop.xlane.xlu0 %2534
    %v2536 = vsel %vm754, %v2403, -inf
    %2537 = vmax.xlane.f32.xlu0 %v2536
    %v2538 = vpop.xlane.xlu0 %2537
    %v2539 = vsel %vm754, %v2406, -inf
    %2540 = vmax.xlane.f32.xlu0 %v2539
    %v2541 = vpop.xlane.xlu0 %2540
    %v2542 = vsel %vm754, %v2411, -inf
    %2543 = vmax.xlane.f32.xlu0 %v2542
    %v2544 = vpop.xlane.xlu0 %2543
    %v2545 = vsel %vm754, %v2414, -inf
    %2546 = vmax.xlane.f32.xlu0 %v2545
    %v2547 = vpop.xlane.xlu0 %2546
    %v2548 = vsel %vm754, %v2419, -inf
    %2549 = vmax.xlane.f32.xlu0 %v2548
    %v2550 = vpop.xlane.xlu0 %2549
    %v2551 = vsel %vm754, %v2422, -inf
    %2552 = vmax.xlane.f32.xlu0 %v2551
    %v2553 = vpop.xlane.xlu0 %2552
    %v2554 = vsel %vm754, %v2500, -inf
    %2555 = vmax.xlane.f32.xlu0 %v2554
    %v2556 = vpop.xlane.xlu0 %2555
    %v2557 = vsel %vm754, %v2503, -inf
    %2558 = vmax.xlane.f32.xlu0 %v2557
    %v2559 = vpop.xlane.xlu0 %2558
    %v2560 = vsel %vm754, %v2508, -inf
    %2561 = vmax.xlane.f32.xlu0 %v2560
    %v2562 = vpop.xlane.xlu0 %2561
    %v2563 = vsel %vm754, %v2511, -inf
    %2564 = vmax.xlane.f32.xlu0 %v2563
    %v2565 = vpop.xlane.xlu0 %2564
    %v2566 = vsel %vm754, %v2516, -inf
    %2567 = vmax.xlane.f32.xlu0 %v2566
    %v2568 = vpop.xlane.xlu0 %2567
    %v2569 = vsel %vm754, %v2519, -inf
    %2570 = vmax.xlane.f32.xlu0 %v2569
    %v2571 = vpop.xlane.xlu0 %2570
    %v2572 = vsel %vm754, %v2524, -inf
    %2573 = vmax.xlane.f32.xlu0 %v2572
    %v2574 = vpop.xlane.xlu0 %2573
    %v2575 = vsel %vm754, %v2527, -inf
    %2576 = vmax.xlane.f32.xlu0 %v2575
    %v2577 = vpop.xlane.xlu0 %2576
    %v2578 = vsub.f32 %v2395, %v2532
    %v2579 = vsub.f32 %v2398, %v2535
    %v2580 = vsub.f32 %v2403, %v2538
    %v2581 = vsub.f32 %v2406, %v2541
    %v2582 = vsub.f32 %v2411, %v2544
    %v2583 = vsub.f32 %v2414, %v2547
    %v2584 = vsub.f32 %v2419, %v2550
    %v2585 = vsub.f32 %v2422, %v2553
    %v2586 = vsub.f32 %v2500, %v2556
    %v2587 = vsub.f32 %v2503, %v2559
    %v2588 = vsub.f32 %v2508, %v2562
    %v2589 = vsub.f32 %v2511, %v2565
    %v2590 = vsub.f32 %v2516, %v2568
    %v2591 = vsub.f32 %v2519, %v2571
    %v2592 = vsub.f32 %v2524, %v2574
    %v2593 = vsub.f32 %v2527, %v2577
    %v2594 = vmul.f32 %v2578, 1.442695
    %v2595 = vpow.pop %v2594
    %v2596 = vmul.f32 %v2579, 1.442695
    %v2597 = vpow.pop %v2596
    %v2598 = vmul.f32 %v2580, 1.442695
    %v2599 = vpow.pop %v2598
    %v2600 = vmul.f32 %v2581, 1.442695
    %v2601 = vpow.pop %v2600
    %v2602 = vmul.f32 %v2582, 1.442695
    %v2603 = vpow.pop %v2602
    %v2604 = vmul.f32 %v2583, 1.442695
    %v2605 = vpow.pop %v2604
    %v2606 = vmul.f32 %v2584, 1.442695
    %v2607 = vpow.pop %v2606
    %v2608 = vmul.f32 %v2585, 1.442695
    %v2609 = vpow.pop %v2608
    %v2610 = vmul.f32 %v2586, 1.442695
    %v2611 = vpow.pop %v2610
    %v2612 = vmul.f32 %v2587, 1.442695
    %v2613 = vpow.pop %v2612
    %v2614 = vmul.f32 %v2588, 1.442695
    %v2615 = vpow.pop %v2614
    %v2616 = vmul.f32 %v2589, 1.442695
    %v2617 = vpow.pop %v2616
    %v2618 = vmul.f32 %v2590, 1.442695
    %v2619 = vpow.pop %v2618
    %v2620 = vmul.f32 %v2591, 1.442695
    %v2621 = vpow.pop %v2620
    %v2622 = vmul.f32 %v2592, 1.442695
    %v2623 = vpow.pop %v2622
    %v2624 = vmul.f32 %v2593, 1.442695
    %v2625 = vpow.pop %v2624
    %v2626 = vsel %vm754, %v2595, 0.0
    %2627 = vadd.xlane.f32.xlu0 %v2626
    %v2628 = vpop.xlane.xlu0 %2627
    %v2629 = vsel %vm754, %v2597, 0.0
    %2630 = vadd.xlane.f32.xlu0 %v2629
    %v2631 = vpop.xlane.xlu0 %2630
    %v2632 = vsel %vm754, %v2599, 0.0
    %2633 = vadd.xlane.f32.xlu0 %v2632
    %v2634 = vpop.xlane.xlu0 %2633
    %v2635 = vsel %vm754, %v2601, 0.0
    %2636 = vadd.xlane.f32.xlu0 %v2635
    %v2637 = vpop.xlane.xlu0 %2636
    %v2638 = vsel %vm754, %v2603, 0.0
    %2639 = vadd.xlane.f32.xlu0 %v2638
    %v2640 = vpop.xlane.xlu0 %2639
    %v2641 = vsel %vm754, %v2605, 0.0
    %2642 = vadd.xlane.f32.xlu0 %v2641
    %v2643 = vpop.xlane.xlu0 %2642
    %v2644 = vsel %vm754, %v2607, 0.0
    %2645 = vadd.xlane.f32.xlu0 %v2644
    %v2646 = vpop.xlane.xlu0 %2645
    %v2647 = vsel %vm754, %v2609, 0.0
    %2648 = vadd.xlane.f32.xlu0 %v2647
    %v2649 = vpop.xlane.xlu0 %2648
    %v2650 = vsel %vm754, %v2611, 0.0
    %2651 = vadd.xlane.f32.xlu0 %v2650
    %v2652 = vpop.xlane.xlu0 %2651
    %v2653 = vsel %vm754, %v2613, 0.0
    %2654 = vadd.xlane.f32.xlu0 %v2653
    %v2655 = vpop.xlane.xlu0 %2654
    %v2656 = vsel %vm754, %v2615, 0.0
    %2657 = vadd.xlane.f32.xlu0 %v2656
    %v2658 = vpop.xlane.xlu0 %2657
    %v2659 = vsel %vm754, %v2617, 0.0
    %2660 = vadd.xlane.f32.xlu0 %v2659
    %v2661 = vpop.xlane.xlu0 %2660
    %v2662 = vsel %vm754, %v2619, 0.0
    %2663 = vadd.xlane.f32.xlu0 %v2662
    %v2664 = vpop.xlane.xlu0 %2663
    %v2665 = vsel %vm754, %v2621, 0.0
    %2666 = vadd.xlane.f32.xlu0 %v2665
    %v2667 = vpop.xlane.xlu0 %2666
    %v2668 = vsel %vm754, %v2623, 0.0
    %2669 = vadd.xlane.f32.xlu0 %v2668
    %v2670 = vpop.xlane.xlu0 %2669
    %v2671 = vsel %vm754, %v2625, 0.0
    %2672 = vadd.xlane.f32.xlu0 %v2671
    %v2673 = vpop.xlane.xlu0 %2672
    %v2674 = vrcp.pop %v2628
    %v2675 = vrcp.pop %v2631
    %v2676 = vrcp.pop %v2634
    %v2677 = vrcp.pop %v2637
    %v2678 = vrcp.pop %v2640
    %v2679 = vrcp.pop %v2643
    %v2680 = vrcp.pop %v2646
    %v2681 = vrcp.pop %v2649
    %v2682 = vrcp.pop %v2652
    %v2683 = vrcp.pop %v2655
    %v2684 = vrcp.pop %v2658
    %v2685 = vrcp.pop %v2661
    %v2686 = vrcp.pop %v2664
    %v2687 = vrcp.pop %v2667
    %v2688 = vrcp.pop %v2670
    %v2689 = vrcp.pop %v2673
    %v2690 = vmul.f32 %v2595, %v2674
    %v2691 = vmul.f32 %v2597, %v2675
    %v2692 = vmul.f32 %v2599, %v2676
    %v2693 = vmul.f32 %v2601, %v2677
    %v2694 = vmul.f32 %v2603, %v2678
    %v2695 = vmul.f32 %v2605, %v2679
    %v2696 = vmul.f32 %v2607, %v2680
    %v2697 = vmul.f32 %v2609, %v2681
    %v2698 = vmul.f32 %v2611, %v2682
    %v2699 = vmul.f32 %v2613, %v2683
    %v2700 = vmul.f32 %v2615, %v2684
    %v2701 = vmul.f32 %v2617, %v2685
    %v2702 = vmul.f32 %v2619, %v2686
    %v2703 = vmul.f32 %v2621, %v2687
    %v2704 = vmul.f32 %v2623, %v2688
    %v2705 = vmul.f32 %v2625, %v2689
    %v2706 = vpack.c.bf16 %v2691, %v2690
    %v2707 = vpack.c.bf16 %v2693, %v2692
    %v2708 = vpack.c.bf16 %v2695, %v2694
    %v2709 = vpack.c.bf16 %v2697, %v2696
    %v2710 = vpack.c.bf16 %v2699, %v2698
    %v2711 = vpack.c.bf16 %v2701, %v2700
    %v2712 = vpack.c.bf16 %v2703, %v2702
    %v2713 = vpack.c.bf16 %v2705, %v2704
    %2718 = vrot.lane.b32.xlu0 %v1730, 96
    %v2719 = vpop.permute.xlu0 %2718
    %2720 = vrot.lane.b32.xlu0 %v1731, 96
    %v2721 = vpop.permute.xlu0 %2720
    %2722 = vrot.lane.b32.xlu0 %v1732, 96
    %v2723 = vpop.permute.xlu0 %2722
    %2724 = vrot.lane.b32.xlu0 %v1733, 96
    %v2725 = vpop.permute.xlu0 %2724
    %v2731 = vsel %vm754, %v2706, 0
    %v2734 = vsel %vm754, %v2707, 0
    %v2737 = vsel %vm754, %v2708, 0
    %v2740 = vsel %vm754, %v2709, 0
    %2742 = vmatprep.subr.bf16.mxu0 0
    %2743 = vmatpush1.bf16.msra.mxu0 0
    %2744 = vmatprep.subr.bf16.mxu0 0
    %2745 = vmatpush1.bf16.msra.mxu0 0
    %2746 = vmatprep.subr.bf16.mxu0 0
    %2747 = vmatpush1.bf16.msra.mxu0 0
    %2748 = vmatprep.subr.bf16.mxu0 0
    %2749 = vmatpush1.bf16.msra.mxu0 0
    %2750 = vmatprep.subr.bf16.mxu0 0
    %2751 = vmatpush1.bf16.msra.mxu0 %v2725
    %2752 = vmatprep.subr.bf16.mxu0 0
    %2753 = vmatpush1.bf16.msra.mxu0 %v2723
    %2754 = vmatprep.subr.bf16.mxu0 0
    %2755 = vmatpush1.bf16.msra.mxu0 %v2721
    %2756 = vmatprep.subr.bf16.mxu0 0
    %2757 = vmatpush1.bf16.msra.mxu0 %v2719
    %2758 = vmatprep.subr.bf16.mxu0 0
    %2759 = vmatpush2.bf16.msra.mxu0 0
    %2760 = vmatprep.subr.bf16.mxu0 0
    %2761 = vmatpush2.bf16.msra.mxu0 0
    %2762 = vmatprep.subr.bf16.mxu0 0
    %2763 = vmatpush2.bf16.msra.mxu0 0
    %2764 = vmatprep.subr.bf16.mxu0 0
    %2765 = vmatpush2.bf16.msra.mxu0 0
    %2766 = vmatprep.subr.bf16.mxu0 0
    %2767 = vmatpush2.bf16.msra.mxu0 0
    %2768 = vmatprep.subr.bf16.mxu0 0
    %2769 = vmatpush2.bf16.msra.mxu0 0
    %2770 = vmatprep.subr.bf16.mxu0 0
    %2771 = vmatpush2.bf16.msra.mxu0 0
    %2772 = vmatprep.subr.bf16.mxu0 0
    %2773 = vmatpush2.bf16.msra.mxu0 0
    %2774 = vmatprep.mubr.bf16.mxu0 0
    %2775 = vmatmul.mubr.bf16.gmra.mxu0 %v2731
    %v2776 = vpop.f32.mrf.mxu0
    %v2777 = vadd.f32 0.0, %v2776
    %v2778 = vpop.f32.mrf.mxu0
    %v2779 = vpop.f32.mrf.mxu0
    %v2780 = vadd.f32 0.0, %v2779
    %v2781 = vpop.f32.mrf.mxu0
    %2782 = vmatprep.mubr.bf16.mxu0 0
    %2783 = vmatmul.mubr.bf16.gmra.mxu0 %v2734
    %v2784 = vpop.f32.mrf.mxu0
    %v2785 = vadd.f32 0.0, %v2784
    %v2786 = vpop.f32.mrf.mxu0
    %v2787 = vpop.f32.mrf.mxu0
    %v2788 = vadd.f32 0.0, %v2787
    %v2789 = vpop.f32.mrf.mxu0
    %2790 = vmatprep.mubr.bf16.mxu0 0
    %2791 = vmatmul.mubr.bf16.gmra.mxu0 %v2737
    %v2792 = vpop.f32.mrf.mxu0
    %v2793 = vadd.f32 0.0, %v2792
    %v2794 = vpop.f32.mrf.mxu0
    %v2795 = vpop.f32.mrf.mxu0
    %v2796 = vadd.f32 0.0, %v2795
    %v2797 = vpop.f32.mrf.mxu0
    %2798 = vmatprep.mubr.bf16.mxu0 0
    %2799 = vmatmul.mubr.bf16.gmra.mxu0 %v2740
    %v2800 = vpop.f32.mrf.mxu0
    %v2801 = vadd.f32 0.0, %v2800
    %v2802 = vpop.f32.mrf.mxu0
    %v2803 = vpop.f32.mrf.mxu0
    %v2804 = vadd.f32 0.0, %v2803
    %v2805 = vpop.f32.mrf.mxu0
    %2806 = vdwg.mxu0
    %2811 = vrot.lane.b32.xlu0 %v1734, 96
    %v2812 = vpop.permute.xlu0 %2811
    %2813 = vrot.lane.b32.xlu0 %v1735, 96
    %v2814 = vpop.permute.xlu0 %2813
    %2815 = vrot.lane.b32.xlu0 %v1736, 96
    %v2816 = vpop.permute.xlu0 %2815
    %2817 = vrot.lane.b32.xlu0 %v1737, 96
    %v2818 = vpop.permute.xlu0 %2817
    %v2824 = vsel %vm754, %v2710, 0
    %v2827 = vsel %vm754, %v2711, 0
    %v2830 = vsel %vm754, %v2712, 0
    %v2833 = vsel %vm754, %v2713, 0
    %2835 = vmatprep.subr.bf16.mxu0 0
    %2836 = vmatpush1.bf16.msra.mxu0 0
    %2837 = vmatprep.subr.bf16.mxu0 0
    %2838 = vmatpush1.bf16.msra.mxu0 0
    %2839 = vmatprep.subr.bf16.mxu0 0
    %2840 = vmatpush1.bf16.msra.mxu0 0
    %2841 = vmatprep.subr.bf16.mxu0 0
    %2842 = vmatpush1.bf16.msra.mxu0 0
    %2843 = vmatprep.subr.bf16.mxu0 0
    %2844 = vmatpush1.bf16.msra.mxu0 %v2818
    %2845 = vmatprep.subr.bf16.mxu0 0
    %2846 = vmatpush1.bf16.msra.mxu0 %v2816
    %2847 = vmatprep.subr.bf16.mxu0 0
    %2848 = vmatpush1.bf16.msra.mxu0 %v2814
    %2849 = vmatprep.subr.bf16.mxu0 0
    %2850 = vmatpush1.bf16.msra.mxu0 %v2812
    %2851 = vmatprep.subr.bf16.mxu0 0
    %2852 = vmatpush2.bf16.msra.mxu0 0
    %2853 = vmatprep.subr.bf16.mxu0 0
    %2854 = vmatpush2.bf16.msra.mxu0 0
    %2855 = vmatprep.subr.bf16.mxu0 0
    %2856 = vmatpush2.bf16.msra.mxu0 0
    %2857 = vmatprep.subr.bf16.mxu0 0
    %2858 = vmatpush2.bf16.msra.mxu0 0
    %2859 = vmatprep.subr.bf16.mxu0 0
    %2860 = vmatpush2.bf16.msra.mxu0 0
    %2861 = vmatprep.subr.bf16.mxu0 0
    %2862 = vmatpush2.bf16.msra.mxu0 0
    %2863 = vmatprep.subr.bf16.mxu0 0
    %2864 = vmatpush2.bf16.msra.mxu0 0
    %2865 = vmatprep.subr.bf16.mxu0 0
    %2866 = vmatpush2.bf16.msra.mxu0 0
    %2867 = vmatprep.mubr.bf16.mxu0 0
    %2868 = vmatmul.mubr.bf16.gmra.mxu0 %v2824
    %v2869 = vpop.f32.mrf.mxu0
    %v2870 = vadd.f32 0.0, %v2869
    %v2871 = vpop.f32.mrf.mxu0
    %v2872 = vpop.f32.mrf.mxu0
    %v2873 = vadd.f32 0.0, %v2872
    %v2874 = vpop.f32.mrf.mxu0
    %2875 = vmatprep.mubr.bf16.mxu0 0
    %2876 = vmatmul.mubr.bf16.gmra.mxu0 %v2827
    %v2877 = vpop.f32.mrf.mxu0
    %v2878 = vadd.f32 0.0, %v2877
    %v2879 = vpop.f32.mrf.mxu0
    %v2880 = vpop.f32.mrf.mxu0
    %v2881 = vadd.f32 0.0, %v2880
    %v2882 = vpop.f32.mrf.mxu0
    %2883 = vmatprep.mubr.bf16.mxu0 0
    %2884 = vmatmul.mubr.bf16.gmra.mxu0 %v2830
    %v2885 = vpop.f32.mrf.mxu0
    %v2886 = vadd.f32 0.0, %v2885
    %v2887 = vpop.f32.mrf.mxu0
    %v2888 = vpop.f32.mrf.mxu0
    %v2889 = vadd.f32 0.0, %v2888
    %v2890 = vpop.f32.mrf.mxu0
    %2891 = vmatprep.mubr.bf16.mxu0 0
    %2892 = vmatmul.mubr.bf16.gmra.mxu0 %v2833
    %v2893 = vpop.f32.mrf.mxu0
    %v2894 = vadd.f32 0.0, %v2893
    %v2895 = vpop.f32.mrf.mxu0
    %v2896 = vpop.f32.mrf.mxu0
    %v2897 = vadd.f32 0.0, %v2896
    %v2898 = vpop.f32.mrf.mxu0
    %2899 = vdwg.mxu0
    %v2900 = vadd.f32 %v2295, %v2777
    %v2901 = vadd.f32 %v2296, %v2780
    %v2902 = vadd.f32 %v2297, %v2785
    %v2903 = vadd.f32 %v2298, %v2788
    %v2904 = vadd.f32 %v2299, %v2793
    %v2905 = vadd.f32 %v2300, %v2796
    %v2906 = vadd.f32 %v2301, %v2801
    %v2907 = vadd.f32 %v2302, %v2804
    %v2908 = vadd.f32 %v2303, %v2870
    %v2909 = vadd.f32 %v2304, %v2873
    %v2910 = vadd.f32 %v2305, %v2878
    %v2911 = vadd.f32 %v2306, %v2881
    %v2912 = vadd.f32 %v2307, %v2886
    %v2913 = vadd.f32 %v2308, %v2889
    %v2914 = vadd.f32 %v2309, %v2894
    %v2915 = vadd.f32 %v2310, %v2897
    %v2916 = vld [vmem:[%s7] sm:$0x1]
    %v2917 = vld [vmem:[%s8] sm:$0x1]
    %v2918 = vsel %vm77, %v2900, 0.0
    %2919 = vadd.xlane.f32.xlu0 %v2918
    %v2920 = vpop.xlane.xlu0 %2919
    %v2921 = vsel %vm77, %v2901, 0.0
    %2922 = vadd.xlane.f32.xlu0 %v2921
    %v2923 = vpop.xlane.xlu0 %2922
    %v2924 = vsel %vm77, %v2902, 0.0
    %2925 = vadd.xlane.f32.xlu0 %v2924
    %v2926 = vpop.xlane.xlu0 %2925
    %v2927 = vsel %vm77, %v2903, 0.0
    %2928 = vadd.xlane.f32.xlu0 %v2927
    %v2929 = vpop.xlane.xlu0 %2928
    %v2930 = vsel %vm77, %v2904, 0.0
    %2931 = vadd.xlane.f32.xlu0 %v2930
    %v2932 = vpop.xlane.xlu0 %2931
    %v2933 = vsel %vm77, %v2905, 0.0
    %2934 = vadd.xlane.f32.xlu0 %v2933
    %v2935 = vpop.xlane.xlu0 %2934
    %v2936 = vsel %vm77, %v2906, 0.0
    %2937 = vadd.xlane.f32.xlu0 %v2936
    %v2938 = vpop.xlane.xlu0 %2937
    %v2939 = vsel %vm77, %v2907, 0.0
    %2940 = vadd.xlane.f32.xlu0 %v2939
    %v2941 = vpop.xlane.xlu0 %2940
    %v2942 = vsel %vm77, %v2908, 0.0
    %2943 = vadd.xlane.f32.xlu0 %v2942
    %v2944 = vpop.xlane.xlu0 %2943
    %v2945 = vsel %vm77, %v2909, 0.0
    %2946 = vadd.xlane.f32.xlu0 %v2945
    %v2947 = vpop.xlane.xlu0 %2946
    %v2948 = vsel %vm77, %v2910, 0.0
    %2949 = vadd.xlane.f32.xlu0 %v2948
    %v2950 = vpop.xlane.xlu0 %2949
    %v2951 = vsel %vm77, %v2911, 0.0
    %2952 = vadd.xlane.f32.xlu0 %v2951
    %v2953 = vpop.xlane.xlu0 %2952
    %v2954 = vsel %vm77, %v2912, 0.0
    %2955 = vadd.xlane.f32.xlu0 %v2954
    %v2956 = vpop.xlane.xlu0 %2955
    %v2957 = vsel %vm77, %v2913, 0.0
    %2958 = vadd.xlane.f32.xlu0 %v2957
    %v2959 = vpop.xlane.xlu0 %2958
    %v2960 = vsel %vm77, %v2914, 0.0
    %2961 = vadd.xlane.f32.xlu0 %v2960
    %v2962 = vpop.xlane.xlu0 %2961
    %v2963 = vsel %vm77, %v2915, 0.0
    %2964 = vadd.xlane.f32.xlu0 %v2963
    %v2965 = vpop.xlane.xlu0 %2964
    %v2966 = vmul.f32 %v2920, %v126
    %v2967 = vmul.f32 %v2923, %v126
    %v2968 = vmul.f32 %v2926, %v126
    %v2969 = vmul.f32 %v2929, %v126
    %v2970 = vmul.f32 %v2932, %v126
    %v2971 = vmul.f32 %v2935, %v126
    %v2972 = vmul.f32 %v2938, %v126
    %v2973 = vmul.f32 %v2941, %v126
    %v2974 = vmul.f32 %v2944, %v126
    %v2975 = vmul.f32 %v2947, %v126
    %v2976 = vmul.f32 %v2950, %v126
    %v2977 = vmul.f32 %v2953, %v126
    %v2978 = vmul.f32 %v2956, %v126
    %v2979 = vmul.f32 %v2959, %v126
    %v2980 = vmul.f32 %v2962, %v126
    %v2981 = vmul.f32 %v2965, %v126
    %v2982 = vsub.f32 %v2900, %v2966
    %v2983 = vsub.f32 %v2901, %v2967
    %v2984 = vsub.f32 %v2902, %v2968
    %v2985 = vsub.f32 %v2903, %v2969
    %v2986 = vsub.f32 %v2904, %v2970
    %v2987 = vsub.f32 %v2905, %v2971
    %v2988 = vsub.f32 %v2906, %v2972
    %v2989 = vsub.f32 %v2907, %v2973
    %v2990 = vsub.f32 %v2908, %v2974
    %v2991 = vsub.f32 %v2909, %v2975
    %v2992 = vsub.f32 %v2910, %v2976
    %v2993 = vsub.f32 %v2911, %v2977
    %v2994 = vsub.f32 %v2912, %v2978
    %v2995 = vsub.f32 %v2913, %v2979
    %v2996 = vsub.f32 %v2914, %v2980
    %v2997 = vsub.f32 %v2915, %v2981
    %v2998 = vmul.f32 %v2982, %v2982
    %v2999 = vmul.f32 %v2983, %v2983
    %v3000 = vmul.f32 %v2984, %v2984
    %v3001 = vmul.f32 %v2985, %v2985
    %v3002 = vmul.f32 %v2986, %v2986
    %v3003 = vmul.f32 %v2987, %v2987
    %v3004 = vmul.f32 %v2988, %v2988
    %v3005 = vmul.f32 %v2989, %v2989
    %v3006 = vmul.f32 %v2990, %v2990
    %v3007 = vmul.f32 %v2991, %v2991
    %v3008 = vmul.f32 %v2992, %v2992
    %v3009 = vmul.f32 %v2993, %v2993
    %v3010 = vmul.f32 %v2994, %v2994
    %v3011 = vmul.f32 %v2995, %v2995
    %v3012 = vmul.f32 %v2996, %v2996
    %v3013 = vmul.f32 %v2997, %v2997
    %v3014 = vsel %vm77, %v2998, 0.0
    %3015 = vadd.xlane.f32.xlu0 %v3014
    %v3016 = vpop.xlane.xlu0 %3015
    %v3017 = vsel %vm77, %v2999, 0.0
    %3018 = vadd.xlane.f32.xlu0 %v3017
    %v3019 = vpop.xlane.xlu0 %3018
    %v3020 = vsel %vm77, %v3000, 0.0
    %3021 = vadd.xlane.f32.xlu0 %v3020
    %v3022 = vpop.xlane.xlu0 %3021
    %v3023 = vsel %vm77, %v3001, 0.0
    %3024 = vadd.xlane.f32.xlu0 %v3023
    %v3025 = vpop.xlane.xlu0 %3024
    %v3026 = vsel %vm77, %v3002, 0.0
    %3027 = vadd.xlane.f32.xlu0 %v3026
    %v3028 = vpop.xlane.xlu0 %3027
    %v3029 = vsel %vm77, %v3003, 0.0
    %3030 = vadd.xlane.f32.xlu0 %v3029
    %v3031 = vpop.xlane.xlu0 %3030
    %v3032 = vsel %vm77, %v3004, 0.0
    %3033 = vadd.xlane.f32.xlu0 %v3032
    %v3034 = vpop.xlane.xlu0 %3033
    %v3035 = vsel %vm77, %v3005, 0.0
    %3036 = vadd.xlane.f32.xlu0 %v3035
    %v3037 = vpop.xlane.xlu0 %3036
    %v3038 = vsel %vm77, %v3006, 0.0
    %3039 = vadd.xlane.f32.xlu0 %v3038
    %v3040 = vpop.xlane.xlu0 %3039
    %v3041 = vsel %vm77, %v3007, 0.0
    %3042 = vadd.xlane.f32.xlu0 %v3041
    %v3043 = vpop.xlane.xlu0 %3042
    %v3044 = vsel %vm77, %v3008, 0.0
    %3045 = vadd.xlane.f32.xlu0 %v3044
    %v3046 = vpop.xlane.xlu0 %3045
    %v3047 = vsel %vm77, %v3009, 0.0
    %3048 = vadd.xlane.f32.xlu0 %v3047
    %v3049 = vpop.xlane.xlu0 %3048
    %v3050 = vsel %vm77, %v3010, 0.0
    %3051 = vadd.xlane.f32.xlu0 %v3050
    %v3052 = vpop.xlane.xlu0 %3051
    %v3053 = vsel %vm77, %v3011, 0.0
    %3054 = vadd.xlane.f32.xlu0 %v3053
    %v3055 = vpop.xlane.xlu0 %3054
    %v3056 = vsel %vm77, %v3012, 0.0
    %3057 = vadd.xlane.f32.xlu0 %v3056
    %v3058 = vpop.xlane.xlu0 %3057
    %v3059 = vsel %vm77, %v3013, 0.0
    %3060 = vadd.xlane.f32.xlu0 %v3059
    %v3061 = vpop.xlane.xlu0 %3060
    %v3062 = vmul.f32 %v3016, %v126
    %v3063 = vmul.f32 %v3019, %v126
    %v3064 = vmul.f32 %v3022, %v126
    %v3065 = vmul.f32 %v3025, %v126
    %v3066 = vmul.f32 %v3028, %v126
    %v3067 = vmul.f32 %v3031, %v126
    %v3068 = vmul.f32 %v3034, %v126
    %v3069 = vmul.f32 %v3037, %v126
    %v3070 = vmul.f32 %v3040, %v126
    %v3071 = vmul.f32 %v3043, %v126
    %v3072 = vmul.f32 %v3046, %v126
    %v3073 = vmul.f32 %v3049, %v126
    %v3074 = vmul.f32 %v3052, %v126
    %v3075 = vmul.f32 %v3055, %v126
    %v3076 = vmul.f32 %v3058, %v126
    %v3077 = vmul.f32 %v3061, %v126
    %v3078 = vadd.f32 %v3062, 1e-05
    %v3079 = vadd.f32 %v3063, 1e-05
    %v3080 = vadd.f32 %v3064, 1e-05
    %v3081 = vadd.f32 %v3065, 1e-05
    %v3082 = vadd.f32 %v3066, 1e-05
    %v3083 = vadd.f32 %v3067, 1e-05
    %v3084 = vadd.f32 %v3068, 1e-05
    %v3085 = vadd.f32 %v3069, 1e-05
    %v3086 = vadd.f32 %v3070, 1e-05
    %v3087 = vadd.f32 %v3071, 1e-05
    %v3088 = vadd.f32 %v3072, 1e-05
    %v3089 = vadd.f32 %v3073, 1e-05
    %v3090 = vadd.f32 %v3074, 1e-05
    %v3091 = vadd.f32 %v3075, 1e-05
    %v3092 = vadd.f32 %v3076, 1e-05
    %v3093 = vadd.f32 %v3077, 1e-05
    %v3094 = vrsqrt.pop %v3078
    %v3095 = vrsqrt.pop %v3079
    %v3096 = vrsqrt.pop %v3080
    %v3097 = vrsqrt.pop %v3081
    %v3098 = vrsqrt.pop %v3082
    %v3099 = vrsqrt.pop %v3083
    %v3100 = vrsqrt.pop %v3084
    %v3101 = vrsqrt.pop %v3085
    %v3102 = vrsqrt.pop %v3086
    %v3103 = vrsqrt.pop %v3087
    %v3104 = vrsqrt.pop %v3088
    %v3105 = vrsqrt.pop %v3089
    %v3106 = vrsqrt.pop %v3090
    %v3107 = vrsqrt.pop %v3091
    %v3108 = vrsqrt.pop %v3092
    %v3109 = vrsqrt.pop %v3093
    %v3110 = vmul.f32 %v2982, %v3094
    %v3111 = vmul.f32 %v2983, %v3095
    %v3112 = vmul.f32 %v2984, %v3096
    %v3113 = vmul.f32 %v2985, %v3097
    %v3114 = vmul.f32 %v2986, %v3098
    %v3115 = vmul.f32 %v2987, %v3099
    %v3116 = vmul.f32 %v2988, %v3100
    %v3117 = vmul.f32 %v2989, %v3101
    %v3118 = vmul.f32 %v2990, %v3102
    %v3119 = vmul.f32 %v2991, %v3103
    %v3120 = vmul.f32 %v2992, %v3104
    %v3121 = vmul.f32 %v2993, %v3105
    %v3122 = vmul.f32 %v2994, %v3106
    %v3123 = vmul.f32 %v2995, %v3107
    %v3124 = vmul.f32 %v2996, %v3108
    %v3125 = vmul.f32 %v2997, %v3109
    %v3127 = vlaneseq
    %v3128 = vshrl.u32 %v3127, 7
    %v3129 = vsub.s32 0, %v3128
    %v3130 = vrot.slane %v2916, %v3129
    %v3132 = vmul.f32 %v3110, %v3130
    %v3133 = vmul.f32 %v3111, %v3130
    %v3134 = vmul.f32 %v3112, %v3130
    %v3135 = vmul.f32 %v3113, %v3130
    %v3136 = vmul.f32 %v3114, %v3130
    %v3137 = vmul.f32 %v3115, %v3130
    %v3138 = vmul.f32 %v3116, %v3130
    %v3139 = vmul.f32 %v3117, %v3130
    %v3140 = vmul.f32 %v3118, %v3130
    %v3141 = vmul.f32 %v3119, %v3130
    %v3142 = vmul.f32 %v3120, %v3130
    %v3143 = vmul.f32 %v3121, %v3130
    %v3144 = vmul.f32 %v3122, %v3130
    %v3145 = vmul.f32 %v3123, %v3130
    %v3146 = vmul.f32 %v3124, %v3130
    %v3147 = vmul.f32 %v3125, %v3130
    %v3149 = vlaneseq
    %v3150 = vshrl.u32 %v3149, 7
    %v3151 = vsub.s32 0, %v3150
    %v3152 = vrot.slane %v2917, %v3151
    %v3154 = vadd.f32 %v3132, %v3152
    %v3155 = vadd.f32 %v3133, %v3152
    %v3156 = vadd.f32 %v3134, %v3152
    %v3157 = vadd.f32 %v3135, %v3152
    %v3158 = vadd.f32 %v3136, %v3152
    %v3159 = vadd.f32 %v3137, %v3152
    %v3160 = vadd.f32 %v3138, %v3152
    %v3161 = vadd.f32 %v3139, %v3152
    %v3162 = vadd.f32 %v3140, %v3152
    %v3163 = vadd.f32 %v3141, %v3152
    %v3164 = vadd.f32 %v3142, %v3152
    %v3165 = vadd.f32 %v3143, %v3152
    %v3166 = vadd.f32 %v3144, %v3152
    %v3167 = vadd.f32 %v3145, %v3152
    %v3168 = vadd.f32 %v3146, %v3152
    %v3169 = vadd.f32 %v3147, %v3152
    %v3170 = vpack.c.bf16 %v3155, %v3154
    %v3171 = vpack.c.bf16 %v3157, %v3156
    %v3172 = vpack.c.bf16 %v3159, %v3158
    %v3173 = vpack.c.bf16 %v3161, %v3160
    %v3174 = vpack.c.bf16 %v3163, %v3162
    %v3175 = vpack.c.bf16 %v3165, %v3164
    %v3176 = vpack.c.bf16 %v3167, %v3166
    %v3177 = vpack.c.bf16 %v3169, %v3168
    %v3178 = vld [vmem:[%s9] sm:$0xf]
    %v3179 = vld [vmem:[%s9 + $0x4] sm:$0xf]
    %v3180 = vld [vmem:[%s9 + $0x8] sm:$0xf]
    %v3181 = vld [vmem:[%s9 + $0xc] sm:$0xf]
    %v3182 = vld [vmem:[%s10] sm:$0x1]
    %v3184 = vlaneseq
    %v3185 = vshrl.u32 %v3184, 7
    %v3186 = vsub.s32 0, %v3185
    %v3187 = vrot.slane %v3182, %v3186
    %v3193 = vunpack.c.l.b16 %v3178
    %v3194 = vunpack.c.l.b16 %v3179
    %v3195 = vunpack.c.l.b16 %v3180
    %v3196 = vunpack.c.l.b16 %v3181
    %v3197 = vpack.c.b16 %v3194, %v3193
    %v3198 = vpack.c.b16 %v3196, %v3195
    %v3202 = vsel %vm77, %v3170, 0
    %v3205 = vsel %vm77, %v3171, 0
    %v3208 = vsel %vm77, %v3172, 0
    %v3211 = vsel %vm77, %v3173, 0
    %v3214 = vsel %vm77, %v3174, 0
    %v3217 = vsel %vm77, %v3175, 0
    %v3220 = vsel %vm77, %v3176, 0
    %v3223 = vsel %vm77, %v3177, 0
    %3225 = vmatprep.subr.bf16.mxu0 0
    %3226 = vmatpush1.bf16.msra.mxu0 0
    %3227 = vmatprep.subr.bf16.mxu0 0
    %3228 = vmatpush1.bf16.msra.mxu0 0
    %3229 = vmatprep.subr.bf16.mxu0 0
    %3230 = vmatpush1.bf16.msra.mxu0 0
    %3231 = vmatprep.subr.bf16.mxu0 0
    %3232 = vmatpush1.bf16.msra.mxu0 0
    %3233 = vmatprep.subr.bf16.mxu0 0
    %3234 = vmatpush1.bf16.msra.mxu0 0
    %3235 = vmatprep.subr.bf16.mxu0 0
    %3236 = vmatpush1.bf16.msra.mxu0 0
    %3237 = vmatprep.subr.bf16.mxu0 0
    %3238 = vmatpush1.bf16.msra.mxu0 %v3198
    %3239 = vmatprep.subr.bf16.mxu0 0
    %3240 = vmatpush1.bf16.msra.mxu0 %v3197
    %3241 = vmatprep.subr.bf16.mxu0 0
    %3242 = vmatpush2.bf16.msra.mxu0 0
    %3243 = vmatprep.subr.bf16.mxu0 0
    %3244 = vmatpush2.bf16.msra.mxu0 0
    %3245 = vmatprep.subr.bf16.mxu0 0
    %3246 = vmatpush2.bf16.msra.mxu0 0
    %3247 = vmatprep.subr.bf16.mxu0 0
    %3248 = vmatpush2.bf16.msra.mxu0 0
    %3249 = vmatprep.subr.bf16.mxu0 0
    %3250 = vmatpush2.bf16.msra.mxu0 0
    %3251 = vmatprep.subr.bf16.mxu0 0
    %3252 = vmatpush2.bf16.msra.mxu0 0
    %3253 = vmatprep.subr.bf16.mxu0 0
    %3254 = vmatpush2.bf16.msra.mxu0 0
    %3255 = vmatprep.subr.bf16.mxu0 0
    %3256 = vmatpush2.bf16.msra.mxu0 0
    %3257 = vmatprep.mubr.bf16.mxu0 0
    %3258 = vmatmul.mubr.bf16.gmra.mxu0 %v3202
    %v3259 = vpop.f32.mrf.mxu0
    %v3260 = vadd.f32 %v3187, %v3259
    %v3261 = vpop.f32.mrf.mxu0
    %v3262 = vpop.f32.mrf.mxu0
    %v3263 = vadd.f32 %v3187, %v3262
    %v3264 = vpop.f32.mrf.mxu0
    %3265 = vmatprep.mubr.bf16.mxu0 0
    %3266 = vmatmul.mubr.bf16.gmra.mxu0 %v3205
    %v3267 = vpop.f32.mrf.mxu0
    %v3268 = vadd.f32 %v3187, %v3267
    %v3269 = vpop.f32.mrf.mxu0
    %v3270 = vpop.f32.mrf.mxu0
    %v3271 = vadd.f32 %v3187, %v3270
    %v3272 = vpop.f32.mrf.mxu0
    %3273 = vmatprep.mubr.bf16.mxu0 0
    %3274 = vmatmul.mubr.bf16.gmra.mxu0 %v3208
    %v3275 = vpop.f32.mrf.mxu0
    %v3276 = vadd.f32 %v3187, %v3275
    %v3277 = vpop.f32.mrf.mxu0
    %v3278 = vpop.f32.mrf.mxu0
    %v3279 = vadd.f32 %v3187, %v3278
    %v3280 = vpop.f32.mrf.mxu0
    %3281 = vmatprep.mubr.bf16.mxu0 0
    %3282 = vmatmul.mubr.bf16.gmra.mxu0 %v3211
    %v3283 = vpop.f32.mrf.mxu0
    %v3284 = vadd.f32 %v3187, %v3283
    %v3285 = vpop.f32.mrf.mxu0
    %v3286 = vpop.f32.mrf.mxu0
    %v3287 = vadd.f32 %v3187, %v3286
    %v3288 = vpop.f32.mrf.mxu0
    %3289 = vmatprep.mubr.bf16.mxu0 0
    %3290 = vmatmul.mubr.bf16.gmra.mxu0 %v3214
    %v3291 = vpop.f32.mrf.mxu0
    %v3292 = vadd.f32 %v3187, %v3291
    %v3293 = vpop.f32.mrf.mxu0
    %v3294 = vpop.f32.mrf.mxu0
    %v3295 = vadd.f32 %v3187, %v3294
    %v3296 = vpop.f32.mrf.mxu0
    %3297 = vmatprep.mubr.bf16.mxu0 0
    %3298 = vmatmul.mubr.bf16.gmra.mxu0 %v3217
    %v3299 = vpop.f32.mrf.mxu0
    %v3300 = vadd.f32 %v3187, %v3299
    %v3301 = vpop.f32.mrf.mxu0
    %v3302 = vpop.f32.mrf.mxu0
    %v3303 = vadd.f32 %v3187, %v3302
    %v3304 = vpop.f32.mrf.mxu0
    %3305 = vmatprep.mubr.bf16.mxu0 0
    %3306 = vmatmul.mubr.bf16.gmra.mxu0 %v3220
    %v3307 = vpop.f32.mrf.mxu0
    %v3308 = vadd.f32 %v3187, %v3307
    %v3309 = vpop.f32.mrf.mxu0
    %v3310 = vpop.f32.mrf.mxu0
    %v3311 = vadd.f32 %v3187, %v3310
    %v3312 = vpop.f32.mrf.mxu0
    %3313 = vmatprep.mubr.bf16.mxu0 0
    %3314 = vmatmul.mubr.bf16.gmra.mxu0 %v3223
    %v3315 = vpop.f32.mrf.mxu0
    %v3316 = vadd.f32 %v3187, %v3315
    %v3317 = vpop.f32.mrf.mxu0
    %v3318 = vpop.f32.mrf.mxu0
    %v3319 = vadd.f32 %v3187, %v3318
    %v3320 = vpop.f32.mrf.mxu0
    %3321 = vdwg.mxu0
    %v3322 = vmul.f32 %v3260, 0.5
    %v3323 = vmul.f32 %v3263, 0.5
    %v3324 = vmul.f32 %v3268, 0.5
    %v3325 = vmul.f32 %v3271, 0.5
    %v3326 = vmul.f32 %v3276, 0.5
    %v3327 = vmul.f32 %v3279, 0.5
    %v3328 = vmul.f32 %v3284, 0.5
    %v3329 = vmul.f32 %v3287, 0.5
    %v3330 = vmul.f32 %v3292, 0.5
    %v3331 = vmul.f32 %v3295, 0.5
    %v3332 = vmul.f32 %v3300, 0.5
    %v3333 = vmul.f32 %v3303, 0.5
    %v3334 = vmul.f32 %v3308, 0.5
    %v3335 = vmul.f32 %v3311, 0.5
    %v3336 = vmul.f32 %v3316, 0.5
    %v3337 = vmul.f32 %v3319, 0.5
    %v3338 = vmul.f32 %v3260, 0.70710677
    %v3339 = vmul.f32 %v3263, 0.70710677
    %v3340 = vmul.f32 %v3268, 0.70710677
    %v3341 = vmul.f32 %v3271, 0.70710677
    %v3342 = vmul.f32 %v3276, 0.70710677
    %v3343 = vmul.f32 %v3279, 0.70710677
    %v3344 = vmul.f32 %v3284, 0.70710677
    %v3345 = vmul.f32 %v3287, 0.70710677
    %v3346 = vmul.f32 %v3292, 0.70710677
    %v3347 = vmul.f32 %v3295, 0.70710677
    %v3348 = vmul.f32 %v3300, 0.70710677
    %v3349 = vmul.f32 %v3303, 0.70710677
    %v3350 = vmul.f32 %v3308, 0.70710677
    %v3351 = vmul.f32 %v3311, 0.70710677
    %v3352 = vmul.f32 %v3316, 0.70710677
    %v3353 = vmul.f32 %v3319, 0.70710677
    %v3354 = verf.f32.pop %v3338
    %v3355 = verf.f32.pop %v3339
    %v3356 = verf.f32.pop %v3340
    %v3357 = verf.f32.pop %v3341
    %v3358 = verf.f32.pop %v3342
    %v3359 = verf.f32.pop %v3343
    %v3360 = verf.f32.pop %v3344
    %v3361 = verf.f32.pop %v3345
    %v3362 = verf.f32.pop %v3346
    %v3363 = verf.f32.pop %v3347
    %v3364 = verf.f32.pop %v3348
    %v3365 = verf.f32.pop %v3349
    %v3366 = verf.f32.pop %v3350
    %v3367 = verf.f32.pop %v3351
    %v3368 = verf.f32.pop %v3352
    %v3369 = verf.f32.pop %v3353
    %v3370 = vadd.f32 %v3354, 1.0
    %v3371 = vadd.f32 %v3355, 1.0
    %v3372 = vadd.f32 %v3356, 1.0
    %v3373 = vadd.f32 %v3357, 1.0
    %v3374 = vadd.f32 %v3358, 1.0
    %v3375 = vadd.f32 %v3359, 1.0
    %v3376 = vadd.f32 %v3360, 1.0
    %v3377 = vadd.f32 %v3361, 1.0
    %v3378 = vadd.f32 %v3362, 1.0
    %v3379 = vadd.f32 %v3363, 1.0
    %v3380 = vadd.f32 %v3364, 1.0
    %v3381 = vadd.f32 %v3365, 1.0
    %v3382 = vadd.f32 %v3366, 1.0
    %v3383 = vadd.f32 %v3367, 1.0
    %v3384 = vadd.f32 %v3368, 1.0
    %v3385 = vadd.f32 %v3369, 1.0
    %v3386 = vmul.f32 %v3322, %v3370
    %v3387 = vmul.f32 %v3323, %v3371
    %v3388 = vmul.f32 %v3324, %v3372
    %v3389 = vmul.f32 %v3325, %v3373
    %v3390 = vmul.f32 %v3326, %v3374
    %v3391 = vmul.f32 %v3327, %v3375
    %v3392 = vmul.f32 %v3328, %v3376
    %v3393 = vmul.f32 %v3329, %v3377
    %v3394 = vmul.f32 %v3330, %v3378
    %v3395 = vmul.f32 %v3331, %v3379
    %v3396 = vmul.f32 %v3332, %v3380
    %v3397 = vmul.f32 %v3333, %v3381
    %v3398 = vmul.f32 %v3334, %v3382
    %v3399 = vmul.f32 %v3335, %v3383
    %v3400 = vmul.f32 %v3336, %v3384
    %v3401 = vmul.f32 %v3337, %v3385
    %v3402 = vpack.c.bf16 %v3387, %v3386
    %v3403 = vpack.c.bf16 %v3389, %v3388
    %v3404 = vpack.c.bf16 %v3391, %v3390
    %v3405 = vpack.c.bf16 %v3393, %v3392
    %v3406 = vpack.c.bf16 %v3395, %v3394
    %v3407 = vpack.c.bf16 %v3397, %v3396
    %v3408 = vpack.c.bf16 %v3399, %v3398
    %v3409 = vpack.c.bf16 %v3401, %v3400
    %v3410 = vld [vmem:[%s11] sm:$0xf]
    %v3411 = vld [vmem:[%s11 + $0x4] sm:$0xf]
    %v3412 = vld [vmem:[%s11 + $0x8] sm:$0xf]
    %v3413 = vld [vmem:[%s11 + $0xc] sm:$0xf]
    %v3414 = vld [vmem:[%s11 + $0x10] sm:$0xf]
    %v3415 = vld [vmem:[%s11 + $0x14] sm:$0xf]
    %v3416 = vld [vmem:[%s11 + $0x18] sm:$0xf]
    %v3417 = vld [vmem:[%s11 + $0x1c] sm:$0xf]
    %v3418 = vld [vmem:[%s11 + $0x20] sm:$0xf]
    %v3419 = vld [vmem:[%s11 + $0x24] sm:$0xf]
    %v3420 = vld [vmem:[%s11 + $0x28] sm:$0xf]
    %v3421 = vld [vmem:[%s11 + $0x2c] sm:$0xf]
    %v3422 = vld [vmem:[%s11 + $0x30] sm:$0xf]
    %v3423 = vld [vmem:[%s11 + $0x34] sm:$0xf]
    %v3424 = vld [vmem:[%s11 + $0x38] sm:$0xf]
    %v3425 = vld [vmem:[%s11 + $0x3c] sm:$0xf]
    %v3442 = vunpack.c.l.b16 %v3410
    %v3443 = vunpack.c.l.b16 %v3411
    %v3444 = vunpack.c.l.b16 %v3412
    %v3445 = vunpack.c.l.b16 %v3413
    %v3446 = vunpack.c.l.b16 %v3414
    %v3447 = vunpack.c.l.b16 %v3415
    %v3448 = vunpack.c.l.b16 %v3416
    %v3449 = vunpack.c.l.b16 %v3417
    %v3450 = vunpack.c.l.b16 %v3418
    %v3451 = vunpack.c.l.b16 %v3419
    %v3452 = vunpack.c.l.b16 %v3420
    %v3453 = vunpack.c.l.b16 %v3421
    %v3454 = vunpack.c.l.b16 %v3422
    %v3455 = vunpack.c.l.b16 %v3423
    %v3456 = vunpack.c.l.b16 %v3424
    %v3457 = vunpack.c.l.b16 %v3425
    %v3458 = vpack.c.b16 %v3443, %v3442
    %v3459 = vpack.c.b16 %v3445, %v3444
    %v3460 = vpack.c.b16 %v3447, %v3446
    %v3461 = vpack.c.b16 %v3449, %v3448
    %v3462 = vpack.c.b16 %v3451, %v3450
    %v3463 = vpack.c.b16 %v3453, %v3452
    %v3464 = vpack.c.b16 %v3455, %v3454
    %v3465 = vpack.c.b16 %v3457, %v3456
    %3474 = vmatprep.subr.bf16.mxu0 0
    %3475 = vmatpush1.bf16.msra.mxu0 %v3465
    %3476 = vmatprep.subr.bf16.mxu0 0
    %3477 = vmatpush1.bf16.msra.mxu0 %v3464
    %3478 = vmatprep.subr.bf16.mxu0 0
    %3479 = vmatpush1.bf16.msra.mxu0 %v3463
    %3480 = vmatprep.subr.bf16.mxu0 0
    %3481 = vmatpush1.bf16.msra.mxu0 %v3462
    %3482 = vmatprep.subr.bf16.mxu0 0
    %3483 = vmatpush1.bf16.msra.mxu0 %v3461
    %3484 = vmatprep.subr.bf16.mxu0 0
    %3485 = vmatpush1.bf16.msra.mxu0 %v3460
    %3486 = vmatprep.subr.bf16.mxu0 0
    %3487 = vmatpush1.bf16.msra.mxu0 %v3459
    %3488 = vmatprep.subr.bf16.mxu0 0
    %3489 = vmatpush1.bf16.msra.mxu0 %v3458
    %3490 = vmatprep.subr.bf16.mxu0 0
    %3491 = vmatpush2.bf16.msra.mxu0 0
    %3492 = vmatprep.subr.bf16.mxu0 0
    %3493 = vmatpush2.bf16.msra.mxu0 0
    %3494 = vmatprep.subr.bf16.mxu0 0
    %3495 = vmatpush2.bf16.msra.mxu0 0
    %3496 = vmatprep.subr.bf16.mxu0 0
    %3497 = vmatpush2.bf16.msra.mxu0 0
    %3498 = vmatprep.subr.bf16.mxu0 0
    %3499 = vmatpush2.bf16.msra.mxu0 0
    %3500 = vmatprep.subr.bf16.mxu0 0
    %3501 = vmatpush2.bf16.msra.mxu0 0
    %3502 = vmatprep.subr.bf16.mxu0 0
    %3503 = vmatpush2.bf16.msra.mxu0 0
    %3504 = vmatprep.subr.bf16.mxu0 0
    %3505 = vmatpush2.bf16.msra.mxu0 0
    %3506 = vmatprep.mubr.bf16.mxu0 0
    %3507 = vmatmul.mubr.bf16.gmra.mxu0 %v3402
    %v3508 = vpop.f32.mrf.mxu0
    %v3509 = vadd.f32 0.0, %v3508
    %v3510 = vpop.f32.mrf.mxu0
    %v3511 = vpop.f32.mrf.mxu0
    %v3512 = vadd.f32 0.0, %v3511
    %v3513 = vpop.f32.mrf.mxu0
    %3514 = vmatprep.mubr.bf16.mxu0 0
    %3515 = vmatmul.mubr.bf16.gmra.mxu0 %v3403
    %v3516 = vpop.f32.mrf.mxu0
    %v3517 = vadd.f32 0.0, %v3516
    %v3518 = vpop.f32.mrf.mxu0
    %v3519 = vpop.f32.mrf.mxu0
    %v3520 = vadd.f32 0.0, %v3519
    %v3521 = vpop.f32.mrf.mxu0
    %3522 = vmatprep.mubr.bf16.mxu0 0
    %3523 = vmatmul.mubr.bf16.gmra.mxu0 %v3404
    %v3524 = vpop.f32.mrf.mxu0
    %v3525 = vadd.f32 0.0, %v3524
    %v3526 = vpop.f32.mrf.mxu0
    %v3527 = vpop.f32.mrf.mxu0
    %v3528 = vadd.f32 0.0, %v3527
    %v3529 = vpop.f32.mrf.mxu0
    %3530 = vmatprep.mubr.bf16.mxu0 0
    %3531 = vmatmul.mubr.bf16.gmra.mxu0 %v3405
    %v3532 = vpop.f32.mrf.mxu0
    %v3533 = vadd.f32 0.0, %v3532
    %v3534 = vpop.f32.mrf.mxu0
    %v3535 = vpop.f32.mrf.mxu0
    %v3536 = vadd.f32 0.0, %v3535
    %v3537 = vpop.f32.mrf.mxu0
    %3538 = vmatprep.mubr.bf16.mxu0 0
    %3539 = vmatmul.mubr.bf16.gmra.mxu0 %v3406
    %v3540 = vpop.f32.mrf.mxu0
    %v3541 = vadd.f32 0.0, %v3540
    %v3542 = vpop.f32.mrf.mxu0
    %v3543 = vpop.f32.mrf.mxu0
    %v3544 = vadd.f32 0.0, %v3543
    %v3545 = vpop.f32.mrf.mxu0
    %3546 = vmatprep.mubr.bf16.mxu0 0
    %3547 = vmatmul.mubr.bf16.gmra.mxu0 %v3407
    %v3548 = vpop.f32.mrf.mxu0
    %v3549 = vadd.f32 0.0, %v3548
    %v3550 = vpop.f32.mrf.mxu0
    %v3551 = vpop.f32.mrf.mxu0
    %v3552 = vadd.f32 0.0, %v3551
    %v3553 = vpop.f32.mrf.mxu0
    %3554 = vmatprep.mubr.bf16.mxu0 0
    %3555 = vmatmul.mubr.bf16.gmra.mxu0 %v3408
    %v3556 = vpop.f32.mrf.mxu0
    %v3557 = vadd.f32 0.0, %v3556
    %v3558 = vpop.f32.mrf.mxu0
    %v3559 = vpop.f32.mrf.mxu0
    %v3560 = vadd.f32 0.0, %v3559
    %v3561 = vpop.f32.mrf.mxu0
    %3562 = vmatprep.mubr.bf16.mxu0 0
    %3563 = vmatmul.mubr.bf16.gmra.mxu0 %v3409
    %v3564 = vpop.f32.mrf.mxu0
    %v3565 = vadd.f32 0.0, %v3564
    %v3566 = vpop.f32.mrf.mxu0
    %v3567 = vpop.f32.mrf.mxu0
    %v3568 = vadd.f32 0.0, %v3567
    %v3569 = vpop.f32.mrf.mxu0
    %3570 = vdwg.mxu0
    %v3571 = vadd.f32 %v2900, %v3509
    %v3572 = vadd.f32 %v2901, %v3512
    %v3573 = vadd.f32 %v2902, %v3517
    %v3574 = vadd.f32 %v2903, %v3520
    %v3575 = vadd.f32 %v2904, %v3525
    %v3576 = vadd.f32 %v2905, %v3528
    %v3577 = vadd.f32 %v2906, %v3533
    %v3578 = vadd.f32 %v2907, %v3536
    %v3579 = vadd.f32 %v2908, %v3541
    %v3580 = vadd.f32 %v2909, %v3544
    %v3581 = vadd.f32 %v2910, %v3549
    %v3582 = vadd.f32 %v2911, %v3552
    %v3583 = vadd.f32 %v2912, %v3557
    %v3584 = vadd.f32 %v2913, %v3560
    %v3585 = vadd.f32 %v2914, %v3565
    %v3586 = vadd.f32 %v2915, %v3568
    %v3587 = vld [vmem:[%s12] sm:$0x1]
    %v3589 = vlaneseq
    %v3590 = vshrl.u32 %v3589, 7
    %v3591 = vsub.s32 0, %v3590
    %v3592 = vrot.slane %v3587, %v3591
    %v3594 = vadd.f32 %v3571, %v3592
    %v3595 = vadd.f32 %v3572, %v3592
    %v3596 = vadd.f32 %v3573, %v3592
    %v3597 = vadd.f32 %v3574, %v3592
    %v3598 = vadd.f32 %v3575, %v3592
    %v3599 = vadd.f32 %v3576, %v3592
    %v3600 = vadd.f32 %v3577, %v3592
    %v3601 = vadd.f32 %v3578, %v3592
    %v3602 = vadd.f32 %v3579, %v3592
    %v3603 = vadd.f32 %v3580, %v3592
    %v3604 = vadd.f32 %v3581, %v3592
    %v3605 = vadd.f32 %v3582, %v3592
    %v3606 = vadd.f32 %v3583, %v3592
    %v3607 = vadd.f32 %v3584, %v3592
    %v3608 = vadd.f32 %v3585, %v3592
    %v3609 = vadd.f32 %v3586, %v3592
    %s3610 = scalar_lea.vmem %s2, 1
    %v3611 = vld [vmem:[%s3610] sm:$0x1]
    %s3612 = scalar_lea.vmem %s3, 1
    %v3613 = vld [vmem:[%s3612] sm:$0x1]
    %v3614 = vsel %vm77, %v3594, 0.0
    %3615 = vadd.xlane.f32.xlu0 %v3614
    %v3616 = vpop.xlane.xlu0 %3615
    %v3617 = vsel %vm77, %v3595, 0.0
    %3618 = vadd.xlane.f32.xlu0 %v3617
    %v3619 = vpop.xlane.xlu0 %3618
    %v3620 = vsel %vm77, %v3596, 0.0
    %3621 = vadd.xlane.f32.xlu0 %v3620
    %v3622 = vpop.xlane.xlu0 %3621
    %v3623 = vsel %vm77, %v3597, 0.0
    %3624 = vadd.xlane.f32.xlu0 %v3623
    %v3625 = vpop.xlane.xlu0 %3624
    %v3626 = vsel %vm77, %v3598, 0.0
    %3627 = vadd.xlane.f32.xlu0 %v3626
    %v3628 = vpop.xlane.xlu0 %3627
    %v3629 = vsel %vm77, %v3599, 0.0
    %3630 = vadd.xlane.f32.xlu0 %v3629
    %v3631 = vpop.xlane.xlu0 %3630
    %v3632 = vsel %vm77, %v3600, 0.0
    %3633 = vadd.xlane.f32.xlu0 %v3632
    %v3634 = vpop.xlane.xlu0 %3633
    %v3635 = vsel %vm77, %v3601, 0.0
    %3636 = vadd.xlane.f32.xlu0 %v3635
    %v3637 = vpop.xlane.xlu0 %3636
    %v3638 = vsel %vm77, %v3602, 0.0
    %3639 = vadd.xlane.f32.xlu0 %v3638
    %v3640 = vpop.xlane.xlu0 %3639
    %v3641 = vsel %vm77, %v3603, 0.0
    %3642 = vadd.xlane.f32.xlu0 %v3641
    %v3643 = vpop.xlane.xlu0 %3642
    %v3644 = vsel %vm77, %v3604, 0.0
    %3645 = vadd.xlane.f32.xlu0 %v3644
    %v3646 = vpop.xlane.xlu0 %3645
    %v3647 = vsel %vm77, %v3605, 0.0
    %3648 = vadd.xlane.f32.xlu0 %v3647
    %v3649 = vpop.xlane.xlu0 %3648
    %v3650 = vsel %vm77, %v3606, 0.0
    %3651 = vadd.xlane.f32.xlu0 %v3650
    %v3652 = vpop.xlane.xlu0 %3651
    %v3653 = vsel %vm77, %v3607, 0.0
    %3654 = vadd.xlane.f32.xlu0 %v3653
    %v3655 = vpop.xlane.xlu0 %3654
    %v3656 = vsel %vm77, %v3608, 0.0
    %3657 = vadd.xlane.f32.xlu0 %v3656
    %v3658 = vpop.xlane.xlu0 %3657
    %v3659 = vsel %vm77, %v3609, 0.0
    %3660 = vadd.xlane.f32.xlu0 %v3659
    %v3661 = vpop.xlane.xlu0 %3660
    %v3662 = vmul.f32 %v3616, %v126
    %v3663 = vmul.f32 %v3619, %v126
    %v3664 = vmul.f32 %v3622, %v126
    %v3665 = vmul.f32 %v3625, %v126
    %v3666 = vmul.f32 %v3628, %v126
    %v3667 = vmul.f32 %v3631, %v126
    %v3668 = vmul.f32 %v3634, %v126
    %v3669 = vmul.f32 %v3637, %v126
    %v3670 = vmul.f32 %v3640, %v126
    %v3671 = vmul.f32 %v3643, %v126
    %v3672 = vmul.f32 %v3646, %v126
    %v3673 = vmul.f32 %v3649, %v126
    %v3674 = vmul.f32 %v3652, %v126
    %v3675 = vmul.f32 %v3655, %v126
    %v3676 = vmul.f32 %v3658, %v126
    %v3677 = vmul.f32 %v3661, %v126
    %v3678 = vsub.f32 %v3594, %v3662
    %v3679 = vsub.f32 %v3595, %v3663
    %v3680 = vsub.f32 %v3596, %v3664
    %v3681 = vsub.f32 %v3597, %v3665
    %v3682 = vsub.f32 %v3598, %v3666
    %v3683 = vsub.f32 %v3599, %v3667
    %v3684 = vsub.f32 %v3600, %v3668
    %v3685 = vsub.f32 %v3601, %v3669
    %v3686 = vsub.f32 %v3602, %v3670
    %v3687 = vsub.f32 %v3603, %v3671
    %v3688 = vsub.f32 %v3604, %v3672
    %v3689 = vsub.f32 %v3605, %v3673
    %v3690 = vsub.f32 %v3606, %v3674
    %v3691 = vsub.f32 %v3607, %v3675
    %v3692 = vsub.f32 %v3608, %v3676
    %v3693 = vsub.f32 %v3609, %v3677
    %v3694 = vmul.f32 %v3678, %v3678
    %v3695 = vmul.f32 %v3679, %v3679
    %v3696 = vmul.f32 %v3680, %v3680
    %v3697 = vmul.f32 %v3681, %v3681
    %v3698 = vmul.f32 %v3682, %v3682
    %v3699 = vmul.f32 %v3683, %v3683
    %v3700 = vmul.f32 %v3684, %v3684
    %v3701 = vmul.f32 %v3685, %v3685
    %v3702 = vmul.f32 %v3686, %v3686
    %v3703 = vmul.f32 %v3687, %v3687
    %v3704 = vmul.f32 %v3688, %v3688
    %v3705 = vmul.f32 %v3689, %v3689
    %v3706 = vmul.f32 %v3690, %v3690
    %v3707 = vmul.f32 %v3691, %v3691
    %v3708 = vmul.f32 %v3692, %v3692
    %v3709 = vmul.f32 %v3693, %v3693
    %v3710 = vsel %vm77, %v3694, 0.0
    %3711 = vadd.xlane.f32.xlu0 %v3710
    %v3712 = vpop.xlane.xlu0 %3711
    %v3713 = vsel %vm77, %v3695, 0.0
    %3714 = vadd.xlane.f32.xlu0 %v3713
    %v3715 = vpop.xlane.xlu0 %3714
    %v3716 = vsel %vm77, %v3696, 0.0
    %3717 = vadd.xlane.f32.xlu0 %v3716
    %v3718 = vpop.xlane.xlu0 %3717
    %v3719 = vsel %vm77, %v3697, 0.0
    %3720 = vadd.xlane.f32.xlu0 %v3719
    %v3721 = vpop.xlane.xlu0 %3720
    %v3722 = vsel %vm77, %v3698, 0.0
    %3723 = vadd.xlane.f32.xlu0 %v3722
    %v3724 = vpop.xlane.xlu0 %3723
    %v3725 = vsel %vm77, %v3699, 0.0
    %3726 = vadd.xlane.f32.xlu0 %v3725
    %v3727 = vpop.xlane.xlu0 %3726
    %v3728 = vsel %vm77, %v3700, 0.0
    %3729 = vadd.xlane.f32.xlu0 %v3728
    %v3730 = vpop.xlane.xlu0 %3729
    %v3731 = vsel %vm77, %v3701, 0.0
    %3732 = vadd.xlane.f32.xlu0 %v3731
    %v3733 = vpop.xlane.xlu0 %3732
    %v3734 = vsel %vm77, %v3702, 0.0
    %3735 = vadd.xlane.f32.xlu0 %v3734
    %v3736 = vpop.xlane.xlu0 %3735
    %v3737 = vsel %vm77, %v3703, 0.0
    %3738 = vadd.xlane.f32.xlu0 %v3737
    %v3739 = vpop.xlane.xlu0 %3738
    %v3740 = vsel %vm77, %v3704, 0.0
    %3741 = vadd.xlane.f32.xlu0 %v3740
    %v3742 = vpop.xlane.xlu0 %3741
    %v3743 = vsel %vm77, %v3705, 0.0
    %3744 = vadd.xlane.f32.xlu0 %v3743
    %v3745 = vpop.xlane.xlu0 %3744
    %v3746 = vsel %vm77, %v3706, 0.0
    %3747 = vadd.xlane.f32.xlu0 %v3746
    %v3748 = vpop.xlane.xlu0 %3747
    %v3749 = vsel %vm77, %v3707, 0.0
    %3750 = vadd.xlane.f32.xlu0 %v3749
    %v3751 = vpop.xlane.xlu0 %3750
    %v3752 = vsel %vm77, %v3708, 0.0
    %3753 = vadd.xlane.f32.xlu0 %v3752
    %v3754 = vpop.xlane.xlu0 %3753
    %v3755 = vsel %vm77, %v3709, 0.0
    %3756 = vadd.xlane.f32.xlu0 %v3755
    %v3757 = vpop.xlane.xlu0 %3756
    %v3758 = vmul.f32 %v3712, %v126
    %v3759 = vmul.f32 %v3715, %v126
    %v3760 = vmul.f32 %v3718, %v126
    %v3761 = vmul.f32 %v3721, %v126
    %v3762 = vmul.f32 %v3724, %v126
    %v3763 = vmul.f32 %v3727, %v126
    %v3764 = vmul.f32 %v3730, %v126
    %v3765 = vmul.f32 %v3733, %v126
    %v3766 = vmul.f32 %v3736, %v126
    %v3767 = vmul.f32 %v3739, %v126
    %v3768 = vmul.f32 %v3742, %v126
    %v3769 = vmul.f32 %v3745, %v126
    %v3770 = vmul.f32 %v3748, %v126
    %v3771 = vmul.f32 %v3751, %v126
    %v3772 = vmul.f32 %v3754, %v126
    %v3773 = vmul.f32 %v3757, %v126
    %v3774 = vadd.f32 %v3758, 1e-05
    %v3775 = vadd.f32 %v3759, 1e-05
    %v3776 = vadd.f32 %v3760, 1e-05
    %v3777 = vadd.f32 %v3761, 1e-05
    %v3778 = vadd.f32 %v3762, 1e-05
    %v3779 = vadd.f32 %v3763, 1e-05
    %v3780 = vadd.f32 %v3764, 1e-05
    %v3781 = vadd.f32 %v3765, 1e-05
    %v3782 = vadd.f32 %v3766, 1e-05
    %v3783 = vadd.f32 %v3767, 1e-05
    %v3784 = vadd.f32 %v3768, 1e-05
    %v3785 = vadd.f32 %v3769, 1e-05
    %v3786 = vadd.f32 %v3770, 1e-05
    %v3787 = vadd.f32 %v3771, 1e-05
    %v3788 = vadd.f32 %v3772, 1e-05
    %v3789 = vadd.f32 %v3773, 1e-05
    %v3790 = vrsqrt.pop %v3774
    %v3791 = vrsqrt.pop %v3775
    %v3792 = vrsqrt.pop %v3776
    %v3793 = vrsqrt.pop %v3777
    %v3794 = vrsqrt.pop %v3778
    %v3795 = vrsqrt.pop %v3779
    %v3796 = vrsqrt.pop %v3780
    %v3797 = vrsqrt.pop %v3781
    %v3798 = vrsqrt.pop %v3782
    %v3799 = vrsqrt.pop %v3783
    %v3800 = vrsqrt.pop %v3784
    %v3801 = vrsqrt.pop %v3785
    %v3802 = vrsqrt.pop %v3786
    %v3803 = vrsqrt.pop %v3787
    %v3804 = vrsqrt.pop %v3788
    %v3805 = vrsqrt.pop %v3789
    %v3806 = vmul.f32 %v3678, %v3790
    %v3807 = vmul.f32 %v3679, %v3791
    %v3808 = vmul.f32 %v3680, %v3792
    %v3809 = vmul.f32 %v3681, %v3793
    %v3810 = vmul.f32 %v3682, %v3794
    %v3811 = vmul.f32 %v3683, %v3795
    %v3812 = vmul.f32 %v3684, %v3796
    %v3813 = vmul.f32 %v3685, %v3797
    %v3814 = vmul.f32 %v3686, %v3798
    %v3815 = vmul.f32 %v3687, %v3799
    %v3816 = vmul.f32 %v3688, %v3800
    %v3817 = vmul.f32 %v3689, %v3801
    %v3818 = vmul.f32 %v3690, %v3802
    %v3819 = vmul.f32 %v3691, %v3803
    %v3820 = vmul.f32 %v3692, %v3804
    %v3821 = vmul.f32 %v3693, %v3805
    %v3823 = vlaneseq
    %v3824 = vshrl.u32 %v3823, 7
    %v3825 = vsub.s32 0, %v3824
    %v3826 = vrot.slane %v3611, %v3825
    %v3828 = vmul.f32 %v3806, %v3826
    %v3829 = vmul.f32 %v3807, %v3826
    %v3830 = vmul.f32 %v3808, %v3826
    %v3831 = vmul.f32 %v3809, %v3826
    %v3832 = vmul.f32 %v3810, %v3826
    %v3833 = vmul.f32 %v3811, %v3826
    %v3834 = vmul.f32 %v3812, %v3826
    %v3835 = vmul.f32 %v3813, %v3826
    %v3836 = vmul.f32 %v3814, %v3826
    %v3837 = vmul.f32 %v3815, %v3826
    %v3838 = vmul.f32 %v3816, %v3826
    %v3839 = vmul.f32 %v3817, %v3826
    %v3840 = vmul.f32 %v3818, %v3826
    %v3841 = vmul.f32 %v3819, %v3826
    %v3842 = vmul.f32 %v3820, %v3826
    %v3843 = vmul.f32 %v3821, %v3826
    %v3845 = vlaneseq
    %v3846 = vshrl.u32 %v3845, 7
    %v3847 = vsub.s32 0, %v3846
    %v3848 = vrot.slane %v3613, %v3847
    %v3850 = vadd.f32 %v3828, %v3848
    %v3851 = vadd.f32 %v3829, %v3848
    %v3852 = vadd.f32 %v3830, %v3848
    %v3853 = vadd.f32 %v3831, %v3848
    %v3854 = vadd.f32 %v3832, %v3848
    %v3855 = vadd.f32 %v3833, %v3848
    %v3856 = vadd.f32 %v3834, %v3848
    %v3857 = vadd.f32 %v3835, %v3848
    %v3858 = vadd.f32 %v3836, %v3848
    %v3859 = vadd.f32 %v3837, %v3848
    %v3860 = vadd.f32 %v3838, %v3848
    %v3861 = vadd.f32 %v3839, %v3848
    %v3862 = vadd.f32 %v3840, %v3848
    %v3863 = vadd.f32 %v3841, %v3848
    %v3864 = vadd.f32 %v3842, %v3848
    %v3865 = vadd.f32 %v3843, %v3848
    %v3866 = vpack.c.bf16 %v3851, %v3850
    %v3867 = vpack.c.bf16 %v3853, %v3852
    %v3868 = vpack.c.bf16 %v3855, %v3854
    %v3869 = vpack.c.bf16 %v3857, %v3856
    %v3870 = vpack.c.bf16 %v3859, %v3858
    %v3871 = vpack.c.bf16 %v3861, %v3860
    %v3872 = vpack.c.bf16 %v3863, %v3862
    %v3873 = vpack.c.bf16 %v3865, %v3864
    %s3874 = scalar_lea.vmem %s4, 32
    %v3875 = vld [vmem:[%s3874] sm:$0xff]
    %v3876 = vld [vmem:[%s3874 + $0x8] sm:$0xff]
    %v3877 = vld [vmem:[%s3874 + $0x10] sm:$0xff]
    %v3878 = vld [vmem:[%s3874 + $0x18] sm:$0xff]
    %s3879 = scalar_lea.vmem %s5, 2
    %v3880 = vld [vmem:[%s3879] sm:$0x3]
    %v3882 = vlaneseq
    %v3883 = vshrl.u32 %v3882, 7
    %v3884 = vsub.s32 0, %v3883
    %v3885 = vrot.slane %v3880, %v3884
    %v3886 = vlaneseq
    %v3887 = vshrl.u32 %v3886, 7
    %v3888 = vsub.s32 1, %v3887
    %v3889 = vrot.slane %v3880, %v3888
    %v3896 = vunpack.c.l.b16 %v3875
    %v3897 = vunpack.c.h.b16 %v3875
    %v3898 = vunpack.c.l.b16 %v3876
    %v3899 = vunpack.c.h.b16 %v3876
    %v3900 = vunpack.c.l.b16 %v3877
    %v3901 = vunpack.c.h.b16 %v3877
    %v3902 = vunpack.c.l.b16 %v3878
    %v3903 = vunpack.c.h.b16 %v3878
    %v3904 = vpack.c.b16 %v3898, %v3896
    %v3905 = vpack.c.b16 %v3899, %v3897
    %v3906 = vpack.c.b16 %v3902, %v3900
    %v3907 = vpack.c.b16 %v3903, %v3901
    %v3913 = vsel %vm77, %v3866, 0
    %v3916 = vsel %vm77, %v3867, 0
    %v3919 = vsel %vm77, %v3868, 0
    %v3922 = vsel %vm77, %v3869, 0
    %v3925 = vsel %vm77, %v3870, 0
    %v3928 = vsel %vm77, %v3871, 0
    %v3931 = vsel %vm77, %v3872, 0
    %v3934 = vsel %vm77, %v3873, 0
    %3936 = vmatprep.subr.bf16.mxu0 0
    %3937 = vmatpush1.bf16.msra.mxu0 0
    %3938 = vmatprep.subr.bf16.mxu0 0
    %3939 = vmatpush1.bf16.msra.mxu0 0
    %3940 = vmatprep.subr.bf16.mxu0 0
    %3941 = vmatpush1.bf16.msra.mxu0 0
    %3942 = vmatprep.subr.bf16.mxu0 0
    %3943 = vmatpush1.bf16.msra.mxu0 0
    %3944 = vmatprep.subr.bf16.mxu0 0
    %3945 = vmatpush1.bf16.msra.mxu0 0
    %3946 = vmatprep.subr.bf16.mxu0 0
    %3947 = vmatpush1.bf16.msra.mxu0 0
    %3948 = vmatprep.subr.bf16.mxu0 %v3907
    %3949 = vmatpush1.bf16.msra.mxu0 %v3906
    %3950 = vmatprep.subr.bf16.mxu0 %v3905
    %3951 = vmatpush1.bf16.msra.mxu0 %v3904
    %3952 = vmatprep.subr.bf16.mxu0 0
    %3953 = vmatpush2.bf16.msra.mxu0 0
    %3954 = vmatprep.subr.bf16.mxu0 0
    %3955 = vmatpush2.bf16.msra.mxu0 0
    %3956 = vmatprep.subr.bf16.mxu0 0
    %3957 = vmatpush2.bf16.msra.mxu0 0
    %3958 = vmatprep.subr.bf16.mxu0 0
    %3959 = vmatpush2.bf16.msra.mxu0 0
    %3960 = vmatprep.subr.bf16.mxu0 0
    %3961 = vmatpush2.bf16.msra.mxu0 0
    %3962 = vmatprep.subr.bf16.mxu0 0
    %3963 = vmatpush2.bf16.msra.mxu0 0
    %3964 = vmatprep.subr.bf16.mxu0 0
    %3965 = vmatpush2.bf16.msra.mxu0 0
    %3966 = vmatprep.subr.bf16.mxu0 0
    %3967 = vmatpush2.bf16.msra.mxu0 0
    %3968 = vmatprep.mubr.bf16.mxu0 0
    %3969 = vmatmul.mubr.bf16.gmra.mxu0 %v3913
    %v3970 = vpop.f32.mrf.mxu0
    %v3971 = vadd.f32 %v3885, %v3970
    %v3972 = vpop.f32.mrf.mxu0
    %v3973 = vadd.f32 %v3889, %v3972
    %v3974 = vpop.f32.mrf.mxu0
    %v3975 = vadd.f32 %v3885, %v3974
    %v3976 = vpop.f32.mrf.mxu0
    %v3977 = vadd.f32 %v3889, %v3976
    %3978 = vmatprep.mubr.bf16.mxu0 0
    %3979 = vmatmul.mubr.bf16.gmra.mxu0 %v3916
    %v3980 = vpop.f32.mrf.mxu0
    %v3981 = vadd.f32 %v3885, %v3980
    %v3982 = vpop.f32.mrf.mxu0
    %v3983 = vadd.f32 %v3889, %v3982
    %v3984 = vpop.f32.mrf.mxu0
    %v3985 = vadd.f32 %v3885, %v3984
    %v3986 = vpop.f32.mrf.mxu0
    %v3987 = vadd.f32 %v3889, %v3986
    %3988 = vmatprep.mubr.bf16.mxu0 0
    %3989 = vmatmul.mubr.bf16.gmra.mxu0 %v3919
    %v3990 = vpop.f32.mrf.mxu0
    %v3991 = vadd.f32 %v3885, %v3990
    %v3992 = vpop.f32.mrf.mxu0
    %v3993 = vadd.f32 %v3889, %v3992
    %v3994 = vpop.f32.mrf.mxu0
    %v3995 = vadd.f32 %v3885, %v3994
    %v3996 = vpop.f32.mrf.mxu0
    %v3997 = vadd.f32 %v3889, %v3996
    %3998 = vmatprep.mubr.bf16.mxu0 0
    %3999 = vmatmul.mubr.bf16.gmra.mxu0 %v3922
    %v4000 = vpop.f32.mrf.mxu0
    %v4001 = vadd.f32 %v3885, %v4000
    %v4002 = vpop.f32.mrf.mxu0
    %v4003 = vadd.f32 %v3889, %v4002
    %v4004 = vpop.f32.mrf.mxu0
    %v4005 = vadd.f32 %v3885, %v4004
    %v4006 = vpop.f32.mrf.mxu0
    %v4007 = vadd.f32 %v3889, %v4006
    %4008 = vmatprep.mubr.bf16.mxu0 0
    %4009 = vmatmul.mubr.bf16.gmra.mxu0 %v3925
    %v4010 = vpop.f32.mrf.mxu0
    %v4011 = vadd.f32 %v3885, %v4010
    %v4012 = vpop.f32.mrf.mxu0
    %v4013 = vadd.f32 %v3889, %v4012
    %v4014 = vpop.f32.mrf.mxu0
    %v4015 = vadd.f32 %v3885, %v4014
    %v4016 = vpop.f32.mrf.mxu0
    %v4017 = vadd.f32 %v3889, %v4016
    %4018 = vmatprep.mubr.bf16.mxu0 0
    %4019 = vmatmul.mubr.bf16.gmra.mxu0 %v3928
    %v4020 = vpop.f32.mrf.mxu0
    %v4021 = vadd.f32 %v3885, %v4020
    %v4022 = vpop.f32.mrf.mxu0
    %v4023 = vadd.f32 %v3889, %v4022
    %v4024 = vpop.f32.mrf.mxu0
    %v4025 = vadd.f32 %v3885, %v4024
    %v4026 = vpop.f32.mrf.mxu0
    %v4027 = vadd.f32 %v3889, %v4026
    %4028 = vmatprep.mubr.bf16.mxu0 0
    %4029 = vmatmul.mubr.bf16.gmra.mxu0 %v3931
    %v4030 = vpop.f32.mrf.mxu0
    %v4031 = vadd.f32 %v3885, %v4030
    %v4032 = vpop.f32.mrf.mxu0
    %v4033 = vadd.f32 %v3889, %v4032
    %v4034 = vpop.f32.mrf.mxu0
    %v4035 = vadd.f32 %v3885, %v4034
    %v4036 = vpop.f32.mrf.mxu0
    %v4037 = vadd.f32 %v3889, %v4036
    %4038 = vmatprep.mubr.bf16.mxu0 0
    %4039 = vmatmul.mubr.bf16.gmra.mxu0 %v3934
    %v4040 = vpop.f32.mrf.mxu0
    %v4041 = vadd.f32 %v3885, %v4040
    %v4042 = vpop.f32.mrf.mxu0
    %v4043 = vadd.f32 %v3889, %v4042
    %v4044 = vpop.f32.mrf.mxu0
    %v4045 = vadd.f32 %v3885, %v4044
    %v4046 = vpop.f32.mrf.mxu0
    %v4047 = vadd.f32 %v3889, %v4046
    %4048 = vdwg.mxu0
    %s4049 = scalar_lea.vmem %s6, 1
    %v4050 = vld [vmem:[%s4049] sm:$0x1]
    %v4052 = vlaneseq
    %v4053 = vshrl.u32 %v4052, 7
    %v4054 = vsub.s32 0, %v4053
    %v4055 = vrot.slane %v4050, %v4054
    %v4057 = vadd.f32 %v3594, %v4055
    %v4058 = vadd.f32 %v3595, %v4055
    %v4059 = vadd.f32 %v3596, %v4055
    %v4060 = vadd.f32 %v3597, %v4055
    %v4061 = vadd.f32 %v3598, %v4055
    %v4062 = vadd.f32 %v3599, %v4055
    %v4063 = vadd.f32 %v3600, %v4055
    %v4064 = vadd.f32 %v3601, %v4055
    %v4065 = vadd.f32 %v3602, %v4055
    %v4066 = vadd.f32 %v3603, %v4055
    %v4067 = vadd.f32 %v3604, %v4055
    %v4068 = vadd.f32 %v3605, %v4055
    %v4069 = vadd.f32 %v3606, %v4055
    %v4070 = vadd.f32 %v3607, %v4055
    %v4071 = vadd.f32 %v3608, %v4055
    %v4072 = vadd.f32 %v3609, %v4055
    %v4073 = vpack.c.bf16 %v3975, %v3971
    %v4074 = vpack.c.bf16 %v3985, %v3981
    %v4075 = vpack.c.bf16 %v3995, %v3991
    %v4076 = vpack.c.bf16 %v4005, %v4001
    %v4077 = vpack.c.bf16 %v4015, %v4011
    %v4078 = vpack.c.bf16 %v4025, %v4021
    %v4079 = vpack.c.bf16 %v4035, %v4031
    %v4080 = vpack.c.bf16 %v4045, %v4041
    %s4081 = scalar_lea.vmem [#allocation2], 256
    %v4082 = vld [vmem:[%s4081] sm:$0xff]
    %v4083 = vld [vmem:[%s4081 + $0x8] sm:$0xff]
    %v4084 = vld [vmem:[%s4081 + $0x10] sm:$0xff]
    %v4085 = vld [vmem:[%s4081 + $0x18] sm:$0xff]
    %v4086 = vld [vmem:[%s4081 + $0x20] sm:$0xff]
    %v4087 = vld [vmem:[%s4081 + $0x28] sm:$0xff]
    %v4088 = vld [vmem:[%s4081 + $0x30] sm:$0xff]
    %v4089 = vld [vmem:[%s4081 + $0x38] sm:$0xff]
    %4094 = vrot.lane.b32.xlu0 %v4073, 96
    %v4095 = vpop.permute.xlu0 %4094
    %4096 = vrot.lane.b32.xlu0 %v4074, 96
    %v4097 = vpop.permute.xlu0 %4096
    %4098 = vrot.lane.b32.xlu0 %v4075, 96
    %v4099 = vpop.permute.xlu0 %4098
    %4100 = vrot.lane.b32.xlu0 %v4076, 96
    %v4101 = vpop.permute.xlu0 %4100
    %v4103 = vsel %vm563, %v4073, 0
    %v4106 = vsel %vm563, %v4074, 0
    %v4109 = vsel %vm563, %v4075, 0
    %v4112 = vsel %vm563, %v4076, 0
    %v4115 = vsel %vm563, %v4095, 0
    %v4118 = vsel %vm563, %v4097, 0
    %v4121 = vsel %vm563, %v4099, 0
    %v4124 = vsel %vm563, %v4101, 0
    %4126 = vmatprep.subr.bf16.mxu0 0
    %4127 = vmatpush1.bf16.xpose.msra.mxu0 0
    %4128 = vmatprep.subr.bf16.mxu0 0
    %4129 = vmatpush1.bf16.xpose.msra.mxu0 0
    %4130 = vmatprep.subr.bf16.mxu0 0
    %4131 = vmatpush1.bf16.xpose.msra.mxu0 0
    %4132 = vmatprep.subr.bf16.mxu0 0
    %4133 = vmatpush1.bf16.xpose.msra.mxu0 0
    %4134 = vmatprep.subr.bf16.mxu0 0
    %4135 = vmatpush1.bf16.xpose.msra.mxu0 %v4124
    %4136 = vmatprep.subr.bf16.mxu0 0
    %4137 = vmatpush1.bf16.xpose.msra.mxu0 %v4121
    %4138 = vmatprep.subr.bf16.mxu0 0
    %4139 = vmatpush1.bf16.xpose.msra.mxu0 %v4118
    %4140 = vmatprep.subr.bf16.mxu0 0
    %4141 = vmatpush1.bf16.xpose.msra.mxu0 %v4115
    %4142 = vmatprep.subr.bf16.mxu0 0
    %4143 = vmatpush2.bf16.xpose.msra.mxu0 0
    %4144 = vmatprep.subr.bf16.mxu0 0
    %4145 = vmatpush2.bf16.xpose.msra.mxu0 0
    %4146 = vmatprep.subr.bf16.mxu0 0
    %4147 = vmatpush2.bf16.xpose.msra.mxu0 0
    %4148 = vmatprep.subr.bf16.mxu0 0
    %4149 = vmatpush2.bf16.xpose.msra.mxu0 0
    %4150 = vmatprep.subr.bf16.mxu0 0
    %4151 = vmatpush2.bf16.xpose.msra.mxu0 0
    %4152 = vmatprep.subr.bf16.mxu0 0
    %4153 = vmatpush2.bf16.xpose.msra.mxu0 0
    %4154 = vmatprep.subr.bf16.mxu0 0
    %4155 = vmatpush2.bf16.xpose.msra.mxu0 0
    %4156 = vmatprep.subr.bf16.mxu0 0
    %4157 = vmatpush2.bf16.xpose.msra.mxu0 0
    %4158 = vmatprep.mubr.bf16.mxu0 0
    %4159 = vmatmul.mubr.bf16.gmra.mxu0 %v4103
    %v4160 = vpop.f32.mrf.mxu0
    %v4161 = vadd.f32 %v4082, %v4160
    %v4162 = vpop.f32.mrf.mxu0
    %v4163 = vpop.f32.mrf.mxu0
    %v4164 = vadd.f32 %v4083, %v4163
    %v4165 = vpop.f32.mrf.mxu0
    %4166 = vmatprep.mubr.bf16.mxu0 0
    %4167 = vmatmul.mubr.bf16.gmra.mxu0 %v4106
    %v4168 = vpop.f32.mrf.mxu0
    %v4169 = vadd.f32 %v4084, %v4168
    %v4170 = vpop.f32.mrf.mxu0
    %v4171 = vpop.f32.mrf.mxu0
    %v4172 = vadd.f32 %v4085, %v4171
    %v4173 = vpop.f32.mrf.mxu0
    %4174 = vmatprep.mubr.bf16.mxu0 0
    %4175 = vmatmul.mubr.bf16.gmra.mxu0 %v4109
    %v4176 = vpop.f32.mrf.mxu0
    %v4177 = vadd.f32 %v4086, %v4176
    %v4178 = vpop.f32.mrf.mxu0
    %v4179 = vpop.f32.mrf.mxu0
    %v4180 = vadd.f32 %v4087, %v4179
    %v4181 = vpop.f32.mrf.mxu0
    %4182 = vmatprep.mubr.bf16.mxu0 0
    %4183 = vmatmul.mubr.bf16.gmra.mxu0 %v4112
    %v4184 = vpop.f32.mrf.mxu0
    %v4185 = vadd.f32 %v4088, %v4184
    %v4186 = vpop.f32.mrf.mxu0
    %v4187 = vpop.f32.mrf.mxu0
    %v4188 = vadd.f32 %v4089, %v4187
    %v4189 = vpop.f32.mrf.mxu0
    %4190 = vdwg.mxu0
    %4195 = vrot.lane.b32.xlu0 %v4077, 96
    %v4196 = vpop.permute.xlu0 %4195
    %4197 = vrot.lane.b32.xlu0 %v4078, 96
    %v4198 = vpop.permute.xlu0 %4197
    %4199 = vrot.lane.b32.xlu0 %v4079, 96
    %v4200 = vpop.permute.xlu0 %4199
    %4201 = vrot.lane.b32.xlu0 %v4080, 96
    %v4202 = vpop.permute.xlu0 %4201
    %v4204 = vsel %vm563, %v4077, 0
    %v4207 = vsel %vm563, %v4078, 0
    %v4210 = vsel %vm563, %v4079, 0
    %v4213 = vsel %vm563, %v4080, 0
    %v4216 = vsel %vm563, %v4196, 0
    %v4219 = vsel %vm563, %v4198, 0
    %v4222 = vsel %vm563, %v4200, 0
    %v4225 = vsel %vm563, %v4202, 0
    %4227 = vmatprep.subr.bf16.mxu0 0
    %4228 = vmatpush1.bf16.xpose.msra.mxu0 0
    %4229 = vmatprep.subr.bf16.mxu0 0
    %4230 = vmatpush1.bf16.xpose.msra.mxu0 0
    %4231 = vmatprep.subr.bf16.mxu0 0
    %4232 = vmatpush1.bf16.xpose.msra.mxu0 0
    %4233 = vmatprep.subr.bf16.mxu0 0
    %4234 = vmatpush1.bf16.xpose.msra.mxu0 0
    %4235 = vmatprep.subr.bf16.mxu0 0
    %4236 = vmatpush1.bf16.xpose.msra.mxu0 %v4225
    %4237 = vmatprep.subr.bf16.mxu0 0
    %4238 = vmatpush1.bf16.xpose.msra.mxu0 %v4222
    %4239 = vmatprep.subr.bf16.mxu0 0
    %4240 = vmatpush1.bf16.xpose.msra.mxu0 %v4219
    %4241 = vmatprep.subr.bf16.mxu0 0
    %4242 = vmatpush1.bf16.xpose.msra.mxu0 %v4216
    %4243 = vmatprep.subr.bf16.mxu0 0
    %4244 = vmatpush2.bf16.xpose.msra.mxu0 0
    %4245 = vmatprep.subr.bf16.mxu0 0
    %4246 = vmatpush2.bf16.xpose.msra.mxu0 0
    %4247 = vmatprep.subr.bf16.mxu0 0
    %4248 = vmatpush2.bf16.xpose.msra.mxu0 0
    %4249 = vmatprep.subr.bf16.mxu0 0
    %4250 = vmatpush2.bf16.xpose.msra.mxu0 0
    %4251 = vmatprep.subr.bf16.mxu0 0
    %4252 = vmatpush2.bf16.xpose.msra.mxu0 0
    %4253 = vmatprep.subr.bf16.mxu0 0
    %4254 = vmatpush2.bf16.xpose.msra.mxu0 0
    %4255 = vmatprep.subr.bf16.mxu0 0
    %4256 = vmatpush2.bf16.xpose.msra.mxu0 0
    %4257 = vmatprep.subr.bf16.mxu0 0
    %4258 = vmatpush2.bf16.xpose.msra.mxu0 0
    %4259 = vmatprep.mubr.bf16.mxu0 0
    %4260 = vmatmul.mubr.bf16.gmra.mxu0 %v4204
    %v4261 = vpop.f32.mrf.mxu0
    %v4262 = vadd.f32 %v4082, %v4261
    %v4263 = vpop.f32.mrf.mxu0
    %v4264 = vpop.f32.mrf.mxu0
    %v4265 = vadd.f32 %v4083, %v4264
    %v4266 = vpop.f32.mrf.mxu0
    %4267 = vmatprep.mubr.bf16.mxu0 0
    %4268 = vmatmul.mubr.bf16.gmra.mxu0 %v4207
    %v4269 = vpop.f32.mrf.mxu0
    %v4270 = vadd.f32 %v4084, %v4269
    %v4271 = vpop.f32.mrf.mxu0
    %v4272 = vpop.f32.mrf.mxu0
    %v4273 = vadd.f32 %v4085, %v4272
    %v4274 = vpop.f32.mrf.mxu0
    %4275 = vmatprep.mubr.bf16.mxu0 0
    %4276 = vmatmul.mubr.bf16.gmra.mxu0 %v4210
    %v4277 = vpop.f32.mrf.mxu0
    %v4278 = vadd.f32 %v4086, %v4277
    %v4279 = vpop.f32.mrf.mxu0
    %v4280 = vpop.f32.mrf.mxu0
    %v4281 = vadd.f32 %v4087, %v4280
    %v4282 = vpop.f32.mrf.mxu0
    %4283 = vmatprep.mubr.bf16.mxu0 0
    %4284 = vmatmul.mubr.bf16.gmra.mxu0 %v4213
    %v4285 = vpop.f32.mrf.mxu0
    %v4286 = vadd.f32 %v4088, %v4285
    %v4287 = vpop.f32.mrf.mxu0
    %v4288 = vpop.f32.mrf.mxu0
    %v4289 = vadd.f32 %v4089, %v4288
    %v4290 = vpop.f32.mrf.mxu0
    %4291 = vdwg.mxu0
    %v4292 = vsel %vm754, %v4161, -inf
    %4293 = vmax.xlane.f32.xlu0 %v4292
    %v4294 = vpop.xlane.xlu0 %4293
    %v4295 = vsel %vm754, %v4164, -inf
    %4296 = vmax.xlane.f32.xlu0 %v4295
    %v4297 = vpop.xlane.xlu0 %4296
    %v4298 = vsel %vm754, %v4169, -inf
    %4299 = vmax.xlane.f32.xlu0 %v4298
    %v4300 = vpop.xlane.xlu0 %4299
    %v4301 = vsel %vm754, %v4172, -inf
    %4302 = vmax.xlane.f32.xlu0 %v4301
    %v4303 = vpop.xlane.xlu0 %4302
    %v4304 = vsel %vm754, %v4177, -inf
    %4305 = vmax.xlane.f32.xlu0 %v4304
    %v4306 = vpop.xlane.xlu0 %4305
    %v4307 = vsel %vm754, %v4180, -inf
    %4308 = vmax.xlane.f32.xlu0 %v4307
    %v4309 = vpop.xlane.xlu0 %4308
    %v4310 = vsel %vm754, %v4185, -inf
    %4311 = vmax.xlane.f32.xlu0 %v4310
    %v4312 = vpop.xlane.xlu0 %4311
    %v4313 = vsel %vm754, %v4188, -inf
    %4314 = vmax.xlane.f32.xlu0 %v4313
    %v4315 = vpop.xlane.xlu0 %4314
    %v4316 = vsel %vm754, %v4262, -inf
    %4317 = vmax.xlane.f32.xlu0 %v4316
    %v4318 = vpop.xlane.xlu0 %4317
    %v4319 = vsel %vm754, %v4265, -inf
    %4320 = vmax.xlane.f32.xlu0 %v4319
    %v4321 = vpop.xlane.xlu0 %4320
    %v4322 = vsel %vm754, %v4270, -inf
    %4323 = vmax.xlane.f32.xlu0 %v4322
    %v4324 = vpop.xlane.xlu0 %4323
    %v4325 = vsel %vm754, %v4273, -inf
    %4326 = vmax.xlane.f32.xlu0 %v4325
    %v4327 = vpop.xlane.xlu0 %4326
    %v4328 = vsel %vm754, %v4278, -inf
    %4329 = vmax.xlane.f32.xlu0 %v4328
    %v4330 = vpop.xlane.xlu0 %4329
    %v4331 = vsel %vm754, %v4281, -inf
    %4332 = vmax.xlane.f32.xlu0 %v4331
    %v4333 = vpop.xlane.xlu0 %4332
    %v4334 = vsel %vm754, %v4286, -inf
    %4335 = vmax.xlane.f32.xlu0 %v4334
    %v4336 = vpop.xlane.xlu0 %4335
    %v4337 = vsel %vm754, %v4289, -inf
    %4338 = vmax.xlane.f32.xlu0 %v4337
    %v4339 = vpop.xlane.xlu0 %4338
    %v4340 = vsub.f32 %v4161, %v4294
    %v4341 = vsub.f32 %v4164, %v4297
    %v4342 = vsub.f32 %v4169, %v4300
    %v4343 = vsub.f32 %v4172, %v4303
    %v4344 = vsub.f32 %v4177, %v4306
    %v4345 = vsub.f32 %v4180, %v4309
    %v4346 = vsub.f32 %v4185, %v4312
    %v4347 = vsub.f32 %v4188, %v4315
    %v4348 = vsub.f32 %v4262, %v4318
    %v4349 = vsub.f32 %v4265, %v4321
    %v4350 = vsub.f32 %v4270, %v4324
    %v4351 = vsub.f32 %v4273, %v4327
    %v4352 = vsub.f32 %v4278, %v4330
    %v4353 = vsub.f32 %v4281, %v4333
    %v4354 = vsub.f32 %v4286, %v4336
    %v4355 = vsub.f32 %v4289, %v4339
    %v4356 = vmul.f32 %v4340, 1.442695
    %v4357 = vpow.pop %v4356
    %v4358 = vmul.f32 %v4341, 1.442695
    %v4359 = vpow.pop %v4358
    %v4360 = vmul.f32 %v4342, 1.442695
    %v4361 = vpow.pop %v4360
    %v4362 = vmul.f32 %v4343, 1.442695
    %v4363 = vpow.pop %v4362
    %v4364 = vmul.f32 %v4344, 1.442695
    %v4365 = vpow.pop %v4364
    %v4366 = vmul.f32 %v4345, 1.442695
    %v4367 = vpow.pop %v4366
    %v4368 = vmul.f32 %v4346, 1.442695
    %v4369 = vpow.pop %v4368
    %v4370 = vmul.f32 %v4347, 1.442695
    %v4371 = vpow.pop %v4370
    %v4372 = vmul.f32 %v4348, 1.442695
    %v4373 = vpow.pop %v4372
    %v4374 = vmul.f32 %v4349, 1.442695
    %v4375 = vpow.pop %v4374
    %v4376 = vmul.f32 %v4350, 1.442695
    %v4377 = vpow.pop %v4376
    %v4378 = vmul.f32 %v4351, 1.442695
    %v4379 = vpow.pop %v4378
    %v4380 = vmul.f32 %v4352, 1.442695
    %v4381 = vpow.pop %v4380
    %v4382 = vmul.f32 %v4353, 1.442695
    %v4383 = vpow.pop %v4382
    %v4384 = vmul.f32 %v4354, 1.442695
    %v4385 = vpow.pop %v4384
    %v4386 = vmul.f32 %v4355, 1.442695
    %v4387 = vpow.pop %v4386
    %v4388 = vsel %vm754, %v4357, 0.0
    %4389 = vadd.xlane.f32.xlu0 %v4388
    %v4390 = vpop.xlane.xlu0 %4389
    %v4391 = vsel %vm754, %v4359, 0.0
    %4392 = vadd.xlane.f32.xlu0 %v4391
    %v4393 = vpop.xlane.xlu0 %4392
    %v4394 = vsel %vm754, %v4361, 0.0
    %4395 = vadd.xlane.f32.xlu0 %v4394
    %v4396 = vpop.xlane.xlu0 %4395
    %v4397 = vsel %vm754, %v4363, 0.0
    %4398 = vadd.xlane.f32.xlu0 %v4397
    %v4399 = vpop.xlane.xlu0 %4398
    %v4400 = vsel %vm754, %v4365, 0.0
    %4401 = vadd.xlane.f32.xlu0 %v4400
    %v4402 = vpop.xlane.xlu0 %4401
    %v4403 = vsel %vm754, %v4367, 0.0
    %4404 = vadd.xlane.f32.xlu0 %v4403
    %v4405 = vpop.xlane.xlu0 %4404
    %v4406 = vsel %vm754, %v4369, 0.0
    %4407 = vadd.xlane.f32.xlu0 %v4406
    %v4408 = vpop.xlane.xlu0 %4407
    %v4409 = vsel %vm754, %v4371, 0.0
    %4410 = vadd.xlane.f32.xlu0 %v4409
    %v4411 = vpop.xlane.xlu0 %4410
    %v4412 = vsel %vm754, %v4373, 0.0
    %4413 = vadd.xlane.f32.xlu0 %v4412
    %v4414 = vpop.xlane.xlu0 %4413
    %v4415 = vsel %vm754, %v4375, 0.0
    %4416 = vadd.xlane.f32.xlu0 %v4415
    %v4417 = vpop.xlane.xlu0 %4416
    %v4418 = vsel %vm754, %v4377, 0.0
    %4419 = vadd.xlane.f32.xlu0 %v4418
    %v4420 = vpop.xlane.xlu0 %4419
    %v4421 = vsel %vm754, %v4379, 0.0
    %4422 = vadd.xlane.f32.xlu0 %v4421
    %v4423 = vpop.xlane.xlu0 %4422
    %v4424 = vsel %vm754, %v4381, 0.0
    %4425 = vadd.xlane.f32.xlu0 %v4424
    %v4426 = vpop.xlane.xlu0 %4425
    %v4427 = vsel %vm754, %v4383, 0.0
    %4428 = vadd.xlane.f32.xlu0 %v4427
    %v4429 = vpop.xlane.xlu0 %4428
    %v4430 = vsel %vm754, %v4385, 0.0
    %4431 = vadd.xlane.f32.xlu0 %v4430
    %v4432 = vpop.xlane.xlu0 %4431
    %v4433 = vsel %vm754, %v4387, 0.0
    %4434 = vadd.xlane.f32.xlu0 %v4433
    %v4435 = vpop.xlane.xlu0 %4434
    %v4436 = vrcp.pop %v4390
    %v4437 = vrcp.pop %v4393
    %v4438 = vrcp.pop %v4396
    %v4439 = vrcp.pop %v4399
    %v4440 = vrcp.pop %v4402
    %v4441 = vrcp.pop %v4405
    %v4442 = vrcp.pop %v4408
    %v4443 = vrcp.pop %v4411
    %v4444 = vrcp.pop %v4414
    %v4445 = vrcp.pop %v4417
    %v4446 = vrcp.pop %v4420
    %v4447 = vrcp.pop %v4423
    %v4448 = vrcp.pop %v4426
    %v4449 = vrcp.pop %v4429
    %v4450 = vrcp.pop %v4432
    %v4451 = vrcp.pop %v4435
    %v4452 = vmul.f32 %v4357, %v4436
    %v4453 = vmul.f32 %v4359, %v4437
    %v4454 = vmul.f32 %v4361, %v4438
    %v4455 = vmul.f32 %v4363, %v4439
    %v4456 = vmul.f32 %v4365, %v4440
    %v4457 = vmul.f32 %v4367, %v4441
    %v4458 = vmul.f32 %v4369, %v4442
    %v4459 = vmul.f32 %v4371, %v4443
    %v4460 = vmul.f32 %v4373, %v4444
    %v4461 = vmul.f32 %v4375, %v4445
    %v4462 = vmul.f32 %v4377, %v4446
    %v4463 = vmul.f32 %v4379, %v4447
    %v4464 = vmul.f32 %v4381, %v4448
    %v4465 = vmul.f32 %v4383, %v4449
    %v4466 = vmul.f32 %v4385, %v4450
    %v4467 = vmul.f32 %v4387, %v4451
    %v4468 = vpack.c.bf16 %v4453, %v4452
    %v4469 = vpack.c.bf16 %v4455, %v4454
    %v4470 = vpack.c.bf16 %v4457, %v4456
    %v4471 = vpack.c.bf16 %v4459, %v4458
    %v4472 = vpack.c.bf16 %v4461, %v4460
    %v4473 = vpack.c.bf16 %v4463, %v4462
    %v4474 = vpack.c.bf16 %v4465, %v4464
    %v4475 = vpack.c.bf16 %v4467, %v4466
    %4476 = vrot.lane.b32.xlu0 %v4073, 64
    %v4477 = vpop.permute.xlu0 %4476
    %4478 = vrot.lane.b32.xlu0 %v4074, 64
    %v4479 = vpop.permute.xlu0 %4478
    %4480 = vrot.lane.b32.xlu0 %v4075, 64
    %v4481 = vpop.permute.xlu0 %4480
    %4482 = vrot.lane.b32.xlu0 %v4076, 64
    %v4483 = vpop.permute.xlu0 %4482
    %v4489 = vsel %vm754, %v4468, 0
    %v4492 = vsel %vm754, %v4469, 0
    %v4495 = vsel %vm754, %v4470, 0
    %v4498 = vsel %vm754, %v4471, 0
    %4500 = vmatprep.subr.bf16.mxu0 0
    %4501 = vmatpush1.bf16.msra.mxu0 0
    %4502 = vmatprep.subr.bf16.mxu0 0
    %4503 = vmatpush1.bf16.msra.mxu0 0
    %4504 = vmatprep.subr.bf16.mxu0 0
    %4505 = vmatpush1.bf16.msra.mxu0 0
    %4506 = vmatprep.subr.bf16.mxu0 0
    %4507 = vmatpush1.bf16.msra.mxu0 0
    %4508 = vmatprep.subr.bf16.mxu0 0
    %4509 = vmatpush1.bf16.msra.mxu0 %v4483
    %4510 = vmatprep.subr.bf16.mxu0 0
    %4511 = vmatpush1.bf16.msra.mxu0 %v4481
    %4512 = vmatprep.subr.bf16.mxu0 0
    %4513 = vmatpush1.bf16.msra.mxu0 %v4479
    %4514 = vmatprep.subr.bf16.mxu0 0
    %4515 = vmatpush1.bf16.msra.mxu0 %v4477
    %4516 = vmatprep.subr.bf16.mxu0 0
    %4517 = vmatpush2.bf16.msra.mxu0 0
    %4518 = vmatprep.subr.bf16.mxu0 0
    %4519 = vmatpush2.bf16.msra.mxu0 0
    %4520 = vmatprep.subr.bf16.mxu0 0
    %4521 = vmatpush2.bf16.msra.mxu0 0
    %4522 = vmatprep.subr.bf16.mxu0 0
    %4523 = vmatpush2.bf16.msra.mxu0 0
    %4524 = vmatprep.subr.bf16.mxu0 0
    %4525 = vmatpush2.bf16.msra.mxu0 0
    %4526 = vmatprep.subr.bf16.mxu0 0
    %4527 = vmatpush2.bf16.msra.mxu0 0
    %4528 = vmatprep.subr.bf16.mxu0 0
    %4529 = vmatpush2.bf16.msra.mxu0 0
    %4530 = vmatprep.subr.bf16.mxu0 0
    %4531 = vmatpush2.bf16.msra.mxu0 0
    %4532 = vmatprep.mubr.bf16.mxu0 0
    %4533 = vmatmul.mubr.bf16.gmra.mxu0 %v4489
    %v4534 = vpop.f32.mrf.mxu0
    %v4535 = vadd.f32 0.0, %v4534
    %v4536 = vpop.f32.mrf.mxu0
    %v4537 = vpop.f32.mrf.mxu0
    %v4538 = vadd.f32 0.0, %v4537
    %v4539 = vpop.f32.mrf.mxu0
    %4540 = vmatprep.mubr.bf16.mxu0 0
    %4541 = vmatmul.mubr.bf16.gmra.mxu0 %v4492
    %v4542 = vpop.f32.mrf.mxu0
    %v4543 = vadd.f32 0.0, %v4542
    %v4544 = vpop.f32.mrf.mxu0
    %v4545 = vpop.f32.mrf.mxu0
    %v4546 = vadd.f32 0.0, %v4545
    %v4547 = vpop.f32.mrf.mxu0
    %4548 = vmatprep.mubr.bf16.mxu0 0
    %4549 = vmatmul.mubr.bf16.gmra.mxu0 %v4495
    %v4550 = vpop.f32.mrf.mxu0
    %v4551 = vadd.f32 0.0, %v4550
    %v4552 = vpop.f32.mrf.mxu0
    %v4553 = vpop.f32.mrf.mxu0
    %v4554 = vadd.f32 0.0, %v4553
    %v4555 = vpop.f32.mrf.mxu0
    %4556 = vmatprep.mubr.bf16.mxu0 0
    %4557 = vmatmul.mubr.bf16.gmra.mxu0 %v4498
    %v4558 = vpop.f32.mrf.mxu0
    %v4559 = vadd.f32 0.0, %v4558
    %v4560 = vpop.f32.mrf.mxu0
    %v4561 = vpop.f32.mrf.mxu0
    %v4562 = vadd.f32 0.0, %v4561
    %v4563 = vpop.f32.mrf.mxu0
    %4564 = vdwg.mxu0
    %4565 = vrot.lane.b32.xlu0 %v4077, 64
    %v4566 = vpop.permute.xlu0 %4565
    %4567 = vrot.lane.b32.xlu0 %v4078, 64
    %v4568 = vpop.permute.xlu0 %4567
    %4569 = vrot.lane.b32.xlu0 %v4079, 64
    %v4570 = vpop.permute.xlu0 %4569
    %4571 = vrot.lane.b32.xlu0 %v4080, 64
    %v4572 = vpop.permute.xlu0 %4571
    %v4578 = vsel %vm754, %v4472, 0
    %v4581 = vsel %vm754, %v4473, 0
    %v4584 = vsel %vm754, %v4474, 0
    %v4587 = vsel %vm754, %v4475, 0
    %4589 = vmatprep.subr.bf16.mxu0 0
    %4590 = vmatpush1.bf16.msra.mxu0 0
    %4591 = vmatprep.subr.bf16.mxu0 0
    %4592 = vmatpush1.bf16.msra.mxu0 0
    %4593 = vmatprep.subr.bf16.mxu0 0
    %4594 = vmatpush1.bf16.msra.mxu0 0
    %4595 = vmatprep.subr.bf16.mxu0 0
    %4596 = vmatpush1.bf16.msra.mxu0 0
    %4597 = vmatprep.subr.bf16.mxu0 0
    %4598 = vmatpush1.bf16.msra.mxu0 %v4572
    %4599 = vmatprep.subr.bf16.mxu0 0
    %4600 = vmatpush1.bf16.msra.mxu0 %v4570
    %4601 = vmatprep.subr.bf16.mxu0 0
    %4602 = vmatpush1.bf16.msra.mxu0 %v4568
    %4603 = vmatprep.subr.bf16.mxu0 0
    %4604 = vmatpush1.bf16.msra.mxu0 %v4566
    %4605 = vmatprep.subr.bf16.mxu0 0
    %4606 = vmatpush2.bf16.msra.mxu0 0
    %4607 = vmatprep.subr.bf16.mxu0 0
    %4608 = vmatpush2.bf16.msra.mxu0 0
    %4609 = vmatprep.subr.bf16.mxu0 0
    %4610 = vmatpush2.bf16.msra.mxu0 0
    %4611 = vmatprep.subr.bf16.mxu0 0
    %4612 = vmatpush2.bf16.msra.mxu0 0
    %4613 = vmatprep.subr.bf16.mxu0 0
    %4614 = vmatpush2.bf16.msra.mxu0 0
    %4615 = vmatprep.subr.bf16.mxu0 0
    %4616 = vmatpush2.bf16.msra.mxu0 0
    %4617 = vmatprep.subr.bf16.mxu0 0
    %4618 = vmatpush2.bf16.msra.mxu0 0
    %4619 = vmatprep.subr.bf16.mxu0 0
    %4620 = vmatpush2.bf16.msra.mxu0 0
    %4621 = vmatprep.mubr.bf16.mxu0 0
    %4622 = vmatmul.mubr.bf16.gmra.mxu0 %v4578
    %v4623 = vpop.f32.mrf.mxu0
    %v4624 = vadd.f32 0.0, %v4623
    %v4625 = vpop.f32.mrf.mxu0
    %v4626 = vpop.f32.mrf.mxu0
    %v4627 = vadd.f32 0.0, %v4626
    %v4628 = vpop.f32.mrf.mxu0
    %4629 = vmatprep.mubr.bf16.mxu0 0
    %4630 = vmatmul.mubr.bf16.gmra.mxu0 %v4581
    %v4631 = vpop.f32.mrf.mxu0
    %v4632 = vadd.f32 0.0, %v4631
    %v4633 = vpop.f32.mrf.mxu0
    %v4634 = vpop.f32.mrf.mxu0
    %v4635 = vadd.f32 0.0, %v4634
    %v4636 = vpop.f32.mrf.mxu0
    %4637 = vmatprep.mubr.bf16.mxu0 0
    %4638 = vmatmul.mubr.bf16.gmra.mxu0 %v4584
    %v4639 = vpop.f32.mrf.mxu0
    %v4640 = vadd.f32 0.0, %v4639
    %v4641 = vpop.f32.mrf.mxu0
    %v4642 = vpop.f32.mrf.mxu0
    %v4643 = vadd.f32 0.0, %v4642
    %v4644 = vpop.f32.mrf.mxu0
    %4645 = vmatprep.mubr.bf16.mxu0 0
    %4646 = vmatmul.mubr.bf16.gmra.mxu0 %v4587
    %v4647 = vpop.f32.mrf.mxu0
    %v4648 = vadd.f32 0.0, %v4647
    %v4649 = vpop.f32.mrf.mxu0
    %v4650 = vpop.f32.mrf.mxu0
    %v4651 = vadd.f32 0.0, %v4650
    %v4652 = vpop.f32.mrf.mxu0
    %4653 = vdwg.mxu0
    %v4654 = vadd.f32 %v4057, %v4535
    %v4655 = vadd.f32 %v4058, %v4538
    %v4656 = vadd.f32 %v4059, %v4543
    %v4657 = vadd.f32 %v4060, %v4546
    %v4658 = vadd.f32 %v4061, %v4551
    %v4659 = vadd.f32 %v4062, %v4554
    %v4660 = vadd.f32 %v4063, %v4559
    %v4661 = vadd.f32 %v4064, %v4562
    %v4662 = vadd.f32 %v4065, %v4624
    %v4663 = vadd.f32 %v4066, %v4627
    %v4664 = vadd.f32 %v4067, %v4632
    %v4665 = vadd.f32 %v4068, %v4635
    %v4666 = vadd.f32 %v4069, %v4640
    %v4667 = vadd.f32 %v4070, %v4643
    %v4668 = vadd.f32 %v4071, %v4648
    %v4669 = vadd.f32 %v4072, %v4651
    %s4670 = scalar_lea.vmem [#allocation2], 320
    %v4671 = vld [vmem:[%s4670] sm:$0xff]
    %v4672 = vld [vmem:[%s4670 + $0x8] sm:$0xff]
    %v4673 = vld [vmem:[%s4670 + $0x10] sm:$0xff]
    %v4674 = vld [vmem:[%s4670 + $0x18] sm:$0xff]
    %v4675 = vld [vmem:[%s4670 + $0x20] sm:$0xff]
    %v4676 = vld [vmem:[%s4670 + $0x28] sm:$0xff]
    %v4677 = vld [vmem:[%s4670 + $0x30] sm:$0xff]
    %v4678 = vld [vmem:[%s4670 + $0x38] sm:$0xff]
    %4679 = vrot.lane.b32.xlu0 %v4073, 120
    %v4680 = vpop.permute.xlu0 %4679
    %4681 = vrot.lane.b32.xlu0 %v4074, 120
    %v4682 = vpop.permute.xlu0 %4681
    %4683 = vrot.lane.b32.xlu0 %v4075, 120
    %v4684 = vpop.permute.xlu0 %4683
    %4685 = vrot.lane.b32.xlu0 %v4076, 120
    %v4686 = vpop.permute.xlu0 %4685
    %4687 = vrot.lane.b32.xlu0 %v4073, 88
    %v4688 = vpop.permute.xlu0 %4687
    %4689 = vrot.lane.b32.xlu0 %v4074, 88
    %v4690 = vpop.permute.xlu0 %4689
    %4691 = vrot.lane.b32.xlu0 %v4075, 88
    %v4692 = vpop.permute.xlu0 %4691
    %4693 = vrot.lane.b32.xlu0 %v4076, 88
    %v4694 = vpop.permute.xlu0 %4693
    %v4696 = vsel %vm563, %v4680, 0
    %v4699 = vsel %vm563, %v4682, 0
    %v4702 = vsel %vm563, %v4684, 0
    %v4705 = vsel %vm563, %v4686, 0
    %v4708 = vsel %vm563, %v4688, 0
    %v4711 = vsel %vm563, %v4690, 0
    %v4714 = vsel %vm563, %v4692, 0
    %v4717 = vsel %vm563, %v4694, 0
    %4719 = vmatprep.subr.bf16.mxu0 0
    %4720 = vmatpush1.bf16.xpose.msra.mxu0 0
    %4721 = vmatprep.subr.bf16.mxu0 0
    %4722 = vmatpush1.bf16.xpose.msra.mxu0 0
    %4723 = vmatprep.subr.bf16.mxu0 0
    %4724 = vmatpush1.bf16.xpose.msra.mxu0 0
    %4725 = vmatprep.subr.bf16.mxu0 0
    %4726 = vmatpush1.bf16.xpose.msra.mxu0 0
    %4727 = vmatprep.subr.bf16.mxu0 0
    %4728 = vmatpush1.bf16.xpose.msra.mxu0 %v4717
    %4729 = vmatprep.subr.bf16.mxu0 0
    %4730 = vmatpush1.bf16.xpose.msra.mxu0 %v4714
    %4731 = vmatprep.subr.bf16.mxu0 0
    %4732 = vmatpush1.bf16.xpose.msra.mxu0 %v4711
    %4733 = vmatprep.subr.bf16.mxu0 0
    %4734 = vmatpush1.bf16.xpose.msra.mxu0 %v4708
    %4735 = vmatprep.subr.bf16.mxu0 0
    %4736 = vmatpush2.bf16.xpose.msra.mxu0 0
    %4737 = vmatprep.subr.bf16.mxu0 0
    %4738 = vmatpush2.bf16.xpose.msra.mxu0 0
    %4739 = vmatprep.subr.bf16.mxu0 0
    %4740 = vmatpush2.bf16.xpose.msra.mxu0 0
    %4741 = vmatprep.subr.bf16.mxu0 0
    %4742 = vmatpush2.bf16.xpose.msra.mxu0 0
    %4743 = vmatprep.subr.bf16.mxu0 0
    %4744 = vmatpush2.bf16.xpose.msra.mxu0 0
    %4745 = vmatprep.subr.bf16.mxu0 0
    %4746 = vmatpush2.bf16.xpose.msra.mxu0 0
    %4747 = vmatprep.subr.bf16.mxu0 0
    %4748 = vmatpush2.bf16.xpose.msra.mxu0 0
    %4749 = vmatprep.subr.bf16.mxu0 0
    %4750 = vmatpush2.bf16.xpose.msra.mxu0 0
    %4751 = vmatprep.mubr.bf16.mxu0 0
    %4752 = vmatmul.mubr.bf16.gmra.mxu0 %v4696
    %v4753 = vpop.f32.mrf.mxu0
    %v4754 = vadd.f32 %v4671, %v4753
    %v4755 = vpop.f32.mrf.mxu0
    %v4756 = vpop.f32.mrf.mxu0
    %v4757 = vadd.f32 %v4672, %v4756
    %v4758 = vpop.f32.mrf.mxu0
    %4759 = vmatprep.mubr.bf16.mxu0 0
    %4760 = vmatmul.mubr.bf16.gmra.mxu0 %v4699
    %v4761 = vpop.f32.mrf.mxu0
    %v4762 = vadd.f32 %v4673, %v4761
    %v4763 = vpop.f32.mrf.mxu0
    %v4764 = vpop.f32.mrf.mxu0
    %v4765 = vadd.f32 %v4674, %v4764
    %v4766 = vpop.f32.mrf.mxu0
    %4767 = vmatprep.mubr.bf16.mxu0 0
    %4768 = vmatmul.mubr.bf16.gmra.mxu0 %v4702
    %v4769 = vpop.f32.mrf.mxu0
    %v4770 = vadd.f32 %v4675, %v4769
    %v4771 = vpop.f32.mrf.mxu0
    %v4772 = vpop.f32.mrf.mxu0
    %v4773 = vadd.f32 %v4676, %v4772
    %v4774 = vpop.f32.mrf.mxu0
    %4775 = vmatprep.mubr.bf16.mxu0 0
    %4776 = vmatmul.mubr.bf16.gmra.mxu0 %v4705
    %v4777 = vpop.f32.mrf.mxu0
    %v4778 = vadd.f32 %v4677, %v4777
    %v4779 = vpop.f32.mrf.mxu0
    %v4780 = vpop.f32.mrf.mxu0
    %v4781 = vadd.f32 %v4678, %v4780
    %v4782 = vpop.f32.mrf.mxu0
    %4783 = vdwg.mxu0
    %4784 = vrot.lane.b32.xlu0 %v4077, 120
    %v4785 = vpop.permute.xlu0 %4784
    %4786 = vrot.lane.b32.xlu0 %v4078, 120
    %v4787 = vpop.permute.xlu0 %4786
    %4788 = vrot.lane.b32.xlu0 %v4079, 120
    %v4789 = vpop.permute.xlu0 %4788
    %4790 = vrot.lane.b32.xlu0 %v4080, 120
    %v4791 = vpop.permute.xlu0 %4790
    %4792 = vrot.lane.b32.xlu0 %v4077, 88
    %v4793 = vpop.permute.xlu0 %4792
    %4794 = vrot.lane.b32.xlu0 %v4078, 88
    %v4795 = vpop.permute.xlu0 %4794
    %4796 = vrot.lane.b32.xlu0 %v4079, 88
    %v4797 = vpop.permute.xlu0 %4796
    %4798 = vrot.lane.b32.xlu0 %v4080, 88
    %v4799 = vpop.permute.xlu0 %4798
    %v4801 = vsel %vm563, %v4785, 0
    %v4804 = vsel %vm563, %v4787, 0
    %v4807 = vsel %vm563, %v4789, 0
    %v4810 = vsel %vm563, %v4791, 0
    %v4813 = vsel %vm563, %v4793, 0
    %v4816 = vsel %vm563, %v4795, 0
    %v4819 = vsel %vm563, %v4797, 0
    %v4822 = vsel %vm563, %v4799, 0
    %4824 = vmatprep.subr.bf16.mxu0 0
    %4825 = vmatpush1.bf16.xpose.msra.mxu0 0
    %4826 = vmatprep.subr.bf16.mxu0 0
    %4827 = vmatpush1.bf16.xpose.msra.mxu0 0
    %4828 = vmatprep.subr.bf16.mxu0 0
    %4829 = vmatpush1.bf16.xpose.msra.mxu0 0
    %4830 = vmatprep.subr.bf16.mxu0 0
    %4831 = vmatpush1.bf16.xpose.msra.mxu0 0
    %4832 = vmatprep.subr.bf16.mxu0 0
    %4833 = vmatpush1.bf16.xpose.msra.mxu0 %v4822
    %4834 = vmatprep.subr.bf16.mxu0 0
    %4835 = vmatpush1.bf16.xpose.msra.mxu0 %v4819
    %4836 = vmatprep.subr.bf16.mxu0 0
    %4837 = vmatpush1.bf16.xpose.msra.mxu0 %v4816
    %4838 = vmatprep.subr.bf16.mxu0 0
    %4839 = vmatpush1.bf16.xpose.msra.mxu0 %v4813
    %4840 = vmatprep.subr.bf16.mxu0 0
    %4841 = vmatpush2.bf16.xpose.msra.mxu0 0
    %4842 = vmatprep.subr.bf16.mxu0 0
    %4843 = vmatpush2.bf16.xpose.msra.mxu0 0
    %4844 = vmatprep.subr.bf16.mxu0 0
    %4845 = vmatpush2.bf16.xpose.msra.mxu0 0
    %4846 = vmatprep.subr.bf16.mxu0 0
    %4847 = vmatpush2.bf16.xpose.msra.mxu0 0
    %4848 = vmatprep.subr.bf16.mxu0 0
    %4849 = vmatpush2.bf16.xpose.msra.mxu0 0
    %4850 = vmatprep.subr.bf16.mxu0 0
    %4851 = vmatpush2.bf16.xpose.msra.mxu0 0
    %4852 = vmatprep.subr.bf16.mxu0 0
    %4853 = vmatpush2.bf16.xpose.msra.mxu0 0
    %4854 = vmatprep.subr.bf16.mxu0 0
    %4855 = vmatpush2.bf16.xpose.msra.mxu0 0
    %4856 = vmatprep.mubr.bf16.mxu0 0
    %4857 = vmatmul.mubr.bf16.gmra.mxu0 %v4801
    %v4858 = vpop.f32.mrf.mxu0
    %v4859 = vadd.f32 %v4671, %v4858
    %v4860 = vpop.f32.mrf.mxu0
    %v4861 = vpop.f32.mrf.mxu0
    %v4862 = vadd.f32 %v4672, %v4861
    %v4863 = vpop.f32.mrf.mxu0
    %4864 = vmatprep.mubr.bf16.mxu0 0
    %4865 = vmatmul.mubr.bf16.gmra.mxu0 %v4804
    %v4866 = vpop.f32.mrf.mxu0
    %v4867 = vadd.f32 %v4673, %v4866
    %v4868 = vpop.f32.mrf.mxu0
    %v4869 = vpop.f32.mrf.mxu0
    %v4870 = vadd.f32 %v4674, %v4869
    %v4871 = vpop.f32.mrf.mxu0
    %4872 = vmatprep.mubr.bf16.mxu0 0
    %4873 = vmatmul.mubr.bf16.gmra.mxu0 %v4807
    %v4874 = vpop.f32.mrf.mxu0
    %v4875 = vadd.f32 %v4675, %v4874
    %v4876 = vpop.f32.mrf.mxu0
    %v4877 = vpop.f32.mrf.mxu0
    %v4878 = vadd.f32 %v4676, %v4877
    %v4879 = vpop.f32.mrf.mxu0
    %4880 = vmatprep.mubr.bf16.mxu0 0
    %4881 = vmatmul.mubr.bf16.gmra.mxu0 %v4810
    %v4882 = vpop.f32.mrf.mxu0
    %v4883 = vadd.f32 %v4677, %v4882
    %v4884 = vpop.f32.mrf.mxu0
    %v4885 = vpop.f32.mrf.mxu0
    %v4886 = vadd.f32 %v4678, %v4885
    %v4887 = vpop.f32.mrf.mxu0
    %4888 = vdwg.mxu0
    %v4889 = vsel %vm754, %v4754, -inf
    %4890 = vmax.xlane.f32.xlu0 %v4889
    %v4891 = vpop.xlane.xlu0 %4890
    %v4892 = vsel %vm754, %v4757, -inf
    %4893 = vmax.xlane.f32.xlu0 %v4892
    %v4894 = vpop.xlane.xlu0 %4893
    %v4895 = vsel %vm754, %v4762, -inf
    %4896 = vmax.xlane.f32.xlu0 %v4895
    %v4897 = vpop.xlane.xlu0 %4896
    %v4898 = vsel %vm754, %v4765, -inf
    %4899 = vmax.xlane.f32.xlu0 %v4898
    %v4900 = vpop.xlane.xlu0 %4899
    %v4901 = vsel %vm754, %v4770, -inf
    %4902 = vmax.xlane.f32.xlu0 %v4901
    %v4903 = vpop.xlane.xlu0 %4902
    %v4904 = vsel %vm754, %v4773, -inf
    %4905 = vmax.xlane.f32.xlu0 %v4904
    %v4906 = vpop.xlane.xlu0 %4905
    %v4907 = vsel %vm754, %v4778, -inf
    %4908 = vmax.xlane.f32.xlu0 %v4907
    %v4909 = vpop.xlane.xlu0 %4908
    %v4910 = vsel %vm754, %v4781, -inf
    %4911 = vmax.xlane.f32.xlu0 %v4910
    %v4912 = vpop.xlane.xlu0 %4911
    %v4913 = vsel %vm754, %v4859, -inf
    %4914 = vmax.xlane.f32.xlu0 %v4913
    %v4915 = vpop.xlane.xlu0 %4914
    %v4916 = vsel %vm754, %v4862, -inf
    %4917 = vmax.xlane.f32.xlu0 %v4916
    %v4918 = vpop.xlane.xlu0 %4917
    %v4919 = vsel %vm754, %v4867, -inf
    %4920 = vmax.xlane.f32.xlu0 %v4919
    %v4921 = vpop.xlane.xlu0 %4920
    %v4922 = vsel %vm754, %v4870, -inf
    %4923 = vmax.xlane.f32.xlu0 %v4922
    %v4924 = vpop.xlane.xlu0 %4923
    %v4925 = vsel %vm754, %v4875, -inf
    %4926 = vmax.xlane.f32.xlu0 %v4925
    %v4927 = vpop.xlane.xlu0 %4926
    %v4928 = vsel %vm754, %v4878, -inf
    %4929 = vmax.xlane.f32.xlu0 %v4928
    %v4930 = vpop.xlane.xlu0 %4929
    %v4931 = vsel %vm754, %v4883, -inf
    %4932 = vmax.xlane.f32.xlu0 %v4931
    %v4933 = vpop.xlane.xlu0 %4932
    %v4934 = vsel %vm754, %v4886, -inf
    %4935 = vmax.xlane.f32.xlu0 %v4934
    %v4936 = vpop.xlane.xlu0 %4935
    %v4937 = vsub.f32 %v4754, %v4891
    %v4938 = vsub.f32 %v4757, %v4894
    %v4939 = vsub.f32 %v4762, %v4897
    %v4940 = vsub.f32 %v4765, %v4900
    %v4941 = vsub.f32 %v4770, %v4903
    %v4942 = vsub.f32 %v4773, %v4906
    %v4943 = vsub.f32 %v4778, %v4909
    %v4944 = vsub.f32 %v4781, %v4912
    %v4945 = vsub.f32 %v4859, %v4915
    %v4946 = vsub.f32 %v4862, %v4918
    %v4947 = vsub.f32 %v4867, %v4921
    %v4948 = vsub.f32 %v4870, %v4924
    %v4949 = vsub.f32 %v4875, %v4927
    %v4950 = vsub.f32 %v4878, %v4930
    %v4951 = vsub.f32 %v4883, %v4933
    %v4952 = vsub.f32 %v4886, %v4936
    %v4953 = vmul.f32 %v4937, 1.442695
    %v4954 = vpow.pop %v4953
    %v4955 = vmul.f32 %v4938, 1.442695
    %v4956 = vpow.pop %v4955
    %v4957 = vmul.f32 %v4939, 1.442695
    %v4958 = vpow.pop %v4957
    %v4959 = vmul.f32 %v4940, 1.442695
    %v4960 = vpow.pop %v4959
    %v4961 = vmul.f32 %v4941, 1.442695
    %v4962 = vpow.pop %v4961
    %v4963 = vmul.f32 %v4942, 1.442695
    %v4964 = vpow.pop %v4963
    %v4965 = vmul.f32 %v4943, 1.442695
    %v4966 = vpow.pop %v4965
    %v4967 = vmul.f32 %v4944, 1.442695
    %v4968 = vpow.pop %v4967
    %v4969 = vmul.f32 %v4945, 1.442695
    %v4970 = vpow.pop %v4969
    %v4971 = vmul.f32 %v4946, 1.442695
    %v4972 = vpow.pop %v4971
    %v4973 = vmul.f32 %v4947, 1.442695
    %v4974 = vpow.pop %v4973
    %v4975 = vmul.f32 %v4948, 1.442695
    %v4976 = vpow.pop %v4975
    %v4977 = vmul.f32 %v4949, 1.442695
    %v4978 = vpow.pop %v4977
    %v4979 = vmul.f32 %v4950, 1.442695
    %v4980 = vpow.pop %v4979
    %v4981 = vmul.f32 %v4951, 1.442695
    %v4982 = vpow.pop %v4981
    %v4983 = vmul.f32 %v4952, 1.442695
    %v4984 = vpow.pop %v4983
    %v4985 = vsel %vm754, %v4954, 0.0
    %4986 = vadd.xlane.f32.xlu0 %v4985
    %v4987 = vpop.xlane.xlu0 %4986
    %v4988 = vsel %vm754, %v4956, 0.0
    %4989 = vadd.xlane.f32.xlu0 %v4988
    %v4990 = vpop.xlane.xlu0 %4989
    %v4991 = vsel %vm754, %v4958, 0.0
    %4992 = vadd.xlane.f32.xlu0 %v4991
    %v4993 = vpop.xlane.xlu0 %4992
    %v4994 = vsel %vm754, %v4960, 0.0
    %4995 = vadd.xlane.f32.xlu0 %v4994
    %v4996 = vpop.xlane.xlu0 %4995
    %v4997 = vsel %vm754, %v4962, 0.0
    %4998 = vadd.xlane.f32.xlu0 %v4997
    %v4999 = vpop.xlane.xlu0 %4998
    %v5000 = vsel %vm754, %v4964, 0.0
    %5001 = vadd.xlane.f32.xlu0 %v5000
    %v5002 = vpop.xlane.xlu0 %5001
    %v5003 = vsel %vm754, %v4966, 0.0
    %5004 = vadd.xlane.f32.xlu0 %v5003
    %v5005 = vpop.xlane.xlu0 %5004
    %v5006 = vsel %vm754, %v4968, 0.0
    %5007 = vadd.xlane.f32.xlu0 %v5006
    %v5008 = vpop.xlane.xlu0 %5007
    %v5009 = vsel %vm754, %v4970, 0.0
    %5010 = vadd.xlane.f32.xlu0 %v5009
    %v5011 = vpop.xlane.xlu0 %5010
    %v5012 = vsel %vm754, %v4972, 0.0
    %5013 = vadd.xlane.f32.xlu0 %v5012
    %v5014 = vpop.xlane.xlu0 %5013
    %v5015 = vsel %vm754, %v4974, 0.0
    %5016 = vadd.xlane.f32.xlu0 %v5015
    %v5017 = vpop.xlane.xlu0 %5016
    %v5018 = vsel %vm754, %v4976, 0.0
    %5019 = vadd.xlane.f32.xlu0 %v5018
    %v5020 = vpop.xlane.xlu0 %5019
    %v5021 = vsel %vm754, %v4978, 0.0
    %5022 = vadd.xlane.f32.xlu0 %v5021
    %v5023 = vpop.xlane.xlu0 %5022
    %v5024 = vsel %vm754, %v4980, 0.0
    %5025 = vadd.xlane.f32.xlu0 %v5024
    %v5026 = vpop.xlane.xlu0 %5025
    %v5027 = vsel %vm754, %v4982, 0.0
    %5028 = vadd.xlane.f32.xlu0 %v5027
    %v5029 = vpop.xlane.xlu0 %5028
    %v5030 = vsel %vm754, %v4984, 0.0
    %5031 = vadd.xlane.f32.xlu0 %v5030
    %v5032 = vpop.xlane.xlu0 %5031
    %v5033 = vrcp.pop %v4987
    %v5034 = vrcp.pop %v4990
    %v5035 = vrcp.pop %v4993
    %v5036 = vrcp.pop %v4996
    %v5037 = vrcp.pop %v4999
    %v5038 = vrcp.pop %v5002
    %v5039 = vrcp.pop %v5005
    %v5040 = vrcp.pop %v5008
    %v5041 = vrcp.pop %v5011
    %v5042 = vrcp.pop %v5014
    %v5043 = vrcp.pop %v5017
    %v5044 = vrcp.pop %v5020
    %v5045 = vrcp.pop %v5023
    %v5046 = vrcp.pop %v5026
    %v5047 = vrcp.pop %v5029
    %v5048 = vrcp.pop %v5032
    %v5049 = vmul.f32 %v4954, %v5033
    %v5050 = vmul.f32 %v4956, %v5034
    %v5051 = vmul.f32 %v4958, %v5035
    %v5052 = vmul.f32 %v4960, %v5036
    %v5053 = vmul.f32 %v4962, %v5037
    %v5054 = vmul.f32 %v4964, %v5038
    %v5055 = vmul.f32 %v4966, %v5039
    %v5056 = vmul.f32 %v4968, %v5040
    %v5057 = vmul.f32 %v4970, %v5041
    %v5058 = vmul.f32 %v4972, %v5042
    %v5059 = vmul.f32 %v4974, %v5043
    %v5060 = vmul.f32 %v4976, %v5044
    %v5061 = vmul.f32 %v4978, %v5045
    %v5062 = vmul.f32 %v4980, %v5046
    %v5063 = vmul.f32 %v4982, %v5047
    %v5064 = vmul.f32 %v4984, %v5048
    %v5065 = vpack.c.bf16 %v5050, %v5049
    %v5066 = vpack.c.bf16 %v5052, %v5051
    %v5067 = vpack.c.bf16 %v5054, %v5053
    %v5068 = vpack.c.bf16 %v5056, %v5055
    %v5069 = vpack.c.bf16 %v5058, %v5057
    %v5070 = vpack.c.bf16 %v5060, %v5059
    %v5071 = vpack.c.bf16 %v5062, %v5061
    %v5072 = vpack.c.bf16 %v5064, %v5063
    %5073 = vrot.lane.b32.xlu0 %v4073, 32
    %v5074 = vpop.permute.xlu0 %5073
    %5075 = vrot.lane.b32.xlu0 %v4074, 32
    %v5076 = vpop.permute.xlu0 %5075
    %5077 = vrot.lane.b32.xlu0 %v4075, 32
    %v5078 = vpop.permute.xlu0 %5077
    %5079 = vrot.lane.b32.xlu0 %v4076, 32
    %v5080 = vpop.permute.xlu0 %5079
    %v5086 = vsel %vm754, %v5065, 0
    %v5089 = vsel %vm754, %v5066, 0
    %v5092 = vsel %vm754, %v5067, 0
    %v5095 = vsel %vm754, %v5068, 0
    %5097 = vmatprep.subr.bf16.mxu0 0
    %5098 = vmatpush1.bf16.msra.mxu0 0
    %5099 = vmatprep.subr.bf16.mxu0 0
    %5100 = vmatpush1.bf16.msra.mxu0 0
    %5101 = vmatprep.subr.bf16.mxu0 0
    %5102 = vmatpush1.bf16.msra.mxu0 0
    %5103 = vmatprep.subr.bf16.mxu0 0
    %5104 = vmatpush1.bf16.msra.mxu0 0
    %5105 = vmatprep.subr.bf16.mxu0 0
    %5106 = vmatpush1.bf16.msra.mxu0 %v5080
    %5107 = vmatprep.subr.bf16.mxu0 0
    %5108 = vmatpush1.bf16.msra.mxu0 %v5078
    %5109 = vmatprep.subr.bf16.mxu0 0
    %5110 = vmatpush1.bf16.msra.mxu0 %v5076
    %5111 = vmatprep.subr.bf16.mxu0 0
    %5112 = vmatpush1.bf16.msra.mxu0 %v5074
    %5113 = vmatprep.subr.bf16.mxu0 0
    %5114 = vmatpush2.bf16.msra.mxu0 0
    %5115 = vmatprep.subr.bf16.mxu0 0
    %5116 = vmatpush2.bf16.msra.mxu0 0
    %5117 = vmatprep.subr.bf16.mxu0 0
    %5118 = vmatpush2.bf16.msra.mxu0 0
    %5119 = vmatprep.subr.bf16.mxu0 0
    %5120 = vmatpush2.bf16.msra.mxu0 0
    %5121 = vmatprep.subr.bf16.mxu0 0
    %5122 = vmatpush2.bf16.msra.mxu0 0
    %5123 = vmatprep.subr.bf16.mxu0 0
    %5124 = vmatpush2.bf16.msra.mxu0 0
    %5125 = vmatprep.subr.bf16.mxu0 0
    %5126 = vmatpush2.bf16.msra.mxu0 0
    %5127 = vmatprep.subr.bf16.mxu0 0
    %5128 = vmatpush2.bf16.msra.mxu0 0
    %5129 = vmatprep.mubr.bf16.mxu0 0
    %5130 = vmatmul.mubr.bf16.gmra.mxu0 %v5086
    %v5131 = vpop.f32.mrf.mxu0
    %v5132 = vadd.f32 0.0, %v5131
    %v5133 = vpop.f32.mrf.mxu0
    %v5134 = vpop.f32.mrf.mxu0
    %v5135 = vadd.f32 0.0, %v5134
    %v5136 = vpop.f32.mrf.mxu0
    %5137 = vmatprep.mubr.bf16.mxu0 0
    %5138 = vmatmul.mubr.bf16.gmra.mxu0 %v5089
    %v5139 = vpop.f32.mrf.mxu0
    %v5140 = vadd.f32 0.0, %v5139
    %v5141 = vpop.f32.mrf.mxu0
    %v5142 = vpop.f32.mrf.mxu0
    %v5143 = vadd.f32 0.0, %v5142
    %v5144 = vpop.f32.mrf.mxu0
    %5145 = vmatprep.mubr.bf16.mxu0 0
    %5146 = vmatmul.mubr.bf16.gmra.mxu0 %v5092
    %v5147 = vpop.f32.mrf.mxu0
    %v5148 = vadd.f32 0.0, %v5147
    %v5149 = vpop.f32.mrf.mxu0
    %v5150 = vpop.f32.mrf.mxu0
    %v5151 = vadd.f32 0.0, %v5150
    %v5152 = vpop.f32.mrf.mxu0
    %5153 = vmatprep.mubr.bf16.mxu0 0
    %5154 = vmatmul.mubr.bf16.gmra.mxu0 %v5095
    %v5155 = vpop.f32.mrf.mxu0
    %v5156 = vadd.f32 0.0, %v5155
    %v5157 = vpop.f32.mrf.mxu0
    %v5158 = vpop.f32.mrf.mxu0
    %v5159 = vadd.f32 0.0, %v5158
    %v5160 = vpop.f32.mrf.mxu0
    %5161 = vdwg.mxu0
    %5162 = vrot.lane.b32.xlu0 %v4077, 32
    %v5163 = vpop.permute.xlu0 %5162
    %5164 = vrot.lane.b32.xlu0 %v4078, 32
    %v5165 = vpop.permute.xlu0 %5164
    %5166 = vrot.lane.b32.xlu0 %v4079, 32
    %v5167 = vpop.permute.xlu0 %5166
    %5168 = vrot.lane.b32.xlu0 %v4080, 32
    %v5169 = vpop.permute.xlu0 %5168
    %v5175 = vsel %vm754, %v5069, 0
    %v5178 = vsel %vm754, %v5070, 0
    %v5181 = vsel %vm754, %v5071, 0
    %v5184 = vsel %vm754, %v5072, 0
    %5186 = vmatprep.subr.bf16.mxu0 0
    %5187 = vmatpush1.bf16.msra.mxu0 0
    %5188 = vmatprep.subr.bf16.mxu0 0
    %5189 = vmatpush1.bf16.msra.mxu0 0
    %5190 = vmatprep.subr.bf16.mxu0 0
    %5191 = vmatpush1.bf16.msra.mxu0 0
    %5192 = vmatprep.subr.bf16.mxu0 0
    %5193 = vmatpush1.bf16.msra.mxu0 0
    %5194 = vmatprep.subr.bf16.mxu0 0
    %5195 = vmatpush1.bf16.msra.mxu0 %v5169
    %5196 = vmatprep.subr.bf16.mxu0 0
    %5197 = vmatpush1.bf16.msra.mxu0 %v5167
    %5198 = vmatprep.subr.bf16.mxu0 0
    %5199 = vmatpush1.bf16.msra.mxu0 %v5165
    %5200 = vmatprep.subr.bf16.mxu0 0
    %5201 = vmatpush1.bf16.msra.mxu0 %v5163
    %5202 = vmatprep.subr.bf16.mxu0 0
    %5203 = vmatpush2.bf16.msra.mxu0 0
    %5204 = vmatprep.subr.bf16.mxu0 0
    %5205 = vmatpush2.bf16.msra.mxu0 0
    %5206 = vmatprep.subr.bf16.mxu0 0
    %5207 = vmatpush2.bf16.msra.mxu0 0
    %5208 = vmatprep.subr.bf16.mxu0 0
    %5209 = vmatpush2.bf16.msra.mxu0 0
    %5210 = vmatprep.subr.bf16.mxu0 0
    %5211 = vmatpush2.bf16.msra.mxu0 0
    %5212 = vmatprep.subr.bf16.mxu0 0
    %5213 = vmatpush2.bf16.msra.mxu0 0
    %5214 = vmatprep.subr.bf16.mxu0 0
    %5215 = vmatpush2.bf16.msra.mxu0 0
    %5216 = vmatprep.subr.bf16.mxu0 0
    %5217 = vmatpush2.bf16.msra.mxu0 0
    %5218 = vmatprep.mubr.bf16.mxu0 0
    %5219 = vmatmul.mubr.bf16.gmra.mxu0 %v5175
    %v5220 = vpop.f32.mrf.mxu0
    %v5221 = vadd.f32 0.0, %v5220
    %v5222 = vpop.f32.mrf.mxu0
    %v5223 = vpop.f32.mrf.mxu0
    %v5224 = vadd.f32 0.0, %v5223
    %v5225 = vpop.f32.mrf.mxu0
    %5226 = vmatprep.mubr.bf16.mxu0 0
    %5227 = vmatmul.mubr.bf16.gmra.mxu0 %v5178
    %v5228 = vpop.f32.mrf.mxu0
    %v5229 = vadd.f32 0.0, %v5228
    %v5230 = vpop.f32.mrf.mxu0
    %v5231 = vpop.f32.mrf.mxu0
    %v5232 = vadd.f32 0.0, %v5231
    %v5233 = vpop.f32.mrf.mxu0
    %5234 = vmatprep.mubr.bf16.mxu0 0
    %5235 = vmatmul.mubr.bf16.gmra.mxu0 %v5181
    %v5236 = vpop.f32.mrf.mxu0
    %v5237 = vadd.f32 0.0, %v5236
    %v5238 = vpop.f32.mrf.mxu0
    %v5239 = vpop.f32.mrf.mxu0
    %v5240 = vadd.f32 0.0, %v5239
    %v5241 = vpop.f32.mrf.mxu0
    %5242 = vmatprep.mubr.bf16.mxu0 0
    %5243 = vmatmul.mubr.bf16.gmra.mxu0 %v5184
    %v5244 = vpop.f32.mrf.mxu0
    %v5245 = vadd.f32 0.0, %v5244
    %v5246 = vpop.f32.mrf.mxu0
    %v5247 = vpop.f32.mrf.mxu0
    %v5248 = vadd.f32 0.0, %v5247
    %v5249 = vpop.f32.mrf.mxu0
    %5250 = vdwg.mxu0
    %v5251 = vadd.f32 %v4654, %v5132
    %v5252 = vadd.f32 %v4655, %v5135
    %v5253 = vadd.f32 %v4656, %v5140
    %v5254 = vadd.f32 %v4657, %v5143
    %v5255 = vadd.f32 %v4658, %v5148
    %v5256 = vadd.f32 %v4659, %v5151
    %v5257 = vadd.f32 %v4660, %v5156
    %v5258 = vadd.f32 %v4661, %v5159
    %v5259 = vadd.f32 %v4662, %v5221
    %v5260 = vadd.f32 %v4663, %v5224
    %v5261 = vadd.f32 %v4664, %v5229
    %v5262 = vadd.f32 %v4665, %v5232
    %v5263 = vadd.f32 %v4666, %v5237
    %v5264 = vadd.f32 %v4667, %v5240
    %v5265 = vadd.f32 %v4668, %v5245
    %v5266 = vadd.f32 %v4669, %v5248
    %v5267 = vpack.c.bf16 %v3977, %v3973
    %v5268 = vpack.c.bf16 %v3987, %v3983
    %v5269 = vpack.c.bf16 %v3997, %v3993
    %v5270 = vpack.c.bf16 %v4007, %v4003
    %v5271 = vpack.c.bf16 %v4017, %v4013
    %v5272 = vpack.c.bf16 %v4027, %v4023
    %v5273 = vpack.c.bf16 %v4037, %v4033
    %v5274 = vpack.c.bf16 %v4047, %v4043
    %s5275 = scalar_lea.vmem [#allocation2], 384
    %v5276 = vld [vmem:[%s5275] sm:$0xff]
    %v5277 = vld [vmem:[%s5275 + $0x8] sm:$0xff]
    %v5278 = vld [vmem:[%s5275 + $0x10] sm:$0xff]
    %v5279 = vld [vmem:[%s5275 + $0x18] sm:$0xff]
    %v5280 = vld [vmem:[%s5275 + $0x20] sm:$0xff]
    %v5281 = vld [vmem:[%s5275 + $0x28] sm:$0xff]
    %v5282 = vld [vmem:[%s5275 + $0x30] sm:$0xff]
    %v5283 = vld [vmem:[%s5275 + $0x38] sm:$0xff]
    %5284 = vrot.lane.b32.xlu0 %v4073, 112
    %v5285 = vpop.permute.xlu0 %5284
    %5286 = vrot.lane.b32.xlu0 %v4074, 112
    %v5287 = vpop.permute.xlu0 %5286
    %5288 = vrot.lane.b32.xlu0 %v4075, 112
    %v5289 = vpop.permute.xlu0 %5288
    %5290 = vrot.lane.b32.xlu0 %v4076, 112
    %v5291 = vpop.permute.xlu0 %5290
    %5292 = vrot.lane.b32.xlu0 %v4073, 80
    %v5293 = vpop.permute.xlu0 %5292
    %5294 = vrot.lane.b32.xlu0 %v4074, 80
    %v5295 = vpop.permute.xlu0 %5294
    %5296 = vrot.lane.b32.xlu0 %v4075, 80
    %v5297 = vpop.permute.xlu0 %5296
    %5298 = vrot.lane.b32.xlu0 %v4076, 80
    %v5299 = vpop.permute.xlu0 %5298
    %v5301 = vsel %vm563, %v5285, 0
    %v5304 = vsel %vm563, %v5287, 0
    %v5307 = vsel %vm563, %v5289, 0
    %v5310 = vsel %vm563, %v5291, 0
    %v5313 = vsel %vm563, %v5293, 0
    %v5316 = vsel %vm563, %v5295, 0
    %v5319 = vsel %vm563, %v5297, 0
    %v5322 = vsel %vm563, %v5299, 0
    %5324 = vmatprep.subr.bf16.mxu0 0
    %5325 = vmatpush1.bf16.xpose.msra.mxu0 0
    %5326 = vmatprep.subr.bf16.mxu0 0
    %5327 = vmatpush1.bf16.xpose.msra.mxu0 0
    %5328 = vmatprep.subr.bf16.mxu0 0
    %5329 = vmatpush1.bf16.xpose.msra.mxu0 0
    %5330 = vmatprep.subr.bf16.mxu0 0
    %5331 = vmatpush1.bf16.xpose.msra.mxu0 0
    %5332 = vmatprep.subr.bf16.mxu0 0
    %5333 = vmatpush1.bf16.xpose.msra.mxu0 %v5322
    %5334 = vmatprep.subr.bf16.mxu0 0
    %5335 = vmatpush1.bf16.xpose.msra.mxu0 %v5319
    %5336 = vmatprep.subr.bf16.mxu0 0
    %5337 = vmatpush1.bf16.xpose.msra.mxu0 %v5316
    %5338 = vmatprep.subr.bf16.mxu0 0
    %5339 = vmatpush1.bf16.xpose.msra.mxu0 %v5313
    %5340 = vmatprep.subr.bf16.mxu0 0
    %5341 = vmatpush2.bf16.xpose.msra.mxu0 0
    %5342 = vmatprep.subr.bf16.mxu0 0
    %5343 = vmatpush2.bf16.xpose.msra.mxu0 0
    %5344 = vmatprep.subr.bf16.mxu0 0
    %5345 = vmatpush2.bf16.xpose.msra.mxu0 0
    %5346 = vmatprep.subr.bf16.mxu0 0
    %5347 = vmatpush2.bf16.xpose.msra.mxu0 0
    %5348 = vmatprep.subr.bf16.mxu0 0
    %5349 = vmatpush2.bf16.xpose.msra.mxu0 0
    %5350 = vmatprep.subr.bf16.mxu0 0
    %5351 = vmatpush2.bf16.xpose.msra.mxu0 0
    %5352 = vmatprep.subr.bf16.mxu0 0
    %5353 = vmatpush2.bf16.xpose.msra.mxu0 0
    %5354 = vmatprep.subr.bf16.mxu0 0
    %5355 = vmatpush2.bf16.xpose.msra.mxu0 0
    %5356 = vmatprep.mubr.bf16.mxu0 0
    %5357 = vmatmul.mubr.bf16.gmra.mxu0 %v5301
    %v5358 = vpop.f32.mrf.mxu0
    %v5359 = vadd.f32 %v5276, %v5358
    %v5360 = vpop.f32.mrf.mxu0
    %v5361 = vpop.f32.mrf.mxu0
    %v5362 = vadd.f32 %v5277, %v5361
    %v5363 = vpop.f32.mrf.mxu0
    %5364 = vmatprep.mubr.bf16.mxu0 0
    %5365 = vmatmul.mubr.bf16.gmra.mxu0 %v5304
    %v5366 = vpop.f32.mrf.mxu0
    %v5367 = vadd.f32 %v5278, %v5366
    %v5368 = vpop.f32.mrf.mxu0
    %v5369 = vpop.f32.mrf.mxu0
    %v5370 = vadd.f32 %v5279, %v5369
    %v5371 = vpop.f32.mrf.mxu0
    %5372 = vmatprep.mubr.bf16.mxu0 0
    %5373 = vmatmul.mubr.bf16.gmra.mxu0 %v5307
    %v5374 = vpop.f32.mrf.mxu0
    %v5375 = vadd.f32 %v5280, %v5374
    %v5376 = vpop.f32.mrf.mxu0
    %v5377 = vpop.f32.mrf.mxu0
    %v5378 = vadd.f32 %v5281, %v5377
    %v5379 = vpop.f32.mrf.mxu0
    %5380 = vmatprep.mubr.bf16.mxu0 0
    %5381 = vmatmul.mubr.bf16.gmra.mxu0 %v5310
    %v5382 = vpop.f32.mrf.mxu0
    %v5383 = vadd.f32 %v5282, %v5382
    %v5384 = vpop.f32.mrf.mxu0
    %v5385 = vpop.f32.mrf.mxu0
    %v5386 = vadd.f32 %v5283, %v5385
    %v5387 = vpop.f32.mrf.mxu0
    %5388 = vdwg.mxu0
    %5389 = vrot.lane.b32.xlu0 %v4077, 112
    %v5390 = vpop.permute.xlu0 %5389
    %5391 = vrot.lane.b32.xlu0 %v4078, 112
    %v5392 = vpop.permute.xlu0 %5391
    %5393 = vrot.lane.b32.xlu0 %v4079, 112
    %v5394 = vpop.permute.xlu0 %5393
    %5395 = vrot.lane.b32.xlu0 %v4080, 112
    %v5396 = vpop.permute.xlu0 %5395
    %5397 = vrot.lane.b32.xlu0 %v4077, 80
    %v5398 = vpop.permute.xlu0 %5397
    %5399 = vrot.lane.b32.xlu0 %v4078, 80
    %v5400 = vpop.permute.xlu0 %5399
    %5401 = vrot.lane.b32.xlu0 %v4079, 80
    %v5402 = vpop.permute.xlu0 %5401
    %5403 = vrot.lane.b32.xlu0 %v4080, 80
    %v5404 = vpop.permute.xlu0 %5403
    %v5406 = vsel %vm563, %v5390, 0
    %v5409 = vsel %vm563, %v5392, 0
    %v5412 = vsel %vm563, %v5394, 0
    %v5415 = vsel %vm563, %v5396, 0
    %v5418 = vsel %vm563, %v5398, 0
    %v5421 = vsel %vm563, %v5400, 0
    %v5424 = vsel %vm563, %v5402, 0
    %v5427 = vsel %vm563, %v5404, 0
    %5429 = vmatprep.subr.bf16.mxu0 0
    %5430 = vmatpush1.bf16.xpose.msra.mxu0 0
    %5431 = vmatprep.subr.bf16.mxu0 0
    %5432 = vmatpush1.bf16.xpose.msra.mxu0 0
    %5433 = vmatprep.subr.bf16.mxu0 0
    %5434 = vmatpush1.bf16.xpose.msra.mxu0 0
    %5435 = vmatprep.subr.bf16.mxu0 0
    %5436 = vmatpush1.bf16.xpose.msra.mxu0 0
    %5437 = vmatprep.subr.bf16.mxu0 0
    %5438 = vmatpush1.bf16.xpose.msra.mxu0 %v5427
    %5439 = vmatprep.subr.bf16.mxu0 0
    %5440 = vmatpush1.bf16.xpose.msra.mxu0 %v5424
    %5441 = vmatprep.subr.bf16.mxu0 0
    %5442 = vmatpush1.bf16.xpose.msra.mxu0 %v5421
    %5443 = vmatprep.subr.bf16.mxu0 0
    %5444 = vmatpush1.bf16.xpose.msra.mxu0 %v5418
    %5445 = vmatprep.subr.bf16.mxu0 0
    %5446 = vmatpush2.bf16.xpose.msra.mxu0 0
    %5447 = vmatprep.subr.bf16.mxu0 0
    %5448 = vmatpush2.bf16.xpose.msra.mxu0 0
    %5449 = vmatprep.subr.bf16.mxu0 0
    %5450 = vmatpush2.bf16.xpose.msra.mxu0 0
    %5451 = vmatprep.subr.bf16.mxu0 0
    %5452 = vmatpush2.bf16.xpose.msra.mxu0 0
    %5453 = vmatprep.subr.bf16.mxu0 0
    %5454 = vmatpush2.bf16.xpose.msra.mxu0 0
    %5455 = vmatprep.subr.bf16.mxu0 0
    %5456 = vmatpush2.bf16.xpose.msra.mxu0 0
    %5457 = vmatprep.subr.bf16.mxu0 0
    %5458 = vmatpush2.bf16.xpose.msra.mxu0 0
    %5459 = vmatprep.subr.bf16.mxu0 0
    %5460 = vmatpush2.bf16.xpose.msra.mxu0 0
    %5461 = vmatprep.mubr.bf16.mxu0 0
    %5462 = vmatmul.mubr.bf16.gmra.mxu0 %v5406
    %v5463 = vpop.f32.mrf.mxu0
    %v5464 = vadd.f32 %v5276, %v5463
    %v5465 = vpop.f32.mrf.mxu0
    %v5466 = vpop.f32.mrf.mxu0
    %v5467 = vadd.f32 %v5277, %v5466
    %v5468 = vpop.f32.mrf.mxu0
    %5469 = vmatprep.mubr.bf16.mxu0 0
    %5470 = vmatmul.mubr.bf16.gmra.mxu0 %v5409
    %v5471 = vpop.f32.mrf.mxu0
    %v5472 = vadd.f32 %v5278, %v5471
    %v5473 = vpop.f32.mrf.mxu0
    %v5474 = vpop.f32.mrf.mxu0
    %v5475 = vadd.f32 %v5279, %v5474
    %v5476 = vpop.f32.mrf.mxu0
    %5477 = vmatprep.mubr.bf16.mxu0 0
    %5478 = vmatmul.mubr.bf16.gmra.mxu0 %v5412
    %v5479 = vpop.f32.mrf.mxu0
    %v5480 = vadd.f32 %v5280, %v5479
    %v5481 = vpop.f32.mrf.mxu0
    %v5482 = vpop.f32.mrf.mxu0
    %v5483 = vadd.f32 %v5281, %v5482
    %v5484 = vpop.f32.mrf.mxu0
    %5485 = vmatprep.mubr.bf16.mxu0 0
    %5486 = vmatmul.mubr.bf16.gmra.mxu0 %v5415
    %v5487 = vpop.f32.mrf.mxu0
    %v5488 = vadd.f32 %v5282, %v5487
    %v5489 = vpop.f32.mrf.mxu0
    %v5490 = vpop.f32.mrf.mxu0
    %v5491 = vadd.f32 %v5283, %v5490
    %v5492 = vpop.f32.mrf.mxu0
    %5493 = vdwg.mxu0
    %v5494 = vsel %vm754, %v5359, -inf
    %5495 = vmax.xlane.f32.xlu0 %v5494
    %v5496 = vpop.xlane.xlu0 %5495
    %v5497 = vsel %vm754, %v5362, -inf
    %5498 = vmax.xlane.f32.xlu0 %v5497
    %v5499 = vpop.xlane.xlu0 %5498
    %v5500 = vsel %vm754, %v5367, -inf
    %5501 = vmax.xlane.f32.xlu0 %v5500
    %v5502 = vpop.xlane.xlu0 %5501
    %v5503 = vsel %vm754, %v5370, -inf
    %5504 = vmax.xlane.f32.xlu0 %v5503
    %v5505 = vpop.xlane.xlu0 %5504
    %v5506 = vsel %vm754, %v5375, -inf
    %5507 = vmax.xlane.f32.xlu0 %v5506
    %v5508 = vpop.xlane.xlu0 %5507
    %v5509 = vsel %vm754, %v5378, -inf
    %5510 = vmax.xlane.f32.xlu0 %v5509
    %v5511 = vpop.xlane.xlu0 %5510
    %v5512 = vsel %vm754, %v5383, -inf
    %5513 = vmax.xlane.f32.xlu0 %v5512
    %v5514 = vpop.xlane.xlu0 %5513
    %v5515 = vsel %vm754, %v5386, -inf
    %5516 = vmax.xlane.f32.xlu0 %v5515
    %v5517 = vpop.xlane.xlu0 %5516
    %v5518 = vsel %vm754, %v5464, -inf
    %5519 = vmax.xlane.f32.xlu0 %v5518
    %v5520 = vpop.xlane.xlu0 %5519
    %v5521 = vsel %vm754, %v5467, -inf
    %5522 = vmax.xlane.f32.xlu0 %v5521
    %v5523 = vpop.xlane.xlu0 %5522
    %v5524 = vsel %vm754, %v5472, -inf
    %5525 = vmax.xlane.f32.xlu0 %v5524
    %v5526 = vpop.xlane.xlu0 %5525
    %v5527 = vsel %vm754, %v5475, -inf
    %5528 = vmax.xlane.f32.xlu0 %v5527
    %v5529 = vpop.xlane.xlu0 %5528
    %v5530 = vsel %vm754, %v5480, -inf
    %5531 = vmax.xlane.f32.xlu0 %v5530
    %v5532 = vpop.xlane.xlu0 %5531
    %v5533 = vsel %vm754, %v5483, -inf
    %5534 = vmax.xlane.f32.xlu0 %v5533
    %v5535 = vpop.xlane.xlu0 %5534
    %v5536 = vsel %vm754, %v5488, -inf
    %5537 = vmax.xlane.f32.xlu0 %v5536
    %v5538 = vpop.xlane.xlu0 %5537
    %v5539 = vsel %vm754, %v5491, -inf
    %5540 = vmax.xlane.f32.xlu0 %v5539
    %v5541 = vpop.xlane.xlu0 %5540
    %v5542 = vsub.f32 %v5359, %v5496
    %v5543 = vsub.f32 %v5362, %v5499
    %v5544 = vsub.f32 %v5367, %v5502
    %v5545 = vsub.f32 %v5370, %v5505
    %v5546 = vsub.f32 %v5375, %v5508
    %v5547 = vsub.f32 %v5378, %v5511
    %v5548 = vsub.f32 %v5383, %v5514
    %v5549 = vsub.f32 %v5386, %v5517
    %v5550 = vsub.f32 %v5464, %v5520
    %v5551 = vsub.f32 %v5467, %v5523
    %v5552 = vsub.f32 %v5472, %v5526
    %v5553 = vsub.f32 %v5475, %v5529
    %v5554 = vsub.f32 %v5480, %v5532
    %v5555 = vsub.f32 %v5483, %v5535
    %v5556 = vsub.f32 %v5488, %v5538
    %v5557 = vsub.f32 %v5491, %v5541
    %v5558 = vmul.f32 %v5542, 1.442695
    %v5559 = vpow.pop %v5558
    %v5560 = vmul.f32 %v5543, 1.442695
    %v5561 = vpow.pop %v5560
    %v5562 = vmul.f32 %v5544, 1.442695
    %v5563 = vpow.pop %v5562
    %v5564 = vmul.f32 %v5545, 1.442695
    %v5565 = vpow.pop %v5564
    %v5566 = vmul.f32 %v5546, 1.442695
    %v5567 = vpow.pop %v5566
    %v5568 = vmul.f32 %v5547, 1.442695
    %v5569 = vpow.pop %v5568
    %v5570 = vmul.f32 %v5548, 1.442695
    %v5571 = vpow.pop %v5570
    %v5572 = vmul.f32 %v5549, 1.442695
    %v5573 = vpow.pop %v5572
    %v5574 = vmul.f32 %v5550, 1.442695
    %v5575 = vpow.pop %v5574
    %v5576 = vmul.f32 %v5551, 1.442695
    %v5577 = vpow.pop %v5576
    %v5578 = vmul.f32 %v5552, 1.442695
    %v5579 = vpow.pop %v5578
    %v5580 = vmul.f32 %v5553, 1.442695
    %v5581 = vpow.pop %v5580
    %v5582 = vmul.f32 %v5554, 1.442695
    %v5583 = vpow.pop %v5582
    %v5584 = vmul.f32 %v5555, 1.442695
    %v5585 = vpow.pop %v5584
    %v5586 = vmul.f32 %v5556, 1.442695
    %v5587 = vpow.pop %v5586
    %v5588 = vmul.f32 %v5557, 1.442695
    %v5589 = vpow.pop %v5588
    %v5590 = vsel %vm754, %v5559, 0.0
    %5591 = vadd.xlane.f32.xlu0 %v5590
    %v5592 = vpop.xlane.xlu0 %5591
    %v5593 = vsel %vm754, %v5561, 0.0
    %5594 = vadd.xlane.f32.xlu0 %v5593
    %v5595 = vpop.xlane.xlu0 %5594
    %v5596 = vsel %vm754, %v5563, 0.0
    %5597 = vadd.xlane.f32.xlu0 %v5596
    %v5598 = vpop.xlane.xlu0 %5597
    %v5599 = vsel %vm754, %v5565, 0.0
    %5600 = vadd.xlane.f32.xlu0 %v5599
    %v5601 = vpop.xlane.xlu0 %5600
    %v5602 = vsel %vm754, %v5567, 0.0
    %5603 = vadd.xlane.f32.xlu0 %v5602
    %v5604 = vpop.xlane.xlu0 %5603
    %v5605 = vsel %vm754, %v5569, 0.0
    %5606 = vadd.xlane.f32.xlu0 %v5605
    %v5607 = vpop.xlane.xlu0 %5606
    %v5608 = vsel %vm754, %v5571, 0.0
    %5609 = vadd.xlane.f32.xlu0 %v5608
    %v5610 = vpop.xlane.xlu0 %5609
    %v5611 = vsel %vm754, %v5573, 0.0
    %5612 = vadd.xlane.f32.xlu0 %v5611
    %v5613 = vpop.xlane.xlu0 %5612
    %v5614 = vsel %vm754, %v5575, 0.0
    %5615 = vadd.xlane.f32.xlu0 %v5614
    %v5616 = vpop.xlane.xlu0 %5615
    %v5617 = vsel %vm754, %v5577, 0.0
    %5618 = vadd.xlane.f32.xlu0 %v5617
    %v5619 = vpop.xlane.xlu0 %5618
    %v5620 = vsel %vm754, %v5579, 0.0
    %5621 = vadd.xlane.f32.xlu0 %v5620
    %v5622 = vpop.xlane.xlu0 %5621
    %v5623 = vsel %vm754, %v5581, 0.0
    %5624 = vadd.xlane.f32.xlu0 %v5623
    %v5625 = vpop.xlane.xlu0 %5624
    %v5626 = vsel %vm754, %v5583, 0.0
    %5627 = vadd.xlane.f32.xlu0 %v5626
    %v5628 = vpop.xlane.xlu0 %5627
    %v5629 = vsel %vm754, %v5585, 0.0
    %5630 = vadd.xlane.f32.xlu0 %v5629
    %v5631 = vpop.xlane.xlu0 %5630
    %v5632 = vsel %vm754, %v5587, 0.0
    %5633 = vadd.xlane.f32.xlu0 %v5632
    %v5634 = vpop.xlane.xlu0 %5633
    %v5635 = vsel %vm754, %v5589, 0.0
    %5636 = vadd.xlane.f32.xlu0 %v5635
    %v5637 = vpop.xlane.xlu0 %5636
    %v5638 = vrcp.pop %v5592
    %v5639 = vrcp.pop %v5595
    %v5640 = vrcp.pop %v5598
    %v5641 = vrcp.pop %v5601
    %v5642 = vrcp.pop %v5604
    %v5643 = vrcp.pop %v5607
    %v5644 = vrcp.pop %v5610
    %v5645 = vrcp.pop %v5613
    %v5646 = vrcp.pop %v5616
    %v5647 = vrcp.pop %v5619
    %v5648 = vrcp.pop %v5622
    %v5649 = vrcp.pop %v5625
    %v5650 = vrcp.pop %v5628
    %v5651 = vrcp.pop %v5631
    %v5652 = vrcp.pop %v5634
    %v5653 = vrcp.pop %v5637
    %v5654 = vmul.f32 %v5559, %v5638
    %v5655 = vmul.f32 %v5561, %v5639
    %v5656 = vmul.f32 %v5563, %v5640
    %v5657 = vmul.f32 %v5565, %v5641
    %v5658 = vmul.f32 %v5567, %v5642
    %v5659 = vmul.f32 %v5569, %v5643
    %v5660 = vmul.f32 %v5571, %v5644
    %v5661 = vmul.f32 %v5573, %v5645
    %v5662 = vmul.f32 %v5575, %v5646
    %v5663 = vmul.f32 %v5577, %v5647
    %v5664 = vmul.f32 %v5579, %v5648
    %v5665 = vmul.f32 %v5581, %v5649
    %v5666 = vmul.f32 %v5583, %v5650
    %v5667 = vmul.f32 %v5585, %v5651
    %v5668 = vmul.f32 %v5587, %v5652
    %v5669 = vmul.f32 %v5589, %v5653
    %v5670 = vpack.c.bf16 %v5655, %v5654
    %v5671 = vpack.c.bf16 %v5657, %v5656
    %v5672 = vpack.c.bf16 %v5659, %v5658
    %v5673 = vpack.c.bf16 %v5661, %v5660
    %v5674 = vpack.c.bf16 %v5663, %v5662
    %v5675 = vpack.c.bf16 %v5665, %v5664
    %v5676 = vpack.c.bf16 %v5667, %v5666
    %v5677 = vpack.c.bf16 %v5669, %v5668
    %v5679 = vsel %vm754, %v5670, 0
    %v5682 = vsel %vm754, %v5671, 0
    %v5685 = vsel %vm754, %v5672, 0
    %v5688 = vsel %vm754, %v5673, 0
    %5690 = vmatprep.subr.bf16.mxu0 0
    %5691 = vmatpush1.bf16.msra.mxu0 0
    %5692 = vmatprep.subr.bf16.mxu0 0
    %5693 = vmatpush1.bf16.msra.mxu0 0
    %5694 = vmatprep.subr.bf16.mxu0 0
    %5695 = vmatpush1.bf16.msra.mxu0 0
    %5696 = vmatprep.subr.bf16.mxu0 0
    %5697 = vmatpush1.bf16.msra.mxu0 0
    %5698 = vmatprep.subr.bf16.mxu0 0
    %5699 = vmatpush1.bf16.msra.mxu0 %v5270
    %5700 = vmatprep.subr.bf16.mxu0 0
    %5701 = vmatpush1.bf16.msra.mxu0 %v5269
    %5702 = vmatprep.subr.bf16.mxu0 0
    %5703 = vmatpush1.bf16.msra.mxu0 %v5268
    %5704 = vmatprep.subr.bf16.mxu0 0
    %5705 = vmatpush1.bf16.msra.mxu0 %v5267
    %5706 = vmatprep.subr.bf16.mxu0 0
    %5707 = vmatpush2.bf16.msra.mxu0 0
    %5708 = vmatprep.subr.bf16.mxu0 0
    %5709 = vmatpush2.bf16.msra.mxu0 0
    %5710 = vmatprep.subr.bf16.mxu0 0
    %5711 = vmatpush2.bf16.msra.mxu0 0
    %5712 = vmatprep.subr.bf16.mxu0 0
    %5713 = vmatpush2.bf16.msra.mxu0 0
    %5714 = vmatprep.subr.bf16.mxu0 0
    %5715 = vmatpush2.bf16.msra.mxu0 0
    %5716 = vmatprep.subr.bf16.mxu0 0
    %5717 = vmatpush2.bf16.msra.mxu0 0
    %5718 = vmatprep.subr.bf16.mxu0 0
    %5719 = vmatpush2.bf16.msra.mxu0 0
    %5720 = vmatprep.subr.bf16.mxu0 0
    %5721 = vmatpush2.bf16.msra.mxu0 0
    %5722 = vmatprep.mubr.bf16.mxu0 0
    %5723 = vmatmul.mubr.bf16.gmra.mxu0 %v5679
    %v5724 = vpop.f32.mrf.mxu0
    %v5725 = vadd.f32 0.0, %v5724
    %v5726 = vpop.f32.mrf.mxu0
    %v5727 = vpop.f32.mrf.mxu0
    %v5728 = vadd.f32 0.0, %v5727
    %v5729 = vpop.f32.mrf.mxu0
    %5730 = vmatprep.mubr.bf16.mxu0 0
    %5731 = vmatmul.mubr.bf16.gmra.mxu0 %v5682
    %v5732 = vpop.f32.mrf.mxu0
    %v5733 = vadd.f32 0.0, %v5732
    %v5734 = vpop.f32.mrf.mxu0
    %v5735 = vpop.f32.mrf.mxu0
    %v5736 = vadd.f32 0.0, %v5735
    %v5737 = vpop.f32.mrf.mxu0
    %5738 = vmatprep.mubr.bf16.mxu0 0
    %5739 = vmatmul.mubr.bf16.gmra.mxu0 %v5685
    %v5740 = vpop.f32.mrf.mxu0
    %v5741 = vadd.f32 0.0, %v5740
    %v5742 = vpop.f32.mrf.mxu0
    %v5743 = vpop.f32.mrf.mxu0
    %v5744 = vadd.f32 0.0, %v5743
    %v5745 = vpop.f32.mrf.mxu0
    %5746 = vmatprep.mubr.bf16.mxu0 0
    %5747 = vmatmul.mubr.bf16.gmra.mxu0 %v5688
    %v5748 = vpop.f32.mrf.mxu0
    %v5749 = vadd.f32 0.0, %v5748
    %v5750 = vpop.f32.mrf.mxu0
    %v5751 = vpop.f32.mrf.mxu0
    %v5752 = vadd.f32 0.0, %v5751
    %v5753 = vpop.f32.mrf.mxu0
    %5754 = vdwg.mxu0
    %v5756 = vsel %vm754, %v5674, 0
    %v5759 = vsel %vm754, %v5675, 0
    %v5762 = vsel %vm754, %v5676, 0
    %v5765 = vsel %vm754, %v5677, 0
    %5767 = vmatprep.subr.bf16.mxu0 0
    %5768 = vmatpush1.bf16.msra.mxu0 0
    %5769 = vmatprep.subr.bf16.mxu0 0
    %5770 = vmatpush1.bf16.msra.mxu0 0
    %5771 = vmatprep.subr.bf16.mxu0 0
    %5772 = vmatpush1.bf16.msra.mxu0 0
    %5773 = vmatprep.subr.bf16.mxu0 0
    %5774 = vmatpush1.bf16.msra.mxu0 0
    %5775 = vmatprep.subr.bf16.mxu0 0
    %5776 = vmatpush1.bf16.msra.mxu0 %v5274
    %5777 = vmatprep.subr.bf16.mxu0 0
    %5778 = vmatpush1.bf16.msra.mxu0 %v5273
    %5779 = vmatprep.subr.bf16.mxu0 0
    %5780 = vmatpush1.bf16.msra.mxu0 %v5272
    %5781 = vmatprep.subr.bf16.mxu0 0
    %5782 = vmatpush1.bf16.msra.mxu0 %v5271
    %5783 = vmatprep.subr.bf16.mxu0 0
    %5784 = vmatpush2.bf16.msra.mxu0 0
    %5785 = vmatprep.subr.bf16.mxu0 0
    %5786 = vmatpush2.bf16.msra.mxu0 0
    %5787 = vmatprep.subr.bf16.mxu0 0
    %5788 = vmatpush2.bf16.msra.mxu0 0
    %5789 = vmatprep.subr.bf16.mxu0 0
    %5790 = vmatpush2.bf16.msra.mxu0 0
    %5791 = vmatprep.subr.bf16.mxu0 0
    %5792 = vmatpush2.bf16.msra.mxu0 0
    %5793 = vmatprep.subr.bf16.mxu0 0
    %5794 = vmatpush2.bf16.msra.mxu0 0
    %5795 = vmatprep.subr.bf16.mxu0 0
    %5796 = vmatpush2.bf16.msra.mxu0 0
    %5797 = vmatprep.subr.bf16.mxu0 0
    %5798 = vmatpush2.bf16.msra.mxu0 0
    %5799 = vmatprep.mubr.bf16.mxu0 0
    %5800 = vmatmul.mubr.bf16.gmra.mxu0 %v5756
    %v5801 = vpop.f32.mrf.mxu0
    %v5802 = vadd.f32 0.0, %v5801
    %v5803 = vpop.f32.mrf.mxu0
    %v5804 = vpop.f32.mrf.mxu0
    %v5805 = vadd.f32 0.0, %v5804
    %v5806 = vpop.f32.mrf.mxu0
    %5807 = vmatprep.mubr.bf16.mxu0 0
    %5808 = vmatmul.mubr.bf16.gmra.mxu0 %v5759
    %v5809 = vpop.f32.mrf.mxu0
    %v5810 = vadd.f32 0.0, %v5809
    %v5811 = vpop.f32.mrf.mxu0
    %v5812 = vpop.f32.mrf.mxu0
    %v5813 = vadd.f32 0.0, %v5812
    %v5814 = vpop.f32.mrf.mxu0
    %5815 = vmatprep.mubr.bf16.mxu0 0
    %5816 = vmatmul.mubr.bf16.gmra.mxu0 %v5762
    %v5817 = vpop.f32.mrf.mxu0
    %v5818 = vadd.f32 0.0, %v5817
    %v5819 = vpop.f32.mrf.mxu0
    %v5820 = vpop.f32.mrf.mxu0
    %v5821 = vadd.f32 0.0, %v5820
    %v5822 = vpop.f32.mrf.mxu0
    %5823 = vmatprep.mubr.bf16.mxu0 0
    %5824 = vmatmul.mubr.bf16.gmra.mxu0 %v5765
    %v5825 = vpop.f32.mrf.mxu0
    %v5826 = vadd.f32 0.0, %v5825
    %v5827 = vpop.f32.mrf.mxu0
    %v5828 = vpop.f32.mrf.mxu0
    %v5829 = vadd.f32 0.0, %v5828
    %v5830 = vpop.f32.mrf.mxu0
    %5831 = vdwg.mxu0
    %v5832 = vadd.f32 %v5251, %v5725
    %v5833 = vadd.f32 %v5252, %v5728
    %v5834 = vadd.f32 %v5253, %v5733
    %v5835 = vadd.f32 %v5254, %v5736
    %v5836 = vadd.f32 %v5255, %v5741
    %v5837 = vadd.f32 %v5256, %v5744
    %v5838 = vadd.f32 %v5257, %v5749
    %v5839 = vadd.f32 %v5258, %v5752
    %v5840 = vadd.f32 %v5259, %v5802
    %v5841 = vadd.f32 %v5260, %v5805
    %v5842 = vadd.f32 %v5261, %v5810
    %v5843 = vadd.f32 %v5262, %v5813
    %v5844 = vadd.f32 %v5263, %v5818
    %v5845 = vadd.f32 %v5264, %v5821
    %v5846 = vadd.f32 %v5265, %v5826
    %v5847 = vadd.f32 %v5266, %v5829
    %s5848 = scalar_lea.vmem [#allocation2], 448
    %v5849 = vld [vmem:[%s5848] sm:$0xff]
    %v5850 = vld [vmem:[%s5848 + $0x8] sm:$0xff]
    %v5851 = vld [vmem:[%s5848 + $0x10] sm:$0xff]
    %v5852 = vld [vmem:[%s5848 + $0x18] sm:$0xff]
    %v5853 = vld [vmem:[%s5848 + $0x20] sm:$0xff]
    %v5854 = vld [vmem:[%s5848 + $0x28] sm:$0xff]
    %v5855 = vld [vmem:[%s5848 + $0x30] sm:$0xff]
    %v5856 = vld [vmem:[%s5848 + $0x38] sm:$0xff]
    %5857 = vrot.lane.b32.xlu0 %v4073, 104
    %v5858 = vpop.permute.xlu0 %5857
    %5859 = vrot.lane.b32.xlu0 %v4074, 104
    %v5860 = vpop.permute.xlu0 %5859
    %5861 = vrot.lane.b32.xlu0 %v4075, 104
    %v5862 = vpop.permute.xlu0 %5861
    %5863 = vrot.lane.b32.xlu0 %v4076, 104
    %v5864 = vpop.permute.xlu0 %5863
    %5865 = vrot.lane.b32.xlu0 %v4073, 72
    %v5866 = vpop.permute.xlu0 %5865
    %5867 = vrot.lane.b32.xlu0 %v4074, 72
    %v5868 = vpop.permute.xlu0 %5867
    %5869 = vrot.lane.b32.xlu0 %v4075, 72
    %v5870 = vpop.permute.xlu0 %5869
    %5871 = vrot.lane.b32.xlu0 %v4076, 72
    %v5872 = vpop.permute.xlu0 %5871
    %v5874 = vsel %vm563, %v5858, 0
    %v5877 = vsel %vm563, %v5860, 0
    %v5880 = vsel %vm563, %v5862, 0
    %v5883 = vsel %vm563, %v5864, 0
    %v5886 = vsel %vm563, %v5866, 0
    %v5889 = vsel %vm563, %v5868, 0
    %v5892 = vsel %vm563, %v5870, 0
    %v5895 = vsel %vm563, %v5872, 0
    %5897 = vmatprep.subr.bf16.mxu0 0
    %5898 = vmatpush1.bf16.xpose.msra.mxu0 0
    %5899 = vmatprep.subr.bf16.mxu0 0
    %5900 = vmatpush1.bf16.xpose.msra.mxu0 0
    %5901 = vmatprep.subr.bf16.mxu0 0
    %5902 = vmatpush1.bf16.xpose.msra.mxu0 0
    %5903 = vmatprep.subr.bf16.mxu0 0
    %5904 = vmatpush1.bf16.xpose.msra.mxu0 0
    %5905 = vmatprep.subr.bf16.mxu0 0
    %5906 = vmatpush1.bf16.xpose.msra.mxu0 %v5895
    %5907 = vmatprep.subr.bf16.mxu0 0
    %5908 = vmatpush1.bf16.xpose.msra.mxu0 %v5892
    %5909 = vmatprep.subr.bf16.mxu0 0
    %5910 = vmatpush1.bf16.xpose.msra.mxu0 %v5889
    %5911 = vmatprep.subr.bf16.mxu0 0
    %5912 = vmatpush1.bf16.xpose.msra.mxu0 %v5886
    %5913 = vmatprep.subr.bf16.mxu0 0
    %5914 = vmatpush2.bf16.xpose.msra.mxu0 0
    %5915 = vmatprep.subr.bf16.mxu0 0
    %5916 = vmatpush2.bf16.xpose.msra.mxu0 0
    %5917 = vmatprep.subr.bf16.mxu0 0
    %5918 = vmatpush2.bf16.xpose.msra.mxu0 0
    %5919 = vmatprep.subr.bf16.mxu0 0
    %5920 = vmatpush2.bf16.xpose.msra.mxu0 0
    %5921 = vmatprep.subr.bf16.mxu0 0
    %5922 = vmatpush2.bf16.xpose.msra.mxu0 0
    %5923 = vmatprep.subr.bf16.mxu0 0
    %5924 = vmatpush2.bf16.xpose.msra.mxu0 0
    %5925 = vmatprep.subr.bf16.mxu0 0
    %5926 = vmatpush2.bf16.xpose.msra.mxu0 0
    %5927 = vmatprep.subr.bf16.mxu0 0
    %5928 = vmatpush2.bf16.xpose.msra.mxu0 0
    %5929 = vmatprep.mubr.bf16.mxu0 0
    %5930 = vmatmul.mubr.bf16.gmra.mxu0 %v5874
    %v5931 = vpop.f32.mrf.mxu0
    %v5932 = vadd.f32 %v5849, %v5931
    %v5933 = vpop.f32.mrf.mxu0
    %v5934 = vpop.f32.mrf.mxu0
    %v5935 = vadd.f32 %v5850, %v5934
    %v5936 = vpop.f32.mrf.mxu0
    %5937 = vmatprep.mubr.bf16.mxu0 0
    %5938 = vmatmul.mubr.bf16.gmra.mxu0 %v5877
    %v5939 = vpop.f32.mrf.mxu0
    %v5940 = vadd.f32 %v5851, %v5939
    %v5941 = vpop.f32.mrf.mxu0
    %v5942 = vpop.f32.mrf.mxu0
    %v5943 = vadd.f32 %v5852, %v5942
    %v5944 = vpop.f32.mrf.mxu0
    %5945 = vmatprep.mubr.bf16.mxu0 0
    %5946 = vmatmul.mubr.bf16.gmra.mxu0 %v5880
    %v5947 = vpop.f32.mrf.mxu0
    %v5948 = vadd.f32 %v5853, %v5947
    %v5949 = vpop.f32.mrf.mxu0
    %v5950 = vpop.f32.mrf.mxu0
    %v5951 = vadd.f32 %v5854, %v5950
    %v5952 = vpop.f32.mrf.mxu0
    %5953 = vmatprep.mubr.bf16.mxu0 0
    %5954 = vmatmul.mubr.bf16.gmra.mxu0 %v5883
    %v5955 = vpop.f32.mrf.mxu0
    %v5956 = vadd.f32 %v5855, %v5955
    %v5957 = vpop.f32.mrf.mxu0
    %v5958 = vpop.f32.mrf.mxu0
    %v5959 = vadd.f32 %v5856, %v5958
    %v5960 = vpop.f32.mrf.mxu0
    %5961 = vdwg.mxu0
    %5962 = vrot.lane.b32.xlu0 %v4077, 104
    %v5963 = vpop.permute.xlu0 %5962
    %5964 = vrot.lane.b32.xlu0 %v4078, 104
    %v5965 = vpop.permute.xlu0 %5964
    %5966 = vrot.lane.b32.xlu0 %v4079, 104
    %v5967 = vpop.permute.xlu0 %5966
    %5968 = vrot.lane.b32.xlu0 %v4080, 104
    %v5969 = vpop.permute.xlu0 %5968
    %5970 = vrot.lane.b32.xlu0 %v4077, 72
    %v5971 = vpop.permute.xlu0 %5970
    %5972 = vrot.lane.b32.xlu0 %v4078, 72
    %v5973 = vpop.permute.xlu0 %5972
    %5974 = vrot.lane.b32.xlu0 %v4079, 72
    %v5975 = vpop.permute.xlu0 %5974
    %5976 = vrot.lane.b32.xlu0 %v4080, 72
    %v5977 = vpop.permute.xlu0 %5976
    %v5979 = vsel %vm563, %v5963, 0
    %v5982 = vsel %vm563, %v5965, 0
    %v5985 = vsel %vm563, %v5967, 0
    %v5988 = vsel %vm563, %v5969, 0
    %v5991 = vsel %vm563, %v5971, 0
    %v5994 = vsel %vm563, %v5973, 0
    %v5997 = vsel %vm563, %v5975, 0
    %v6000 = vsel %vm563, %v5977, 0
    %6002 = vmatprep.subr.bf16.mxu0 0
    %6003 = vmatpush1.bf16.xpose.msra.mxu0 0
    %6004 = vmatprep.subr.bf16.mxu0 0
    %6005 = vmatpush1.bf16.xpose.msra.mxu0 0
    %6006 = vmatprep.subr.bf16.mxu0 0
    %6007 = vmatpush1.bf16.xpose.msra.mxu0 0
    %6008 = vmatprep.subr.bf16.mxu0 0
    %6009 = vmatpush1.bf16.xpose.msra.mxu0 0
    %6010 = vmatprep.subr.bf16.mxu0 0
    %6011 = vmatpush1.bf16.xpose.msra.mxu0 %v6000
    %6012 = vmatprep.subr.bf16.mxu0 0
    %6013 = vmatpush1.bf16.xpose.msra.mxu0 %v5997
    %6014 = vmatprep.subr.bf16.mxu0 0
    %6015 = vmatpush1.bf16.xpose.msra.mxu0 %v5994
    %6016 = vmatprep.subr.bf16.mxu0 0
    %6017 = vmatpush1.bf16.xpose.msra.mxu0 %v5991
    %6018 = vmatprep.subr.bf16.mxu0 0
    %6019 = vmatpush2.bf16.xpose.msra.mxu0 0
    %6020 = vmatprep.subr.bf16.mxu0 0
    %6021 = vmatpush2.bf16.xpose.msra.mxu0 0
    %6022 = vmatprep.subr.bf16.mxu0 0
    %6023 = vmatpush2.bf16.xpose.msra.mxu0 0
    %6024 = vmatprep.subr.bf16.mxu0 0
    %6025 = vmatpush2.bf16.xpose.msra.mxu0 0
    %6026 = vmatprep.subr.bf16.mxu0 0
    %6027 = vmatpush2.bf16.xpose.msra.mxu0 0
    %6028 = vmatprep.subr.bf16.mxu0 0
    %6029 = vmatpush2.bf16.xpose.msra.mxu0 0
    %6030 = vmatprep.subr.bf16.mxu0 0
    %6031 = vmatpush2.bf16.xpose.msra.mxu0 0
    %6032 = vmatprep.subr.bf16.mxu0 0
    %6033 = vmatpush2.bf16.xpose.msra.mxu0 0
    %6034 = vmatprep.mubr.bf16.mxu0 0
    %6035 = vmatmul.mubr.bf16.gmra.mxu0 %v5979
    %v6036 = vpop.f32.mrf.mxu0
    %v6037 = vadd.f32 %v5849, %v6036
    %v6038 = vpop.f32.mrf.mxu0
    %v6039 = vpop.f32.mrf.mxu0
    %v6040 = vadd.f32 %v5850, %v6039
    %v6041 = vpop.f32.mrf.mxu0
    %6042 = vmatprep.mubr.bf16.mxu0 0
    %6043 = vmatmul.mubr.bf16.gmra.mxu0 %v5982
    %v6044 = vpop.f32.mrf.mxu0
    %v6045 = vadd.f32 %v5851, %v6044
    %v6046 = vpop.f32.mrf.mxu0
    %v6047 = vpop.f32.mrf.mxu0
    %v6048 = vadd.f32 %v5852, %v6047
    %v6049 = vpop.f32.mrf.mxu0
    %6050 = vmatprep.mubr.bf16.mxu0 0
    %6051 = vmatmul.mubr.bf16.gmra.mxu0 %v5985
    %v6052 = vpop.f32.mrf.mxu0
    %v6053 = vadd.f32 %v5853, %v6052
    %v6054 = vpop.f32.mrf.mxu0
    %v6055 = vpop.f32.mrf.mxu0
    %v6056 = vadd.f32 %v5854, %v6055
    %v6057 = vpop.f32.mrf.mxu0
    %6058 = vmatprep.mubr.bf16.mxu0 0
    %6059 = vmatmul.mubr.bf16.gmra.mxu0 %v5988
    %v6060 = vpop.f32.mrf.mxu0
    %v6061 = vadd.f32 %v5855, %v6060
    %v6062 = vpop.f32.mrf.mxu0
    %v6063 = vpop.f32.mrf.mxu0
    %v6064 = vadd.f32 %v5856, %v6063
    %v6065 = vpop.f32.mrf.mxu0
    %6066 = vdwg.mxu0
    %v6067 = vsel %vm754, %v5932, -inf
    %6068 = vmax.xlane.f32.xlu0 %v6067
    %v6069 = vpop.xlane.xlu0 %6068
    %v6070 = vsel %vm754, %v5935, -inf
    %6071 = vmax.xlane.f32.xlu0 %v6070
    %v6072 = vpop.xlane.xlu0 %6071
    %v6073 = vsel %vm754, %v5940, -inf
    %6074 = vmax.xlane.f32.xlu0 %v6073
    %v6075 = vpop.xlane.xlu0 %6074
    %v6076 = vsel %vm754, %v5943, -inf
    %6077 = vmax.xlane.f32.xlu0 %v6076
    %v6078 = vpop.xlane.xlu0 %6077
    %v6079 = vsel %vm754, %v5948, -inf
    %6080 = vmax.xlane.f32.xlu0 %v6079
    %v6081 = vpop.xlane.xlu0 %6080
    %v6082 = vsel %vm754, %v5951, -inf
    %6083 = vmax.xlane.f32.xlu0 %v6082
    %v6084 = vpop.xlane.xlu0 %6083
    %v6085 = vsel %vm754, %v5956, -inf
    %6086 = vmax.xlane.f32.xlu0 %v6085
    %v6087 = vpop.xlane.xlu0 %6086
    %v6088 = vsel %vm754, %v5959, -inf
    %6089 = vmax.xlane.f32.xlu0 %v6088
    %v6090 = vpop.xlane.xlu0 %6089
    %v6091 = vsel %vm754, %v6037, -inf
    %6092 = vmax.xlane.f32.xlu0 %v6091
    %v6093 = vpop.xlane.xlu0 %6092
    %v6094 = vsel %vm754, %v6040, -inf
    %6095 = vmax.xlane.f32.xlu0 %v6094
    %v6096 = vpop.xlane.xlu0 %6095
    %v6097 = vsel %vm754, %v6045, -inf
    %6098 = vmax.xlane.f32.xlu0 %v6097
    %v6099 = vpop.xlane.xlu0 %6098
    %v6100 = vsel %vm754, %v6048, -inf
    %6101 = vmax.xlane.f32.xlu0 %v6100
    %v6102 = vpop.xlane.xlu0 %6101
    %v6103 = vsel %vm754, %v6053, -inf
    %6104 = vmax.xlane.f32.xlu0 %v6103
    %v6105 = vpop.xlane.xlu0 %6104
    %v6106 = vsel %vm754, %v6056, -inf
    %6107 = vmax.xlane.f32.xlu0 %v6106
    %v6108 = vpop.xlane.xlu0 %6107
    %v6109 = vsel %vm754, %v6061, -inf
    %6110 = vmax.xlane.f32.xlu0 %v6109
    %v6111 = vpop.xlane.xlu0 %6110
    %v6112 = vsel %vm754, %v6064, -inf
    %6113 = vmax.xlane.f32.xlu0 %v6112
    %v6114 = vpop.xlane.xlu0 %6113
    %v6115 = vsub.f32 %v5932, %v6069
    %v6116 = vsub.f32 %v5935, %v6072
    %v6117 = vsub.f32 %v5940, %v6075
    %v6118 = vsub.f32 %v5943, %v6078
    %v6119 = vsub.f32 %v5948, %v6081
    %v6120 = vsub.f32 %v5951, %v6084
    %v6121 = vsub.f32 %v5956, %v6087
    %v6122 = vsub.f32 %v5959, %v6090
    %v6123 = vsub.f32 %v6037, %v6093
    %v6124 = vsub.f32 %v6040, %v6096
    %v6125 = vsub.f32 %v6045, %v6099
    %v6126 = vsub.f32 %v6048, %v6102
    %v6127 = vsub.f32 %v6053, %v6105
    %v6128 = vsub.f32 %v6056, %v6108
    %v6129 = vsub.f32 %v6061, %v6111
    %v6130 = vsub.f32 %v6064, %v6114
    %v6131 = vmul.f32 %v6115, 1.442695
    %v6132 = vpow.pop %v6131
    %v6133 = vmul.f32 %v6116, 1.442695
    %v6134 = vpow.pop %v6133
    %v6135 = vmul.f32 %v6117, 1.442695
    %v6136 = vpow.pop %v6135
    %v6137 = vmul.f32 %v6118, 1.442695
    %v6138 = vpow.pop %v6137
    %v6139 = vmul.f32 %v6119, 1.442695
    %v6140 = vpow.pop %v6139
    %v6141 = vmul.f32 %v6120, 1.442695
    %v6142 = vpow.pop %v6141
    %v6143 = vmul.f32 %v6121, 1.442695
    %v6144 = vpow.pop %v6143
    %v6145 = vmul.f32 %v6122, 1.442695
    %v6146 = vpow.pop %v6145
    %v6147 = vmul.f32 %v6123, 1.442695
    %v6148 = vpow.pop %v6147
    %v6149 = vmul.f32 %v6124, 1.442695
    %v6150 = vpow.pop %v6149
    %v6151 = vmul.f32 %v6125, 1.442695
    %v6152 = vpow.pop %v6151
    %v6153 = vmul.f32 %v6126, 1.442695
    %v6154 = vpow.pop %v6153
    %v6155 = vmul.f32 %v6127, 1.442695
    %v6156 = vpow.pop %v6155
    %v6157 = vmul.f32 %v6128, 1.442695
    %v6158 = vpow.pop %v6157
    %v6159 = vmul.f32 %v6129, 1.442695
    %v6160 = vpow.pop %v6159
    %v6161 = vmul.f32 %v6130, 1.442695
    %v6162 = vpow.pop %v6161
    %v6163 = vsel %vm754, %v6132, 0.0
    %6164 = vadd.xlane.f32.xlu0 %v6163
    %v6165 = vpop.xlane.xlu0 %6164
    %v6166 = vsel %vm754, %v6134, 0.0
    %6167 = vadd.xlane.f32.xlu0 %v6166
    %v6168 = vpop.xlane.xlu0 %6167
    %v6169 = vsel %vm754, %v6136, 0.0
    %6170 = vadd.xlane.f32.xlu0 %v6169
    %v6171 = vpop.xlane.xlu0 %6170
    %v6172 = vsel %vm754, %v6138, 0.0
    %6173 = vadd.xlane.f32.xlu0 %v6172
    %v6174 = vpop.xlane.xlu0 %6173
    %v6175 = vsel %vm754, %v6140, 0.0
    %6176 = vadd.xlane.f32.xlu0 %v6175
    %v6177 = vpop.xlane.xlu0 %6176
    %v6178 = vsel %vm754, %v6142, 0.0
    %6179 = vadd.xlane.f32.xlu0 %v6178
    %v6180 = vpop.xlane.xlu0 %6179
    %v6181 = vsel %vm754, %v6144, 0.0
    %6182 = vadd.xlane.f32.xlu0 %v6181
    %v6183 = vpop.xlane.xlu0 %6182
    %v6184 = vsel %vm754, %v6146, 0.0
    %6185 = vadd.xlane.f32.xlu0 %v6184
    %v6186 = vpop.xlane.xlu0 %6185
    %v6187 = vsel %vm754, %v6148, 0.0
    %6188 = vadd.xlane.f32.xlu0 %v6187
    %v6189 = vpop.xlane.xlu0 %6188
    %v6190 = vsel %vm754, %v6150, 0.0
    %6191 = vadd.xlane.f32.xlu0 %v6190
    %v6192 = vpop.xlane.xlu0 %6191
    %v6193 = vsel %vm754, %v6152, 0.0
    %6194 = vadd.xlane.f32.xlu0 %v6193
    %v6195 = vpop.xlane.xlu0 %6194
    %v6196 = vsel %vm754, %v6154, 0.0
    %6197 = vadd.xlane.f32.xlu0 %v6196
    %v6198 = vpop.xlane.xlu0 %6197
    %v6199 = vsel %vm754, %v6156, 0.0
    %6200 = vadd.xlane.f32.xlu0 %v6199
    %v6201 = vpop.xlane.xlu0 %6200
    %v6202 = vsel %vm754, %v6158, 0.0
    %6203 = vadd.xlane.f32.xlu0 %v6202
    %v6204 = vpop.xlane.xlu0 %6203
    %v6205 = vsel %vm754, %v6160, 0.0
    %6206 = vadd.xlane.f32.xlu0 %v6205
    %v6207 = vpop.xlane.xlu0 %6206
    %v6208 = vsel %vm754, %v6162, 0.0
    %6209 = vadd.xlane.f32.xlu0 %v6208
    %v6210 = vpop.xlane.xlu0 %6209
    %v6211 = vrcp.pop %v6165
    %v6212 = vrcp.pop %v6168
    %v6213 = vrcp.pop %v6171
    %v6214 = vrcp.pop %v6174
    %v6215 = vrcp.pop %v6177
    %v6216 = vrcp.pop %v6180
    %v6217 = vrcp.pop %v6183
    %v6218 = vrcp.pop %v6186
    %v6219 = vrcp.pop %v6189
    %v6220 = vrcp.pop %v6192
    %v6221 = vrcp.pop %v6195
    %v6222 = vrcp.pop %v6198
    %v6223 = vrcp.pop %v6201
    %v6224 = vrcp.pop %v6204
    %v6225 = vrcp.pop %v6207
    %v6226 = vrcp.pop %v6210
    %v6227 = vmul.f32 %v6132, %v6211
    %v6228 = vmul.f32 %v6134, %v6212
    %v6229 = vmul.f32 %v6136, %v6213
    %v6230 = vmul.f32 %v6138, %v6214
    %v6231 = vmul.f32 %v6140, %v6215
    %v6232 = vmul.f32 %v6142, %v6216
    %v6233 = vmul.f32 %v6144, %v6217
    %v6234 = vmul.f32 %v6146, %v6218
    %v6235 = vmul.f32 %v6148, %v6219
    %v6236 = vmul.f32 %v6150, %v6220
    %v6237 = vmul.f32 %v6152, %v6221
    %v6238 = vmul.f32 %v6154, %v6222
    %v6239 = vmul.f32 %v6156, %v6223
    %v6240 = vmul.f32 %v6158, %v6224
    %v6241 = vmul.f32 %v6160, %v6225
    %v6242 = vmul.f32 %v6162, %v6226
    %v6243 = vpack.c.bf16 %v6228, %v6227
    %v6244 = vpack.c.bf16 %v6230, %v6229
    %v6245 = vpack.c.bf16 %v6232, %v6231
    %v6246 = vpack.c.bf16 %v6234, %v6233
    %v6247 = vpack.c.bf16 %v6236, %v6235
    %v6248 = vpack.c.bf16 %v6238, %v6237
    %v6249 = vpack.c.bf16 %v6240, %v6239
    %v6250 = vpack.c.bf16 %v6242, %v6241
    %6255 = vrot.lane.b32.xlu0 %v5267, 96
    %v6256 = vpop.permute.xlu0 %6255
    %6257 = vrot.lane.b32.xlu0 %v5268, 96
    %v6258 = vpop.permute.xlu0 %6257
    %6259 = vrot.lane.b32.xlu0 %v5269, 96
    %v6260 = vpop.permute.xlu0 %6259
    %6261 = vrot.lane.b32.xlu0 %v5270, 96
    %v6262 = vpop.permute.xlu0 %6261
    %v6268 = vsel %vm754, %v6243, 0
    %v6271 = vsel %vm754, %v6244, 0
    %v6274 = vsel %vm754, %v6245, 0
    %v6277 = vsel %vm754, %v6246, 0
    %6279 = vmatprep.subr.bf16.mxu0 0
    %6280 = vmatpush1.bf16.msra.mxu0 0
    %6281 = vmatprep.subr.bf16.mxu0 0
    %6282 = vmatpush1.bf16.msra.mxu0 0
    %6283 = vmatprep.subr.bf16.mxu0 0
    %6284 = vmatpush1.bf16.msra.mxu0 0
    %6285 = vmatprep.subr.bf16.mxu0 0
    %6286 = vmatpush1.bf16.msra.mxu0 0
    %6287 = vmatprep.subr.bf16.mxu0 0
    %6288 = vmatpush1.bf16.msra.mxu0 %v6262
    %6289 = vmatprep.subr.bf16.mxu0 0
    %6290 = vmatpush1.bf16.msra.mxu0 %v6260
    %6291 = vmatprep.subr.bf16.mxu0 0
    %6292 = vmatpush1.bf16.msra.mxu0 %v6258
    %6293 = vmatprep.subr.bf16.mxu0 0
    %6294 = vmatpush1.bf16.msra.mxu0 %v6256
    %6295 = vmatprep.subr.bf16.mxu0 0
    %6296 = vmatpush2.bf16.msra.mxu0 0
    %6297 = vmatprep.subr.bf16.mxu0 0
    %6298 = vmatpush2.bf16.msra.mxu0 0
    %6299 = vmatprep.subr.bf16.mxu0 0
    %6300 = vmatpush2.bf16.msra.mxu0 0
    %6301 = vmatprep.subr.bf16.mxu0 0
    %6302 = vmatpush2.bf16.msra.mxu0 0
    %6303 = vmatprep.subr.bf16.mxu0 0
    %6304 = vmatpush2.bf16.msra.mxu0 0
    %6305 = vmatprep.subr.bf16.mxu0 0
    %6306 = vmatpush2.bf16.msra.mxu0 0
    %6307 = vmatprep.subr.bf16.mxu0 0
    %6308 = vmatpush2.bf16.msra.mxu0 0
    %6309 = vmatprep.subr.bf16.mxu0 0
    %6310 = vmatpush2.bf16.msra.mxu0 0
    %6311 = vmatprep.mubr.bf16.mxu0 0
    %6312 = vmatmul.mubr.bf16.gmra.mxu0 %v6268
    %v6313 = vpop.f32.mrf.mxu0
    %v6314 = vadd.f32 0.0, %v6313
    %v6315 = vpop.f32.mrf.mxu0
    %v6316 = vpop.f32.mrf.mxu0
    %v6317 = vadd.f32 0.0, %v6316
    %v6318 = vpop.f32.mrf.mxu0
    %6319 = vmatprep.mubr.bf16.mxu0 0
    %6320 = vmatmul.mubr.bf16.gmra.mxu0 %v6271
    %v6321 = vpop.f32.mrf.mxu0
    %v6322 = vadd.f32 0.0, %v6321
    %v6323 = vpop.f32.mrf.mxu0
    %v6324 = vpop.f32.mrf.mxu0
    %v6325 = vadd.f32 0.0, %v6324
    %v6326 = vpop.f32.mrf.mxu0
    %6327 = vmatprep.mubr.bf16.mxu0 0
    %6328 = vmatmul.mubr.bf16.gmra.mxu0 %v6274
    %v6329 = vpop.f32.mrf.mxu0
    %v6330 = vadd.f32 0.0, %v6329
    %v6331 = vpop.f32.mrf.mxu0
    %v6332 = vpop.f32.mrf.mxu0
    %v6333 = vadd.f32 0.0, %v6332
    %v6334 = vpop.f32.mrf.mxu0
    %6335 = vmatprep.mubr.bf16.mxu0 0
    %6336 = vmatmul.mubr.bf16.gmra.mxu0 %v6277
    %v6337 = vpop.f32.mrf.mxu0
    %v6338 = vadd.f32 0.0, %v6337
    %v6339 = vpop.f32.mrf.mxu0
    %v6340 = vpop.f32.mrf.mxu0
    %v6341 = vadd.f32 0.0, %v6340
    %v6342 = vpop.f32.mrf.mxu0
    %6343 = vdwg.mxu0
    %6348 = vrot.lane.b32.xlu0 %v5271, 96
    %v6349 = vpop.permute.xlu0 %6348
    %6350 = vrot.lane.b32.xlu0 %v5272, 96
    %v6351 = vpop.permute.xlu0 %6350
    %6352 = vrot.lane.b32.xlu0 %v5273, 96
    %v6353 = vpop.permute.xlu0 %6352
    %6354 = vrot.lane.b32.xlu0 %v5274, 96
    %v6355 = vpop.permute.xlu0 %6354
    %v6361 = vsel %vm754, %v6247, 0
    %v6364 = vsel %vm754, %v6248, 0
    %v6367 = vsel %vm754, %v6249, 0
    %v6370 = vsel %vm754, %v6250, 0
    %6372 = vmatprep.subr.bf16.mxu0 0
    %6373 = vmatpush1.bf16.msra.mxu0 0
    %6374 = vmatprep.subr.bf16.mxu0 0
    %6375 = vmatpush1.bf16.msra.mxu0 0
    %6376 = vmatprep.subr.bf16.mxu0 0
    %6377 = vmatpush1.bf16.msra.mxu0 0
    %6378 = vmatprep.subr.bf16.mxu0 0
    %6379 = vmatpush1.bf16.msra.mxu0 0
    %6380 = vmatprep.subr.bf16.mxu0 0
    %6381 = vmatpush1.bf16.msra.mxu0 %v6355
    %6382 = vmatprep.subr.bf16.mxu0 0
    %6383 = vmatpush1.bf16.msra.mxu0 %v6353
    %6384 = vmatprep.subr.bf16.mxu0 0
    %6385 = vmatpush1.bf16.msra.mxu0 %v6351
    %6386 = vmatprep.subr.bf16.mxu0 0
    %6387 = vmatpush1.bf16.msra.mxu0 %v6349
    %6388 = vmatprep.subr.bf16.mxu0 0
    %6389 = vmatpush2.bf16.msra.mxu0 0
    %6390 = vmatprep.subr.bf16.mxu0 0
    %6391 = vmatpush2.bf16.msra.mxu0 0
    %6392 = vmatprep.subr.bf16.mxu0 0
    %6393 = vmatpush2.bf16.msra.mxu0 0
    %6394 = vmatprep.subr.bf16.mxu0 0
    %6395 = vmatpush2.bf16.msra.mxu0 0
    %6396 = vmatprep.subr.bf16.mxu0 0
    %6397 = vmatpush2.bf16.msra.mxu0 0
    %6398 = vmatprep.subr.bf16.mxu0 0
    %6399 = vmatpush2.bf16.msra.mxu0 0
    %6400 = vmatprep.subr.bf16.mxu0 0
    %6401 = vmatpush2.bf16.msra.mxu0 0
    %6402 = vmatprep.subr.bf16.mxu0 0
    %6403 = vmatpush2.bf16.msra.mxu0 0
    %6404 = vmatprep.mubr.bf16.mxu0 0
    %6405 = vmatmul.mubr.bf16.gmra.mxu0 %v6361
    %v6406 = vpop.f32.mrf.mxu0
    %v6407 = vadd.f32 0.0, %v6406
    %v6408 = vpop.f32.mrf.mxu0
    %v6409 = vpop.f32.mrf.mxu0
    %v6410 = vadd.f32 0.0, %v6409
    %v6411 = vpop.f32.mrf.mxu0
    %6412 = vmatprep.mubr.bf16.mxu0 0
    %6413 = vmatmul.mubr.bf16.gmra.mxu0 %v6364
    %v6414 = vpop.f32.mrf.mxu0
    %v6415 = vadd.f32 0.0, %v6414
    %v6416 = vpop.f32.mrf.mxu0
    %v6417 = vpop.f32.mrf.mxu0
    %v6418 = vadd.f32 0.0, %v6417
    %v6419 = vpop.f32.mrf.mxu0
    %6420 = vmatprep.mubr.bf16.mxu0 0
    %6421 = vmatmul.mubr.bf16.gmra.mxu0 %v6367
    %v6422 = vpop.f32.mrf.mxu0
    %v6423 = vadd.f32 0.0, %v6422
    %v6424 = vpop.f32.mrf.mxu0
    %v6425 = vpop.f32.mrf.mxu0
    %v6426 = vadd.f32 0.0, %v6425
    %v6427 = vpop.f32.mrf.mxu0
    %6428 = vmatprep.mubr.bf16.mxu0 0
    %6429 = vmatmul.mubr.bf16.gmra.mxu0 %v6370
    %v6430 = vpop.f32.mrf.mxu0
    %v6431 = vadd.f32 0.0, %v6430
    %v6432 = vpop.f32.mrf.mxu0
    %v6433 = vpop.f32.mrf.mxu0
    %v6434 = vadd.f32 0.0, %v6433
    %v6435 = vpop.f32.mrf.mxu0
    %6436 = vdwg.mxu0
    %v6437 = vadd.f32 %v5832, %v6314
    %v6438 = vadd.f32 %v5833, %v6317
    %v6439 = vadd.f32 %v5834, %v6322
    %v6440 = vadd.f32 %v5835, %v6325
    %v6441 = vadd.f32 %v5836, %v6330
    %v6442 = vadd.f32 %v5837, %v6333
    %v6443 = vadd.f32 %v5838, %v6338
    %v6444 = vadd.f32 %v5839, %v6341
    %v6445 = vadd.f32 %v5840, %v6407
    %v6446 = vadd.f32 %v5841, %v6410
    %v6447 = vadd.f32 %v5842, %v6415
    %v6448 = vadd.f32 %v5843, %v6418
    %v6449 = vadd.f32 %v5844, %v6423
    %v6450 = vadd.f32 %v5845, %v6426
    %v6451 = vadd.f32 %v5846, %v6431
    %v6452 = vadd.f32 %v5847, %v6434
    %s6453 = scalar_lea.vmem %s7, 1
    %v6454 = vld [vmem:[%s6453] sm:$0x1]
    %s6455 = scalar_lea.vmem %s8, 1
    %v6456 = vld [vmem:[%s6455] sm:$0x1]
    %v6457 = vsel %vm77, %v6437, 0.0
    %6458 = vadd.xlane.f32.xlu0 %v6457
    %v6459 = vpop.xlane.xlu0 %6458
    %v6460 = vsel %vm77, %v6438, 0.0
    %6461 = vadd.xlane.f32.xlu0 %v6460
    %v6462 = vpop.xlane.xlu0 %6461
    %v6463 = vsel %vm77, %v6439, 0.0
    %6464 = vadd.xlane.f32.xlu0 %v6463
    %v6465 = vpop.xlane.xlu0 %6464
    %v6466 = vsel %vm77, %v6440, 0.0
    %6467 = vadd.xlane.f32.xlu0 %v6466
    %v6468 = vpop.xlane.xlu0 %6467
    %v6469 = vsel %vm77, %v6441, 0.0
    %6470 = vadd.xlane.f32.xlu0 %v6469
    %v6471 = vpop.xlane.xlu0 %6470
    %v6472 = vsel %vm77, %v6442, 0.0
    %6473 = vadd.xlane.f32.xlu0 %v6472
    %v6474 = vpop.xlane.xlu0 %6473
    %v6475 = vsel %vm77, %v6443, 0.0
    %6476 = vadd.xlane.f32.xlu0 %v6475
    %v6477 = vpop.xlane.xlu0 %6476
    %v6478 = vsel %vm77, %v6444, 0.0
    %6479 = vadd.xlane.f32.xlu0 %v6478
    %v6480 = vpop.xlane.xlu0 %6479
    %v6481 = vsel %vm77, %v6445, 0.0
    %6482 = vadd.xlane.f32.xlu0 %v6481
    %v6483 = vpop.xlane.xlu0 %6482
    %v6484 = vsel %vm77, %v6446, 0.0
    %6485 = vadd.xlane.f32.xlu0 %v6484
    %v6486 = vpop.xlane.xlu0 %6485
    %v6487 = vsel %vm77, %v6447, 0.0
    %6488 = vadd.xlane.f32.xlu0 %v6487
    %v6489 = vpop.xlane.xlu0 %6488
    %v6490 = vsel %vm77, %v6448, 0.0
    %6491 = vadd.xlane.f32.xlu0 %v6490
    %v6492 = vpop.xlane.xlu0 %6491
    %v6493 = vsel %vm77, %v6449, 0.0
    %6494 = vadd.xlane.f32.xlu0 %v6493
    %v6495 = vpop.xlane.xlu0 %6494
    %v6496 = vsel %vm77, %v6450, 0.0
    %6497 = vadd.xlane.f32.xlu0 %v6496
    %v6498 = vpop.xlane.xlu0 %6497
    %v6499 = vsel %vm77, %v6451, 0.0
    %6500 = vadd.xlane.f32.xlu0 %v6499
    %v6501 = vpop.xlane.xlu0 %6500
    %v6502 = vsel %vm77, %v6452, 0.0
    %6503 = vadd.xlane.f32.xlu0 %v6502
    %v6504 = vpop.xlane.xlu0 %6503
    %v6505 = vmul.f32 %v6459, %v126
    %v6506 = vmul.f32 %v6462, %v126
    %v6507 = vmul.f32 %v6465, %v126
    %v6508 = vmul.f32 %v6468, %v126
    %v6509 = vmul.f32 %v6471, %v126
    %v6510 = vmul.f32 %v6474, %v126
    %v6511 = vmul.f32 %v6477, %v126
    %v6512 = vmul.f32 %v6480, %v126
    %v6513 = vmul.f32 %v6483, %v126
    %v6514 = vmul.f32 %v6486, %v126
    %v6515 = vmul.f32 %v6489, %v126
    %v6516 = vmul.f32 %v6492, %v126
    %v6517 = vmul.f32 %v6495, %v126
    %v6518 = vmul.f32 %v6498, %v126
    %v6519 = vmul.f32 %v6501, %v126
    %v6520 = vmul.f32 %v6504, %v126
    %v6521 = vsub.f32 %v6437, %v6505
    %v6522 = vsub.f32 %v6438, %v6506
    %v6523 = vsub.f32 %v6439, %v6507
    %v6524 = vsub.f32 %v6440, %v6508
    %v6525 = vsub.f32 %v6441, %v6509
    %v6526 = vsub.f32 %v6442, %v6510
    %v6527 = vsub.f32 %v6443, %v6511
    %v6528 = vsub.f32 %v6444, %v6512
    %v6529 = vsub.f32 %v6445, %v6513
    %v6530 = vsub.f32 %v6446, %v6514
    %v6531 = vsub.f32 %v6447, %v6515
    %v6532 = vsub.f32 %v6448, %v6516
    %v6533 = vsub.f32 %v6449, %v6517
    %v6534 = vsub.f32 %v6450, %v6518
    %v6535 = vsub.f32 %v6451, %v6519
    %v6536 = vsub.f32 %v6452, %v6520
    %v6537 = vmul.f32 %v6521, %v6521
    %v6538 = vmul.f32 %v6522, %v6522
    %v6539 = vmul.f32 %v6523, %v6523
    %v6540 = vmul.f32 %v6524, %v6524
    %v6541 = vmul.f32 %v6525, %v6525
    %v6542 = vmul.f32 %v6526, %v6526
    %v6543 = vmul.f32 %v6527, %v6527
    %v6544 = vmul.f32 %v6528, %v6528
    %v6545 = vmul.f32 %v6529, %v6529
    %v6546 = vmul.f32 %v6530, %v6530
    %v6547 = vmul.f32 %v6531, %v6531
    %v6548 = vmul.f32 %v6532, %v6532
    %v6549 = vmul.f32 %v6533, %v6533
    %v6550 = vmul.f32 %v6534, %v6534
    %v6551 = vmul.f32 %v6535, %v6535
    %v6552 = vmul.f32 %v6536, %v6536
    %v6553 = vsel %vm77, %v6537, 0.0
    %6554 = vadd.xlane.f32.xlu0 %v6553
    %v6555 = vpop.xlane.xlu0 %6554
    %v6556 = vsel %vm77, %v6538, 0.0
    %6557 = vadd.xlane.f32.xlu0 %v6556
    %v6558 = vpop.xlane.xlu0 %6557
    %v6559 = vsel %vm77, %v6539, 0.0
    %6560 = vadd.xlane.f32.xlu0 %v6559
    %v6561 = vpop.xlane.xlu0 %6560
    %v6562 = vsel %vm77, %v6540, 0.0
    %6563 = vadd.xlane.f32.xlu0 %v6562
    %v6564 = vpop.xlane.xlu0 %6563
    %v6565 = vsel %vm77, %v6541, 0.0
    %6566 = vadd.xlane.f32.xlu0 %v6565
    %v6567 = vpop.xlane.xlu0 %6566
    %v6568 = vsel %vm77, %v6542, 0.0
    %6569 = vadd.xlane.f32.xlu0 %v6568
    %v6570 = vpop.xlane.xlu0 %6569
    %v6571 = vsel %vm77, %v6543, 0.0
    %6572 = vadd.xlane.f32.xlu0 %v6571
    %v6573 = vpop.xlane.xlu0 %6572
    %v6574 = vsel %vm77, %v6544, 0.0
    %6575 = vadd.xlane.f32.xlu0 %v6574
    %v6576 = vpop.xlane.xlu0 %6575
    %v6577 = vsel %vm77, %v6545, 0.0
    %6578 = vadd.xlane.f32.xlu0 %v6577
    %v6579 = vpop.xlane.xlu0 %6578
    %v6580 = vsel %vm77, %v6546, 0.0
    %6581 = vadd.xlane.f32.xlu0 %v6580
    %v6582 = vpop.xlane.xlu0 %6581
    %v6583 = vsel %vm77, %v6547, 0.0
    %6584 = vadd.xlane.f32.xlu0 %v6583
    %v6585 = vpop.xlane.xlu0 %6584
    %v6586 = vsel %vm77, %v6548, 0.0
    %6587 = vadd.xlane.f32.xlu0 %v6586
    %v6588 = vpop.xlane.xlu0 %6587
    %v6589 = vsel %vm77, %v6549, 0.0
    %6590 = vadd.xlane.f32.xlu0 %v6589
    %v6591 = vpop.xlane.xlu0 %6590
    %v6592 = vsel %vm77, %v6550, 0.0
    %6593 = vadd.xlane.f32.xlu0 %v6592
    %v6594 = vpop.xlane.xlu0 %6593
    %v6595 = vsel %vm77, %v6551, 0.0
    %6596 = vadd.xlane.f32.xlu0 %v6595
    %v6597 = vpop.xlane.xlu0 %6596
    %v6598 = vsel %vm77, %v6552, 0.0
    %6599 = vadd.xlane.f32.xlu0 %v6598
    %v6600 = vpop.xlane.xlu0 %6599
    %v6601 = vmul.f32 %v6555, %v126
    %v6602 = vmul.f32 %v6558, %v126
    %v6603 = vmul.f32 %v6561, %v126
    %v6604 = vmul.f32 %v6564, %v126
    %v6605 = vmul.f32 %v6567, %v126
    %v6606 = vmul.f32 %v6570, %v126
    %v6607 = vmul.f32 %v6573, %v126
    %v6608 = vmul.f32 %v6576, %v126
    %v6609 = vmul.f32 %v6579, %v126
    %v6610 = vmul.f32 %v6582, %v126
    %v6611 = vmul.f32 %v6585, %v126
    %v6612 = vmul.f32 %v6588, %v126
    %v6613 = vmul.f32 %v6591, %v126
    %v6614 = vmul.f32 %v6594, %v126
    %v6615 = vmul.f32 %v6597, %v126
    %v6616 = vmul.f32 %v6600, %v126
    %v6617 = vadd.f32 %v6601, 1e-05
    %v6618 = vadd.f32 %v6602, 1e-05
    %v6619 = vadd.f32 %v6603, 1e-05
    %v6620 = vadd.f32 %v6604, 1e-05
    %v6621 = vadd.f32 %v6605, 1e-05
    %v6622 = vadd.f32 %v6606, 1e-05
    %v6623 = vadd.f32 %v6607, 1e-05
    %v6624 = vadd.f32 %v6608, 1e-05
    %v6625 = vadd.f32 %v6609, 1e-05
    %v6626 = vadd.f32 %v6610, 1e-05
    %v6627 = vadd.f32 %v6611, 1e-05
    %v6628 = vadd.f32 %v6612, 1e-05
    %v6629 = vadd.f32 %v6613, 1e-05
    %v6630 = vadd.f32 %v6614, 1e-05
    %v6631 = vadd.f32 %v6615, 1e-05
    %v6632 = vadd.f32 %v6616, 1e-05
    %v6633 = vrsqrt.pop %v6617
    %v6634 = vrsqrt.pop %v6618
    %v6635 = vrsqrt.pop %v6619
    %v6636 = vrsqrt.pop %v6620
    %v6637 = vrsqrt.pop %v6621
    %v6638 = vrsqrt.pop %v6622
    %v6639 = vrsqrt.pop %v6623
    %v6640 = vrsqrt.pop %v6624
    %v6641 = vrsqrt.pop %v6625
    %v6642 = vrsqrt.pop %v6626
    %v6643 = vrsqrt.pop %v6627
    %v6644 = vrsqrt.pop %v6628
    %v6645 = vrsqrt.pop %v6629
    %v6646 = vrsqrt.pop %v6630
    %v6647 = vrsqrt.pop %v6631
    %v6648 = vrsqrt.pop %v6632
    %v6649 = vmul.f32 %v6521, %v6633
    %v6650 = vmul.f32 %v6522, %v6634
    %v6651 = vmul.f32 %v6523, %v6635
    %v6652 = vmul.f32 %v6524, %v6636
    %v6653 = vmul.f32 %v6525, %v6637
    %v6654 = vmul.f32 %v6526, %v6638
    %v6655 = vmul.f32 %v6527, %v6639
    %v6656 = vmul.f32 %v6528, %v6640
    %v6657 = vmul.f32 %v6529, %v6641
    %v6658 = vmul.f32 %v6530, %v6642
    %v6659 = vmul.f32 %v6531, %v6643
    %v6660 = vmul.f32 %v6532, %v6644
    %v6661 = vmul.f32 %v6533, %v6645
    %v6662 = vmul.f32 %v6534, %v6646
    %v6663 = vmul.f32 %v6535, %v6647
    %v6664 = vmul.f32 %v6536, %v6648
    %v6666 = vlaneseq
    %v6667 = vshrl.u32 %v6666, 7
    %v6668 = vsub.s32 0, %v6667
    %v6669 = vrot.slane %v6454, %v6668
    %v6671 = vmul.f32 %v6649, %v6669
    %v6672 = vmul.f32 %v6650, %v6669
    %v6673 = vmul.f32 %v6651, %v6669
    %v6674 = vmul.f32 %v6652, %v6669
    %v6675 = vmul.f32 %v6653, %v6669
    %v6676 = vmul.f32 %v6654, %v6669
    %v6677 = vmul.f32 %v6655, %v6669
    %v6678 = vmul.f32 %v6656, %v6669
    %v6679 = vmul.f32 %v6657, %v6669
    %v6680 = vmul.f32 %v6658, %v6669
    %v6681 = vmul.f32 %v6659, %v6669
    %v6682 = vmul.f32 %v6660, %v6669
    %v6683 = vmul.f32 %v6661, %v6669
    %v6684 = vmul.f32 %v6662, %v6669
    %v6685 = vmul.f32 %v6663, %v6669
    %v6686 = vmul.f32 %v6664, %v6669
    %v6688 = vlaneseq
    %v6689 = vshrl.u32 %v6688, 7
    %v6690 = vsub.s32 0, %v6689
    %v6691 = vrot.slane %v6456, %v6690
    %v6693 = vadd.f32 %v6671, %v6691
    %v6694 = vadd.f32 %v6672, %v6691
    %v6695 = vadd.f32 %v6673, %v6691
    %v6696 = vadd.f32 %v6674, %v6691
    %v6697 = vadd.f32 %v6675, %v6691
    %v6698 = vadd.f32 %v6676, %v6691
    %v6699 = vadd.f32 %v6677, %v6691
    %v6700 = vadd.f32 %v6678, %v6691
    %v6701 = vadd.f32 %v6679, %v6691
    %v6702 = vadd.f32 %v6680, %v6691
    %v6703 = vadd.f32 %v6681, %v6691
    %v6704 = vadd.f32 %v6682, %v6691
    %v6705 = vadd.f32 %v6683, %v6691
    %v6706 = vadd.f32 %v6684, %v6691
    %v6707 = vadd.f32 %v6685, %v6691
    %v6708 = vadd.f32 %v6686, %v6691
    %v6709 = vpack.c.bf16 %v6694, %v6693
    %v6710 = vpack.c.bf16 %v6696, %v6695
    %v6711 = vpack.c.bf16 %v6698, %v6697
    %v6712 = vpack.c.bf16 %v6700, %v6699
    %v6713 = vpack.c.bf16 %v6702, %v6701
    %v6714 = vpack.c.bf16 %v6704, %v6703
    %v6715 = vpack.c.bf16 %v6706, %v6705
    %v6716 = vpack.c.bf16 %v6708, %v6707
    %s6717 = scalar_lea.vmem %s9, 16
    %v6718 = vld [vmem:[%s6717] sm:$0xf]
    %v6719 = vld [vmem:[%s6717 + $0x4] sm:$0xf]
    %v6720 = vld [vmem:[%s6717 + $0x8] sm:$0xf]
    %v6721 = vld [vmem:[%s6717 + $0xc] sm:$0xf]
    %s6722 = scalar_lea.vmem %s10, 1
    %v6723 = vld [vmem:[%s6722] sm:$0x1]
    %v6725 = vlaneseq
    %v6726 = vshrl.u32 %v6725, 7
    %v6727 = vsub.s32 0, %v6726
    %v6728 = vrot.slane %v6723, %v6727
    %v6734 = vunpack.c.l.b16 %v6718
    %v6735 = vunpack.c.l.b16 %v6719
    %v6736 = vunpack.c.l.b16 %v6720
    %v6737 = vunpack.c.l.b16 %v6721
    %v6738 = vpack.c.b16 %v6735, %v6734
    %v6739 = vpack.c.b16 %v6737, %v6736
    %v6743 = vsel %vm77, %v6709, 0
    %v6746 = vsel %vm77, %v6710, 0
    %v6749 = vsel %vm77, %v6711, 0
    %v6752 = vsel %vm77, %v6712, 0
    %v6755 = vsel %vm77, %v6713, 0
    %v6758 = vsel %vm77, %v6714, 0
    %v6761 = vsel %vm77, %v6715, 0
    %v6764 = vsel %vm77, %v6716, 0
    %6766 = vmatprep.subr.bf16.mxu0 0
    %6767 = vmatpush1.bf16.msra.mxu0 0
    %6768 = vmatprep.subr.bf16.mxu0 0
    %6769 = vmatpush1.bf16.msra.mxu0 0
    %6770 = vmatprep.subr.bf16.mxu0 0
    %6771 = vmatpush1.bf16.msra.mxu0 0
    %6772 = vmatprep.subr.bf16.mxu0 0
    %6773 = vmatpush1.bf16.msra.mxu0 0
    %6774 = vmatprep.subr.bf16.mxu0 0
    %6775 = vmatpush1.bf16.msra.mxu0 0
    %6776 = vmatprep.subr.bf16.mxu0 0
    %6777 = vmatpush1.bf16.msra.mxu0 0
    %6778 = vmatprep.subr.bf16.mxu0 0
    %6779 = vmatpush1.bf16.msra.mxu0 %v6739
    %6780 = vmatprep.subr.bf16.mxu0 0
    %6781 = vmatpush1.bf16.msra.mxu0 %v6738
    %6782 = vmatprep.subr.bf16.mxu0 0
    %6783 = vmatpush2.bf16.msra.mxu0 0
    %6784 = vmatprep.subr.bf16.mxu0 0
    %6785 = vmatpush2.bf16.msra.mxu0 0
    %6786 = vmatprep.subr.bf16.mxu0 0
    %6787 = vmatpush2.bf16.msra.mxu0 0
    %6788 = vmatprep.subr.bf16.mxu0 0
    %6789 = vmatpush2.bf16.msra.mxu0 0
    %6790 = vmatprep.subr.bf16.mxu0 0
    %6791 = vmatpush2.bf16.msra.mxu0 0
    %6792 = vmatprep.subr.bf16.mxu0 0
    %6793 = vmatpush2.bf16.msra.mxu0 0
    %6794 = vmatprep.subr.bf16.mxu0 0
    %6795 = vmatpush2.bf16.msra.mxu0 0
    %6796 = vmatprep.subr.bf16.mxu0 0
    %6797 = vmatpush2.bf16.msra.mxu0 0
    %6798 = vmatprep.mubr.bf16.mxu0 0
    %6799 = vmatmul.mubr.bf16.gmra.mxu0 %v6743
    %v6800 = vpop.f32.mrf.mxu0
    %v6801 = vadd.f32 %v6728, %v6800
    %v6802 = vpop.f32.mrf.mxu0
    %v6803 = vpop.f32.mrf.mxu0
    %v6804 = vadd.f32 %v6728, %v6803
    %v6805 = vpop.f32.mrf.mxu0
    %6806 = vmatprep.mubr.bf16.mxu0 0
    %6807 = vmatmul.mubr.bf16.gmra.mxu0 %v6746
    %v6808 = vpop.f32.mrf.mxu0
    %v6809 = vadd.f32 %v6728, %v6808
    %v6810 = vpop.f32.mrf.mxu0
    %v6811 = vpop.f32.mrf.mxu0
    %v6812 = vadd.f32 %v6728, %v6811
    %v6813 = vpop.f32.mrf.mxu0
    %6814 = vmatprep.mubr.bf16.mxu0 0
    %6815 = vmatmul.mubr.bf16.gmra.mxu0 %v6749
    %v6816 = vpop.f32.mrf.mxu0
    %v6817 = vadd.f32 %v6728, %v6816
    %v6818 = vpop.f32.mrf.mxu0
    %v6819 = vpop.f32.mrf.mxu0
    %v6820 = vadd.f32 %v6728, %v6819
    %v6821 = vpop.f32.mrf.mxu0
    %6822 = vmatprep.mubr.bf16.mxu0 0
    %6823 = vmatmul.mubr.bf16.gmra.mxu0 %v6752
    %v6824 = vpop.f32.mrf.mxu0
    %v6825 = vadd.f32 %v6728, %v6824
    %v6826 = vpop.f32.mrf.mxu0
    %v6827 = vpop.f32.mrf.mxu0
    %v6828 = vadd.f32 %v6728, %v6827
    %v6829 = vpop.f32.mrf.mxu0
    %6830 = vmatprep.mubr.bf16.mxu0 0
    %6831 = vmatmul.mubr.bf16.gmra.mxu0 %v6755
    %v6832 = vpop.f32.mrf.mxu0
    %v6833 = vadd.f32 %v6728, %v6832
    %v6834 = vpop.f32.mrf.mxu0
    %v6835 = vpop.f32.mrf.mxu0
    %v6836 = vadd.f32 %v6728, %v6835
    %v6837 = vpop.f32.mrf.mxu0
    %6838 = vmatprep.mubr.bf16.mxu0 0
    %6839 = vmatmul.mubr.bf16.gmra.mxu0 %v6758
    %v6840 = vpop.f32.mrf.mxu0
    %v6841 = vadd.f32 %v6728, %v6840
    %v6842 = vpop.f32.mrf.mxu0
    %v6843 = vpop.f32.mrf.mxu0
    %v6844 = vadd.f32 %v6728, %v6843
    %v6845 = vpop.f32.mrf.mxu0
    %6846 = vmatprep.mubr.bf16.mxu0 0
    %6847 = vmatmul.mubr.bf16.gmra.mxu0 %v6761
    %v6848 = vpop.f32.mrf.mxu0
    %v6849 = vadd.f32 %v6728, %v6848
    %v6850 = vpop.f32.mrf.mxu0
    %v6851 = vpop.f32.mrf.mxu0
    %v6852 = vadd.f32 %v6728, %v6851
    %v6853 = vpop.f32.mrf.mxu0
    %6854 = vmatprep.mubr.bf16.mxu0 0
    %6855 = vmatmul.mubr.bf16.gmra.mxu0 %v6764
    %v6856 = vpop.f32.mrf.mxu0
    %v6857 = vadd.f32 %v6728, %v6856
    %v6858 = vpop.f32.mrf.mxu0
    %v6859 = vpop.f32.mrf.mxu0
    %v6860 = vadd.f32 %v6728, %v6859
    %v6861 = vpop.f32.mrf.mxu0
    %6862 = vdwg.mxu0
    %v6863 = vmul.f32 %v6801, 0.5
    %v6864 = vmul.f32 %v6804, 0.5
    %v6865 = vmul.f32 %v6809, 0.5
    %v6866 = vmul.f32 %v6812, 0.5
    %v6867 = vmul.f32 %v6817, 0.5
    %v6868 = vmul.f32 %v6820, 0.5
    %v6869 = vmul.f32 %v6825, 0.5
    %v6870 = vmul.f32 %v6828, 0.5
    %v6871 = vmul.f32 %v6833, 0.5
    %v6872 = vmul.f32 %v6836, 0.5
    %v6873 = vmul.f32 %v6841, 0.5
    %v6874 = vmul.f32 %v6844, 0.5
    %v6875 = vmul.f32 %v6849, 0.5
    %v6876 = vmul.f32 %v6852, 0.5
    %v6877 = vmul.f32 %v6857, 0.5
    %v6878 = vmul.f32 %v6860, 0.5
    %v6879 = vmul.f32 %v6801, 0.70710677
    %v6880 = vmul.f32 %v6804, 0.70710677
    %v6881 = vmul.f32 %v6809, 0.70710677
    %v6882 = vmul.f32 %v6812, 0.70710677
    %v6883 = vmul.f32 %v6817, 0.70710677
    %v6884 = vmul.f32 %v6820, 0.70710677
    %v6885 = vmul.f32 %v6825, 0.70710677
    %v6886 = vmul.f32 %v6828, 0.70710677
    %v6887 = vmul.f32 %v6833, 0.70710677
    %v6888 = vmul.f32 %v6836, 0.70710677
    %v6889 = vmul.f32 %v6841, 0.70710677
    %v6890 = vmul.f32 %v6844, 0.70710677
    %v6891 = vmul.f32 %v6849, 0.70710677
    %v6892 = vmul.f32 %v6852, 0.70710677
    %v6893 = vmul.f32 %v6857, 0.70710677
    %v6894 = vmul.f32 %v6860, 0.70710677
    %v6895 = verf.f32.pop %v6879
    %v6896 = verf.f32.pop %v6880
    %v6897 = verf.f32.pop %v6881
    %v6898 = verf.f32.pop %v6882
    %v6899 = verf.f32.pop %v6883
    %v6900 = verf.f32.pop %v6884
    %v6901 = verf.f32.pop %v6885
    %v6902 = verf.f32.pop %v6886
    %v6903 = verf.f32.pop %v6887
    %v6904 = verf.f32.pop %v6888
    %v6905 = verf.f32.pop %v6889
    %v6906 = verf.f32.pop %v6890
    %v6907 = verf.f32.pop %v6891
    %v6908 = verf.f32.pop %v6892
    %v6909 = verf.f32.pop %v6893
    %v6910 = verf.f32.pop %v6894
    %v6911 = vadd.f32 %v6895, 1.0
    %v6912 = vadd.f32 %v6896, 1.0
    %v6913 = vadd.f32 %v6897, 1.0
    %v6914 = vadd.f32 %v6898, 1.0
    %v6915 = vadd.f32 %v6899, 1.0
    %v6916 = vadd.f32 %v6900, 1.0
    %v6917 = vadd.f32 %v6901, 1.0
    %v6918 = vadd.f32 %v6902, 1.0
    %v6919 = vadd.f32 %v6903, 1.0
    %v6920 = vadd.f32 %v6904, 1.0
    %v6921 = vadd.f32 %v6905, 1.0
    %v6922 = vadd.f32 %v6906, 1.0
    %v6923 = vadd.f32 %v6907, 1.0
    %v6924 = vadd.f32 %v6908, 1.0
    %v6925 = vadd.f32 %v6909, 1.0
    %v6926 = vadd.f32 %v6910, 1.0
    %v6927 = vmul.f32 %v6863, %v6911
    %v6928 = vmul.f32 %v6864, %v6912
    %v6929 = vmul.f32 %v6865, %v6913
    %v6930 = vmul.f32 %v6866, %v6914
    %v6931 = vmul.f32 %v6867, %v6915
    %v6932 = vmul.f32 %v6868, %v6916
    %v6933 = vmul.f32 %v6869, %v6917
    %v6934 = vmul.f32 %v6870, %v6918
    %v6935 = vmul.f32 %v6871, %v6919
    %v6936 = vmul.f32 %v6872, %v6920
    %v6937 = vmul.f32 %v6873, %v6921
    %v6938 = vmul.f32 %v6874, %v6922
    %v6939 = vmul.f32 %v6875, %v6923
    %v6940 = vmul.f32 %v6876, %v6924
    %v6941 = vmul.f32 %v6877, %v6925
    %v6942 = vmul.f32 %v6878, %v6926
    %v6943 = vpack.c.bf16 %v6928, %v6927
    %v6944 = vpack.c.bf16 %v6930, %v6929
    %v6945 = vpack.c.bf16 %v6932, %v6931
    %v6946 = vpack.c.bf16 %v6934, %v6933
    %v6947 = vpack.c.bf16 %v6936, %v6935
    %v6948 = vpack.c.bf16 %v6938, %v6937
    %v6949 = vpack.c.bf16 %v6940, %v6939
    %v6950 = vpack.c.bf16 %v6942, %v6941
    %s6951 = scalar_lea.vmem %s11, 64
    %v6952 = vld [vmem:[%s6951] sm:$0xf]
    %v6953 = vld [vmem:[%s6951 + $0x4] sm:$0xf]
    %v6954 = vld [vmem:[%s6951 + $0x8] sm:$0xf]
    %v6955 = vld [vmem:[%s6951 + $0xc] sm:$0xf]
    %v6956 = vld [vmem:[%s6951 + $0x10] sm:$0xf]
    %v6957 = vld [vmem:[%s6951 + $0x14] sm:$0xf]
    %v6958 = vld [vmem:[%s6951 + $0x18] sm:$0xf]
    %v6959 = vld [vmem:[%s6951 + $0x1c] sm:$0xf]
    %v6960 = vld [vmem:[%s6951 + $0x20] sm:$0xf]
    %v6961 = vld [vmem:[%s6951 + $0x24] sm:$0xf]
    %v6962 = vld [vmem:[%s6951 + $0x28] sm:$0xf]
    %v6963 = vld [vmem:[%s6951 + $0x2c] sm:$0xf]
    %v6964 = vld [vmem:[%s6951 + $0x30] sm:$0xf]
    %v6965 = vld [vmem:[%s6951 + $0x34] sm:$0xf]
    %v6966 = vld [vmem:[%s6951 + $0x38] sm:$0xf]
    %v6967 = vld [vmem:[%s6951 + $0x3c] sm:$0xf]
    %v6984 = vunpack.c.l.b16 %v6952
    %v6985 = vunpack.c.l.b16 %v6953
    %v6986 = vunpack.c.l.b16 %v6954
    %v6987 = vunpack.c.l.b16 %v6955
    %v6988 = vunpack.c.l.b16 %v6956
    %v6989 = vunpack.c.l.b16 %v6957
    %v6990 = vunpack.c.l.b16 %v6958
    %v6991 = vunpack.c.l.b16 %v6959
    %v6992 = vunpack.c.l.b16 %v6960
    %v6993 = vunpack.c.l.b16 %v6961
    %v6994 = vunpack.c.l.b16 %v6962
    %v6995 = vunpack.c.l.b16 %v6963
    %v6996 = vunpack.c.l.b16 %v6964
    %v6997 = vunpack.c.l.b16 %v6965
    %v6998 = vunpack.c.l.b16 %v6966
    %v6999 = vunpack.c.l.b16 %v6967
    %v7000 = vpack.c.b16 %v6985, %v6984
    %v7001 = vpack.c.b16 %v6987, %v6986
    %v7002 = vpack.c.b16 %v6989, %v6988
    %v7003 = vpack.c.b16 %v6991, %v6990
    %v7004 = vpack.c.b16 %v6993, %v6992
    %v7005 = vpack.c.b16 %v6995, %v6994
    %v7006 = vpack.c.b16 %v6997, %v6996
    %v7007 = vpack.c.b16 %v6999, %v6998
    %7016 = vmatprep.subr.bf16.mxu0 0
    %7017 = vmatpush1.bf16.msra.mxu0 %v7007
    %7018 = vmatprep.subr.bf16.mxu0 0
    %7019 = vmatpush1.bf16.msra.mxu0 %v7006
    %7020 = vmatprep.subr.bf16.mxu0 0
    %7021 = vmatpush1.bf16.msra.mxu0 %v7005
    %7022 = vmatprep.subr.bf16.mxu0 0
    %7023 = vmatpush1.bf16.msra.mxu0 %v7004
    %7024 = vmatprep.subr.bf16.mxu0 0
    %7025 = vmatpush1.bf16.msra.mxu0 %v7003
    %7026 = vmatprep.subr.bf16.mxu0 0
    %7027 = vmatpush1.bf16.msra.mxu0 %v7002
    %7028 = vmatprep.subr.bf16.mxu0 0
    %7029 = vmatpush1.bf16.msra.mxu0 %v7001
    %7030 = vmatprep.subr.bf16.mxu0 0
    %7031 = vmatpush1.bf16.msra.mxu0 %v7000
    %7032 = vmatprep.subr.bf16.mxu0 0
    %7033 = vmatpush2.bf16.msra.mxu0 0
    %7034 = vmatprep.subr.bf16.mxu0 0
    %7035 = vmatpush2.bf16.msra.mxu0 0
    %7036 = vmatprep.subr.bf16.mxu0 0
    %7037 = vmatpush2.bf16.msra.mxu0 0
    %7038 = vmatprep.subr.bf16.mxu0 0
    %7039 = vmatpush2.bf16.msra.mxu0 0
    %7040 = vmatprep.subr.bf16.mxu0 0
    %7041 = vmatpush2.bf16.msra.mxu0 0
    %7042 = vmatprep.subr.bf16.mxu0 0
    %7043 = vmatpush2.bf16.msra.mxu0 0
    %7044 = vmatprep.subr.bf16.mxu0 0
    %7045 = vmatpush2.bf16.msra.mxu0 0
    %7046 = vmatprep.subr.bf16.mxu0 0
    %7047 = vmatpush2.bf16.msra.mxu0 0
    %7048 = vmatprep.mubr.bf16.mxu0 0
    %7049 = vmatmul.mubr.bf16.gmra.mxu0 %v6943
    %v7050 = vpop.f32.mrf.mxu0
    %v7051 = vadd.f32 0.0, %v7050
    %v7052 = vpop.f32.mrf.mxu0
    %v7053 = vpop.f32.mrf.mxu0
    %v7054 = vadd.f32 0.0, %v7053
    %v7055 = vpop.f32.mrf.mxu0
    %7056 = vmatprep.mubr.bf16.mxu0 0
    %7057 = vmatmul.mubr.bf16.gmra.mxu0 %v6944
    %v7058 = vpop.f32.mrf.mxu0
    %v7059 = vadd.f32 0.0, %v7058
    %v7060 = vpop.f32.mrf.mxu0
    %v7061 = vpop.f32.mrf.mxu0
    %v7062 = vadd.f32 0.0, %v7061
    %v7063 = vpop.f32.mrf.mxu0
    %7064 = vmatprep.mubr.bf16.mxu0 0
    %7065 = vmatmul.mubr.bf16.gmra.mxu0 %v6945
    %v7066 = vpop.f32.mrf.mxu0
    %v7067 = vadd.f32 0.0, %v7066
    %v7068 = vpop.f32.mrf.mxu0
    %v7069 = vpop.f32.mrf.mxu0
    %v7070 = vadd.f32 0.0, %v7069
    %v7071 = vpop.f32.mrf.mxu0
    %7072 = vmatprep.mubr.bf16.mxu0 0
    %7073 = vmatmul.mubr.bf16.gmra.mxu0 %v6946
    %v7074 = vpop.f32.mrf.mxu0
    %v7075 = vadd.f32 0.0, %v7074
    %v7076 = vpop.f32.mrf.mxu0
    %v7077 = vpop.f32.mrf.mxu0
    %v7078 = vadd.f32 0.0, %v7077
    %v7079 = vpop.f32.mrf.mxu0
    %7080 = vmatprep.mubr.bf16.mxu0 0
    %7081 = vmatmul.mubr.bf16.gmra.mxu0 %v6947
    %v7082 = vpop.f32.mrf.mxu0
    %v7083 = vadd.f32 0.0, %v7082
    %v7084 = vpop.f32.mrf.mxu0
    %v7085 = vpop.f32.mrf.mxu0
    %v7086 = vadd.f32 0.0, %v7085
    %v7087 = vpop.f32.mrf.mxu0
    %7088 = vmatprep.mubr.bf16.mxu0 0
    %7089 = vmatmul.mubr.bf16.gmra.mxu0 %v6948
    %v7090 = vpop.f32.mrf.mxu0
    %v7091 = vadd.f32 0.0, %v7090
    %v7092 = vpop.f32.mrf.mxu0
    %v7093 = vpop.f32.mrf.mxu0
    %v7094 = vadd.f32 0.0, %v7093
    %v7095 = vpop.f32.mrf.mxu0
    %7096 = vmatprep.mubr.bf16.mxu0 0
    %7097 = vmatmul.mubr.bf16.gmra.mxu0 %v6949
    %v7098 = vpop.f32.mrf.mxu0
    %v7099 = vadd.f32 0.0, %v7098
    %v7100 = vpop.f32.mrf.mxu0
    %v7101 = vpop.f32.mrf.mxu0
    %v7102 = vadd.f32 0.0, %v7101
    %v7103 = vpop.f32.mrf.mxu0
    %7104 = vmatprep.mubr.bf16.mxu0 0
    %7105 = vmatmul.mubr.bf16.gmra.mxu0 %v6950
    %v7106 = vpop.f32.mrf.mxu0
    %v7107 = vadd.f32 0.0, %v7106
    %v7108 = vpop.f32.mrf.mxu0
    %v7109 = vpop.f32.mrf.mxu0
    %v7110 = vadd.f32 0.0, %v7109
    %v7111 = vpop.f32.mrf.mxu0
    %7112 = vdwg.mxu0
    %v7113 = vadd.f32 %v6437, %v7051
    %v7114 = vadd.f32 %v6438, %v7054
    %v7115 = vadd.f32 %v6439, %v7059
    %v7116 = vadd.f32 %v6440, %v7062
    %v7117 = vadd.f32 %v6441, %v7067
    %v7118 = vadd.f32 %v6442, %v7070
    %v7119 = vadd.f32 %v6443, %v7075
    %v7120 = vadd.f32 %v6444, %v7078
    %v7121 = vadd.f32 %v6445, %v7083
    %v7122 = vadd.f32 %v6446, %v7086
    %v7123 = vadd.f32 %v6447, %v7091
    %v7124 = vadd.f32 %v6448, %v7094
    %v7125 = vadd.f32 %v6449, %v7099
    %v7126 = vadd.f32 %v6450, %v7102
    %v7127 = vadd.f32 %v6451, %v7107
    %v7128 = vadd.f32 %v6452, %v7110
    %s7129 = scalar_lea.vmem %s12, 1
    %v7130 = vld [vmem:[%s7129] sm:$0x1]
    %v7132 = vlaneseq
    %v7133 = vshrl.u32 %v7132, 7
    %v7134 = vsub.s32 0, %v7133
    %v7135 = vrot.slane %v7130, %v7134
    %v7137 = vadd.f32 %v7113, %v7135
    %v7138 = vadd.f32 %v7114, %v7135
    %v7139 = vadd.f32 %v7115, %v7135
    %v7140 = vadd.f32 %v7116, %v7135
    %v7141 = vadd.f32 %v7117, %v7135
    %v7142 = vadd.f32 %v7118, %v7135
    %v7143 = vadd.f32 %v7119, %v7135
    %v7144 = vadd.f32 %v7120, %v7135
    %v7145 = vadd.f32 %v7121, %v7135
    %v7146 = vadd.f32 %v7122, %v7135
    %v7147 = vadd.f32 %v7123, %v7135
    %v7148 = vadd.f32 %v7124, %v7135
    %v7149 = vadd.f32 %v7125, %v7135
    %v7150 = vadd.f32 %v7126, %v7135
    %v7151 = vadd.f32 %v7127, %v7135
    %v7152 = vadd.f32 %v7128, %v7135
    %7153 = vst.msk [vmem:[%s13] sm:$0xff] %vm77, %v7137
    %7154 = vst.msk [vmem:[%s13 + $0x8] sm:$0xff] %vm77, %v7138
    %7155 = vst.msk [vmem:[%s13 + $0x10] sm:$0xff] %vm77, %v7139
    %7156 = vst.msk [vmem:[%s13 + $0x18] sm:$0xff] %vm77, %v7140
    %7157 = vst.msk [vmem:[%s13 + $0x20] sm:$0xff] %vm77, %v7141
    %7158 = vst.msk [vmem:[%s13 + $0x28] sm:$0xff] %vm77, %v7142
    %7159 = vst.msk [vmem:[%s13 + $0x30] sm:$0xff] %vm77, %v7143
    %7160 = vst.msk [vmem:[%s13 + $0x38] sm:$0xff] %vm77, %v7144
    %7161 = vst.msk [vmem:[%s13 + $0x40] sm:$0xff] %vm77, %v7145
    %7162 = vst.msk [vmem:[%s13 + $0x48] sm:$0xff] %vm77, %v7146
    %7163 = vst.msk [vmem:[%s13 + $0x50] sm:$0xff] %vm77, %v7147
    %7164 = vst.msk [vmem:[%s13 + $0x58] sm:$0xff] %vm77, %v7148
    %7165 = vst.msk [vmem:[%s13 + $0x60] sm:$0xff] %vm77, %v7149
    %7166 = vst.msk [vmem:[%s13 + $0x68] sm:$0xff] %vm77, %v7150
    %7167 = vst.msk [vmem:[%s13 + $0x70] sm:$0xff] %vm77, %v7151
    %7168 = vst.msk [vmem:[%s13 + $0x78] sm:$0xff] %vm77, %v7152
    // Predicated region
    $region58: #{basic_layer_pallas.1} parent=1 // pred_check
      _
    $region59: #{basic_layer_pallas.1} parent=1 // pred_check_branch
      %7170 = sbr.rel (0) target = $region61
    $region60: #{basic_layer_pallas.1} parent=1 // pred_region
      _
    $region61: #{basic_layer_pallas.1} parent=1 // pred_fallthru
      _
    // Predicated region
    $region62: #{basic_layer_pallas.1} parent=1 // pred_check
      _
    $region63: #{basic_layer_pallas.1} parent=1 // pred_check_branch
      %7172 = sbr.rel (0) target = $region65
    $region64: #{basic_layer_pallas.1} parent=1 // pred_region
      _
    $region65: #{basic_layer_pallas.1} parent=1 // pred_fallthru
      _
    %7173 = vsyncpa [#allocation3], 1

</llo_original>
